<compile_context>
chip_gen: v5e
topology: v5e:2x2
jax: 0.10.0
libtpu: 0.0.40
codegen_flags: <defaults>
</compile_context>

<pallas_src>
import math

import jax
import jax.numpy as jnp
from jax.experimental import pallas as pl
from jax.experimental.pallas import tpu as pltpu

# ----------------------------- synthetic config -----------------------------
VOCAB = 100
EMB = 128            # MobileBERT embedding_size
HIDDEN = 512         # MobileBERT hidden_size (classifier input is 512)
BOTTLENECK = 128     # intra_bottleneck_size (true hidden size)
NUM_HEADS = 4
HEAD_DIM = BOTTLENECK // NUM_HEADS
INTER = 512          # intermediate_size
NUM_FFN = 4          # num_feedforward_networks
NUM_LAYERS = 2       # real model has 24; kept small for the demo
MAX_POS = 64
TYPE_VOCAB = 2
NUM_LABELS = 17
CLS_PAD = 128        # classifier output padded to a full lane width
BATCH = 2
SEQ = 8

# Row-block parallel axis: 1 for the tiny demo (max M per matmul). Set to 2 on
# v7x at production batch sizes to feed both TensorCores (each core then
# streams its own weight copy, absorbed by 3.2 TB/s HBM).
ROW_BLOCKS = 1
B_PER_BLOCK = BATCH // ROW_BLOCKS
MBLK = B_PER_BLOCK * SEQ           # token rows per grid row-block
M_TOTAL = BATCH * SEQ

# rows of the packed per-layer (NVEC, HIDDEN) f32 vector slab
VEC_BS, VEC_BB, VEC_QKB, VEC_AOS, VEC_AOB = 0, 1, 2, 3, 4
VEC_FIB = 5
VEC_FOS = 5 + NUM_FFN
VEC_FOB = 5 + 2 * NUM_FFN
VEC_OBS = 5 + 3 * NUM_FFN
VEC_OBB = 6 + 3 * NUM_FFN
NVEC = 7 + 3 * NUM_FFN             # = 19

# rows of the packed global (NMISC, HIDDEN) f32 vector slab
MISC_EMB_SCALE, MISC_EMB_BETA, MISC_POOL_B, MISC_CLS_B, MISC_LABEL_MASK = range(5)
NMISC = 5


# ------------------------------ kernel helpers -------------------------------
def _gelu(x):
    # TODO(synk): PyTorch 'gelu' is the exact erf form; tanh approximation is
    # used because erf lowering on Mosaic is not guaranteed.
    c = math.sqrt(2.0 / math.pi)
    return 0.5 * x * (1.0 + jnp.tanh(c * (x + 0.044715 * x * x * x)))


def _mm(x, w_bf16):
    """bf16 x bf16 MXU matmul with f32 accumulation."""
    return jnp.dot(x.astype(jnp.bfloat16), w_bf16,
                   preferred_element_type=jnp.float32)


# --------------------------- fully fused forward ------------------------------
def _fused_forward_kernel(
        # per-row-block activations / labels
        tri_ref, pt_ref, mask_ref, labels_ref,
        # global weights / vectors (fetched once, constant block index)
        embw_ref, poolw_ref, clsw_ref, misc_ref,
        # per-layer weights (bf16) + one packed f32 vector slab
        bw_ref, qkw_ref, aow_ref, fiw_ref, fow_ref, obw_ref, lvec_ref,
        # outputs
        logits_ref, lossp_ref,
        # scratch (persist across the layer axis)
        h_ref, ctx_ref):
    l = pl.program_id(1)
    last = pl.num_programs(1) - 1

    # ---- embedding transform (NoNorm(tri @ W + b + pos + type)) at layer 0 ----
    @pl.when(l == 0)
    def _():
        misc = misc_ref[...]
        y = _mm(tri_ref[...], embw_ref[...]) + pt_ref[...]
        h_ref[...] = (y * misc[MISC_EMB_SCALE:MISC_EMB_SCALE + 1, :]
                      + misc[MISC_EMB_BETA:MISC_EMB_BETA + 1, :])
        # TODO(synk): dropout layers are identity (inference / eval mode).

    hidden = h_ref[...]                      # (MBLK, HIDDEN) f32, layer-resident
    vec = lvec_ref[0]                        # (NVEC, HIDDEN) packed scale/bias rows
    bias = mask_ref[0]                       # (MBLK, MBLK) additive attention mask

    # --- bottleneck projections (one matmul): [layer_input | shared_qk | value]
    proj = (_mm(hidden, bw_ref[0]) * vec[VEC_BS:VEC_BS + 1, :3 * BOTTLENECK]
            + vec[VEC_BB:VEC_BB + 1, :3 * BOTTLENECK])           # (MBLK, 384)
    layer_input = proj[:, :BOTTLENECK]
    shared_qk = proj[:, BOTTLENECK:2 * BOTTLENECK]
    value = proj[:, 2 * BOTTLENECK:]

    # --- q/k from the shared bottleneck (one matmul, N=256 for the 256-wide MXU)
    qk = _mm(shared_qk, qkw_ref[0]) + vec[VEC_QKB:VEC_QKB + 1, :2 * BOTTLENECK]
    q = qk[:, :BOTTLENECK]
    k = qk[:, BOTTLENECK:]

    # --- multi-head self-attention over all B*S rows at once; per-head context
    #     is written directly into VMEM scratch (no lane concatenate).
    scale = 1.0 / math.sqrt(HEAD_DIM)
    for h in range(NUM_HEADS):
        sl = slice(h * HEAD_DIM, (h + 1) * HEAD_DIM)
        qh, kh, vh = q[:, sl], k[:, sl], value[:, sl]
        s = jax.lax.dot_general(
            qh, kh, (((1,), (1,)), ((), ())),
            preferred_element_type=jnp.float32) * scale + bias   # (MBLK, MBLK)
        m = jnp.max(s, axis=-1, keepdims=True)
        p = jnp.exp(s - m)
        p = p * pl.reciprocal(jnp.sum(p, axis=-1, keepdims=True), approx=True)
        ctx_ref[:, sl] = jnp.dot(p, vh, preferred_element_type=jnp.float32)
    ctx = ctx_ref[...]                                            # (MBLK, 128)

    # --- attention output dense + residual + NoNorm (fused epilogue)
    x = ((_mm(ctx, aow_ref[0]) + layer_input)
         * vec[VEC_AOS:VEC_AOS + 1, :BOTTLENECK]
         + vec[VEC_AOB:VEC_AOB + 1, :BOTTLENECK])

    # --- stacked FFNs: 3 extra FFNs + main intermediate/output, residual NoNorm
    # TODO(synk): at production M, switch to lax.fori_loop(..., unroll=True) to
    # bound vreg live ranges; at MBLK=16 the static unroll is spill-free.
    for f in range(NUM_FFN):
        inter = _gelu(_mm(x, fiw_ref[0, f]) + vec[VEC_FIB + f:VEC_FIB + f + 1, :])
        x = ((_mm(inter, fow_ref[0, f]) + x)
             * vec[VEC_FOS + f:VEC_FOS + f + 1, :BOTTLENECK]
             + vec[VEC_FOB + f:VEC_FOB + f + 1, :BOTTLENECK])

    # --- output bottleneck back to HIDDEN + residual with layer-input hidden
    h_new = ((_mm(x, obw_ref[0]) + hidden)
             * vec[VEC_OBS:VEC_OBS + 1, :] + vec[VEC_OBB:VEC_OBB + 1, :])
    h_ref[...] = h_new

    # ---- pooler + classifier + BCE elementwise at the last layer step ----
    @pl.when(l == last)
    def _():
        misc = misc_ref[...]
        # select first-token rows (0, SEQ, 2*SEQ, ...) via a tiny selection matmul
        rows = jax.lax.broadcasted_iota(jnp.int32, (B_PER_BLOCK, MBLK), 0)
        cols = jax.lax.broadcasted_iota(jnp.int32, (B_PER_BLOCK, MBLK), 1)
        sel = (cols == rows * SEQ).astype(jnp.float32)
        first = jnp.dot(sel, h_new, preferred_element_type=jnp.float32)
        pooled = jnp.tanh(_mm(first, poolw_ref[...])
                          + misc[MISC_POOL_B:MISC_POOL_B + 1, :])
        logits = _mm(pooled, clsw_ref[...]) + misc[MISC_CLS_B:MISC_CLS_B + 1, :CLS_PAD]
        logits_ref[...] = logits
        # BCEWithLogits, padded label columns masked to zero contribution
        y = labels_ref[...]
        per = (jnp.maximum(logits, 0.0) - logits * y
               + jnp.log1p(jnp.exp(-jnp.abs(logits))))
        per = per * misc[MISC_LABEL_MASK:MISC_LABEL_MASK + 1, :CLS_PAD]
        lossp_ref[...] = jnp.sum(per, axis=0, keepdims=True)     # (1, CLS_PAD)


def mobilebert_forward_call(tri, pos_type, mask, labels_pad, pp):
    enc = pp["enc"]
    grid = (ROW_BLOCKS, NUM_LAYERS)

    def full2(shape):
        return pl.BlockSpec(shape, lambda rb, l: (0, 0))

    in_specs = [
        pl.BlockSpec((MBLK, 3 * EMB), lambda rb, l: (rb, 0)),            # tri
        pl.BlockSpec((MBLK, HIDDEN), lambda rb, l: (rb, 0)),             # pos_type
        pl.BlockSpec((1, MBLK, MBLK), lambda rb, l: (rb, 0, 0)),         # mask
        pl.BlockSpec((B_PER_BLOCK, CLS_PAD), lambda rb, l: (rb, 0)),     # labels
        full2((3 * EMB, HIDDEN)),                                        # emb_w
        full2((HIDDEN, HIDDEN)),                                         # pool_w
        full2((HIDDEN, CLS_PAD)),                                        # cls_w
        full2((NMISC, HIDDEN)),                                          # misc vec
        pl.BlockSpec((1, HIDDEN, 3 * BOTTLENECK), lambda rb, l: (l, 0, 0)),       # bw
        pl.BlockSpec((1, BOTTLENECK, 2 * BOTTLENECK), lambda rb, l: (l, 0, 0)),   # qkw
        pl.BlockSpec((1, BOTTLENECK, BOTTLENECK), lambda rb, l: (l, 0, 0)),       # aow
        pl.BlockSpec((1, NUM_FFN, BOTTLENECK, INTER), lambda rb, l: (l, 0, 0, 0)),  # fiw
        pl.BlockSpec((1, NUM_FFN, INTER, BOTTLENECK), lambda rb, l: (l, 0, 0, 0)),  # fow
        pl.BlockSpec((1, BOTTLENECK, HIDDEN), lambda rb, l: (l, 0, 0)),  # obw
        pl.BlockSpec((1, NVEC, HIDDEN), lambda rb, l: (l, 0, 0)),        # lvec
    ]
    out_specs = (
        pl.BlockSpec((B_PER_BLOCK, CLS_PAD), lambda rb, l: (rb, 0)),     # logits
        pl.BlockSpec((1, CLS_PAD), lambda rb, l: (rb, 0)),               # loss parts
    )
    out_shape = (
        jax.ShapeDtypeStruct((BATCH, CLS_PAD), jnp.float32),
        jax.ShapeDtypeStruct((ROW_BLOCKS, CLS_PAD), jnp.float32),
    )
    return pl.pallas_call(
        _fused_forward_kernel,
        grid=grid,
        in_specs=in_specs,
        out_specs=out_specs,
        out_shape=out_shape,
        scratch_shapes=[
            pltpu.VMEM((MBLK, HIDDEN), jnp.float32),       # resident hidden state
            pltpu.VMEM((MBLK, BOTTLENECK), jnp.float32),   # attention context
        ],
        compiler_params=pltpu.CompilerParams(
            dimension_semantics=("parallel", "arbitrary")),
    )(tri, pos_type, mask, labels_pad,
      pp["emb_w"], pp["pool_w"], pp["cls_w"], pp["misc"],
      enc["bw"], enc["qkw"], enc["aow"], enc["fiw"], enc["fow"], enc["obw"],
      enc["lvec"])


# ------------------------------ parameter init --------------------------------
def init_params(key):
    ks = iter(jax.random.split(key, 1024))

    def w(shape, std=0.02):
        return (std * jax.random.normal(next(ks), shape)).astype(jnp.float32)

    def zeros(shape):
        return jnp.zeros(shape, jnp.float32)

    def ones(shape):
        return jnp.ones(shape, jnp.float32)

    p = {
        "word_emb": w((VOCAB, EMB)),
        "pos_emb": w((MAX_POS, HIDDEN)),
        "type_emb": w((TYPE_VOCAB, HIDDEN)),
        "emb_tr_w": w((3 * EMB, HIDDEN)), "emb_tr_b": zeros((HIDDEN,)),
        "emb_nw": ones((HIDDEN,)), "emb_nb": zeros((HIDDEN,)),
        "pool_w": w((HIDDEN, HIDDEN)), "pool_b": zeros((HIDDEN,)),
        "cls_w": w((HIDDEN, NUM_LABELS)), "cls_b": zeros((NUM_LABELS,)),
    }
    layers = []
    for _ in range(NUM_LAYERS):
        lp = {
            "bot_in_w": w((HIDDEN, BOTTLENECK)), "bot_in_b": zeros((BOTTLENECK,)),
            "bot_in_nw": ones((BOTTLENECK,)), "bot_in_nb": zeros((BOTTLENECK,)),
            "bot_att_w": w((HIDDEN, BOTTLENECK)), "bot_att_b": zeros((BOTTLENECK,)),
            "bot_att_nw": ones((BOTTLENECK,)), "bot_att_nb": zeros((BOTTLENECK,)),
            "q_w": w((BOTTLENECK, BOTTLENECK)), "q_b": zeros((BOTTLENECK,)),
            "k_w": w((BOTTLENECK, BOTTLENECK)), "k_b": zeros((BOTTLENECK,)),
            "v_w": w((HIDDEN, BOTTLENECK)), "v_b": zeros((BOTTLENECK,)),
            "ao_w": w((BOTTLENECK, BOTTLENECK)), "ao_b": zeros((BOTTLENECK,)),
            "ao_nw": ones((BOTTLENECK,)), "ao_nb": zeros((BOTTLENECK,)),
            "int_w": w((BOTTLENECK, INTER)), "int_b": zeros((INTER,)),
            "out_w": w((INTER, BOTTLENECK)), "out_b": zeros((BOTTLENECK,)),
            "out_nw": ones((BOTTLENECK,)), "out_nb": zeros((BOTTLENECK,)),
            "obot_w": w((BOTTLENECK, HIDDEN)), "obot_b": zeros((HIDDEN,)),
            "obot_nw": ones((HIDDEN,)), "obot_nb": zeros((HIDDEN,)),
            "ffns": [],
        }
        for _ in range(NUM_FFN - 1):
            lp["ffns"].append({
                "iw": w((BOTTLENECK, INTER)), "ib": zeros((INTER,)),
                "ow": w((INTER, BOTTLENECK)), "ob": zeros((BOTTLENECK,)),
                "nw": ones((BOTTLENECK,)), "nb": zeros((BOTTLENECK,)),
            })
        layers.append(lp)
    p["layers"] = layers
    return p


def pack_params(p):
    """Fold NoNorm(scale,bias)+linear bias into (scale, beta), concatenate
    parallel projections, pack all small per-layer vectors into one slab per
    layer, stack layers, cast weights to bf16."""
    bf = lambda x: x.astype(jnp.bfloat16)

    def row(x):
        x = x.reshape(-1)
        return jnp.pad(x, (0, HIDDEN - x.shape[0])).reshape(1, HIDDEN)

    def fold(b, nw, nb):
        # (x + b) * nw + nb == x * nw + (b * nw + nb)
        return b * nw + nb

    enc = {k: [] for k in ["bw", "qkw", "aow", "fiw", "fow", "obw", "lvec"]}
    for lp in p["layers"]:
        # [bottleneck_in | bottleneck_attn | value] share input `hidden`
        enc["bw"].append(bf(jnp.concatenate(
            [lp["bot_in_w"], lp["bot_att_w"], lp["v_w"]], axis=1)))
        # [q | k] share input `shared_qk`
        enc["qkw"].append(bf(jnp.concatenate([lp["q_w"], lp["k_w"]], axis=1)))
        enc["aow"].append(bf(lp["ao_w"]))
        # FFN stack: the 3 extra FFNs, then the main intermediate/output FFN
        ffns = lp["ffns"] + [{"iw": lp["int_w"], "ib": lp["int_b"],
                              "ow": lp["out_w"], "ob": lp["out_b"],
                              "nw": lp["out_nw"], "nb": lp["out_nb"]}]
        enc["fiw"].append(bf(jnp.stack([f["iw"] for f in ffns])))
        enc["fow"].append(bf(jnp.stack([f["ow"] for f in ffns])))
        enc["obw"].append(bf(lp["obot_w"]))

        # one (NVEC, HIDDEN) f32 slab with all scale/beta/bias rows of the layer
        bs = jnp.concatenate([lp["bot_in_nw"], lp["bot_att_nw"],
                              jnp.ones_like(lp["v_b"])])
        bb = jnp.concatenate(
            [fold(lp["bot_in_b"], lp["bot_in_nw"], lp["bot_in_nb"]),
             fold(lp["bot_att_b"], lp["bot_att_nw"], lp["bot_att_nb"]),
             lp["v_b"]])
        qkb = jnp.concatenate([lp["q_b"], lp["k_b"]])
        rows = [row(bs), row(bb), row(qkb), row(lp["ao_nw"]),
                row(fold(lp["ao_b"], lp["ao_nw"], lp["ao_nb"]))]
        rows += [row(f["ib"]) for f in ffns]
        rows += [row(f["nw"]) for f in ffns]
        rows += [row(fold(f["ob"], f["nw"], f["nb"])) for f in ffns]
        rows += [row(lp["obot_nw"]),
                 row(fold(lp["obot_b"], lp["obot_nw"], lp["obot_nb"]))]
        enc["lvec"].append(jnp.concatenate(rows, axis=0))        # (NVEC, 512)

    enc = {k: jnp.stack(v, axis=0) for k, v in enc.items()}

    misc = jnp.concatenate([
        row(p["emb_nw"]),
        row(fold(p["emb_tr_b"], p["emb_nw"], p["emb_nb"])),
        row(p["pool_b"]),
        row(jnp.pad(p["cls_b"], (0, CLS_PAD - NUM_LABELS))),
        row((jnp.arange(CLS_PAD) < NUM_LABELS).astype(jnp.float32)),
    ], axis=0)                                                    # (NMISC, 512)

    return {
        "word_emb": p["word_emb"],
        "pos_emb": p["pos_emb"],
        "type_emb": p["type_emb"],
        "emb_w": bf(p["emb_tr_w"]),
        "pool_w": bf(p["pool_w"]),
        "cls_w": bf(jnp.pad(p["cls_w"], ((0, 0), (0, CLS_PAD - NUM_LABELS)))),
        "misc": misc,
        "enc": enc,
    }


# --------------------------------- forward ------------------------------------
def forward(pp, input_ids, token_type_ids, attention_mask, labels):
    B, S = input_ids.shape
    M = B * S

    # ---- embeddings (table gathers / pads stay as XLA glue) ----
    e = pp["word_emb"][input_ids]                                  # (B, S, EMB)
    left = jnp.pad(e[:, 1:], ((0, 0), (0, 1), (0, 0)))
    right = jnp.pad(e[:, :-1], ((0, 0), (1, 0), (0, 0)))
    tri = jnp.concatenate([left, e, right], axis=-1).reshape(M, 3 * EMB)
    pos_type = (pp["pos_emb"][:S][None, :, :]
                + pp["type_emb"][token_type_ids]).reshape(M, HIDDEN)

    # ---- combined additive attention mask: padding + block-diagonal batch sep
    am = attention_mask.astype(jnp.float32).reshape(ROW_BLOCKS, 1, MBLK)
    key_bias = (1.0 - am) * -10000.0                               # (RB, 1, MBLK)
    bid = jnp.repeat(jnp.arange(B_PER_BLOCK), SEQ)                 # (MBLK,)
    same = (bid[:, None] == bid[None, :])[None, :, :]              # (1, MBLK, MBLK)
    mask = jnp.where(same, key_bias, -10000.0)                     # (RB, MBLK, MBLK)

    labels_pad = jnp.pad(labels.astype(jnp.float32),
                         ((0, 0), (0, CLS_PAD - NUM_LABELS)))

    # ---- one fused pallas_call: embed transform + encoder + pooler + cls + BCE
    logits_pad, loss_parts = mobilebert_forward_call(
        tri, pos_type, mask, labels_pad, pp)

    loss = jnp.sum(loss_parts) / float(BATCH * NUM_LABELS)
    return loss, logits_pad[:, :NUM_LABELS]


# ----------------------------------- main --------------------------------------
if __name__ == "__main__":
    key = jax.random.PRNGKey(0)
    pkey, ikey, lkey = jax.random.split(key, 3)

    raw_params = init_params(pkey)
    params = pack_params(raw_params)

    input_ids = jax.random.randint(ikey, (BATCH, SEQ), 0, VOCAB, dtype=jnp.int32)
    token_type_ids = jnp.zeros((BATCH, SEQ), jnp.int32)
    attention_mask = jnp.array(
        [[1.0] * SEQ, [1.0] * (SEQ - 2) + [0.0] * 2], jnp.float32)
    labels = (jax.random.uniform(lkey, (BATCH, NUM_LABELS)) > 0.5
              ).astype(jnp.float32)

    fwd = jax.jit(forward)
    loss, logits = fwd(params, input_ids, token_type_ids, attention_mask, labels)
    jax.block_until_ready((loss, logits))
    assert logits.shape == (BATCH, NUM_LABELS)
    assert loss.shape == ()
    print("KERNEL_OK")
</pallas_src>

<mosaic_0001>
module attributes {stable_mosaic.version = 11 : i64} {
  func.func @_fused_forward_kernel(%arg0: i32, %arg1: i32, %arg2: memref<16x384xf32, #tpu.memory_space<vmem>>, %arg3: memref<16x512xf32, #tpu.memory_space<vmem>>, %arg4: memref<1x16x16xf32, #tpu.memory_space<vmem>>, %arg5: memref<2x128xf32, #tpu.memory_space<vmem>>, %arg6: memref<384x512xbf16, #tpu.memory_space<vmem>>, %arg7: memref<512x512xbf16, #tpu.memory_space<vmem>>, %arg8: memref<512x128xbf16, #tpu.memory_space<vmem>>, %arg9: memref<5x512xf32, #tpu.memory_space<vmem>>, %arg10: memref<1x512x384xbf16, #tpu.memory_space<vmem>>, %arg11: memref<1x128x256xbf16, #tpu.memory_space<vmem>>, %arg12: memref<1x128x128xbf16, #tpu.memory_space<vmem>>, %arg13: memref<1x4x128x512xbf16, #tpu.memory_space<vmem>>, %arg14: memref<1x4x512x128xbf16, #tpu.memory_space<vmem>>, %arg15: memref<1x128x512xbf16, #tpu.memory_space<vmem>>, %arg16: memref<1x19x512xf32, #tpu.memory_space<vmem>>, %arg17: memref<2x128xf32, #tpu.memory_space<vmem>>, %arg18: memref<1x128xf32, #tpu.memory_space<vmem>>, %arg19: memref<16x512xf32, #tpu.memory_space<vmem>>, %arg20: memref<16x128xf32, #tpu.memory_space<vmem>>) attributes {dimension_semantics = [#tpu.dimension_semantics<parallel>, #tpu.dimension_semantics<arbitrary>], iteration_bounds = array<i64: 1, 2>, scalar_prefetch = 0 : i64, scratch_operands = 2 : i64, tpu.core_type = #tpu.core_type<tc>, window_params = [{transform_indices = @transform_0, window_bounds = array<i64: 16, 384>}, {transform_indices = @transform_1, window_bounds = array<i64: 16, 512>}, {transform_indices = @transform_2, window_bounds = array<i64: 1, 16, 16>}, {transform_indices = @transform_3, window_bounds = array<i64: 2, 128>}, {pipeline_mode = #tpu.pipeline_mode<synchronous>, transform_indices = @transform_4, window_bounds = array<i64: 384, 512>}, {pipeline_mode = #tpu.pipeline_mode<synchronous>, transform_indices = @transform_5, window_bounds = array<i64: 512, 512>}, {pipeline_mode = #tpu.pipeline_mode<synchronous>, transform_indices = @transform_6, window_bounds = array<i64: 512, 128>}, {pipeline_mode = #tpu.pipeline_mode<synchronous>, transform_indices = @transform_7, window_bounds = array<i64: 5, 512>}, {transform_indices = @transform_8, window_bounds = array<i64: 1, 512, 384>}, {transform_indices = @transform_9, window_bounds = array<i64: 1, 128, 256>}, {transform_indices = @transform_10, window_bounds = array<i64: 1, 128, 128>}, {transform_indices = @transform_11, window_bounds = array<i64: 1, 4, 128, 512>}, {transform_indices = @transform_12, window_bounds = array<i64: 1, 4, 512, 128>}, {transform_indices = @transform_13, window_bounds = array<i64: 1, 128, 512>}, {transform_indices = @transform_14, window_bounds = array<i64: 1, 19, 512>}, {transform_indices = @transform_15, window_bounds = array<i64: 2, 128>}, {transform_indices = @transform_16, window_bounds = array<i64: 1, 128>}]} {
    %c0_i32 = arith.constant 0 : i32
    %0 = arith.cmpi eq, %arg1, %c0_i32 : i32
    %1 = arith.extui %0 : i1 to i32
    %c0_i32_0 = arith.constant 0 : i32
    %2 = arith.cmpi ne, %1, %c0_i32_0 : i32
    scf.if %2 {
      %c0_106 = arith.constant 0 : index
      %c0_107 = arith.constant 0 : index
      %257 = vector.load %arg9[%c0_106, %c0_107] : memref<5x512xf32, #tpu.memory_space<vmem>>, vector<5x512xf32>
      %c0_108 = arith.constant 0 : index
      %c0_109 = arith.constant 0 : index
      %258 = vector.load %arg2[%c0_108, %c0_109] : memref<16x384xf32, #tpu.memory_space<vmem>>, vector<16x384xf32>
      %c0_110 = arith.constant 0 : index
      %c0_111 = arith.constant 0 : index
      %259 = vector.load %arg6[%c0_110, %c0_111] : memref<384x512xbf16, #tpu.memory_space<vmem>>, vector<384x512xbf16>
      %260 = arith.truncf %258 : vector<16x384xf32> to vector<16x384xbf16>
      %cst_112 = arith.constant dense<0.000000e+00> : vector<16x512xf32>
      %261 = tpu.matmul %260, %259, %cst_112 {dimension_numbers = #tpu.dot_dimension_numbers<[1], [0], [0], [1], [0, 0, 1, 1], [], []>} : vector<16x384xbf16>, vector<384x512xbf16>, vector<16x512xf32> -> vector<16x512xf32>
      %c0_113 = arith.constant 0 : index
      %c0_114 = arith.constant 0 : index
      %262 = vector.load %arg3[%c0_113, %c0_114] : memref<16x512xf32, #tpu.memory_space<vmem>>, vector<16x512xf32>
      %263 = arith.addf %261, %262 : vector<16x512xf32>
      %264 = vector.extract_strided_slice %257 {offsets = [0, 0], sizes = [1, 512], strides = [1, 1]} : vector<5x512xf32> to vector<1x512xf32>
      %265 = vector.broadcast %264 : vector<1x512xf32> to vector<16x512xf32>
      %266 = arith.mulf %263, %265 : vector<16x512xf32>
      %267 = vector.extract_strided_slice %257 {offsets = [1, 0], sizes = [1, 512], strides = [1, 1]} : vector<5x512xf32> to vector<1x512xf32>
      %268 = vector.broadcast %267 : vector<1x512xf32> to vector<16x512xf32>
      %269 = arith.addf %266, %268 : vector<16x512xf32>
      %c0_115 = arith.constant 0 : index
      %c0_116 = arith.constant 0 : index
      %270 = vector.load %arg19[%c0_115, %c0_116] : memref<16x512xf32, #tpu.memory_space<vmem>>, vector<16x512xf32>
      tpu.vector_store %arg19[%c0_115, %c0_116], %269 {strides = array<i32>} : memref<16x512xf32, #tpu.memory_space<vmem>>, vector<16x512xf32>,
    } else {
    }
    %c0 = arith.constant 0 : index
    %c0_1 = arith.constant 0 : index
    %3 = vector.load %arg19[%c0, %c0_1] : memref<16x512xf32, #tpu.memory_space<vmem>>, vector<16x512xf32>
    %c0_2 = arith.constant 0 : index
    %c0_3 = arith.constant 0 : index
    %c0_4 = arith.constant 0 : index
    %4 = vector.load %arg16[%c0_2, %c0_3, %c0_4] : memref<1x19x512xf32, #tpu.memory_space<vmem>>, vector<1x19x512xf32>
    %5 = vector.shape_cast %4 : vector<1x19x512xf32> to vector<19x512xf32>
    %c0_5 = arith.constant 0 : index
    %c0_6 = arith.constant 0 : index
    %c0_7 = arith.constant 0 : index
    %6 = vector.load %arg4[%c0_5, %c0_6, %c0_7] : memref<1x16x16xf32, #tpu.memory_space<vmem>>, vector<1x16x16xf32>
    %7 = vector.shape_cast %6 : vector<1x16x16xf32> to vector<16x16xf32>
    %c0_8 = arith.constant 0 : index
    %c0_9 = arith.constant 0 : index
    %c0_10 = arith.constant 0 : index
    %8 = vector.load %arg10[%c0_8, %c0_9, %c0_10] : memref<1x512x384xbf16, #tpu.memory_space<vmem>>, vector<1x512x384xbf16>
    %9 = vector.shape_cast %8 : vector<1x512x384xbf16> to vector<512x384xbf16>
    %10 = arith.truncf %3 : vector<16x512xf32> to vector<16x512xbf16>
    %cst = arith.constant dense<0.000000e+00> : vector<16x384xf32>
    %11 = tpu.matmul %10, %9, %cst {dimension_numbers = #tpu.dot_dimension_numbers<[1], [0], [0], [1], [0, 0, 1, 1], [], []>} : vector<16x512xbf16>, vector<512x384xbf16>, vector<16x384xf32> -> vector<16x384xf32>
    %12 = vector.extract_strided_slice %5 {offsets = [0, 0], sizes = [1, 384], strides = [1, 1]} : vector<19x512xf32> to vector<1x384xf32>
    %13 = vector.broadcast %12 : vector<1x384xf32> to vector<16x384xf32>
    %14 = arith.mulf %11, %13 : vector<16x384xf32>
    %15 = vector.extract_strided_slice %5 {offsets = [1, 0], sizes = [1, 384], strides = [1, 1]} : vector<19x512xf32> to vector<1x384xf32>
    %16 = vector.broadcast %15 : vector<1x384xf32> to vector<16x384xf32>
    %17 = arith.addf %14, %16 : vector<16x384xf32>
    %18 = vector.extract_strided_slice %17 {offsets = [0, 0], sizes = [16, 128], strides = [1, 1]} : vector<16x384xf32> to vector<16x128xf32>
    %19 = vector.extract_strided_slice %17 {offsets = [0, 128], sizes = [16, 128], strides = [1, 1]} : vector<16x384xf32> to vector<16x128xf32>
    %20 = vector.extract_strided_slice %17 {offsets = [0, 256], sizes = [16, 128], strides = [1, 1]} : vector<16x384xf32> to vector<16x128xf32>
    %c0_11 = arith.constant 0 : index
    %c0_12 = arith.constant 0 : index
    %c0_13 = arith.constant 0 : index
    %21 = vector.load %arg11[%c0_11, %c0_12, %c0_13] : memref<1x128x256xbf16, #tpu.memory_space<vmem>>, vector<1x128x256xbf16>
    %22 = vector.shape_cast %21 : vector<1x128x256xbf16> to vector<128x256xbf16>
    %23 = arith.truncf %19 : vector<16x128xf32> to vector<16x128xbf16>
    %cst_14 = arith.constant dense<0.000000e+00> : vector<16x256xf32>
    %24 = tpu.matmul %23, %22, %cst_14 {dimension_numbers = #tpu.dot_dimension_numbers<[1], [0], [0], [1], [0, 0, 1, 1], [], []>} : vector<16x128xbf16>, vector<128x256xbf16>, vector<16x256xf32> -> vector<16x256xf32>
    %25 = vector.extract_strided_slice %5 {offsets = [2, 0], sizes = [1, 256], strides = [1, 1]} : vector<19x512xf32> to vector<1x256xf32>
    %26 = vector.broadcast %25 : vector<1x256xf32> to vector<16x256xf32>
    %27 = arith.addf %24, %26 : vector<16x256xf32>
    %28 = vector.extract_strided_slice %27 {offsets = [0, 0], sizes = [16, 128], strides = [1, 1]} : vector<16x256xf32> to vector<16x128xf32>
    %29 = vector.extract_strided_slice %27 {offsets = [0, 128], sizes = [16, 128], strides = [1, 1]} : vector<16x256xf32> to vector<16x128xf32>
    %30 = vector.extract_strided_slice %28 {offsets = [0, 0], sizes = [16, 32], strides = [1, 1]} : vector<16x128xf32> to vector<16x32xf32>
    %31 = vector.extract_strided_slice %29 {offsets = [0, 0], sizes = [16, 32], strides = [1, 1]} : vector<16x128xf32> to vector<16x32xf32>
    %32 = vector.extract_strided_slice %20 {offsets = [0, 0], sizes = [16, 32], strides = [1, 1]} : vector<16x128xf32> to vector<16x32xf32>
    %cst_15 = arith.constant dense<0.000000e+00> : vector<16x16xf32>
    %33 = tpu.matmul %30, %31, %cst_15 {dimension_numbers = #tpu.dot_dimension_numbers<[1], [1], [0], [0], [0, 0, 1, 0], [], []>} : vector<16x32xf32>, vector<16x32xf32>, vector<16x16xf32> -> vector<16x16xf32>
    %cst_16 = arith.constant 0.176776692 : f32
    %34 = vector.broadcast %cst_16 : f32 to vector<16x16xf32>
    %35 = arith.mulf %33, %34 : vector<16x16xf32>
    %36 = arith.addf %35, %7 : vector<16x16xf32>
    %cst_17 = arith.constant dense<0xFF800000> : vector<16xf32>
    %37 = vector.multi_reduction <maximumf>, %36, %cst_17 [1] : vector<16x16xf32> to vector<16xf32>
    %38 = vector.shape_cast %37 : vector<16xf32> to vector<16x1xf32>
    %39 = vector.broadcast %38 : vector<16x1xf32> to vector<16x16xf32>
    %40 = arith.subf %36, %39 : vector<16x16xf32>
    %41 = math.exp %40 : vector<16x16xf32>
    %cst_18 = arith.constant dense<0.000000e+00> : vector<16xf32>
    %42 = vector.multi_reduction <add>, %41, %cst_18 [1] : vector<16x16xf32> to vector<16xf32>
    %43 = vector.shape_cast %42 : vector<16xf32> to vector<16x1xf32>
    %44 = tpu.reciprocal %43 {approx = true} : vector<16x1xf32> -> vector<16x1xf32>
    %45 = vector.broadcast %44 : vector<16x1xf32> to vector<16x16xf32>
    %46 = arith.mulf %41, %45 : vector<16x16xf32>
    %cst_19 = arith.constant dense<0.000000e+00> : vector<16x32xf32>
    %47 = tpu.matmul %46, %32, %cst_19 {dimension_numbers = #tpu.dot_dimension_numbers<[1], [0], [0], [1], [0, 0, 1, 1], [], []>} : vector<16x16xf32>, vector<16x32xf32>, vector<16x32xf32> -> vector<16x32xf32>
    %c0_20 = arith.constant 0 : index
    %c0_21 = arith.constant 0 : index
    %48 = vector.load %arg20[%c0_20, %c0_21] : memref<16x128xf32, #tpu.memory_space<vmem>>, vector<16x32xf32>
    tpu.vector_store %arg20[%c0_20, %c0_21], %47 {strides = array<i32>} : memref<16x128xf32, #tpu.memory_space<vmem>>, vector<16x32xf32>,
    %49 = vector.extract_strided_slice %28 {offsets = [0, 32], sizes = [16, 32], strides = [1, 1]} : vector<16x128xf32> to vector<16x32xf32>
    %50 = vector.extract_strided_slice %29 {offsets = [0, 32], sizes = [16, 32], strides = [1, 1]} : vector<16x128xf32> to vector<16x32xf32>
    %51 = vector.extract_strided_slice %20 {offsets = [0, 32], sizes = [16, 32], strides = [1, 1]} : vector<16x128xf32> to vector<16x32xf32>
    %cst_22 = arith.constant dense<0.000000e+00> : vector<16x16xf32>
    %52 = tpu.matmul %49, %50, %cst_22 {dimension_numbers = #tpu.dot_dimension_numbers<[1], [1], [0], [0], [0, 0, 1, 0], [], []>} : vector<16x32xf32>, vector<16x32xf32>, vector<16x16xf32> -> vector<16x16xf32>
    %cst_23 = arith.constant 0.176776692 : f32
    %53 = vector.broadcast %cst_23 : f32 to vector<16x16xf32>
    %54 = arith.mulf %52, %53 : vector<16x16xf32>
    %55 = arith.addf %54, %7 : vector<16x16xf32>
    %cst_24 = arith.constant dense<0xFF800000> : vector<16xf32>
    %56 = vector.multi_reduction <maximumf>, %55, %cst_24 [1] : vector<16x16xf32> to vector<16xf32>
    %57 = vector.shape_cast %56 : vector<16xf32> to vector<16x1xf32>
    %58 = vector.broadcast %57 : vector<16x1xf32> to vector<16x16xf32>
    %59 = arith.subf %55, %58 : vector<16x16xf32>
    %60 = math.exp %59 : vector<16x16xf32>
    %cst_25 = arith.constant dense<0.000000e+00> : vector<16xf32>
    %61 = vector.multi_reduction <add>, %60, %cst_25 [1] : vector<16x16xf32> to vector<16xf32>
    %62 = vector.shape_cast %61 : vector<16xf32> to vector<16x1xf32>
    %63 = tpu.reciprocal %62 {approx = true} : vector<16x1xf32> -> vector<16x1xf32>
    %64 = vector.broadcast %63 : vector<16x1xf32> to vector<16x16xf32>
    %65 = arith.mulf %60, %64 : vector<16x16xf32>
    %cst_26 = arith.constant dense<0.000000e+00> : vector<16x32xf32>
    %66 = tpu.matmul %65, %51, %cst_26 {dimension_numbers = #tpu.dot_dimension_numbers<[1], [0], [0], [1], [0, 0, 1, 1], [], []>} : vector<16x16xf32>, vector<16x32xf32>, vector<16x32xf32> -> vector<16x32xf32>
    %c0_27 = arith.constant 0 : index
    %c32 = arith.constant 32 : index
    %67 = vector.load %arg20[%c0_27, %c32] : memref<16x128xf32, #tpu.memory_space<vmem>>, vector<16x32xf32>
    tpu.vector_store %arg20[%c0_27, %c32], %66 {strides = array<i32>} : memref<16x128xf32, #tpu.memory_space<vmem>>, vector<16x32xf32>,
    %68 = vector.extract_strided_slice %28 {offsets = [0, 64], sizes = [16, 32], strides = [1, 1]} : vector<16x128xf32> to vector<16x32xf32>
    %69 = vector.extract_strided_slice %29 {offsets = [0, 64], sizes = [16, 32], strides = [1, 1]} : vector<16x128xf32> to vector<16x32xf32>
    %70 = vector.extract_strided_slice %20 {offsets = [0, 64], sizes = [16, 32], strides = [1, 1]} : vector<16x128xf32> to vector<16x32xf32>
    %cst_28 = arith.constant dense<0.000000e+00> : vector<16x16xf32>
    %71 = tpu.matmul %68, %69, %cst_28 {dimension_numbers = #tpu.dot_dimension_numbers<[1], [1], [0], [0], [0, 0, 1, 0], [], []>} : vector<16x32xf32>, vector<16x32xf32>, vector<16x16xf32> -> vector<16x16xf32>
    %cst_29 = arith.constant 0.176776692 : f32
    %72 = vector.broadcast %cst_29 : f32 to vector<16x16xf32>
    %73 = arith.mulf %71, %72 : vector<16x16xf32>
    %74 = arith.addf %73, %7 : vector<16x16xf32>
    %cst_30 = arith.constant dense<0xFF800000> : vector<16xf32>
    %75 = vector.multi_reduction <maximumf>, %74, %cst_30 [1] : vector<16x16xf32> to vector<16xf32>
    %76 = vector.shape_cast %75 : vector<16xf32> to vector<16x1xf32>
    %77 = vector.broadcast %76 : vector<16x1xf32> to vector<16x16xf32>
    %78 = arith.subf %74, %77 : vector<16x16xf32>
    %79 = math.exp %78 : vector<16x16xf32>
    %cst_31 = arith.constant dense<0.000000e+00> : vector<16xf32>
    %80 = vector.multi_reduction <add>, %79, %cst_31 [1] : vector<16x16xf32> to vector<16xf32>
    %81 = vector.shape_cast %80 : vector<16xf32> to vector<16x1xf32>
    %82 = tpu.reciprocal %81 {approx = true} : vector<16x1xf32> -> vector<16x1xf32>
    %83 = vector.broadcast %82 : vector<16x1xf32> to vector<16x16xf32>
    %84 = arith.mulf %79, %83 : vector<16x16xf32>
    %cst_32 = arith.constant dense<0.000000e+00> : vector<16x32xf32>
    %85 = tpu.matmul %84, %70, %cst_32 {dimension_numbers = #tpu.dot_dimension_numbers<[1], [0], [0], [1], [0, 0, 1, 1], [], []>} : vector<16x16xf32>, vector<16x32xf32>, vector<16x32xf32> -> vector<16x32xf32>
    %c0_33 = arith.constant 0 : index
    %c64 = arith.constant 64 : index
    %86 = vector.load %arg20[%c0_33, %c64] : memref<16x128xf32, #tpu.memory_space<vmem>>, vector<16x32xf32>
    tpu.vector_store %arg20[%c0_33, %c64], %85 {strides = array<i32>} : memref<16x128xf32, #tpu.memory_space<vmem>>, vector<16x32xf32>,
    %87 = vector.extract_strided_slice %28 {offsets = [0, 96], sizes = [16, 32], strides = [1, 1]} : vector<16x128xf32> to vector<16x32xf32>
    %88 = vector.extract_strided_slice %29 {offsets = [0, 96], sizes = [16, 32], strides = [1, 1]} : vector<16x128xf32> to vector<16x32xf32>
    %89 = vector.extract_strided_slice %20 {offsets = [0, 96], sizes = [16, 32], strides = [1, 1]} : vector<16x128xf32> to vector<16x32xf32>
    %cst_34 = arith.constant dense<0.000000e+00> : vector<16x16xf32>
    %90 = tpu.matmul %87, %88, %cst_34 {dimension_numbers = #tpu.dot_dimension_numbers<[1], [1], [0], [0], [0, 0, 1, 0], [], []>} : vector<16x32xf32>, vector<16x32xf32>, vector<16x16xf32> -> vector<16x16xf32>
    %cst_35 = arith.constant 0.176776692 : f32
    %91 = vector.broadcast %cst_35 : f32 to vector<16x16xf32>
    %92 = arith.mulf %90, %91 : vector<16x16xf32>
    %93 = arith.addf %92, %7 : vector<16x16xf32>
    %cst_36 = arith.constant dense<0xFF800000> : vector<16xf32>
    %94 = vector.multi_reduction <maximumf>, %93, %cst_36 [1] : vector<16x16xf32> to vector<16xf32>
    %95 = vector.shape_cast %94 : vector<16xf32> to vector<16x1xf32>
    %96 = vector.broadcast %95 : vector<16x1xf32> to vector<16x16xf32>
    %97 = arith.subf %93, %96 : vector<16x16xf32>
    %98 = math.exp %97 : vector<16x16xf32>
    %cst_37 = arith.constant dense<0.000000e+00> : vector<16xf32>
    %99 = vector.multi_reduction <add>, %98, %cst_37 [1] : vector<16x16xf32> to vector<16xf32>
    %100 = vector.shape_cast %99 : vector<16xf32> to vector<16x1xf32>
    %101 = tpu.reciprocal %100 {approx = true} : vector<16x1xf32> -> vector<16x1xf32>
    %102 = vector.broadcast %101 : vector<16x1xf32> to vector<16x16xf32>
    %103 = arith.mulf %98, %102 : vector<16x16xf32>
    %cst_38 = arith.constant dense<0.000000e+00> : vector<16x32xf32>
    %104 = tpu.matmul %103, %89, %cst_38 {dimension_numbers = #tpu.dot_dimension_numbers<[1], [0], [0], [1], [0, 0, 1, 1], [], []>} : vector<16x16xf32>, vector<16x32xf32>, vector<16x32xf32> -> vector<16x32xf32>
    %c0_39 = arith.constant 0 : index
    %c96 = arith.constant 96 : index
    %105 = vector.load %arg20[%c0_39, %c96] : memref<16x128xf32, #tpu.memory_space<vmem>>, vector<16x32xf32>
    tpu.vector_store %arg20[%c0_39, %c96], %104 {strides = array<i32>} : memref<16x128xf32, #tpu.memory_space<vmem>>, vector<16x32xf32>,
    %c0_40 = arith.constant 0 : index
    %c0_41 = arith.constant 0 : index
    %106 = vector.load %arg20[%c0_40, %c0_41] : memref<16x128xf32, #tpu.memory_space<vmem>>, vector<16x128xf32>
    %c0_42 = arith.constant 0 : index
    %c0_43 = arith.constant 0 : index
    %c0_44 = arith.constant 0 : index
    %107 = vector.load %arg12[%c0_42, %c0_43, %c0_44] : memref<1x128x128xbf16, #tpu.memory_space<vmem>>, vector<1x128x128xbf16>
    %108 = vector.shape_cast %107 : vector<1x128x128xbf16> to vector<128x128xbf16>
    %109 = arith.truncf %106 : vector<16x128xf32> to vector<16x128xbf16>
    %cst_45 = arith.constant dense<0.000000e+00> : vector<16x128xf32>
    %110 = tpu.matmul %109, %108, %cst_45 {dimension_numbers = #tpu.dot_dimension_numbers<[1], [0], [0], [1], [0, 0, 1, 1], [], []>} : vector<16x128xbf16>, vector<128x128xbf16>, vector<16x128xf32> -> vector<16x128xf32>
    %111 = arith.addf %110, %18 : vector<16x128xf32>
    %112 = vector.extract_strided_slice %5 {offsets = [3, 0], sizes = [1, 128], strides = [1, 1]} : vector<19x512xf32> to vector<1x128xf32>
    %113 = vector.broadcast %112 : vector<1x128xf32> to vector<16x128xf32>
    %114 = arith.mulf %111, %113 : vector<16x128xf32>
    %115 = vector.extract_strided_slice %5 {offsets = [4, 0], sizes = [1, 128], strides = [1, 1]} : vector<19x512xf32> to vector<1x128xf32>
    %116 = vector.broadcast %115 : vector<1x128xf32> to vector<16x128xf32>
    %117 = arith.addf %114, %116 : vector<16x128xf32>
    %c0_46 = arith.constant 0 : index
    %c0_47 = arith.constant 0 : index
    %c0_48 = arith.constant 0 : index
    %c0_49 = arith.constant 0 : index
    %118 = vector.load %arg13[%c0_46, %c0_47, %c0_48, %c0_49] : memref<1x4x128x512xbf16, #tpu.memory_space<vmem>>, vector<1x1x128x512xbf16>
    %119 = vector.shape_cast %118 : vector<1x1x128x512xbf16> to vector<128x512xbf16>
    %120 = arith.truncf %117 : vector<16x128xf32> to vector<16x128xbf16>
    %cst_50 = arith.constant dense<0.000000e+00> : vector<16x512xf32>
    %121 = tpu.matmul %120, %119, %cst_50 {dimension_numbers = #tpu.dot_dimension_numbers<[1], [0], [0], [1], [0, 0, 1, 1], [], []>} : vector<16x128xbf16>, vector<128x512xbf16>, vector<16x512xf32> -> vector<16x512xf32>
    %122 = vector.extract_strided_slice %5 {offsets = [5, 0], sizes = [1, 512], strides = [1, 1]} : vector<19x512xf32> to vector<1x512xf32>
    %123 = vector.broadcast %122 : vector<1x512xf32> to vector<16x512xf32>
    %124 = arith.addf %121, %123 : vector<16x512xf32>
    %cst_51 = arith.constant 5.000000e-01 : f32
    %125 = vector.broadcast %cst_51 : f32 to vector<16x512xf32>
    %126 = arith.mulf %125, %124 : vector<16x512xf32>
    %cst_52 = arith.constant 4.471500e-02 : f32
    %127 = vector.broadcast %cst_52 : f32 to vector<16x512xf32>
    %128 = arith.mulf %127, %124 : vector<16x512xf32>
    %129 = arith.mulf %128, %124 : vector<16x512xf32>
    %130 = arith.mulf %129, %124 : vector<16x512xf32>
    %131 = arith.addf %124, %130 : vector<16x512xf32>
    %cst_53 = arith.constant 0.797884583 : f32
    %132 = vector.broadcast %cst_53 : f32 to vector<16x512xf32>
    %133 = arith.mulf %132, %131 : vector<16x512xf32>
    %134 = math.tanh %133 : vector<16x512xf32>
    %cst_54 = arith.constant 1.000000e+00 : f32
    %135 = vector.broadcast %cst_54 : f32 to vector<16x512xf32>
    %136 = arith.addf %135, %134 : vector<16x512xf32>
    %137 = arith.mulf %126, %136 : vector<16x512xf32>
    %c0_55 = arith.constant 0 : index
    %c0_56 = arith.constant 0 : index
    %c0_57 = arith.constant 0 : index
    %c0_58 = arith.constant 0 : index
    %138 = vector.load %arg14[%c0_55, %c0_56, %c0_57, %c0_58] : memref<1x4x512x128xbf16, #tpu.memory_space<vmem>>, vector<1x1x512x128xbf16>
    %139 = vector.shape_cast %138 : vector<1x1x512x128xbf16> to vector<512x128xbf16>
    %140 = arith.truncf %137 : vector<16x512xf32> to vector<16x512xbf16>
    %cst_59 = arith.constant dense<0.000000e+00> : vector<16x128xf32>
    %141 = tpu.matmul %140, %139, %cst_59 {dimension_numbers = #tpu.dot_dimension_numbers<[1], [0], [0], [1], [0, 0, 1, 1], [], []>} : vector<16x512xbf16>, vector<512x128xbf16>, vector<16x128xf32> -> vector<16x128xf32>
    %142 = arith.addf %141, %117 : vector<16x128xf32>
    %143 = vector.extract_strided_slice %5 {offsets = [9, 0], sizes = [1, 128], strides = [1, 1]} : vector<19x512xf32> to vector<1x128xf32>
    %144 = vector.broadcast %143 : vector<1x128xf32> to vector<16x128xf32>
    %145 = arith.mulf %142, %144 : vector<16x128xf32>
    %146 = vector.extract_strided_slice %5 {offsets = [13, 0], sizes = [1, 128], strides = [1, 1]} : vector<19x512xf32> to vector<1x128xf32>
    %147 = vector.broadcast %146 : vector<1x128xf32> to vector<16x128xf32>
    %148 = arith.addf %145, %147 : vector<16x128xf32>
    %c0_60 = arith.constant 0 : index
    %c1 = arith.constant 1 : index
    %c0_61 = arith.constant 0 : index
    %c0_62 = arith.constant 0 : index
    %149 = vector.load %arg13[%c0_60, %c1, %c0_61, %c0_62] : memref<1x4x128x512xbf16, #tpu.memory_space<vmem>>, vector<1x1x128x512xbf16>
    %150 = vector.shape_cast %149 : vector<1x1x128x512xbf16> to vector<128x512xbf16>
    %151 = arith.truncf %148 : vector<16x128xf32> to vector<16x128xbf16>
    %cst_63 = arith.constant dense<0.000000e+00> : vector<16x512xf32>
    %152 = tpu.matmul %151, %150, %cst_63 {dimension_numbers = #tpu.dot_dimension_numbers<[1], [0], [0], [1], [0, 0, 1, 1], [], []>} : vector<16x128xbf16>, vector<128x512xbf16>, vector<16x512xf32> -> vector<16x512xf32>
    %153 = vector.extract_strided_slice %5 {offsets = [6, 0], sizes = [1, 512], strides = [1, 1]} : vector<19x512xf32> to vector<1x512xf32>
    %154 = vector.broadcast %153 : vector<1x512xf32> to vector<16x512xf32>
    %155 = arith.addf %152, %154 : vector<16x512xf32>
    %cst_64 = arith.constant 5.000000e-01 : f32
    %156 = vector.broadcast %cst_64 : f32 to vector<16x512xf32>
    %157 = arith.mulf %156, %155 : vector<16x512xf32>
    %cst_65 = arith.constant 4.471500e-02 : f32
    %158 = vector.broadcast %cst_65 : f32 to vector<16x512xf32>
    %159 = arith.mulf %158, %155 : vector<16x512xf32>
    %160 = arith.mulf %159, %155 : vector<16x512xf32>
    %161 = arith.mulf %160, %155 : vector<16x512xf32>
    %162 = arith.addf %155, %161 : vector<16x512xf32>
    %cst_66 = arith.constant 0.797884583 : f32
    %163 = vector.broadcast %cst_66 : f32 to vector<16x512xf32>
    %164 = arith.mulf %163, %162 : vector<16x512xf32>
    %165 = math.tanh %164 : vector<16x512xf32>
    %cst_67 = arith.constant 1.000000e+00 : f32
    %166 = vector.broadcast %cst_67 : f32 to vector<16x512xf32>
    %167 = arith.addf %166, %165 : vector<16x512xf32>
    %168 = arith.mulf %157, %167 : vector<16x512xf32>
    %c0_68 = arith.constant 0 : index
    %c1_69 = arith.constant 1 : index
    %c0_70 = arith.constant 0 : index
    %c0_71 = arith.constant 0 : index
    %169 = vector.load %arg14[%c0_68, %c1_69, %c0_70, %c0_71] : memref<1x4x512x128xbf16, #tpu.memory_space<vmem>>, vector<1x1x512x128xbf16>
    %170 = vector.shape_cast %169 : vector<1x1x512x128xbf16> to vector<512x128xbf16>
    %171 = arith.truncf %168 : vector<16x512xf32> to vector<16x512xbf16>
    %cst_72 = arith.constant dense<0.000000e+00> : vector<16x128xf32>
    %172 = tpu.matmul %171, %170, %cst_72 {dimension_numbers = #tpu.dot_dimension_numbers<[1], [0], [0], [1], [0, 0, 1, 1], [], []>} : vector<16x512xbf16>, vector<512x128xbf16>, vector<16x128xf32> -> vector<16x128xf32>
    %173 = arith.addf %172, %148 : vector<16x128xf32>
    %174 = vector.extract_strided_slice %5 {offsets = [10, 0], sizes = [1, 128], strides = [1, 1]} : vector<19x512xf32> to vector<1x128xf32>
    %175 = vector.broadcast %174 : vector<1x128xf32> to vector<16x128xf32>
    %176 = arith.mulf %173, %175 : vector<16x128xf32>
    %177 = vector.extract_strided_slice %5 {offsets = [14, 0], sizes = [1, 128], strides = [1, 1]} : vector<19x512xf32> to vector<1x128xf32>
    %178 = vector.broadcast %177 : vector<1x128xf32> to vector<16x128xf32>
    %179 = arith.addf %176, %178 : vector<16x128xf32>
    %c0_73 = arith.constant 0 : index
    %c2 = arith.constant 2 : index
    %c0_74 = arith.constant 0 : index
    %c0_75 = arith.constant 0 : index
    %180 = vector.load %arg13[%c0_73, %c2, %c0_74, %c0_75] : memref<1x4x128x512xbf16, #tpu.memory_space<vmem>>, vector<1x1x128x512xbf16>
    %181 = vector.shape_cast %180 : vector<1x1x128x512xbf16> to vector<128x512xbf16>
    %182 = arith.truncf %179 : vector<16x128xf32> to vector<16x128xbf16>
    %cst_76 = arith.constant dense<0.000000e+00> : vector<16x512xf32>
    %183 = tpu.matmul %182, %181, %cst_76 {dimension_numbers = #tpu.dot_dimension_numbers<[1], [0], [0], [1], [0, 0, 1, 1], [], []>} : vector<16x128xbf16>, vector<128x512xbf16>, vector<16x512xf32> -> vector<16x512xf32>
    %184 = vector.extract_strided_slice %5 {offsets = [7, 0], sizes = [1, 512], strides = [1, 1]} : vector<19x512xf32> to vector<1x512xf32>
    %185 = vector.broadcast %184 : vector<1x512xf32> to vector<16x512xf32>
    %186 = arith.addf %183, %185 : vector<16x512xf32>
    %cst_77 = arith.constant 5.000000e-01 : f32
    %187 = vector.broadcast %cst_77 : f32 to vector<16x512xf32>
    %188 = arith.mulf %187, %186 : vector<16x512xf32>
    %cst_78 = arith.constant 4.471500e-02 : f32
    %189 = vector.broadcast %cst_78 : f32 to vector<16x512xf32>
    %190 = arith.mulf %189, %186 : vector<16x512xf32>
    %191 = arith.mulf %190, %186 : vector<16x512xf32>
    %192 = arith.mulf %191, %186 : vector<16x512xf32>
    %193 = arith.addf %186, %192 : vector<16x512xf32>
    %cst_79 = arith.constant 0.797884583 : f32
    %194 = vector.broadcast %cst_79 : f32 to vector<16x512xf32>
    %195 = arith.mulf %194, %193 : vector<16x512xf32>
    %196 = math.tanh %195 : vector<16x512xf32>
    %cst_80 = arith.constant 1.000000e+00 : f32
    %197 = vector.broadcast %cst_80 : f32 to vector<16x512xf32>
    %198 = arith.addf %197, %196 : vector<16x512xf32>
    %199 = arith.mulf %188, %198 : vector<16x512xf32>
    %c0_81 = arith.constant 0 : index
    %c2_82 = arith.constant 2 : index
    %c0_83 = arith.constant 0 : index
    %c0_84 = arith.constant 0 : index
    %200 = vector.load %arg14[%c0_81, %c2_82, %c0_83, %c0_84] : memref<1x4x512x128xbf16, #tpu.memory_space<vmem>>, vector<1x1x512x128xbf16>
    %201 = vector.shape_cast %200 : vector<1x1x512x128xbf16> to vector<512x128xbf16>
    %202 = arith.truncf %199 : vector<16x512xf32> to vector<16x512xbf16>
    %cst_85 = arith.constant dense<0.000000e+00> : vector<16x128xf32>
    %203 = tpu.matmul %202, %201, %cst_85 {dimension_numbers = #tpu.dot_dimension_numbers<[1], [0], [0], [1], [0, 0, 1, 1], [], []>} : vector<16x512xbf16>, vector<512x128xbf16>, vector<16x128xf32> -> vector<16x128xf32>
    %204 = arith.addf %203, %179 : vector<16x128xf32>
    %205 = vector.extract_strided_slice %5 {offsets = [11, 0], sizes = [1, 128], strides = [1, 1]} : vector<19x512xf32> to vector<1x128xf32>
    %206 = vector.broadcast %205 : vector<1x128xf32> to vector<16x128xf32>
    %207 = arith.mulf %204, %206 : vector<16x128xf32>
    %208 = vector.extract_strided_slice %5 {offsets = [15, 0], sizes = [1, 128], strides = [1, 1]} : vector<19x512xf32> to vector<1x128xf32>
    %209 = vector.broadcast %208 : vector<1x128xf32> to vector<16x128xf32>
    %210 = arith.addf %207, %209 : vector<16x128xf32>
    %c0_86 = arith.constant 0 : index
    %c3 = arith.constant 3 : index
    %c0_87 = arith.constant 0 : index
    %c0_88 = arith.constant 0 : index
    %211 = vector.load %arg13[%c0_86, %c3, %c0_87, %c0_88] : memref<1x4x128x512xbf16, #tpu.memory_space<vmem>>, vector<1x1x128x512xbf16>
    %212 = vector.shape_cast %211 : vector<1x1x128x512xbf16> to vector<128x512xbf16>
    %213 = arith.truncf %210 : vector<16x128xf32> to vector<16x128xbf16>
    %cst_89 = arith.constant dense<0.000000e+00> : vector<16x512xf32>
    %214 = tpu.matmul %213, %212, %cst_89 {dimension_numbers = #tpu.dot_dimension_numbers<[1], [0], [0], [1], [0, 0, 1, 1], [], []>} : vector<16x128xbf16>, vector<128x512xbf16>, vector<16x512xf32> -> vector<16x512xf32>
    %215 = vector.extract_strided_slice %5 {offsets = [8, 0], sizes = [1, 512], strides = [1, 1]} : vector<19x512xf32> to vector<1x512xf32>
    %216 = vector.broadcast %215 : vector<1x512xf32> to vector<16x512xf32>
    %217 = arith.addf %214, %216 : vector<16x512xf32>
    %cst_90 = arith.constant 5.000000e-01 : f32
    %218 = vector.broadcast %cst_90 : f32 to vector<16x512xf32>
    %219 = arith.mulf %218, %217 : vector<16x512xf32>
    %cst_91 = arith.constant 4.471500e-02 : f32
    %220 = vector.broadcast %cst_91 : f32 to vector<16x512xf32>
    %221 = arith.mulf %220, %217 : vector<16x512xf32>
    %222 = arith.mulf %221, %217 : vector<16x512xf32>
    %223 = arith.mulf %222, %217 : vector<16x512xf32>
    %224 = arith.addf %217, %223 : vector<16x512xf32>
    %cst_92 = arith.constant 0.797884583 : f32
    %225 = vector.broadcast %cst_92 : f32 to vector<16x512xf32>
    %226 = arith.mulf %225, %224 : vector<16x512xf32>
    %227 = math.tanh %226 : vector<16x512xf32>
    %cst_93 = arith.constant 1.000000e+00 : f32
    %228 = vector.broadcast %cst_93 : f32 to vector<16x512xf32>
    %229 = arith.addf %228, %227 : vector<16x512xf32>
    %230 = arith.mulf %219, %229 : vector<16x512xf32>
    %c0_94 = arith.constant 0 : index
    %c3_95 = arith.constant 3 : index
    %c0_96 = arith.constant 0 : index
    %c0_97 = arith.constant 0 : index
    %231 = vector.load %arg14[%c0_94, %c3_95, %c0_96, %c0_97] : memref<1x4x512x128xbf16, #tpu.memory_space<vmem>>, vector<1x1x512x128xbf16>
    %232 = vector.shape_cast %231 : vector<1x1x512x128xbf16> to vector<512x128xbf16>
    %233 = arith.truncf %230 : vector<16x512xf32> to vector<16x512xbf16>
    %cst_98 = arith.constant dense<0.000000e+00> : vector<16x128xf32>
    %234 = tpu.matmul %233, %232, %cst_98 {dimension_numbers = #tpu.dot_dimension_numbers<[1], [0], [0], [1], [0, 0, 1, 1], [], []>} : vector<16x512xbf16>, vector<512x128xbf16>, vector<16x128xf32> -> vector<16x128xf32>
    %235 = arith.addf %234, %210 : vector<16x128xf32>
    %236 = vector.extract_strided_slice %5 {offsets = [12, 0], sizes = [1, 128], strides = [1, 1]} : vector<19x512xf32> to vector<1x128xf32>
    %237 = vector.broadcast %236 : vector<1x128xf32> to vector<16x128xf32>
    %238 = arith.mulf %235, %237 : vector<16x128xf32>
    %239 = vector.extract_strided_slice %5 {offsets = [16, 0], sizes = [1, 128], strides = [1, 1]} : vector<19x512xf32> to vector<1x128xf32>
    %240 = vector.broadcast %239 : vector<1x128xf32> to vector<16x128xf32>
    %241 = arith.addf %238, %240 : vector<16x128xf32>
    %c0_99 = arith.constant 0 : index
    %c0_100 = arith.constant 0 : index
    %c0_101 = arith.constant 0 : index
    %242 = vector.load %arg15[%c0_99, %c0_100, %c0_101] : memref<1x128x512xbf16, #tpu.memory_space<vmem>>, vector<1x128x512xbf16>
    %243 = vector.shape_cast %242 : vector<1x128x512xbf16> to vector<128x512xbf16>
    %244 = arith.truncf %241 : vector<16x128xf32> to vector<16x128xbf16>
    %cst_102 = arith.constant dense<0.000000e+00> : vector<16x512xf32>
    %245 = tpu.matmul %244, %243, %cst_102 {dimension_numbers = #tpu.dot_dimension_numbers<[1], [0], [0], [1], [0, 0, 1, 1], [], []>} : vector<16x128xbf16>, vector<128x512xbf16>, vector<16x512xf32> -> vector<16x512xf32>
    %246 = arith.addf %245, %3 : vector<16x512xf32>
    %247 = vector.extract_strided_slice %5 {offsets = [17, 0], sizes = [1, 512], strides = [1, 1]} : vector<19x512xf32> to vector<1x512xf32>
    %248 = vector.broadcast %247 : vector<1x512xf32> to vector<16x512xf32>
    %249 = arith.mulf %246, %248 : vector<16x512xf32>
    %250 = vector.extract_strided_slice %5 {offsets = [18, 0], sizes = [1, 512], strides = [1, 1]} : vector<19x512xf32> to vector<1x512xf32>
    %251 = vector.broadcast %250 : vector<1x512xf32> to vector<16x512xf32>
    %252 = arith.addf %249, %251 : vector<16x512xf32>
    %c0_103 = arith.constant 0 : index
    %c0_104 = arith.constant 0 : index
    %253 = vector.load %arg19[%c0_103, %c0_104] : memref<16x512xf32, #tpu.memory_space<vmem>>, vector<16x512xf32>
    tpu.vector_store %arg19[%c0_103, %c0_104], %252 {strides = array<i32>} : memref<16x512xf32, #tpu.memory_space<vmem>>, vector<16x512xf32>,
    %c1_i32 = arith.constant 1 : i32
    %254 = arith.cmpi eq, %arg1, %c1_i32 : i32
    %255 = arith.extui %254 : i1 to i32
    %c0_i32_105 = arith.constant 0 : i32
    %256 = arith.cmpi ne, %255, %c0_i32_105 : i32
    scf.if %256 {
      %c0_106 = arith.constant 0 : index
      %c0_107 = arith.constant 0 : index
      %257 = vector.load %arg9[%c0_106, %c0_107] : memref<5x512xf32, #tpu.memory_space<vmem>>, vector<5x512xf32>
      %258 = tpu.iota {dimensions = array<i32: 0>} : vector<2x16xi32>
      %259 = tpu.iota {dimensions = array<i32: 1>} : vector<2x16xi32>
      %c8_i32 = arith.constant 8 : i32
      %260 = vector.broadcast %c8_i32 : i32 to vector<2x16xi32>
      %261 = arith.muli %258, %260 : vector<2x16xi32>
      %262 = arith.cmpi eq, %259, %261 : vector<2x16xi32>
      %263 = arith.extui %262 : vector<2x16xi1> to vector<2x16xi32>
      %264 = arith.sitofp %263 : vector<2x16xi32> to vector<2x16xf32>
      %cst_108 = arith.constant dense<0.000000e+00> : vector<2x512xf32>
      %265 = tpu.matmul %264, %252, %cst_108 {dimension_numbers = #tpu.dot_dimension_numbers<[1], [0], [0], [1], [0, 0, 1, 1], [], []>} : vector<2x16xf32>, vector<16x512xf32>, vector<2x512xf32> -> vector<2x512xf32>
      %c0_109 = arith.constant 0 : index
      %c0_110 = arith.constant 0 : index
      %266 = vector.load %arg7[%c0_109, %c0_110] : memref<512x512xbf16, #tpu.memory_space<vmem>>, vector<512x512xbf16>
      %267 = arith.truncf %265 : vector<2x512xf32> to vector<2x512xbf16>
      %cst_111 = arith.constant dense<0.000000e+00> : vector<2x512xf32>
      %268 = tpu.matmul %267, %266, %cst_111 {dimension_numbers = #tpu.dot_dimension_numbers<[1], [0], [0], [1], [0, 0, 1, 1], [], []>} : vector<2x512xbf16>, vector<512x512xbf16>, vector<2x512xf32> -> vector<2x512xf32>
      %269 = vector.extract_strided_slice %257 {offsets = [2, 0], sizes = [1, 512], strides = [1, 1]} : vector<5x512xf32> to vector<1x512xf32>
      %270 = vector.broadcast %269 : vector<1x512xf32> to vector<2x512xf32>
      %271 = arith.addf %268, %270 : vector<2x512xf32>
      %272 = math.tanh %271 : vector<2x512xf32>
      %c0_112 = arith.constant 0 : index
      %c0_113 = arith.constant 0 : index
      %273 = vector.load %arg8[%c0_112, %c0_113] : memref<512x128xbf16, #tpu.memory_space<vmem>>, vector<512x128xbf16>
      %274 = arith.truncf %272 : vector<2x512xf32> to vector<2x512xbf16>
      %cst_114 = arith.constant dense<0.000000e+00> : vector<2x128xf32>
      %275 = tpu.matmul %274, %273, %cst_114 {dimension_numbers = #tpu.dot_dimension_numbers<[1], [0], [0], [1], [0, 0, 1, 1], [], []>} : vector<2x512xbf16>, vector<512x128xbf16>, vector<2x128xf32> -> vector<2x128xf32>
      %276 = vector.extract_strided_slice %257 {offsets = [3, 0], sizes = [1, 128], strides = [1, 1]} : vector<5x512xf32> to vector<1x128xf32>
      %277 = vector.broadcast %276 : vector<1x128xf32> to vector<2x128xf32>
      %278 = arith.addf %275, %277 : vector<2x128xf32>
      %c0_115 = arith.constant 0 : index
      %c0_116 = arith.constant 0 : index
      %279 = vector.load %arg17[%c0_115, %c0_116] : memref<2x128xf32, #tpu.memory_space<vmem>>, vector<2x128xf32>
      tpu.vector_store %arg17[%c0_115, %c0_116], %278 {strides = array<i32>} : memref<2x128xf32, #tpu.memory_space<vmem>>, vector<2x128xf32>,
      %c0_117 = arith.constant 0 : index
      %c0_118 = arith.constant 0 : index
      %280 = vector.load %arg5[%c0_117, %c0_118] : memref<2x128xf32, #tpu.memory_space<vmem>>, vector<2x128xf32>
      %cst_119 = arith.constant 0.000000e+00 : f32
      %281 = vector.broadcast %cst_119 : f32 to vector<2x128xf32>
      %282 = arith.maximumf %278, %281 : vector<2x128xf32>
      %283 = arith.mulf %278, %280 : vector<2x128xf32>
      %284 = arith.subf %282, %283 : vector<2x128xf32>
      %285 = math.absf %278 : vector<2x128xf32>
      %cst_120 = arith.constant 0.000000e+00 : f32
      %286 = vector.broadcast %cst_120 : f32 to vector<2x128xf32>
      %287 = arith.subf %286, %285 : vector<2x128xf32>
      %288 = math.exp %287 : vector<2x128xf32>
      %289 = math.log1p %288 : vector<2x128xf32>
      %290 = arith.addf %284, %289 : vector<2x128xf32>
      %291 = vector.extract_strided_slice %257 {offsets = [4, 0], sizes = [1, 128], strides = [1, 1]} : vector<5x512xf32> to vector<1x128xf32>
      %292 = vector.broadcast %291 : vector<1x128xf32> to vector<2x128xf32>
      %293 = arith.mulf %290, %292 : vector<2x128xf32>
      %cst_121 = arith.constant dense<0.000000e+00> : vector<128xf32>
      %294 = vector.multi_reduction <add>, %293, %cst_121 [0] : vector<2x128xf32> to vector<128xf32>
      %295 = vector.shape_cast %294 : vector<128xf32> to vector<1x128xf32>
      %c0_122 = arith.constant 0 : index
      %c0_123 = arith.constant 0 : index
      %296 = vector.load %arg18[%c0_122, %c0_123] : memref<1x128xf32, #tpu.memory_space<vmem>>, vector<1x128xf32>
      tpu.vector_store %arg18[%c0_122, %c0_123], %295 {strides = array<i32>} : memref<1x128xf32, #tpu.memory_space<vmem>>, vector<1x128xf32>,
    } else {
    }
    return
  }
  func.func @transform_0(%arg0: i32, %arg1: i32) -> (i32, i32) {
    %c0_i32 = arith.constant 0 : i32
    %c0_i32_0 = arith.constant 0 : i32
    return %arg0, %c0_i32 : i32, i32
  }
  func.func @transform_1(%arg0: i32, %arg1: i32) -> (i32, i32) {
    %c0_i32 = arith.constant 0 : i32
    %c0_i32_0 = arith.constant 0 : i32
    return %arg0, %c0_i32 : i32, i32
  }
  func.func @transform_2(%arg0: i32, %arg1: i32) -> (i32, i32, i32) {
    %c0_i32 = arith.constant 0 : i32
    %c0_i32_0 = arith.constant 0 : i32
    %c0_i32_1 = arith.constant 0 : i32
    return %arg0, %c0_i32, %c0_i32_0 : i32, i32, i32
  }
  func.func @transform_3(%arg0: i32, %arg1: i32) -> (i32, i32) {
    %c0_i32 = arith.constant 0 : i32
    %c0_i32_0 = arith.constant 0 : i32
    return %arg0, %c0_i32 : i32, i32
  }
  func.func @transform_4(%arg0: i32, %arg1: i32) -> (i32, i32) {
    %c0_i32 = arith.constant 0 : i32
    %c0_i32_0 = arith.constant 0 : i32
    %c0_i32_1 = arith.constant 0 : i32
    return %c0_i32, %c0_i32_0 : i32, i32
  }
  func.func @transform_5(%arg0: i32, %arg1: i32) -> (i32, i32) {
    %c0_i32 = arith.constant 0 : i32
    %c0_i32_0 = arith.constant 0 : i32
    %c0_i32_1 = arith.constant 0 : i32
    return %c0_i32, %c0_i32_0 : i32, i32
  }
  func.func @transform_6(%arg0: i32, %arg1: i32) -> (i32, i32) {
    %c0_i32 = arith.constant 0 : i32
    %c0_i32_0 = arith.constant 0 : i32
    %c0_i32_1 = arith.constant 0 : i32
    return %c0_i32, %c0_i32_0 : i32, i32
  }
  func.func @transform_7(%arg0: i32, %arg1: i32) -> (i32, i32) {
    %c0_i32 = arith.constant 0 : i32
    %c0_i32_0 = arith.constant 0 : i32
    %c0_i32_1 = arith.constant 0 : i32
    return %c0_i32, %c0_i32_0 : i32, i32
  }
  func.func @transform_8(%arg0: i32, %arg1: i32) -> (i32, i32, i32) {
    %c0_i32 = arith.constant 0 : i32
    %c0_i32_0 = arith.constant 0 : i32
    %c0_i32_1 = arith.constant 0 : i32
    return %arg1, %c0_i32, %c0_i32_0 : i32, i32, i32
  }
  func.func @transform_9(%arg0: i32, %arg1: i32) -> (i32, i32, i32) {
    %c0_i32 = arith.constant 0 : i32
    %c0_i32_0 = arith.constant 0 : i32
    %c0_i32_1 = arith.constant 0 : i32
    return %arg1, %c0_i32, %c0_i32_0 : i32, i32, i32
  }
  func.func @transform_10(%arg0: i32, %arg1: i32) -> (i32, i32, i32) {
    %c0_i32 = arith.constant 0 : i32
    %c0_i32_0 = arith.constant 0 : i32
    %c0_i32_1 = arith.constant 0 : i32
    return %arg1, %c0_i32, %c0_i32_0 : i32, i32, i32
  }
  func.func @transform_11(%arg0: i32, %arg1: i32) -> (i32, i32, i32, i32) {
    %c0_i32 = arith.constant 0 : i32
    %c0_i32_0 = arith.constant 0 : i32
    %c0_i32_1 = arith.constant 0 : i32
    %c0_i32_2 = arith.constant 0 : i32
    return %arg1, %c0_i32, %c0_i32_0, %c0_i32_1 : i32, i32, i32, i32
  }
  func.func @transform_12(%arg0: i32, %arg1: i32) -> (i32, i32, i32, i32) {
    %c0_i32 = arith.constant 0 : i32
    %c0_i32_0 = arith.constant 0 : i32
    %c0_i32_1 = arith.constant 0 : i32
    %c0_i32_2 = arith.constant 0 : i32
    return %arg1, %c0_i32, %c0_i32_0, %c0_i32_1 : i32, i32, i32, i32
  }
  func.func @transform_13(%arg0: i32, %arg1: i32) -> (i32, i32, i32) {
    %c0_i32 = arith.constant 0 : i32
    %c0_i32_0 = arith.constant 0 : i32
    %c0_i32_1 = arith.constant 0 : i32
    return %arg1, %c0_i32, %c0_i32_0 : i32, i32, i32
  }
  func.func @transform_14(%arg0: i32, %arg1: i32) -> (i32, i32, i32) {
    %c0_i32 = arith.constant 0 : i32
    %c0_i32_0 = arith.constant 0 : i32
    %c0_i32_1 = arith.constant 0 : i32
    return %arg1, %c0_i32, %c0_i32_0 : i32, i32, i32
  }
  func.func @transform_15(%arg0: i32, %arg1: i32) -> (i32, i32) {
    %c0_i32 = arith.constant 0 : i32
    %c0_i32_0 = arith.constant 0 : i32
    return %arg0, %c0_i32 : i32, i32
  }
  func.func @transform_16(%arg0: i32, %arg1: i32) -> (i32, i32) {
    %c0_i32 = arith.constant 0 : i32
    %c0_i32_0 = arith.constant 0 : i32
    return %arg0, %c0_i32 : i32, i32
  }
}

</mosaic_0001>

<llo_original>
// kernel: forward.1
$region0: #{forward.1}
  #allocation0 [shape = 'u32[]', space=smem, size = 0x4, offset = 0x4, fixed_abs, tag = 'smem constant byte address 0x4 - core index']
  #allocation1 [shape = 'u32[72,128]{1,0:T(1,128)}', space=vmem, size = 0x9000, scoped, tag = 'internal scratch']
  #allocation2 [shape = 'f32[16,512]{1,0:T(8,128)}', space=vmem, size = 0x8000, scoped, tag = 'scratch operand']
  #allocation3 [shape = 'f32[16,128]{1,0:T(8,128)}', space=vmem, size = 0x2000, scoped, tag = 'scratch operand']
  %s0 = inlined_call_operand.vmem [shape: f32[16,384], index: 0, kind: input, shape index: {}]
  %s1 = inlined_call_operand.vmem [shape: f32[16,512], index: 1, kind: input, shape index: {}]
  %s2 = inlined_call_operand.vmem [shape: f32[1,16,16], index: 2, kind: input, shape index: {}]
  %s3 = inlined_call_operand.vmem [shape: f32[2,128], index: 3, kind: input, shape index: {}]
  %s4 = inlined_call_operand.hbm [shape: bf16[384,512], index: 4, kind: input, shape index: {}]
  %s5 = inlined_call_operand.hbm [shape: bf16[512,512], index: 5, kind: input, shape index: {}]
  %s6 = inlined_call_operand.vmem [shape: bf16[512,128], index: 6, kind: input, shape index: {}]
  %s7 = inlined_call_operand.vmem [shape: f32[5,512], index: 7, kind: input, shape index: {}]
  %s8 = inlined_call_operand.hbm [shape: bf16[2,512,384], index: 8, kind: input, shape index: {}]
  %s9 = inlined_call_operand.vmem [shape: bf16[2,128,256], index: 9, kind: input, shape index: {}]
  %s10 = inlined_call_operand.vmem [shape: bf16[2,128,128], index: 10, kind: input, shape index: {}]
  %s11 = inlined_call_operand.hbm [shape: bf16[2,4,128,512], index: 11, kind: input, shape index: {}]
  %s12 = inlined_call_operand.hbm [shape: bf16[2,4,512,128], index: 12, kind: input, shape index: {}]
  %s13 = inlined_call_operand.vmem [shape: bf16[2,128,512], index: 13, kind: input, shape index: {}]
  %s14 = inlined_call_operand.vmem [shape: f32[2,19,512], index: 14, kind: input, shape index: {}]
  %s15 = inlined_call_operand.hbm [shape: f32[2,128], index: 15, kind: output, shape index: {0}]
  %s16 = inlined_call_operand.vmem [shape: f32[1,128], index: 16, kind: output, shape index: {1}]
  %17 = xla_tuple %s15, %s16
  %s18 = sld [smem:[#allocation0]]
  $region129: #{forward.1} parent=0
    _
  %s20 = ssub.s32 1, %s18
  %s21 = scalar_select 0, %s20, %s18
  $region1: #{forward.1} parent=0
    #allocation4 [shape = 'u8[393216]{0}', space=vmem, size = 0x60000, scoped, tag = 'input window, operand 4, single buffered']
    #allocation5 [shape = 's32[2]{0}', space=sflag, size = 0x8, scoped, tag = 'scoped memory for forward.1']
    #allocation6 [shape = 's32[2]{0}', space=sflag, size = 0x8, scoped, tag = 'scoped memory for forward.1']
    #allocation7 [shape = 'u8[524288]{0}', space=vmem, size = 0x80000, scoped, tag = 'input window, operand 5, single buffered']
    #allocation8 [shape = 's32[1]{0}', space=sflag, size = 0x4, scoped, tag = 'scoped memory for forward.1']
    #allocation9 [shape = 'u8[786432]{0}', space=vmem, size = 0xc0000, scoped, tag = 'input window, operand 8']
    #allocation10 [shape = 'u8[1048576]{0}', space=vmem, size = 0x100000, scoped, tag = 'input window, operand 11']
    #allocation11 [shape = 'u8[1048576]{0}', space=vmem, size = 0x100000, scoped, tag = 'input window, operand 12']
    #allocation12 [shape = 'u8[1024]{0}', space=vmem, size = 0x400, scoped, tag = 'output window, operand 0, single buffered']
    %22 = vsyncpa [#allocation5], 0
    %23 = vsyncpa [#allocation8], 0
    %24 = vsyncpa [#allocation6], 0
    loop: start=0, step=1, limit=4
    $region2: #{forward.1} parent=1 // loop_pre_header
      _
    $region3: #{forward.1} parent=1 // loop_header
      %s26 = sphi 0, %s30
      %p27 = scmp.ge.s32.totalorder %s26, 4
      %s33 = sphi 0, %s45
      %s34 = sphi 0, %s41
      %s35 = sphi 0, %s33
      %s36 = sphi 0, %s34
      %s37 = sphi 0, %s35
      %s38 = sphi 0, %s36
      %s48 = sphi 0, %s50
      %s51 = sphi 0, %s48
      %s52 = sphi 0, %s51
      %s68 = sphi 0, %s52
      %s74 = sphi 0, %s76
      %s77 = sphi 0, %s74
      %s78 = sphi 0, %s77
      %s94 = sphi 0, %s78
      %s100 = sphi 0, %s102
      %s103 = sphi 0, %s100
      %s104 = sphi 0, %s103
      %s120 = sphi 0, %s104
      %s126 = sphi 0, %s128
      %s129 = sphi 0, %s126
      %s130 = sphi 0, %s129
      %s146 = sphi 0, %s130
      %s150 = sphi 0, %s150
      %s152 = sphi 0, %s150
      %s153 = sphi 0, %s152
      %s167 = sphi 0, %s153
      %s171 = sphi 0, %s171
      %s173 = sphi 0, %s171
      %s174 = sphi 0, %s173
      %s188 = sphi 0, %s174
      %s192 = sphi 0, %s192
      %s194 = sphi 0, %s192
      %s195 = sphi 0, %s194
      %s209 = sphi 0, %s195
      %s213 = sphi 0, %s213
      %s215 = sphi 0, %s213
      %s216 = sphi 0, %s215
      %s230 = sphi 0, %s216
      %s236 = sphi 0, %s238
      %s239 = sphi 0, %s236
      %s240 = sphi 0, %s239
      %s256 = sphi 0, %s240
      %s262 = sphi 0, %s264
      %s265 = sphi 0, %s262
      %s266 = sphi 0, %s265
      %s282 = sphi 0, %s266
      %s288 = sphi 0, %s290
      %s291 = sphi 0, %s288
      %s292 = sphi 0, %s291
      %s308 = sphi 0, %s292
      %s314 = sphi 0, %s316
      %s317 = sphi 0, %s314
      %s318 = sphi 0, %s317
      %s334 = sphi 0, %s318
      %s340 = sphi 0, %s342
      %s343 = sphi 0, %s340
      %s344 = sphi 0, %s343
      %s360 = sphi 0, %s344
      %s366 = sphi 0, %s368
      %s369 = sphi 0, %s366
      %s370 = sphi 0, %s369
      %s386 = sphi 0, %s370
      %s392 = sphi 0, %s394
      %s395 = sphi 0, %s392
      %s396 = sphi 0, %s395
      %s412 = sphi 0, %s396
      %s418 = sphi 0, %s420
      %s421 = sphi 0, %s418
      %s422 = sphi 0, %s421
      %s438 = sphi 0, %s422
      %s444 = sphi 0, %s446
      %s447 = sphi 0, %s444
      %s448 = sphi 0, %s447
      %s464 = sphi 0, %s448
    $region4: #{forward.1} parent=1 // loop_header_branch
      %29 = sbr.rel (%p27) target = $region8
    $region5: #{forward.1} parent=1 // loop_body
      %s31 = ssub.s32 %s26, 1
      %s32 = ssub.s32 %s26, 2
      %s39 = sadd.s32 1, %s34
      %p40 = scmp.ge.s32.totalorder %s39, 2
      %s41 = scalar_select %p40, 0, %s39
      %s42 = sadd.s32 1, %s33
      %s43 = scalar_select %p40, %s42, %s33
      %p44 = scmp.ge.s32.totalorder %s43, 1
      %s45 = scalar_select %p44, 0, %s43
      %s46 = ssub.s32 %s33, %s45
      %p47 = scmp.eq.s32.totalorder %s46, 0
      %s49 = sadd.s32 %s48, 1
      %s50 = scalar_select %p47, %s48, %s49
      %p53 = pneg %p47
      %p54 = scmp.eq.s32.totalorder %s26, 1
      %p55 = por %p53, %p54
      %p56 = scmp.ne.s32.totalorder %s48, %s51
      %p57 = scmp.eq.s32.totalorder %s26, 0
      %p58 = por %p56, %p57
      %p59 = scmp.ne.s32.totalorder %s48, %s51
      %p60 = scmp.eq.s32.totalorder %s31, 1
      %p61 = por %p59, %p60
      %p62 = scmp.ne.s32.totalorder %s51, %s52
      %p63 = scmp.eq.s32.totalorder %s31, 0
      %p64 = por %p62, %p63
      %p65 = scmp.ne.s32.totalorder %s51, %s52
      %p66 = scmp.eq.s32.totalorder %s32, 1
      %p67 = por %p65, %p66
      %p69 = scmp.ne.s32.totalorder %s52, %s68
      %p70 = scmp.eq.s32.totalorder %s32, 0
      %p71 = por %p69, %p70
      %s72 = ssub.s32 %s33, %s45
      %p73 = scmp.eq.s32.totalorder %s72, 0
      %s75 = sadd.s32 %s74, 1
      %s76 = scalar_select %p73, %s74, %s75
      %p79 = pneg %p73
      %p80 = scmp.eq.s32.totalorder %s26, 1
      %p81 = por %p79, %p80
      %p82 = scmp.ne.s32.totalorder %s74, %s77
      %p83 = scmp.eq.s32.totalorder %s26, 0
      %p84 = por %p82, %p83
      %p85 = scmp.ne.s32.totalorder %s74, %s77
      %p86 = scmp.eq.s32.totalorder %s31, 1
      %p87 = por %p85, %p86
      %p88 = scmp.ne.s32.totalorder %s77, %s78
      %p89 = scmp.eq.s32.totalorder %s31, 0
      %p90 = por %p88, %p89
      %p91 = scmp.ne.s32.totalorder %s77, %s78
      %p92 = scmp.eq.s32.totalorder %s32, 1
      %p93 = por %p91, %p92
      %p95 = scmp.ne.s32.totalorder %s78, %s94
      %p96 = scmp.eq.s32.totalorder %s32, 0
      %p97 = por %p95, %p96
      %s98 = ssub.s32 %s33, %s45
      %p99 = scmp.eq.s32.totalorder %s98, 0
      %s101 = sadd.s32 %s100, 1
      %s102 = scalar_select %p99, %s100, %s101
      %p105 = pneg %p99
      %p106 = scmp.eq.s32.totalorder %s26, 1
      %p107 = por %p105, %p106
      %p108 = scmp.ne.s32.totalorder %s100, %s103
      %p109 = scmp.eq.s32.totalorder %s26, 0
      %p110 = por %p108, %p109
      %p111 = scmp.ne.s32.totalorder %s100, %s103
      %p112 = scmp.eq.s32.totalorder %s31, 1
      %p113 = por %p111, %p112
      %p114 = scmp.ne.s32.totalorder %s103, %s104
      %p115 = scmp.eq.s32.totalorder %s31, 0
      %p116 = por %p114, %p115
      %p117 = scmp.ne.s32.totalorder %s103, %s104
      %p118 = scmp.eq.s32.totalorder %s32, 1
      %p119 = por %p117, %p118
      %p121 = scmp.ne.s32.totalorder %s104, %s120
      %p122 = scmp.eq.s32.totalorder %s32, 0
      %p123 = por %p121, %p122
      %s124 = ssub.s32 %s33, %s45
      %p125 = scmp.eq.s32.totalorder %s124, 0
      %s127 = sadd.s32 %s126, 1
      %s128 = scalar_select %p125, %s126, %s127
      %p131 = pneg %p125
      %p132 = scmp.eq.s32.totalorder %s26, 1
      %p133 = por %p131, %p132
      %p134 = scmp.ne.s32.totalorder %s126, %s129
      %p135 = scmp.eq.s32.totalorder %s26, 0
      %p136 = por %p134, %p135
      %p137 = scmp.ne.s32.totalorder %s126, %s129
      %p138 = scmp.eq.s32.totalorder %s31, 1
      %p139 = por %p137, %p138
      %p140 = scmp.ne.s32.totalorder %s129, %s130
      %p141 = scmp.eq.s32.totalorder %s31, 0
      %p142 = por %p140, %p141
      %p143 = scmp.ne.s32.totalorder %s129, %s130
      %p144 = scmp.eq.s32.totalorder %s32, 1
      %p145 = por %p143, %p144
      %p147 = scmp.ne.s32.totalorder %s130, %s146
      %p148 = scmp.eq.s32.totalorder %s32, 0
      %p149 = por %p147, %p148
      %s151 = sadd.s32 %s150, 1
      %p154 = scmp.eq.s32.totalorder %s26, 1
      %p155 = scmp.ne.s32.totalorder %s150, %s152
      %p156 = scmp.eq.s32.totalorder %s26, 0
      %p157 = por %p155, %p156
      %p158 = scmp.ne.s32.totalorder %s150, %s152
      %p159 = scmp.eq.s32.totalorder %s31, 1
      %p160 = por %p158, %p159
      %p161 = scmp.ne.s32.totalorder %s152, %s153
      %p162 = scmp.eq.s32.totalorder %s31, 0
      %p163 = por %p161, %p162
      %p164 = scmp.ne.s32.totalorder %s152, %s153
      %p165 = scmp.eq.s32.totalorder %s32, 1
      %p166 = por %p164, %p165
      %p168 = scmp.ne.s32.totalorder %s153, %s167
      %p169 = scmp.eq.s32.totalorder %s32, 0
      %p170 = por %p168, %p169
      %s172 = sadd.s32 %s171, 1
      %p175 = scmp.eq.s32.totalorder %s26, 1
      %p176 = scmp.ne.s32.totalorder %s171, %s173
      %p177 = scmp.eq.s32.totalorder %s26, 0
      %p178 = por %p176, %p177
      %p179 = scmp.ne.s32.totalorder %s171, %s173
      %p180 = scmp.eq.s32.totalorder %s31, 1
      %p181 = por %p179, %p180
      %p182 = scmp.ne.s32.totalorder %s173, %s174
      %p183 = scmp.eq.s32.totalorder %s31, 0
      %p184 = por %p182, %p183
      %p185 = scmp.ne.s32.totalorder %s173, %s174
      %p186 = scmp.eq.s32.totalorder %s32, 1
      %p187 = por %p185, %p186
      %p189 = scmp.ne.s32.totalorder %s174, %s188
      %p190 = scmp.eq.s32.totalorder %s32, 0
      %p191 = por %p189, %p190
      %s193 = sadd.s32 %s192, 1
      %p196 = scmp.eq.s32.totalorder %s26, 1
      %p197 = scmp.ne.s32.totalorder %s192, %s194
      %p198 = scmp.eq.s32.totalorder %s26, 0
      %p199 = por %p197, %p198
      %p200 = scmp.ne.s32.totalorder %s192, %s194
      %p201 = scmp.eq.s32.totalorder %s31, 1
      %p202 = por %p200, %p201
      %p203 = scmp.ne.s32.totalorder %s194, %s195
      %p204 = scmp.eq.s32.totalorder %s31, 0
      %p205 = por %p203, %p204
      %p206 = scmp.ne.s32.totalorder %s194, %s195
      %p207 = scmp.eq.s32.totalorder %s32, 1
      %p208 = por %p206, %p207
      %p210 = scmp.ne.s32.totalorder %s195, %s209
      %p211 = scmp.eq.s32.totalorder %s32, 0
      %p212 = por %p210, %p211
      %s214 = sadd.s32 %s213, 1
      %p217 = scmp.eq.s32.totalorder %s26, 1
      %p218 = scmp.ne.s32.totalorder %s213, %s215
      %p219 = scmp.eq.s32.totalorder %s26, 0
      %p220 = por %p218, %p219
      %p221 = scmp.ne.s32.totalorder %s213, %s215
      %p222 = scmp.eq.s32.totalorder %s31, 1
      %p223 = por %p221, %p222
      %p224 = scmp.ne.s32.totalorder %s215, %s216
      %p225 = scmp.eq.s32.totalorder %s31, 0
      %p226 = por %p224, %p225
      %p227 = scmp.ne.s32.totalorder %s215, %s216
      %p228 = scmp.eq.s32.totalorder %s32, 1
      %p229 = por %p227, %p228
      %p231 = scmp.ne.s32.totalorder %s216, %s230
      %p232 = scmp.eq.s32.totalorder %s32, 0
      %p233 = por %p231, %p232
      %s234 = ssub.s32 %s34, %s41
      %p235 = scmp.eq.s32.totalorder %s234, 0
      %s237 = sadd.s32 %s236, 1
      %s238 = scalar_select %p235, %s236, %s237
      %p241 = pneg %p235
      %p242 = scmp.eq.s32.totalorder %s26, 1
      %p243 = por %p241, %p242
      %p244 = scmp.ne.s32.totalorder %s236, %s239
      %p245 = scmp.eq.s32.totalorder %s26, 0
      %p246 = por %p244, %p245
      %p247 = scmp.ne.s32.totalorder %s236, %s239
      %p248 = scmp.eq.s32.totalorder %s31, 1
      %p249 = por %p247, %p248
      %p250 = scmp.ne.s32.totalorder %s239, %s240
      %p251 = scmp.eq.s32.totalorder %s31, 0
      %p252 = por %p250, %p251
      %p253 = scmp.ne.s32.totalorder %s239, %s240
      %p254 = scmp.eq.s32.totalorder %s32, 1
      %p255 = por %p253, %p254
      %p257 = scmp.ne.s32.totalorder %s240, %s256
      %p258 = scmp.eq.s32.totalorder %s32, 0
      %p259 = por %p257, %p258
      %s260 = ssub.s32 %s34, %s41
      %p261 = scmp.eq.s32.totalorder %s260, 0
      %s263 = sadd.s32 %s262, 1
      %s264 = scalar_select %p261, %s262, %s263
      %p267 = pneg %p261
      %p268 = scmp.eq.s32.totalorder %s26, 1
      %p269 = por %p267, %p268
      %p270 = scmp.ne.s32.totalorder %s262, %s265
      %p271 = scmp.eq.s32.totalorder %s26, 0
      %p272 = por %p270, %p271
      %p273 = scmp.ne.s32.totalorder %s262, %s265
      %p274 = scmp.eq.s32.totalorder %s31, 1
      %p275 = por %p273, %p274
      %p276 = scmp.ne.s32.totalorder %s265, %s266
      %p277 = scmp.eq.s32.totalorder %s31, 0
      %p278 = por %p276, %p277
      %p279 = scmp.ne.s32.totalorder %s265, %s266
      %p280 = scmp.eq.s32.totalorder %s32, 1
      %p281 = por %p279, %p280
      %p283 = scmp.ne.s32.totalorder %s266, %s282
      %p284 = scmp.eq.s32.totalorder %s32, 0
      %p285 = por %p283, %p284
      %s286 = ssub.s32 %s34, %s41
      %p287 = scmp.eq.s32.totalorder %s286, 0
      %s289 = sadd.s32 %s288, 1
      %s290 = scalar_select %p287, %s288, %s289
      %p293 = pneg %p287
      %p294 = scmp.eq.s32.totalorder %s26, 1
      %p295 = por %p293, %p294
      %p296 = scmp.ne.s32.totalorder %s288, %s291
      %p297 = scmp.eq.s32.totalorder %s26, 0
      %p298 = por %p296, %p297
      %p299 = scmp.ne.s32.totalorder %s288, %s291
      %p300 = scmp.eq.s32.totalorder %s31, 1
      %p301 = por %p299, %p300
      %p302 = scmp.ne.s32.totalorder %s291, %s292
      %p303 = scmp.eq.s32.totalorder %s31, 0
      %p304 = por %p302, %p303
      %p305 = scmp.ne.s32.totalorder %s291, %s292
      %p306 = scmp.eq.s32.totalorder %s32, 1
      %p307 = por %p305, %p306
      %p309 = scmp.ne.s32.totalorder %s292, %s308
      %p310 = scmp.eq.s32.totalorder %s32, 0
      %p311 = por %p309, %p310
      %s312 = ssub.s32 %s34, %s41
      %p313 = scmp.eq.s32.totalorder %s312, 0
      %s315 = sadd.s32 %s314, 1
      %s316 = scalar_select %p313, %s314, %s315
      %p319 = pneg %p313
      %p320 = scmp.eq.s32.totalorder %s26, 1
      %p321 = por %p319, %p320
      %p322 = scmp.ne.s32.totalorder %s314, %s317
      %p323 = scmp.eq.s32.totalorder %s26, 0
      %p324 = por %p322, %p323
      %p325 = scmp.ne.s32.totalorder %s314, %s317
      %p326 = scmp.eq.s32.totalorder %s31, 1
      %p327 = por %p325, %p326
      %p328 = scmp.ne.s32.totalorder %s317, %s318
      %p329 = scmp.eq.s32.totalorder %s31, 0
      %p330 = por %p328, %p329
      %p331 = scmp.ne.s32.totalorder %s317, %s318
      %p332 = scmp.eq.s32.totalorder %s32, 1
      %p333 = por %p331, %p332
      %p335 = scmp.ne.s32.totalorder %s318, %s334
      %p336 = scmp.eq.s32.totalorder %s32, 0
      %p337 = por %p335, %p336
      %s338 = ssub.s32 %s34, %s41
      %p339 = scmp.eq.s32.totalorder %s338, 0
      %s341 = sadd.s32 %s340, 1
      %s342 = scalar_select %p339, %s340, %s341
      %p345 = pneg %p339
      %p346 = scmp.eq.s32.totalorder %s26, 1
      %p347 = por %p345, %p346
      %p348 = scmp.ne.s32.totalorder %s340, %s343
      %p349 = scmp.eq.s32.totalorder %s26, 0
      %p350 = por %p348, %p349
      %p351 = scmp.ne.s32.totalorder %s340, %s343
      %p352 = scmp.eq.s32.totalorder %s31, 1
      %p353 = por %p351, %p352
      %p354 = scmp.ne.s32.totalorder %s343, %s344
      %p355 = scmp.eq.s32.totalorder %s31, 0
      %p356 = por %p354, %p355
      %p357 = scmp.ne.s32.totalorder %s343, %s344
      %p358 = scmp.eq.s32.totalorder %s32, 1
      %p359 = por %p357, %p358
      %p361 = scmp.ne.s32.totalorder %s344, %s360
      %p362 = scmp.eq.s32.totalorder %s32, 0
      %p363 = por %p361, %p362
      %s364 = ssub.s32 %s34, %s41
      %p365 = scmp.eq.s32.totalorder %s364, 0
      %s367 = sadd.s32 %s366, 1
      %s368 = scalar_select %p365, %s366, %s367
      %p371 = pneg %p365
      %p372 = scmp.eq.s32.totalorder %s26, 1
      %p373 = por %p371, %p372
      %p374 = scmp.ne.s32.totalorder %s366, %s369
      %p375 = scmp.eq.s32.totalorder %s26, 0
      %p376 = por %p374, %p375
      %p377 = scmp.ne.s32.totalorder %s366, %s369
      %p378 = scmp.eq.s32.totalorder %s31, 1
      %p379 = por %p377, %p378
      %p380 = scmp.ne.s32.totalorder %s369, %s370
      %p381 = scmp.eq.s32.totalorder %s31, 0
      %p382 = por %p380, %p381
      %p383 = scmp.ne.s32.totalorder %s369, %s370
      %p384 = scmp.eq.s32.totalorder %s32, 1
      %p385 = por %p383, %p384
      %p387 = scmp.ne.s32.totalorder %s370, %s386
      %p388 = scmp.eq.s32.totalorder %s32, 0
      %p389 = por %p387, %p388
      %s390 = ssub.s32 %s34, %s41
      %p391 = scmp.eq.s32.totalorder %s390, 0
      %s393 = sadd.s32 %s392, 1
      %s394 = scalar_select %p391, %s392, %s393
      %p397 = pneg %p391
      %p398 = scmp.eq.s32.totalorder %s26, 1
      %p399 = por %p397, %p398
      %p400 = scmp.ne.s32.totalorder %s392, %s395
      %p401 = scmp.eq.s32.totalorder %s26, 0
      %p402 = por %p400, %p401
      %p403 = scmp.ne.s32.totalorder %s392, %s395
      %p404 = scmp.eq.s32.totalorder %s31, 1
      %p405 = por %p403, %p404
      %p406 = scmp.ne.s32.totalorder %s395, %s396
      %p407 = scmp.eq.s32.totalorder %s31, 0
      %p408 = por %p406, %p407
      %p409 = scmp.ne.s32.totalorder %s395, %s396
      %p410 = scmp.eq.s32.totalorder %s32, 1
      %p411 = por %p409, %p410
      %p413 = scmp.ne.s32.totalorder %s396, %s412
      %p414 = scmp.eq.s32.totalorder %s32, 0
      %p415 = por %p413, %p414
      %s416 = ssub.s32 %s33, %s45
      %p417 = scmp.eq.s32.totalorder %s416, 0
      %s419 = sadd.s32 %s418, 1
      %s420 = scalar_select %p417, %s418, %s419
      %p423 = pneg %p417
      %p424 = scmp.eq.s32.totalorder %s26, 1
      %p425 = por %p423, %p424
      %p426 = scmp.ne.s32.totalorder %s418, %s421
      %p427 = scmp.eq.s32.totalorder %s26, 0
      %p428 = por %p426, %p427
      %p429 = scmp.ne.s32.totalorder %s418, %s421
      %p430 = scmp.eq.s32.totalorder %s31, 1
      %p431 = por %p429, %p430
      %p432 = scmp.ne.s32.totalorder %s421, %s422
      %p433 = scmp.eq.s32.totalorder %s31, 0
      %p434 = por %p432, %p433
      %p435 = scmp.ne.s32.totalorder %s421, %s422
      %p436 = scmp.eq.s32.totalorder %s32, 1
      %p437 = por %p435, %p436
      %p439 = scmp.ne.s32.totalorder %s422, %s438
      %p440 = scmp.eq.s32.totalorder %s32, 0
      %p441 = por %p439, %p440
      %s442 = ssub.s32 %s33, %s45
      %p443 = scmp.eq.s32.totalorder %s442, 0
      %s445 = sadd.s32 %s444, 1
      %s446 = scalar_select %p443, %s444, %s445
      %p449 = pneg %p443
      %p450 = scmp.eq.s32.totalorder %s26, 1
      %p451 = por %p449, %p450
      %p452 = scmp.ne.s32.totalorder %s444, %s447
      %p453 = scmp.eq.s32.totalorder %s26, 0
      %p454 = por %p452, %p453
      %p455 = scmp.ne.s32.totalorder %s444, %s447
      %p456 = scmp.eq.s32.totalorder %s31, 1
      %p457 = por %p455, %p456
      %p458 = scmp.ne.s32.totalorder %s447, %s448
      %p459 = scmp.eq.s32.totalorder %s31, 0
      %p460 = por %p458, %p459
      %p461 = scmp.ne.s32.totalorder %s447, %s448
      %p462 = scmp.eq.s32.totalorder %s32, 1
      %p463 = por %p461, %p462
      %p465 = scmp.ne.s32.totalorder %s448, %s464
      %p466 = scmp.eq.s32.totalorder %s32, 0
      %p467 = por %p465, %p466
      %p468 = scmp.le.s32.totalorder 1, %s26
      %p469 = scmp.lt.s32.totalorder %s26, 3
      %p470 = pnand %p468, %p469
      %p471 = pneg %p470
      // Predicated region
      $region9: #{forward.1} parent=5 // pred_check
        _
      $region10: #{forward.1} parent=5 // pred_check_branch
        %473 = sbr.rel (%p470) target = $region12
      $region11: #{forward.1} parent=5 // pred_region
        %s474 = ssub.s32 %s26, 1
        // Predicated region
        $region13: #{forward.1} parent=11 // pred_check
          %p475 = pneg %p64
        $region14: #{forward.1} parent=11 // pred_check_branch
          %477 = sbr.rel (%p475) target = $region16
        $region15: #{forward.1} parent=11 // pred_region
          %s478 = smul.u32 2, %s35
          %p479 = scmp.lt.s32.totalorder %s478, 1
          %s480 = scalar_select %p479, %s478, 1
          %s481 = smul.addr %s480, 3
          %s482 = smul.addr %s481, 8
          %s483 = scalar_lea.vmem %s0, %s482
          %s484 = smul.u32 2, %s35
        $region16: #{forward.1} parent=11 // pred_fallthru
          _
        // Predicated region
        $region17: #{forward.1} parent=11 // pred_check
          %p485 = pneg %p90
        $region18: #{forward.1} parent=11 // pred_check_branch
          %487 = sbr.rel (%p485) target = $region20
        $region19: #{forward.1} parent=11 // pred_region
          %s488 = smul.u32 2, %s35
          %p489 = scmp.lt.s32.totalorder %s488, 1
          %s490 = scalar_select %p489, %s488, 1
          %s491 = smul.addr %s490, 4
          %s492 = smul.addr %s491, 8
          %s493 = scalar_lea.vmem %s1, %s492
          %s494 = smul.u32 2, %s35
        $region20: #{forward.1} parent=11 // pred_fallthru
          _
        // Predicated region
        $region21: #{forward.1} parent=11 // pred_check
          %p495 = pneg %p116
        $region22: #{forward.1} parent=11 // pred_check_branch
          %497 = sbr.rel (%p495) target = $region24
        $region23: #{forward.1} parent=11 // pred_region
          %p498 = scmp.lt.s32.totalorder %s35, 0
          %s499 = scalar_select %p498, %s35, 0
          %s500 = smul.addr %s499, 2
          %s501 = smul.addr %s500, 8
          %s502 = scalar_lea.vmem %s2, %s501
        $region24: #{forward.1} parent=11 // pred_fallthru
          _
        // Predicated region
        $region25: #{forward.1} parent=11 // pred_check
          %p503 = pneg %p142
        $region26: #{forward.1} parent=11 // pred_check_branch
          %505 = sbr.rel (%p503) target = $region28
        $region27: #{forward.1} parent=11 // pred_region
          %p506 = scmp.lt.s32.totalorder %s35, 0
          %s507 = scalar_select %p506, %s35, 0
          %s508 = smul.addr %s507, 2
          %s509 = scalar_lea.vmem %s3, %s508
        $region28: #{forward.1} parent=11 // pred_fallthru
          _
        // Predicated region
        $region29: #{forward.1} parent=11 // pred_check
          %p510 = pneg %p163
        $region30: #{forward.1} parent=11 // pred_check_branch
          %512 = sbr.rel (%p510) target = $region32
        $region31: #{forward.1} parent=11 // pred_region
          %514 = vsyncadd [#allocation5], 0
          %s515 = sshll.u32 %s4, 4
          %s516 = int_to_ptr.hbm [resolvable:$true] %s515
          %s517 = sshll.u32 [#allocation4], 4
          %s518 = int_to_ptr.vmem [resolvable:$true] %s517
          %523 = dma.hbm_to_vmem [thread:$0]  %s516, 12288, %s518, [#allocation5], 256, 256, 16
        $region32: #{forward.1} parent=11 // pred_fallthru
          _
        // Predicated region
        $region33: #{forward.1} parent=11 // pred_check
          %p524 = pneg %p184
        $region34: #{forward.1} parent=11 // pred_check_branch
          %526 = sbr.rel (%p524) target = $region36
        $region35: #{forward.1} parent=11 // pred_region
          %528 = vsyncadd [#allocation8], 0
          %s529 = sshll.u32 %s5, 4
          %s530 = int_to_ptr.hbm [resolvable:$true] %s529
          %s531 = sshll.u32 [#allocation7], 4
          %s532 = int_to_ptr.vmem [resolvable:$true] %s531
          %537 = dma.hbm_to_vmem [thread:$0]  %s530, 16384, %s532, [#allocation8], 256, 256, 16
        $region36: #{forward.1} parent=11 // pred_fallthru
          _
        // Predicated region
        $region37: #{forward.1} parent=11 // pred_check
          %p538 = pneg %p205
        $region38: #{forward.1} parent=11 // pred_check_branch
          %540 = sbr.rel (%p538) target = $region40
        $region39: #{forward.1} parent=11 // pred_region
          _
        $region40: #{forward.1} parent=11 // pred_fallthru
          _
        // Predicated region
        $region41: #{forward.1} parent=11 // pred_check
          %p541 = pneg %p226
        $region42: #{forward.1} parent=11 // pred_check_branch
          %543 = sbr.rel (%p541) target = $region44
        $region43: #{forward.1} parent=11 // pred_region
          _
        $region44: #{forward.1} parent=11 // pred_fallthru
          _
      $region12: #{forward.1} parent=5 // pred_fallthru
        _
      %p544 = scmp.lt.s32.totalorder %s26, 2
      // Predicated region
      $region45: #{forward.1} parent=5 // pred_check
        %p545 = pneg %p544
      $region46: #{forward.1} parent=5 // pred_check_branch
        %547 = sbr.rel (%p545) target = $region48
      $region47: #{forward.1} parent=5 // pred_region
        // Predicated region
        $region49: #{forward.1} parent=47 // pred_check
          %p548 = pneg %p246
        $region50: #{forward.1} parent=47 // pred_check_branch
          %550 = sbr.rel (%p548) target = $region52
        $region51: #{forward.1} parent=47 // pred_region
          %s551 = sand.u32 %s26, 1
          %s552 = scalar_lea.sflag [#allocation5], %s551
          %s553 = sand.u32 %s236, 1
          %s554 = smul.addr %s553, 768
          %s555 = scalar_lea.vmem [#allocation9], %s554
          %557 = vsyncadd %s552, 0
          %s558 = smul.addr %s34, 192
          %s559 = smul.addr %s558, 4
          %s560 = scalar_lea.hbm %s8, %s559
          %s561 = sshll.u32 %s560, 4
          %s562 = int_to_ptr.hbm [resolvable:$true] %s561
          %s563 = sshll.u32 %s555, 4
          %s564 = int_to_ptr.vmem [resolvable:$true] %s563
          %569 = dma.hbm_to_vmem [thread:$0]  %s562, 12288, %s564, %s552, 192, 192, 12
        $region52: #{forward.1} parent=47 // pred_fallthru
          _
        // Predicated region
        $region53: #{forward.1} parent=47 // pred_check
          %p570 = pneg %p272
        $region54: #{forward.1} parent=47 // pred_check_branch
          %572 = sbr.rel (%p570) target = $region56
        $region55: #{forward.1} parent=47 // pred_region
          %p573 = scmp.lt.s32.totalorder %s34, 1
          %s574 = scalar_select %p573, %s34, 1
          %s575 = smul.addr %s574, 32
          %s576 = smul.addr %s575, 4
          %s577 = scalar_lea.vmem %s9, %s576
        $region56: #{forward.1} parent=47 // pred_fallthru
          _
        // Predicated region
        $region57: #{forward.1} parent=47 // pred_check
          %p578 = pneg %p298
        $region58: #{forward.1} parent=47 // pred_check_branch
          %580 = sbr.rel (%p578) target = $region60
        $region59: #{forward.1} parent=47 // pred_region
          %p581 = scmp.lt.s32.totalorder %s34, 1
          %s582 = scalar_select %p581, %s34, 1
          %s583 = smul.addr %s582, 16
          %s584 = smul.addr %s583, 4
          %s585 = scalar_lea.vmem %s10, %s584
        $region60: #{forward.1} parent=47 // pred_fallthru
          _
        // Predicated region
        $region61: #{forward.1} parent=47 // pred_check
          %p586 = pneg %p324
        $region62: #{forward.1} parent=47 // pred_check_branch
          %588 = sbr.rel (%p586) target = $region64
        $region63: #{forward.1} parent=47 // pred_region
          %s589 = sand.u32 %s26, 1
          %s590 = scalar_lea.sflag [#allocation5], %s589
          %s591 = sand.u32 %s314, 1
          %s592 = smul.addr %s591, 1024
          %s593 = scalar_lea.vmem [#allocation10], %s592
          %595 = vsyncadd %s590, 0
          %s596 = smul.addr %s34, 256
          %s597 = smul.addr %s596, 4
          %s598 = scalar_lea.hbm %s11, %s597
          %s599 = sshll.u32 %s598, 4
          %s600 = int_to_ptr.hbm [resolvable:$true] %s599
          %s601 = sshll.u32 %s593, 4
          %s602 = int_to_ptr.vmem [resolvable:$true] %s601
          %607 = dma.hbm_to_vmem [thread:$0]  %s600, 16384, %s602, %s590, 256, 256, 16
        $region64: #{forward.1} parent=47 // pred_fallthru
          _
        // Predicated region
        $region65: #{forward.1} parent=47 // pred_check
          %p608 = pneg %p350
        $region66: #{forward.1} parent=47 // pred_check_branch
          %610 = sbr.rel (%p608) target = $region68
        $region67: #{forward.1} parent=47 // pred_region
          %s611 = sand.u32 %s26, 1
          %s612 = scalar_lea.sflag [#allocation5], %s611
          %s613 = sand.u32 %s340, 1
          %s614 = smul.addr %s613, 1024
          %s615 = scalar_lea.vmem [#allocation11], %s614
          %617 = vsyncadd %s612, 0
          %s618 = smul.addr %s34, 256
          %s619 = smul.addr %s618, 4
          %s620 = scalar_lea.hbm %s12, %s619
          %s621 = sshll.u32 %s620, 4
          %s622 = int_to_ptr.hbm [resolvable:$true] %s621
          %s623 = sshll.u32 %s615, 4
          %s624 = int_to_ptr.vmem [resolvable:$true] %s623
          %629 = dma.hbm_to_vmem [thread:$0]  %s622, 16384, %s624, %s612, 64, 64, 4
        $region68: #{forward.1} parent=47 // pred_fallthru
          _
        // Predicated region
        $region69: #{forward.1} parent=47 // pred_check
          %p630 = pneg %p376
        $region70: #{forward.1} parent=47 // pred_check_branch
          %632 = sbr.rel (%p630) target = $region72
        $region71: #{forward.1} parent=47 // pred_region
          %p633 = scmp.lt.s32.totalorder %s34, 1
          %s634 = scalar_select %p633, %s34, 1
          %s635 = smul.addr %s634, 64
          %s636 = smul.addr %s635, 4
          %s637 = scalar_lea.vmem %s13, %s636
        $region72: #{forward.1} parent=47 // pred_fallthru
          _
        // Predicated region
        $region73: #{forward.1} parent=47 // pred_check
          %p638 = pneg %p402
        $region74: #{forward.1} parent=47 // pred_check_branch
          %640 = sbr.rel (%p638) target = $region76
        $region75: #{forward.1} parent=47 // pred_region
          %p641 = scmp.lt.s32.totalorder %s34, 1
          %s642 = scalar_select %p641, %s34, 1
          %s643 = smul.addr %s642, 12
          %s644 = smul.addr %s643, 8
          %s645 = scalar_lea.vmem %s14, %s644
        $region76: #{forward.1} parent=47 // pred_fallthru
          _
      $region48: #{forward.1} parent=5 // pred_fallthru
        _
      %p646 = scmp.le.s32.totalorder 1, %s26
      %p647 = scmp.lt.s32.totalorder %s26, 3
      %p648 = pnand %p646, %p647
      %p649 = pneg %p648
      // Predicated region
      $region77: #{forward.1} parent=5 // pred_check
        _
      $region78: #{forward.1} parent=5 // pred_check_branch
        %651 = sbr.rel (%p648) target = $region80
      $region79: #{forward.1} parent=5 // pred_region
        %s652 = ssub.s32 %s26, 1
        // Predicated region
        $region81: #{forward.1} parent=79 // pred_check
          %p653 = pneg %p163
        $region82: #{forward.1} parent=79 // pred_check_branch
          %655 = sbr.rel (%p653) target = $region84
        $region83: #{forward.1} parent=79 // pred_region
          %657 = dma.done [#allocation5], 12288
        $region84: #{forward.1} parent=79 // pred_fallthru
          _
        // Predicated region
        $region85: #{forward.1} parent=79 // pred_check
          %p658 = pneg %p184
        $region86: #{forward.1} parent=79 // pred_check_branch
          %660 = sbr.rel (%p658) target = $region88
        $region87: #{forward.1} parent=79 // pred_region
          %662 = dma.done [#allocation8], 16384
        $region88: #{forward.1} parent=79 // pred_fallthru
          _
        %s663 = sand.u32 %s31, 1
        %s664 = scalar_lea.sflag [#allocation5], %s663
        %s665 = sand.u32 %s239, 1
        %s666 = smul.addr %s665, 768
        %s667 = scalar_lea.vmem [#allocation9], %s666
        // Predicated region
        $region89: #{forward.1} parent=79 // pred_check
          %p668 = pneg %p252
        $region90: #{forward.1} parent=79 // pred_check_branch
          %670 = sbr.rel (%p668) target = $region92
        $region91: #{forward.1} parent=79 // pred_region
          %672 = dma.done %s664, 12288
        $region92: #{forward.1} parent=79 // pred_fallthru
          _
        %s673 = sand.u32 %s31, 1
        %s674 = scalar_lea.sflag [#allocation5], %s673
        %s675 = sand.u32 %s317, 1
        %s676 = smul.addr %s675, 1024
        %s677 = scalar_lea.vmem [#allocation10], %s676
        // Predicated region
        $region93: #{forward.1} parent=79 // pred_check
          %p678 = pneg %p330
        $region94: #{forward.1} parent=79 // pred_check_branch
          %680 = sbr.rel (%p678) target = $region96
        $region95: #{forward.1} parent=79 // pred_region
          %682 = dma.done %s674, 16384
        $region96: #{forward.1} parent=79 // pred_fallthru
          _
        %s683 = sand.u32 %s31, 1
        %s684 = scalar_lea.sflag [#allocation5], %s683
        %s685 = sand.u32 %s343, 1
        %s686 = smul.addr %s685, 1024
        %s687 = scalar_lea.vmem [#allocation11], %s686
        // Predicated region
        $region97: #{forward.1} parent=79 // pred_check
          %p688 = pneg %p356
        $region98: #{forward.1} parent=79 // pred_check_branch
          %690 = sbr.rel (%p688) target = $region100
        $region99: #{forward.1} parent=79 // pred_region
          %692 = dma.done %s684, 16384
        $region100: #{forward.1} parent=79 // pred_fallthru
          _
        %s693 = smul.u32 2, %s35
        %p694 = scmp.lt.s32.totalorder %s693, 1
        %s695 = scalar_select %p694, %s693, 1
        %s696 = smul.addr %s695, 3
        %s697 = smul.addr %s696, 8
        %s698 = scalar_lea.vmem %s0, %s697
        %p699 = pneg %p64
        %p700 = pneg %p61
        %s701 = smul.u32 2, %s35
        %p702 = scmp.lt.s32.totalorder %s701, 1
        %s703 = scalar_select %p702, %s701, 1
        %s704 = smul.addr %s703, 4
        %s705 = smul.addr %s704, 8
        %s706 = scalar_lea.vmem %s1, %s705
        %p707 = pneg %p90
        %p708 = pneg %p87
        %p709 = scmp.lt.s32.totalorder %s35, 0
        %s710 = scalar_select %p709, %s35, 0
        %s711 = smul.addr %s710, 2
        %s712 = smul.addr %s711, 8
        %s713 = scalar_lea.vmem %s2, %s712
        %p714 = pneg %p116
        %p715 = pneg %p113
        %p716 = scmp.lt.s32.totalorder %s35, 0
        %s717 = scalar_select %p716, %s35, 0
        %s718 = smul.addr %s717, 2
        %s719 = scalar_lea.vmem %s3, %s718
        %p720 = pneg %p142
        %p721 = pneg %p139
        %p722 = pneg %p163
        %p723 = pneg %p160
        %p724 = pneg %p184
        %p725 = pneg %p181
        %p726 = pneg %p205
        %p727 = pneg %p202
        %p728 = pneg %p226
        %p729 = pneg %p223
        %s730 = sand.u32 %s31, 1
        %s731 = scalar_lea.sflag [#allocation5], %s730
        %s732 = sand.u32 %s239, 1
        %s733 = smul.addr %s732, 768
        %s734 = scalar_lea.vmem [#allocation9], %s733
        %p735 = pneg %p252
        %p736 = pneg %p249
        %p737 = scmp.lt.s32.totalorder %s36, 1
        %s738 = scalar_select %p737, %s36, 1
        %s739 = smul.addr %s738, 32
        %s740 = smul.addr %s739, 4
        %s741 = scalar_lea.vmem %s9, %s740
        %p742 = pneg %p278
        %p743 = pneg %p275
        %p744 = scmp.lt.s32.totalorder %s36, 1
        %s745 = scalar_select %p744, %s36, 1
        %s746 = smul.addr %s745, 16
        %s747 = smul.addr %s746, 4
        %s748 = scalar_lea.vmem %s10, %s747
        %p749 = pneg %p304
        %p750 = pneg %p301
        %s751 = sand.u32 %s31, 1
        %s752 = scalar_lea.sflag [#allocation5], %s751
        %s753 = sand.u32 %s317, 1
        %s754 = smul.addr %s753, 1024
        %s755 = scalar_lea.vmem [#allocation10], %s754
        %p756 = pneg %p330
        %p757 = pneg %p327
        %s758 = sand.u32 %s31, 1
        %s759 = scalar_lea.sflag [#allocation5], %s758
        %s760 = sand.u32 %s343, 1
        %s761 = smul.addr %s760, 1024
        %s762 = scalar_lea.vmem [#allocation11], %s761
        %p763 = pneg %p356
        %p764 = pneg %p353
        %p765 = scmp.lt.s32.totalorder %s36, 1
        %s766 = scalar_select %p765, %s36, 1
        %s767 = smul.addr %s766, 64
        %s768 = smul.addr %s767, 4
        %s769 = scalar_lea.vmem %s13, %s768
        %p770 = pneg %p382
        %p771 = pneg %p379
        %p772 = scmp.lt.s32.totalorder %s36, 1
        %s773 = scalar_select %p772, %s36, 1
        %s774 = smul.addr %s773, 12
        %s775 = smul.addr %s774, 8
        %s776 = scalar_lea.vmem %s14, %s775
        %p777 = pneg %p408
        %p778 = pneg %p405
        %p779 = pneg %p434
        %p780 = pneg %p431
        %p781 = pneg %p460
        %p782 = pneg %p457
        %p783 = scmp.lt.s32.totalorder %s35, 0
        %s784 = scalar_select %p783, %s35, 0
        %s785 = scalar_lea.vmem %s16, %s784
        %s786 = smul.u32 2, %s35
        %p787 = scmp.lt.s32.totalorder %s786, 1
        %s788 = scalar_select %p787, %s786, 1
        %s789 = smul.addr %s788, 3
        %s790 = smul.addr %s789, 8
        %s791 = scalar_lea.vmem %s0, %s790
        %s792 = smul.u32 2, %s35
        %s793 = smul.u32 2, %s35
        %p794 = scmp.lt.s32.totalorder %s793, 1
        %s795 = scalar_select %p794, %s793, 1
        %s796 = smul.addr %s795, 4
        %s797 = smul.addr %s796, 8
        %s798 = scalar_lea.vmem %s1, %s797
        %s799 = smul.u32 2, %s35
        %p800 = scmp.lt.s32.totalorder %s35, 0
        %s801 = scalar_select %p800, %s35, 0
        %s802 = smul.addr %s801, 2
        %s803 = smul.addr %s802, 8
        %s804 = scalar_lea.vmem %s2, %s803
        %p805 = scmp.lt.s32.totalorder %s35, 0
        %s806 = scalar_select %p805, %s35, 0
        %s807 = smul.addr %s806, 2
        %s808 = scalar_lea.vmem %s3, %s807
        %p809 = scmp.lt.s32.totalorder %s36, 1
        %s810 = scalar_select %p809, %s36, 1
        %s811 = smul.addr %s810, 32
        %s812 = smul.addr %s811, 4
        %s813 = scalar_lea.vmem %s9, %s812
        %p814 = scmp.lt.s32.totalorder %s36, 1
        %s815 = scalar_select %p814, %s36, 1
        %s816 = smul.addr %s815, 16
        %s817 = smul.addr %s816, 4
        %s818 = scalar_lea.vmem %s10, %s817
        %p819 = scmp.lt.s32.totalorder %s36, 1
        %s820 = scalar_select %p819, %s36, 1
        %s821 = smul.addr %s820, 64
        %s822 = smul.addr %s821, 4
        %s823 = scalar_lea.vmem %s13, %s822
        %p824 = scmp.lt.s32.totalorder %s36, 1
        %s825 = scalar_select %p824, %s36, 1
        %s826 = smul.addr %s825, 12
        %s827 = smul.addr %s826, 8
        %s828 = scalar_lea.vmem %s14, %s827
        %p829 = scmp.lt.s32.totalorder %s35, 0
        %s830 = scalar_select %p829, %s35, 0
        %s831 = scalar_lea.vmem %s16, %s830
        %p832 = scmp.eq.s32.totalorder %s36, 0
        // Predicated region
        $region101: #{forward.1} parent=79 // pred_check
          %p833 = pneg %p832
        $region102: #{forward.1} parent=79 // pred_check_branch
          %835 = sbr.rel (%p833) target = $region104
        $region103: #{forward.1} parent=79 // pred_region
          %v836 = vld [vmem:[%s7] sm:$0x1f]
          %v837 = vld [vmem:[%s7 + $0x8] sm:$0x1f]
          %v838 = vld [vmem:[%s7 + $0x10] sm:$0x1f]
          %v839 = vld [vmem:[%s7 + $0x18] sm:$0x1f]
          %v840 = vld [vmem:[%s791] sm:$0xff]
          %v841 = vld [vmem:[%s791 + $0x8] sm:$0xff]
          %v842 = vld [vmem:[%s791 + $0x10] sm:$0xff]
          %v843 = vld [vmem:[%s791 + $0x18] sm:$0xff]
          %v844 = vld [vmem:[%s791 + $0x20] sm:$0xff]
          %v845 = vld [vmem:[%s791 + $0x28] sm:$0xff]
          %v846 = vld [vmem:[#allocation4] sm:$0xff]
          %v847 = vld [vmem:[#allocation4 + $0x8] sm:$0xff]
          %v848 = vld [vmem:[#allocation4 + $0x10] sm:$0xff]
          %v849 = vld [vmem:[#allocation4 + $0x18] sm:$0xff]
          %v850 = vld [vmem:[#allocation4 + $0x20] sm:$0xff]
          %v851 = vld [vmem:[#allocation4 + $0x28] sm:$0xff]
          %v852 = vld [vmem:[#allocation4 + $0x30] sm:$0xff]
          %v853 = vld [vmem:[#allocation4 + $0x38] sm:$0xff]
          %v854 = vld [vmem:[#allocation4 + $0x40] sm:$0xff]
          %v855 = vld [vmem:[#allocation4 + $0x48] sm:$0xff]
          %v856 = vld [vmem:[#allocation4 + $0x50] sm:$0xff]
          %v857 = vld [vmem:[#allocation4 + $0x58] sm:$0xff]
          %v858 = vld [vmem:[#allocation4 + $0x60] sm:$0xff]
          %v859 = vld [vmem:[#allocation4 + $0x68] sm:$0xff]
          %v860 = vld [vmem:[#allocation4 + $0x70] sm:$0xff]
          %v861 = vld [vmem:[#allocation4 + $0x78] sm:$0xff]
          %v862 = vld [vmem:[#allocation4 + $0x80] sm:$0xff]
          %v863 = vld [vmem:[#allocation4 + $0x88] sm:$0xff]
          %v864 = vld [vmem:[#allocation4 + $0x90] sm:$0xff]
          %v865 = vld [vmem:[#allocation4 + $0x98] sm:$0xff]
          %v866 = vld [vmem:[#allocation4 + $0xa0] sm:$0xff]
          %v867 = vld [vmem:[#allocation4 + $0xa8] sm:$0xff]
          %v868 = vld [vmem:[#allocation4 + $0xb0] sm:$0xff]
          %v869 = vld [vmem:[#allocation4 + $0xb8] sm:$0xff]
          %v870 = vld [vmem:[#allocation4 + $0xc0] sm:$0xff]
          %v871 = vld [vmem:[#allocation4 + $0xc8] sm:$0xff]
          %v872 = vld [vmem:[#allocation4 + $0xd0] sm:$0xff]
          %v873 = vld [vmem:[#allocation4 + $0xd8] sm:$0xff]
          %v874 = vld [vmem:[#allocation4 + $0xe0] sm:$0xff]
          %v875 = vld [vmem:[#allocation4 + $0xe8] sm:$0xff]
          %v876 = vld [vmem:[#allocation4 + $0xf0] sm:$0xff]
          %v877 = vld [vmem:[#allocation4 + $0xf8] sm:$0xff]
          %v878 = vld [vmem:[#allocation4 + $0x100] sm:$0xff]
          %v879 = vld [vmem:[#allocation4 + $0x108] sm:$0xff]
          %v880 = vld [vmem:[#allocation4 + $0x110] sm:$0xff]
          %v881 = vld [vmem:[#allocation4 + $0x118] sm:$0xff]
          %v882 = vld [vmem:[#allocation4 + $0x120] sm:$0xff]
          %v883 = vld [vmem:[#allocation4 + $0x128] sm:$0xff]
          %v884 = vld [vmem:[#allocation4 + $0x130] sm:$0xff]
          %v885 = vld [vmem:[#allocation4 + $0x138] sm:$0xff]
          %v886 = vld [vmem:[#allocation4 + $0x140] sm:$0xff]
          %v887 = vld [vmem:[#allocation4 + $0x148] sm:$0xff]
          %v888 = vld [vmem:[#allocation4 + $0x150] sm:$0xff]
          %v889 = vld [vmem:[#allocation4 + $0x158] sm:$0xff]
          %v890 = vld [vmem:[#allocation4 + $0x160] sm:$0xff]
          %v891 = vld [vmem:[#allocation4 + $0x168] sm:$0xff]
          %v892 = vld [vmem:[#allocation4 + $0x170] sm:$0xff]
          %v893 = vld [vmem:[#allocation4 + $0x178] sm:$0xff]
          %v894 = vld [vmem:[#allocation4 + $0x180] sm:$0xff]
          %v895 = vld [vmem:[#allocation4 + $0x188] sm:$0xff]
          %v896 = vld [vmem:[#allocation4 + $0x190] sm:$0xff]
          %v897 = vld [vmem:[#allocation4 + $0x198] sm:$0xff]
          %v898 = vld [vmem:[#allocation4 + $0x1a0] sm:$0xff]
          %v899 = vld [vmem:[#allocation4 + $0x1a8] sm:$0xff]
          %v900 = vld [vmem:[#allocation4 + $0x1b0] sm:$0xff]
          %v901 = vld [vmem:[#allocation4 + $0x1b8] sm:$0xff]
          %v902 = vld [vmem:[#allocation4 + $0x1c0] sm:$0xff]
          %v903 = vld [vmem:[#allocation4 + $0x1c8] sm:$0xff]
          %v904 = vld [vmem:[#allocation4 + $0x1d0] sm:$0xff]
          %v905 = vld [vmem:[#allocation4 + $0x1d8] sm:$0xff]
          %v906 = vld [vmem:[#allocation4 + $0x1e0] sm:$0xff]
          %v907 = vld [vmem:[#allocation4 + $0x1e8] sm:$0xff]
          %v908 = vld [vmem:[#allocation4 + $0x1f0] sm:$0xff]
          %v909 = vld [vmem:[#allocation4 + $0x1f8] sm:$0xff]
          %v910 = vld [vmem:[#allocation4 + $0x200] sm:$0xff]
          %v911 = vld [vmem:[#allocation4 + $0x208] sm:$0xff]
          %v912 = vld [vmem:[#allocation4 + $0x210] sm:$0xff]
          %v913 = vld [vmem:[#allocation4 + $0x218] sm:$0xff]
          %v914 = vld [vmem:[#allocation4 + $0x220] sm:$0xff]
          %v915 = vld [vmem:[#allocation4 + $0x228] sm:$0xff]
          %v916 = vld [vmem:[#allocation4 + $0x230] sm:$0xff]
          %v917 = vld [vmem:[#allocation4 + $0x238] sm:$0xff]
          %v918 = vld [vmem:[#allocation4 + $0x240] sm:$0xff]
          %v919 = vld [vmem:[#allocation4 + $0x248] sm:$0xff]
          %v920 = vld [vmem:[#allocation4 + $0x250] sm:$0xff]
          %v921 = vld [vmem:[#allocation4 + $0x258] sm:$0xff]
          %v922 = vld [vmem:[#allocation4 + $0x260] sm:$0xff]
          %v923 = vld [vmem:[#allocation4 + $0x268] sm:$0xff]
          %v924 = vld [vmem:[#allocation4 + $0x270] sm:$0xff]
          %v925 = vld [vmem:[#allocation4 + $0x278] sm:$0xff]
          %v926 = vld [vmem:[#allocation4 + $0x280] sm:$0xff]
          %v927 = vld [vmem:[#allocation4 + $0x288] sm:$0xff]
          %v928 = vld [vmem:[#allocation4 + $0x290] sm:$0xff]
          %v929 = vld [vmem:[#allocation4 + $0x298] sm:$0xff]
          %v930 = vld [vmem:[#allocation4 + $0x2a0] sm:$0xff]
          %v931 = vld [vmem:[#allocation4 + $0x2a8] sm:$0xff]
          %v932 = vld [vmem:[#allocation4 + $0x2b0] sm:$0xff]
          %v933 = vld [vmem:[#allocation4 + $0x2b8] sm:$0xff]
          %v934 = vld [vmem:[#allocation4 + $0x2c0] sm:$0xff]
          %v935 = vld [vmem:[#allocation4 + $0x2c8] sm:$0xff]
          %v936 = vld [vmem:[#allocation4 + $0x2d0] sm:$0xff]
          %v937 = vld [vmem:[#allocation4 + $0x2d8] sm:$0xff]
          %v938 = vld [vmem:[#allocation4 + $0x2e0] sm:$0xff]
          %v939 = vld [vmem:[#allocation4 + $0x2e8] sm:$0xff]
          %v940 = vld [vmem:[#allocation4 + $0x2f0] sm:$0xff]
          %v941 = vld [vmem:[#allocation4 + $0x2f8] sm:$0xff]
          %v942 = vpack.c.bf16 %v843, %v840
          %v943 = vpack.c.bf16 %v844, %v841
          %v944 = vpack.c.bf16 %v845, %v842
          %v945 = vld [vmem:[%s798] sm:$0xff]
          %v946 = vld [vmem:[%s798 + $0x8] sm:$0xff]
          %v947 = vld [vmem:[%s798 + $0x10] sm:$0xff]
          %v948 = vld [vmem:[%s798 + $0x18] sm:$0xff]
          %v949 = vld [vmem:[%s798 + $0x20] sm:$0xff]
          %v950 = vld [vmem:[%s798 + $0x28] sm:$0xff]
          %v951 = vld [vmem:[%s798 + $0x30] sm:$0xff]
          %v952 = vld [vmem:[%s798 + $0x38] sm:$0xff]
          %v1049 = vunpack.c.l.b16 %v846
          %v1050 = vunpack.c.h.b16 %v846
          %v1051 = vunpack.c.l.b16 %v847
          %v1052 = vunpack.c.h.b16 %v847
          %v1053 = vunpack.c.l.b16 %v848
          %v1054 = vunpack.c.h.b16 %v848
          %v1055 = vunpack.c.l.b16 %v849
          %v1056 = vunpack.c.h.b16 %v849
          %v1057 = vunpack.c.l.b16 %v850
          %v1058 = vunpack.c.h.b16 %v850
          %v1059 = vunpack.c.l.b16 %v851
          %v1060 = vunpack.c.h.b16 %v851
          %v1061 = vunpack.c.l.b16 %v852
          %v1062 = vunpack.c.h.b16 %v852
          %v1063 = vunpack.c.l.b16 %v853
          %v1064 = vunpack.c.h.b16 %v853
          %v1065 = vunpack.c.l.b16 %v854
          %v1066 = vunpack.c.h.b16 %v854
          %v1067 = vunpack.c.l.b16 %v855
          %v1068 = vunpack.c.h.b16 %v855
          %v1069 = vunpack.c.l.b16 %v856
          %v1070 = vunpack.c.h.b16 %v856
          %v1071 = vunpack.c.l.b16 %v857
          %v1072 = vunpack.c.h.b16 %v857
          %v1073 = vunpack.c.l.b16 %v858
          %v1074 = vunpack.c.h.b16 %v858
          %v1075 = vunpack.c.l.b16 %v859
          %v1076 = vunpack.c.h.b16 %v859
          %v1077 = vunpack.c.l.b16 %v860
          %v1078 = vunpack.c.h.b16 %v860
          %v1079 = vunpack.c.l.b16 %v861
          %v1080 = vunpack.c.h.b16 %v861
          %v1081 = vunpack.c.l.b16 %v862
          %v1082 = vunpack.c.h.b16 %v862
          %v1083 = vunpack.c.l.b16 %v863
          %v1084 = vunpack.c.h.b16 %v863
          %v1085 = vunpack.c.l.b16 %v864
          %v1086 = vunpack.c.h.b16 %v864
          %v1087 = vunpack.c.l.b16 %v865
          %v1088 = vunpack.c.h.b16 %v865
          %v1089 = vunpack.c.l.b16 %v866
          %v1090 = vunpack.c.h.b16 %v866
          %v1091 = vunpack.c.l.b16 %v867
          %v1092 = vunpack.c.h.b16 %v867
          %v1093 = vunpack.c.l.b16 %v868
          %v1094 = vunpack.c.h.b16 %v868
          %v1095 = vunpack.c.l.b16 %v869
          %v1096 = vunpack.c.h.b16 %v869
          %v1097 = vunpack.c.l.b16 %v870
          %v1098 = vunpack.c.h.b16 %v870
          %v1099 = vunpack.c.l.b16 %v871
          %v1100 = vunpack.c.h.b16 %v871
          %v1101 = vunpack.c.l.b16 %v872
          %v1102 = vunpack.c.h.b16 %v872
          %v1103 = vunpack.c.l.b16 %v873
          %v1104 = vunpack.c.h.b16 %v873
          %v1105 = vunpack.c.l.b16 %v874
          %v1106 = vunpack.c.h.b16 %v874
          %v1107 = vunpack.c.l.b16 %v875
          %v1108 = vunpack.c.h.b16 %v875
          %v1109 = vunpack.c.l.b16 %v876
          %v1110 = vunpack.c.h.b16 %v876
          %v1111 = vunpack.c.l.b16 %v877
          %v1112 = vunpack.c.h.b16 %v877
          %v1113 = vunpack.c.l.b16 %v878
          %v1114 = vunpack.c.h.b16 %v878
          %v1115 = vunpack.c.l.b16 %v879
          %v1116 = vunpack.c.h.b16 %v879
          %v1117 = vunpack.c.l.b16 %v880
          %v1118 = vunpack.c.h.b16 %v880
          %v1119 = vunpack.c.l.b16 %v881
          %v1120 = vunpack.c.h.b16 %v881
          %v1121 = vunpack.c.l.b16 %v882
          %v1122 = vunpack.c.h.b16 %v882
          %v1123 = vunpack.c.l.b16 %v883
          %v1124 = vunpack.c.h.b16 %v883
          %v1125 = vunpack.c.l.b16 %v884
          %v1126 = vunpack.c.h.b16 %v884
          %v1127 = vunpack.c.l.b16 %v885
          %v1128 = vunpack.c.h.b16 %v885
          %v1129 = vunpack.c.l.b16 %v886
          %v1130 = vunpack.c.h.b16 %v886
          %v1131 = vunpack.c.l.b16 %v887
          %v1132 = vunpack.c.h.b16 %v887
          %v1133 = vunpack.c.l.b16 %v888
          %v1134 = vunpack.c.h.b16 %v888
          %v1135 = vunpack.c.l.b16 %v889
          %v1136 = vunpack.c.h.b16 %v889
          %v1137 = vunpack.c.l.b16 %v890
          %v1138 = vunpack.c.h.b16 %v890
          %v1139 = vunpack.c.l.b16 %v891
          %v1140 = vunpack.c.h.b16 %v891
          %v1141 = vunpack.c.l.b16 %v892
          %v1142 = vunpack.c.h.b16 %v892
          %v1143 = vunpack.c.l.b16 %v893
          %v1144 = vunpack.c.h.b16 %v893
          %v1145 = vunpack.c.l.b16 %v894
          %v1146 = vunpack.c.h.b16 %v894
          %v1147 = vunpack.c.l.b16 %v895
          %v1148 = vunpack.c.h.b16 %v895
          %v1149 = vunpack.c.l.b16 %v896
          %v1150 = vunpack.c.h.b16 %v896
          %v1151 = vunpack.c.l.b16 %v897
          %v1152 = vunpack.c.h.b16 %v897
          %v1153 = vunpack.c.l.b16 %v898
          %v1154 = vunpack.c.h.b16 %v898
          %v1155 = vunpack.c.l.b16 %v899
          %v1156 = vunpack.c.h.b16 %v899
          %v1157 = vunpack.c.l.b16 %v900
          %v1158 = vunpack.c.h.b16 %v900
          %v1159 = vunpack.c.l.b16 %v901
          %v1160 = vunpack.c.h.b16 %v901
          %v1161 = vunpack.c.l.b16 %v902
          %v1162 = vunpack.c.h.b16 %v902
          %v1163 = vunpack.c.l.b16 %v903
          %v1164 = vunpack.c.h.b16 %v903
          %v1165 = vunpack.c.l.b16 %v904
          %v1166 = vunpack.c.h.b16 %v904
          %v1167 = vunpack.c.l.b16 %v905
          %v1168 = vunpack.c.h.b16 %v905
          %v1169 = vunpack.c.l.b16 %v906
          %v1170 = vunpack.c.h.b16 %v906
          %v1171 = vunpack.c.l.b16 %v907
          %v1172 = vunpack.c.h.b16 %v907
          %v1173 = vunpack.c.l.b16 %v908
          %v1174 = vunpack.c.h.b16 %v908
          %v1175 = vunpack.c.l.b16 %v909
          %v1176 = vunpack.c.h.b16 %v909
          %v1177 = vunpack.c.l.b16 %v910
          %v1178 = vunpack.c.h.b16 %v910
          %v1179 = vunpack.c.l.b16 %v911
          %v1180 = vunpack.c.h.b16 %v911
          %v1181 = vunpack.c.l.b16 %v912
          %v1182 = vunpack.c.h.b16 %v912
          %v1183 = vunpack.c.l.b16 %v913
          %v1184 = vunpack.c.h.b16 %v913
          %v1185 = vunpack.c.l.b16 %v914
          %v1186 = vunpack.c.h.b16 %v914
          %v1187 = vunpack.c.l.b16 %v915
          %v1188 = vunpack.c.h.b16 %v915
          %v1189 = vunpack.c.l.b16 %v916
          %v1190 = vunpack.c.h.b16 %v916
          %v1191 = vunpack.c.l.b16 %v917
          %v1192 = vunpack.c.h.b16 %v917
          %v1193 = vunpack.c.l.b16 %v918
          %v1194 = vunpack.c.h.b16 %v918
          %v1195 = vunpack.c.l.b16 %v919
          %v1196 = vunpack.c.h.b16 %v919
          %v1197 = vunpack.c.l.b16 %v920
          %v1198 = vunpack.c.h.b16 %v920
          %v1199 = vunpack.c.l.b16 %v921
          %v1200 = vunpack.c.h.b16 %v921
          %v1201 = vunpack.c.l.b16 %v922
          %v1202 = vunpack.c.h.b16 %v922
          %v1203 = vunpack.c.l.b16 %v923
          %v1204 = vunpack.c.h.b16 %v923
          %v1205 = vunpack.c.l.b16 %v924
          %v1206 = vunpack.c.h.b16 %v924
          %v1207 = vunpack.c.l.b16 %v925
          %v1208 = vunpack.c.h.b16 %v925
          %v1209 = vunpack.c.l.b16 %v926
          %v1210 = vunpack.c.h.b16 %v926
          %v1211 = vunpack.c.l.b16 %v927
          %v1212 = vunpack.c.h.b16 %v927
          %v1213 = vunpack.c.l.b16 %v928
          %v1214 = vunpack.c.h.b16 %v928
          %v1215 = vunpack.c.l.b16 %v929
          %v1216 = vunpack.c.h.b16 %v929
          %v1217 = vunpack.c.l.b16 %v930
          %v1218 = vunpack.c.h.b16 %v930
          %v1219 = vunpack.c.l.b16 %v931
          %v1220 = vunpack.c.h.b16 %v931
          %v1221 = vunpack.c.l.b16 %v932
          %v1222 = vunpack.c.h.b16 %v932
          %v1223 = vunpack.c.l.b16 %v933
          %v1224 = vunpack.c.h.b16 %v933
          %v1225 = vunpack.c.l.b16 %v934
          %v1226 = vunpack.c.h.b16 %v934
          %v1227 = vunpack.c.l.b16 %v935
          %v1228 = vunpack.c.h.b16 %v935
          %v1229 = vunpack.c.l.b16 %v936
          %v1230 = vunpack.c.h.b16 %v936
          %v1231 = vunpack.c.l.b16 %v937
          %v1232 = vunpack.c.h.b16 %v937
          %v1233 = vunpack.c.l.b16 %v938
          %v1234 = vunpack.c.h.b16 %v938
          %v1235 = vunpack.c.l.b16 %v939
          %v1236 = vunpack.c.h.b16 %v939
          %v1237 = vunpack.c.l.b16 %v940
          %v1238 = vunpack.c.h.b16 %v940
          %v1239 = vunpack.c.l.b16 %v941
          %v1240 = vunpack.c.h.b16 %v941
          %v1241 = vpack.c.b16 %v1053, %v1049
          %v1242 = vpack.c.b16 %v1054, %v1050
          %v1243 = vpack.c.b16 %v1055, %v1051
          %v1244 = vpack.c.b16 %v1056, %v1052
          %v1245 = vpack.c.b16 %v1061, %v1057
          %v1246 = vpack.c.b16 %v1062, %v1058
          %v1247 = vpack.c.b16 %v1063, %v1059
          %v1248 = vpack.c.b16 %v1064, %v1060
          %v1249 = vpack.c.b16 %v1069, %v1065
          %v1250 = vpack.c.b16 %v1070, %v1066
          %v1251 = vpack.c.b16 %v1071, %v1067
          %v1252 = vpack.c.b16 %v1072, %v1068
          %v1253 = vpack.c.b16 %v1077, %v1073
          %v1254 = vpack.c.b16 %v1078, %v1074
          %v1255 = vpack.c.b16 %v1079, %v1075
          %v1256 = vpack.c.b16 %v1080, %v1076
          %v1257 = vpack.c.b16 %v1085, %v1081
          %v1258 = vpack.c.b16 %v1086, %v1082
          %v1259 = vpack.c.b16 %v1087, %v1083
          %v1260 = vpack.c.b16 %v1088, %v1084
          %v1261 = vpack.c.b16 %v1093, %v1089
          %v1262 = vpack.c.b16 %v1094, %v1090
          %v1263 = vpack.c.b16 %v1095, %v1091
          %v1264 = vpack.c.b16 %v1096, %v1092
          %v1265 = vpack.c.b16 %v1101, %v1097
          %v1266 = vpack.c.b16 %v1102, %v1098
          %v1267 = vpack.c.b16 %v1103, %v1099
          %v1268 = vpack.c.b16 %v1104, %v1100
          %v1269 = vpack.c.b16 %v1109, %v1105
          %v1270 = vpack.c.b16 %v1110, %v1106
          %v1271 = vpack.c.b16 %v1111, %v1107
          %v1272 = vpack.c.b16 %v1112, %v1108
          %v1273 = vpack.c.b16 %v1117, %v1113
          %v1274 = vpack.c.b16 %v1118, %v1114
          %v1275 = vpack.c.b16 %v1119, %v1115
          %v1276 = vpack.c.b16 %v1120, %v1116
          %v1277 = vpack.c.b16 %v1125, %v1121
          %v1278 = vpack.c.b16 %v1126, %v1122
          %v1279 = vpack.c.b16 %v1127, %v1123
          %v1280 = vpack.c.b16 %v1128, %v1124
          %v1281 = vpack.c.b16 %v1133, %v1129
          %v1282 = vpack.c.b16 %v1134, %v1130
          %v1283 = vpack.c.b16 %v1135, %v1131
          %v1284 = vpack.c.b16 %v1136, %v1132
          %v1285 = vpack.c.b16 %v1141, %v1137
          %v1286 = vpack.c.b16 %v1142, %v1138
          %v1287 = vpack.c.b16 %v1143, %v1139
          %v1288 = vpack.c.b16 %v1144, %v1140
          %v1289 = vpack.c.b16 %v1149, %v1145
          %v1290 = vpack.c.b16 %v1150, %v1146
          %v1291 = vpack.c.b16 %v1151, %v1147
          %v1292 = vpack.c.b16 %v1152, %v1148
          %v1293 = vpack.c.b16 %v1157, %v1153
          %v1294 = vpack.c.b16 %v1158, %v1154
          %v1295 = vpack.c.b16 %v1159, %v1155
          %v1296 = vpack.c.b16 %v1160, %v1156
          %v1297 = vpack.c.b16 %v1165, %v1161
          %v1298 = vpack.c.b16 %v1166, %v1162
          %v1299 = vpack.c.b16 %v1167, %v1163
          %v1300 = vpack.c.b16 %v1168, %v1164
          %v1301 = vpack.c.b16 %v1173, %v1169
          %v1302 = vpack.c.b16 %v1174, %v1170
          %v1303 = vpack.c.b16 %v1175, %v1171
          %v1304 = vpack.c.b16 %v1176, %v1172
          %v1305 = vpack.c.b16 %v1181, %v1177
          %v1306 = vpack.c.b16 %v1182, %v1178
          %v1307 = vpack.c.b16 %v1183, %v1179
          %v1308 = vpack.c.b16 %v1184, %v1180
          %v1309 = vpack.c.b16 %v1189, %v1185
          %v1310 = vpack.c.b16 %v1190, %v1186
          %v1311 = vpack.c.b16 %v1191, %v1187
          %v1312 = vpack.c.b16 %v1192, %v1188
          %v1313 = vpack.c.b16 %v1197, %v1193
          %v1314 = vpack.c.b16 %v1198, %v1194
          %v1315 = vpack.c.b16 %v1199, %v1195
          %v1316 = vpack.c.b16 %v1200, %v1196
          %v1317 = vpack.c.b16 %v1205, %v1201
          %v1318 = vpack.c.b16 %v1206, %v1202
          %v1319 = vpack.c.b16 %v1207, %v1203
          %v1320 = vpack.c.b16 %v1208, %v1204
          %v1321 = vpack.c.b16 %v1213, %v1209
          %v1322 = vpack.c.b16 %v1214, %v1210
          %v1323 = vpack.c.b16 %v1215, %v1211
          %v1324 = vpack.c.b16 %v1216, %v1212
          %v1325 = vpack.c.b16 %v1221, %v1217
          %v1326 = vpack.c.b16 %v1222, %v1218
          %v1327 = vpack.c.b16 %v1223, %v1219
          %v1328 = vpack.c.b16 %v1224, %v1220
          %v1329 = vpack.c.b16 %v1229, %v1225
          %v1330 = vpack.c.b16 %v1230, %v1226
          %v1331 = vpack.c.b16 %v1231, %v1227
          %v1332 = vpack.c.b16 %v1232, %v1228
          %v1333 = vpack.c.b16 %v1237, %v1233
          %v1334 = vpack.c.b16 %v1238, %v1234
          %v1335 = vpack.c.b16 %v1239, %v1235
          %v1336 = vpack.c.b16 %v1240, %v1236
          %1433 = vmatpush.bf16.msra.mxu0 %v1269
          %1434 = vmatpush.bf16.msra.mxu0 %v1265
          %1435 = vmatpush.bf16.msra.mxu0 %v1261
          %1436 = vmatpush.bf16.msra.mxu0 %v1257
          %1437 = vmatpush.bf16.msra.mxu0 %v1253
          %1438 = vmatpush.bf16.msra.mxu0 %v1249
          %1439 = vmatpush.bf16.msra.mxu0 %v1245
          %1440 = vmatpush.bf16.msra.mxu0 %v1241
          %1441 = vmatmul.bf16.gmra.mxu0 %v942
          %v1442 = vpop.f32.mrf.mxu0
          %v1443 = vadd.f32 %v945, %v1442
          %v1444 = vpop.f32.mrf.mxu0
          %v1445 = vadd.f32 %v949, %v1444
          %1446 = vdwg.mxu0
          %1447 = vmatpush.bf16.msra.mxu0 %v1301
          %1448 = vmatpush.bf16.msra.mxu0 %v1297
          %1449 = vmatpush.bf16.msra.mxu0 %v1293
          %1450 = vmatpush.bf16.msra.mxu0 %v1289
          %1451 = vmatpush.bf16.msra.mxu0 %v1285
          %1452 = vmatpush.bf16.msra.mxu0 %v1281
          %1453 = vmatpush.bf16.msra.mxu0 %v1277
          %1454 = vmatpush.bf16.msra.mxu0 %v1273
          %1455 = vmatmul.bf16.gmra.mxu0 %v943
          %v1456 = vpop.f32.mrf.mxu0
          %v1457 = vadd.f32 %v1443, %v1456
          %v1458 = vpop.f32.mrf.mxu0
          %v1459 = vadd.f32 %v1445, %v1458
          %1460 = vdwg.mxu0
          %1461 = vmatpush.bf16.msra.mxu0 %v1333
          %1462 = vmatpush.bf16.msra.mxu0 %v1329
          %1463 = vmatpush.bf16.msra.mxu0 %v1325
          %1464 = vmatpush.bf16.msra.mxu0 %v1321
          %1465 = vmatpush.bf16.msra.mxu0 %v1317
          %1466 = vmatpush.bf16.msra.mxu0 %v1313
          %1467 = vmatpush.bf16.msra.mxu0 %v1309
          %1468 = vmatpush.bf16.msra.mxu0 %v1305
          %1469 = vmatmul.bf16.gmra.mxu0 %v944
          %v1470 = vpop.f32.mrf.mxu0
          %v1471 = vadd.f32 %v1457, %v1470
          %v1472 = vpop.f32.mrf.mxu0
          %v1473 = vadd.f32 %v1459, %v1472
          %1474 = vdwg.mxu0
          %1475 = vmatpush.bf16.msra.mxu0 %v1270
          %1476 = vmatpush.bf16.msra.mxu0 %v1266
          %1477 = vmatpush.bf16.msra.mxu0 %v1262
          %1478 = vmatpush.bf16.msra.mxu0 %v1258
          %1479 = vmatpush.bf16.msra.mxu0 %v1254
          %1480 = vmatpush.bf16.msra.mxu0 %v1250
          %1481 = vmatpush.bf16.msra.mxu0 %v1246
          %1482 = vmatpush.bf16.msra.mxu0 %v1242
          %1483 = vmatmul.bf16.gmra.mxu0 %v942
          %v1484 = vpop.f32.mrf.mxu0
          %v1485 = vadd.f32 %v946, %v1484
          %v1486 = vpop.f32.mrf.mxu0
          %v1487 = vadd.f32 %v950, %v1486
          %1488 = vdwg.mxu0
          %1489 = vmatpush.bf16.msra.mxu0 %v1302
          %1490 = vmatpush.bf16.msra.mxu0 %v1298
          %1491 = vmatpush.bf16.msra.mxu0 %v1294
          %1492 = vmatpush.bf16.msra.mxu0 %v1290
          %1493 = vmatpush.bf16.msra.mxu0 %v1286
          %1494 = vmatpush.bf16.msra.mxu0 %v1282
          %1495 = vmatpush.bf16.msra.mxu0 %v1278
          %1496 = vmatpush.bf16.msra.mxu0 %v1274
          %1497 = vmatmul.bf16.gmra.mxu0 %v943
          %v1498 = vpop.f32.mrf.mxu0
          %v1499 = vadd.f32 %v1485, %v1498
          %v1500 = vpop.f32.mrf.mxu0
          %v1501 = vadd.f32 %v1487, %v1500
          %1502 = vdwg.mxu0
          %1503 = vmatpush.bf16.msra.mxu0 %v1334
          %1504 = vmatpush.bf16.msra.mxu0 %v1330
          %1505 = vmatpush.bf16.msra.mxu0 %v1326
          %1506 = vmatpush.bf16.msra.mxu0 %v1322
          %1507 = vmatpush.bf16.msra.mxu0 %v1318
          %1508 = vmatpush.bf16.msra.mxu0 %v1314
          %1509 = vmatpush.bf16.msra.mxu0 %v1310
          %1510 = vmatpush.bf16.msra.mxu0 %v1306
          %1511 = vmatmul.bf16.gmra.mxu0 %v944
          %v1512 = vpop.f32.mrf.mxu0
          %v1513 = vadd.f32 %v1499, %v1512
          %v1514 = vpop.f32.mrf.mxu0
          %v1515 = vadd.f32 %v1501, %v1514
          %1516 = vdwg.mxu0
          %1517 = vmatpush.bf16.msra.mxu0 %v1271
          %1518 = vmatpush.bf16.msra.mxu0 %v1267
          %1519 = vmatpush.bf16.msra.mxu0 %v1263
          %1520 = vmatpush.bf16.msra.mxu0 %v1259
          %1521 = vmatpush.bf16.msra.mxu0 %v1255
          %1522 = vmatpush.bf16.msra.mxu0 %v1251
          %1523 = vmatpush.bf16.msra.mxu0 %v1247
          %1524 = vmatpush.bf16.msra.mxu0 %v1243
          %1525 = vmatmul.bf16.gmra.mxu0 %v942
          %v1526 = vpop.f32.mrf.mxu0
          %v1527 = vadd.f32 %v947, %v1526
          %v1528 = vpop.f32.mrf.mxu0
          %v1529 = vadd.f32 %v951, %v1528
          %1530 = vdwg.mxu0
          %1531 = vmatpush.bf16.msra.mxu0 %v1303
          %1532 = vmatpush.bf16.msra.mxu0 %v1299
          %1533 = vmatpush.bf16.msra.mxu0 %v1295
          %1534 = vmatpush.bf16.msra.mxu0 %v1291
          %1535 = vmatpush.bf16.msra.mxu0 %v1287
          %1536 = vmatpush.bf16.msra.mxu0 %v1283
          %1537 = vmatpush.bf16.msra.mxu0 %v1279
          %1538 = vmatpush.bf16.msra.mxu0 %v1275
          %1539 = vmatmul.bf16.gmra.mxu0 %v943
          %v1540 = vpop.f32.mrf.mxu0
          %v1541 = vadd.f32 %v1527, %v1540
          %v1542 = vpop.f32.mrf.mxu0
          %v1543 = vadd.f32 %v1529, %v1542
          %1544 = vdwg.mxu0
          %1545 = vmatpush.bf16.msra.mxu0 %v1335
          %1546 = vmatpush.bf16.msra.mxu0 %v1331
          %1547 = vmatpush.bf16.msra.mxu0 %v1327
          %1548 = vmatpush.bf16.msra.mxu0 %v1323
          %1549 = vmatpush.bf16.msra.mxu0 %v1319
          %1550 = vmatpush.bf16.msra.mxu0 %v1315
          %1551 = vmatpush.bf16.msra.mxu0 %v1311
          %1552 = vmatpush.bf16.msra.mxu0 %v1307
          %1553 = vmatmul.bf16.gmra.mxu0 %v944
          %v1554 = vpop.f32.mrf.mxu0
          %v1555 = vadd.f32 %v1541, %v1554
          %v1556 = vpop.f32.mrf.mxu0
          %v1557 = vadd.f32 %v1543, %v1556
          %1558 = vdwg.mxu0
          %1559 = vmatpush.bf16.msra.mxu0 %v1272
          %1560 = vmatpush.bf16.msra.mxu0 %v1268
          %1561 = vmatpush.bf16.msra.mxu0 %v1264
          %1562 = vmatpush.bf16.msra.mxu0 %v1260
          %1563 = vmatpush.bf16.msra.mxu0 %v1256
          %1564 = vmatpush.bf16.msra.mxu0 %v1252
          %1565 = vmatpush.bf16.msra.mxu0 %v1248
          %1566 = vmatpush.bf16.msra.mxu0 %v1244
          %1567 = vmatmul.bf16.gmra.mxu0 %v942
          %v1568 = vpop.f32.mrf.mxu0
          %v1569 = vadd.f32 %v948, %v1568
          %v1570 = vpop.f32.mrf.mxu0
          %v1571 = vadd.f32 %v952, %v1570
          %1572 = vdwg.mxu0
          %1573 = vmatpush.bf16.msra.mxu0 %v1304
          %1574 = vmatpush.bf16.msra.mxu0 %v1300
          %1575 = vmatpush.bf16.msra.mxu0 %v1296
          %1576 = vmatpush.bf16.msra.mxu0 %v1292
          %1577 = vmatpush.bf16.msra.mxu0 %v1288
          %1578 = vmatpush.bf16.msra.mxu0 %v1284
          %1579 = vmatpush.bf16.msra.mxu0 %v1280
          %1580 = vmatpush.bf16.msra.mxu0 %v1276
          %1581 = vmatmul.bf16.gmra.mxu0 %v943
          %v1582 = vpop.f32.mrf.mxu0
          %v1583 = vadd.f32 %v1569, %v1582
          %v1584 = vpop.f32.mrf.mxu0
          %v1585 = vadd.f32 %v1571, %v1584
          %1586 = vdwg.mxu0
          %1587 = vmatpush.bf16.msra.mxu0 %v1336
          %1588 = vmatpush.bf16.msra.mxu0 %v1332
          %1589 = vmatpush.bf16.msra.mxu0 %v1328
          %1590 = vmatpush.bf16.msra.mxu0 %v1324
          %1591 = vmatpush.bf16.msra.mxu0 %v1320
          %1592 = vmatpush.bf16.msra.mxu0 %v1316
          %1593 = vmatpush.bf16.msra.mxu0 %v1312
          %1594 = vmatpush.bf16.msra.mxu0 %v1308
          %1595 = vmatmul.bf16.gmra.mxu0 %v944
          %v1596 = vpop.f32.mrf.mxu0
          %v1597 = vadd.f32 %v1583, %v1596
          %v1598 = vpop.f32.mrf.mxu0
          %v1599 = vadd.f32 %v1585, %v1598
          %1600 = vdwg.mxu0
          %v1601 = vperm.slane %v836, 0
          %v1602 = vperm.slane %v837, 0
          %v1603 = vperm.slane %v838, 0
          %v1604 = vperm.slane %v839, 0
          %v1605 = vmul.f32 %v1471, %v1601
          %v1606 = vmul.f32 %v1513, %v1602
          %v1607 = vmul.f32 %v1555, %v1603
          %v1608 = vmul.f32 %v1597, %v1604
          %v1609 = vmul.f32 %v1473, %v1601
          %v1610 = vmul.f32 %v1515, %v1602
          %v1611 = vmul.f32 %v1557, %v1603
          %v1612 = vmul.f32 %v1599, %v1604
          %v1613 = vperm.slane %v836, 1
          %v1614 = vperm.slane %v837, 1
          %v1615 = vperm.slane %v838, 1
          %v1616 = vperm.slane %v839, 1
          %v1617 = vadd.f32 %v1605, %v1613
          %v1618 = vadd.f32 %v1606, %v1614
          %v1619 = vadd.f32 %v1607, %v1615
          %v1620 = vadd.f32 %v1608, %v1616
          %v1621 = vadd.f32 %v1609, %v1613
          %v1622 = vadd.f32 %v1610, %v1614
          %v1623 = vadd.f32 %v1611, %v1615
          %v1624 = vadd.f32 %v1612, %v1616
          %1625 = vst [vmem:[#allocation2] sm:$0xff] %v1617
          %1626 = vst [vmem:[#allocation2 + $0x8] sm:$0xff] %v1618
          %1627 = vst [vmem:[#allocation2 + $0x10] sm:$0xff] %v1619
          %1628 = vst [vmem:[#allocation2 + $0x18] sm:$0xff] %v1620
          %1629 = vst [vmem:[#allocation2 + $0x20] sm:$0xff] %v1621
          %1630 = vst [vmem:[#allocation2 + $0x28] sm:$0xff] %v1622
          %1631 = vst [vmem:[#allocation2 + $0x30] sm:$0xff] %v1623
          %1632 = vst [vmem:[#allocation2 + $0x38] sm:$0xff] %v1624
        $region104: #{forward.1} parent=79 // pred_fallthru
          _
        %v1633 = vld [vmem:[#allocation2] sm:$0xff]
        %v1634 = vld [vmem:[#allocation2 + $0x8] sm:$0xff]
        %v1635 = vld [vmem:[#allocation2 + $0x10] sm:$0xff]
        %v1636 = vld [vmem:[#allocation2 + $0x18] sm:$0xff]
        %v1637 = vld [vmem:[#allocation2 + $0x20] sm:$0xff]
        %v1638 = vld [vmem:[#allocation2 + $0x28] sm:$0xff]
        %v1639 = vld [vmem:[#allocation2 + $0x30] sm:$0xff]
        %v1640 = vld [vmem:[#allocation2 + $0x38] sm:$0xff]
        %v1641 = vld [vmem:[%s828] sm:$0xff]
        %v1642 = vld [vmem:[%s828 + $0x8] sm:$0xff]
        %v1643 = vld [vmem:[%s828 + $0x10] sm:$0xff]
        %v1644 = vld [vmem:[%s828 + $0x18] sm:$0xff]
        %v1645 = vld [vmem:[%s828 + $0x20] sm:$0xff]
        %v1646 = vld [vmem:[%s828 + $0x28] sm:$0xff]
        %v1647 = vld [vmem:[%s828 + $0x30] sm:$0xff]
        %v1648 = vld [vmem:[%s828 + $0x38] sm:$0xff]
        %v1649 = vld [vmem:[%s828 + $0x40] sm:$0x7]
        %v1650 = vld [vmem:[%s828 + $0x48] sm:$0x7]
        %v1651 = vld [vmem:[%s828 + $0x50] sm:$0x7]
        %v1652 = vld [vmem:[%s828 + $0x58] sm:$0x7]
        %v1653 = vld [vmem:[%s804] sm:$0xff]
        %v1654 = vld [vmem:[%s804 + $0x8] sm:$0xff]
        %v1655 = vld [vmem:[%s667] sm:$0xff]
        %v1656 = vld [vmem:[%s667 + $0x8] sm:$0xf]
        %v1657 = vld [vmem:[%s667 + $0xc] sm:$0xff]
        %v1658 = vld [vmem:[%s667 + $0x14] sm:$0xf]
        %v1659 = vld [vmem:[%s667 + $0x18] sm:$0xff]
        %v1660 = vld [vmem:[%s667 + $0x20] sm:$0xf]
        %v1661 = vld [vmem:[%s667 + $0x24] sm:$0xff]
        %v1662 = vld [vmem:[%s667 + $0x2c] sm:$0xf]
        %v1663 = vld [vmem:[%s667 + $0x30] sm:$0xff]
        %v1664 = vld [vmem:[%s667 + $0x38] sm:$0xf]
        %v1665 = vld [vmem:[%s667 + $0x3c] sm:$0xff]
        %v1666 = vld [vmem:[%s667 + $0x44] sm:$0xf]
        %v1667 = vld [vmem:[%s667 + $0x48] sm:$0xff]
        %v1668 = vld [vmem:[%s667 + $0x50] sm:$0xf]
        %v1669 = vld [vmem:[%s667 + $0x54] sm:$0xff]
        %v1670 = vld [vmem:[%s667 + $0x5c] sm:$0xf]
        %v1671 = vld [vmem:[%s667 + $0x60] sm:$0xff]
        %v1672 = vld [vmem:[%s667 + $0x68] sm:$0xf]
        %v1673 = vld [vmem:[%s667 + $0x6c] sm:$0xff]
        %v1674 = vld [vmem:[%s667 + $0x74] sm:$0xf]
        %v1675 = vld [vmem:[%s667 + $0x78] sm:$0xff]
        %v1676 = vld [vmem:[%s667 + $0x80] sm:$0xf]
        %v1677 = vld [vmem:[%s667 + $0x84] sm:$0xff]
        %v1678 = vld [vmem:[%s667 + $0x8c] sm:$0xf]
        %v1679 = vld [vmem:[%s667 + $0x90] sm:$0xff]
        %v1680 = vld [vmem:[%s667 + $0x98] sm:$0xf]
        %v1681 = vld [vmem:[%s667 + $0x9c] sm:$0xff]
        %v1682 = vld [vmem:[%s667 + $0xa4] sm:$0xf]
        %v1683 = vld [vmem:[%s667 + $0xa8] sm:$0xff]
        %v1684 = vld [vmem:[%s667 + $0xb0] sm:$0xf]
        %v1685 = vld [vmem:[%s667 + $0xb4] sm:$0xff]
        %v1686 = vld [vmem:[%s667 + $0xbc] sm:$0xf]
        %v1687 = vld [vmem:[%s667 + $0xc0] sm:$0xff]
        %v1688 = vld [vmem:[%s667 + $0xc8] sm:$0xf]
        %v1689 = vld [vmem:[%s667 + $0xcc] sm:$0xff]
        %v1690 = vld [vmem:[%s667 + $0xd4] sm:$0xf]
        %v1691 = vld [vmem:[%s667 + $0xd8] sm:$0xff]
        %v1692 = vld [vmem:[%s667 + $0xe0] sm:$0xf]
        %v1693 = vld [vmem:[%s667 + $0xe4] sm:$0xff]
        %v1694 = vld [vmem:[%s667 + $0xec] sm:$0xf]
        %v1695 = vld [vmem:[%s667 + $0xf0] sm:$0xff]
        %v1696 = vld [vmem:[%s667 + $0xf8] sm:$0xf]
        %v1697 = vld [vmem:[%s667 + $0xfc] sm:$0xff]
        %v1698 = vld [vmem:[%s667 + $0x104] sm:$0xf]
        %v1699 = vld [vmem:[%s667 + $0x108] sm:$0xff]
        %v1700 = vld [vmem:[%s667 + $0x110] sm:$0xf]
        %v1701 = vld [vmem:[%s667 + $0x114] sm:$0xff]
        %v1702 = vld [vmem:[%s667 + $0x11c] sm:$0xf]
        %v1703 = vld [vmem:[%s667 + $0x120] sm:$0xff]
        %v1704 = vld [vmem:[%s667 + $0x128] sm:$0xf]
        %v1705 = vld [vmem:[%s667 + $0x12c] sm:$0xff]
        %v1706 = vld [vmem:[%s667 + $0x134] sm:$0xf]
        %v1707 = vld [vmem:[%s667 + $0x138] sm:$0xff]
        %v1708 = vld [vmem:[%s667 + $0x140] sm:$0xf]
        %v1709 = vld [vmem:[%s667 + $0x144] sm:$0xff]
        %v1710 = vld [vmem:[%s667 + $0x14c] sm:$0xf]
        %v1711 = vld [vmem:[%s667 + $0x150] sm:$0xff]
        %v1712 = vld [vmem:[%s667 + $0x158] sm:$0xf]
        %v1713 = vld [vmem:[%s667 + $0x15c] sm:$0xff]
        %v1714 = vld [vmem:[%s667 + $0x164] sm:$0xf]
        %v1715 = vld [vmem:[%s667 + $0x168] sm:$0xff]
        %v1716 = vld [vmem:[%s667 + $0x170] sm:$0xf]
        %v1717 = vld [vmem:[%s667 + $0x174] sm:$0xff]
        %v1718 = vld [vmem:[%s667 + $0x17c] sm:$0xf]
        %v1719 = vld [vmem:[%s667 + $0x180] sm:$0xff]
        %v1720 = vld [vmem:[%s667 + $0x188] sm:$0xf]
        %v1721 = vld [vmem:[%s667 + $0x18c] sm:$0xff]
        %v1722 = vld [vmem:[%s667 + $0x194] sm:$0xf]
        %v1723 = vld [vmem:[%s667 + $0x198] sm:$0xff]
        %v1724 = vld [vmem:[%s667 + $0x1a0] sm:$0xf]
        %v1725 = vld [vmem:[%s667 + $0x1a4] sm:$0xff]
        %v1726 = vld [vmem:[%s667 + $0x1ac] sm:$0xf]
        %v1727 = vld [vmem:[%s667 + $0x1b0] sm:$0xff]
        %v1728 = vld [vmem:[%s667 + $0x1b8] sm:$0xf]
        %v1729 = vld [vmem:[%s667 + $0x1bc] sm:$0xff]
        %v1730 = vld [vmem:[%s667 + $0x1c4] sm:$0xf]
        %v1731 = vld [vmem:[%s667 + $0x1c8] sm:$0xff]
        %v1732 = vld [vmem:[%s667 + $0x1d0] sm:$0xf]
        %v1733 = vld [vmem:[%s667 + $0x1d4] sm:$0xff]
        %v1734 = vld [vmem:[%s667 + $0x1dc] sm:$0xf]
        %v1735 = vld [vmem:[%s667 + $0x1e0] sm:$0xff]
        %v1736 = vld [vmem:[%s667 + $0x1e8] sm:$0xf]
        %v1737 = vld [vmem:[%s667 + $0x1ec] sm:$0xff]
        %v1738 = vld [vmem:[%s667 + $0x1f4] sm:$0xf]
        %v1739 = vld [vmem:[%s667 + $0x1f8] sm:$0xff]
        %v1740 = vld [vmem:[%s667 + $0x200] sm:$0xf]
        %v1741 = vld [vmem:[%s667 + $0x204] sm:$0xff]
        %v1742 = vld [vmem:[%s667 + $0x20c] sm:$0xf]
        %v1743 = vld [vmem:[%s667 + $0x210] sm:$0xff]
        %v1744 = vld [vmem:[%s667 + $0x218] sm:$0xf]
        %v1745 = vld [vmem:[%s667 + $0x21c] sm:$0xff]
        %v1746 = vld [vmem:[%s667 + $0x224] sm:$0xf]
        %v1747 = vld [vmem:[%s667 + $0x228] sm:$0xff]
        %v1748 = vld [vmem:[%s667 + $0x230] sm:$0xf]
        %v1749 = vld [vmem:[%s667 + $0x234] sm:$0xff]
        %v1750 = vld [vmem:[%s667 + $0x23c] sm:$0xf]
        %v1751 = vld [vmem:[%s667 + $0x240] sm:$0xff]
        %v1752 = vld [vmem:[%s667 + $0x248] sm:$0xf]
        %v1753 = vld [vmem:[%s667 + $0x24c] sm:$0xff]
        %v1754 = vld [vmem:[%s667 + $0x254] sm:$0xf]
        %v1755 = vld [vmem:[%s667 + $0x258] sm:$0xff]
        %v1756 = vld [vmem:[%s667 + $0x260] sm:$0xf]
        %v1757 = vld [vmem:[%s667 + $0x264] sm:$0xff]
        %v1758 = vld [vmem:[%s667 + $0x26c] sm:$0xf]
        %v1759 = vld [vmem:[%s667 + $0x270] sm:$0xff]
        %v1760 = vld [vmem:[%s667 + $0x278] sm:$0xf]
        %v1761 = vld [vmem:[%s667 + $0x27c] sm:$0xff]
        %v1762 = vld [vmem:[%s667 + $0x284] sm:$0xf]
        %v1763 = vld [vmem:[%s667 + $0x288] sm:$0xff]
        %v1764 = vld [vmem:[%s667 + $0x290] sm:$0xf]
        %v1765 = vld [vmem:[%s667 + $0x294] sm:$0xff]
        %v1766 = vld [vmem:[%s667 + $0x29c] sm:$0xf]
        %v1767 = vld [vmem:[%s667 + $0x2a0] sm:$0xff]
        %v1768 = vld [vmem:[%s667 + $0x2a8] sm:$0xf]
        %v1769 = vld [vmem:[%s667 + $0x2ac] sm:$0xff]
        %v1770 = vld [vmem:[%s667 + $0x2b4] sm:$0xf]
        %v1771 = vld [vmem:[%s667 + $0x2b8] sm:$0xff]
        %v1772 = vld [vmem:[%s667 + $0x2c0] sm:$0xf]
        %v1773 = vld [vmem:[%s667 + $0x2c4] sm:$0xff]
        %v1774 = vld [vmem:[%s667 + $0x2cc] sm:$0xf]
        %v1775 = vld [vmem:[%s667 + $0x2d0] sm:$0xff]
        %v1776 = vld [vmem:[%s667 + $0x2d8] sm:$0xf]
        %v1777 = vld [vmem:[%s667 + $0x2dc] sm:$0xff]
        %v1778 = vld [vmem:[%s667 + $0x2e4] sm:$0xf]
        %v1779 = vld [vmem:[%s667 + $0x2e8] sm:$0xff]
        %v1780 = vld [vmem:[%s667 + $0x2f0] sm:$0xf]
        %v1781 = vld [vmem:[%s667 + $0x2f4] sm:$0xff]
        %v1782 = vld [vmem:[%s667 + $0x2fc] sm:$0xf]
        %v1783 = vpack.c.bf16 %v1637, %v1633
        %v1784 = vpack.c.bf16 %v1638, %v1634
        %v1785 = vpack.c.bf16 %v1639, %v1635
        %v1786 = vpack.c.bf16 %v1640, %v1636
        %v1915 = vunpack.c.l.b16 %v1655
        %v1916 = vunpack.c.h.b16 %v1655
        %v1917 = vunpack.c.l.b16 %v1656
        %v1918 = vunpack.c.l.b16 %v1657
        %v1919 = vunpack.c.h.b16 %v1657
        %v1920 = vunpack.c.l.b16 %v1658
        %v1921 = vunpack.c.l.b16 %v1659
        %v1922 = vunpack.c.h.b16 %v1659
        %v1923 = vunpack.c.l.b16 %v1660
        %v1924 = vunpack.c.l.b16 %v1661
        %v1925 = vunpack.c.h.b16 %v1661
        %v1926 = vunpack.c.l.b16 %v1662
        %v1927 = vunpack.c.l.b16 %v1663
        %v1928 = vunpack.c.h.b16 %v1663
        %v1929 = vunpack.c.l.b16 %v1664
        %v1930 = vunpack.c.l.b16 %v1665
        %v1931 = vunpack.c.h.b16 %v1665
        %v1932 = vunpack.c.l.b16 %v1666
        %v1933 = vunpack.c.l.b16 %v1667
        %v1934 = vunpack.c.h.b16 %v1667
        %v1935 = vunpack.c.l.b16 %v1668
        %v1936 = vunpack.c.l.b16 %v1669
        %v1937 = vunpack.c.h.b16 %v1669
        %v1938 = vunpack.c.l.b16 %v1670
        %v1939 = vunpack.c.l.b16 %v1671
        %v1940 = vunpack.c.h.b16 %v1671
        %v1941 = vunpack.c.l.b16 %v1672
        %v1942 = vunpack.c.l.b16 %v1673
        %v1943 = vunpack.c.h.b16 %v1673
        %v1944 = vunpack.c.l.b16 %v1674
        %v1945 = vunpack.c.l.b16 %v1675
        %v1946 = vunpack.c.h.b16 %v1675
        %v1947 = vunpack.c.l.b16 %v1676
        %v1948 = vunpack.c.l.b16 %v1677
        %v1949 = vunpack.c.h.b16 %v1677
        %v1950 = vunpack.c.l.b16 %v1678
        %v1951 = vunpack.c.l.b16 %v1679
        %v1952 = vunpack.c.h.b16 %v1679
        %v1953 = vunpack.c.l.b16 %v1680
        %v1954 = vunpack.c.l.b16 %v1681
        %v1955 = vunpack.c.h.b16 %v1681
        %v1956 = vunpack.c.l.b16 %v1682
        %v1957 = vunpack.c.l.b16 %v1683
        %v1958 = vunpack.c.h.b16 %v1683
        %v1959 = vunpack.c.l.b16 %v1684
        %v1960 = vunpack.c.l.b16 %v1685
        %v1961 = vunpack.c.h.b16 %v1685
        %v1962 = vunpack.c.l.b16 %v1686
        %v1963 = vunpack.c.l.b16 %v1687
        %v1964 = vunpack.c.h.b16 %v1687
        %v1965 = vunpack.c.l.b16 %v1688
        %v1966 = vunpack.c.l.b16 %v1689
        %v1967 = vunpack.c.h.b16 %v1689
        %v1968 = vunpack.c.l.b16 %v1690
        %v1969 = vunpack.c.l.b16 %v1691
        %v1970 = vunpack.c.h.b16 %v1691
        %v1971 = vunpack.c.l.b16 %v1692
        %v1972 = vunpack.c.l.b16 %v1693
        %v1973 = vunpack.c.h.b16 %v1693
        %v1974 = vunpack.c.l.b16 %v1694
        %v1975 = vunpack.c.l.b16 %v1695
        %v1976 = vunpack.c.h.b16 %v1695
        %v1977 = vunpack.c.l.b16 %v1696
        %v1978 = vunpack.c.l.b16 %v1697
        %v1979 = vunpack.c.h.b16 %v1697
        %v1980 = vunpack.c.l.b16 %v1698
        %v1981 = vunpack.c.l.b16 %v1699
        %v1982 = vunpack.c.h.b16 %v1699
        %v1983 = vunpack.c.l.b16 %v1700
        %v1984 = vunpack.c.l.b16 %v1701
        %v1985 = vunpack.c.h.b16 %v1701
        %v1986 = vunpack.c.l.b16 %v1702
        %v1987 = vunpack.c.l.b16 %v1703
        %v1988 = vunpack.c.h.b16 %v1703
        %v1989 = vunpack.c.l.b16 %v1704
        %v1990 = vunpack.c.l.b16 %v1705
        %v1991 = vunpack.c.h.b16 %v1705
        %v1992 = vunpack.c.l.b16 %v1706
        %v1993 = vunpack.c.l.b16 %v1707
        %v1994 = vunpack.c.h.b16 %v1707
        %v1995 = vunpack.c.l.b16 %v1708
        %v1996 = vunpack.c.l.b16 %v1709
        %v1997 = vunpack.c.h.b16 %v1709
        %v1998 = vunpack.c.l.b16 %v1710
        %v1999 = vunpack.c.l.b16 %v1711
        %v2000 = vunpack.c.h.b16 %v1711
        %v2001 = vunpack.c.l.b16 %v1712
        %v2002 = vunpack.c.l.b16 %v1713
        %v2003 = vunpack.c.h.b16 %v1713
        %v2004 = vunpack.c.l.b16 %v1714
        %v2005 = vunpack.c.l.b16 %v1715
        %v2006 = vunpack.c.h.b16 %v1715
        %v2007 = vunpack.c.l.b16 %v1716
        %v2008 = vunpack.c.l.b16 %v1717
        %v2009 = vunpack.c.h.b16 %v1717
        %v2010 = vunpack.c.l.b16 %v1718
        %v2011 = vunpack.c.l.b16 %v1719
        %v2012 = vunpack.c.h.b16 %v1719
        %v2013 = vunpack.c.l.b16 %v1720
        %v2014 = vunpack.c.l.b16 %v1721
        %v2015 = vunpack.c.h.b16 %v1721
        %v2016 = vunpack.c.l.b16 %v1722
        %v2017 = vunpack.c.l.b16 %v1723
        %v2018 = vunpack.c.h.b16 %v1723
        %v2019 = vunpack.c.l.b16 %v1724
        %v2020 = vunpack.c.l.b16 %v1725
        %v2021 = vunpack.c.h.b16 %v1725
        %v2022 = vunpack.c.l.b16 %v1726
        %v2023 = vunpack.c.l.b16 %v1727
        %v2024 = vunpack.c.h.b16 %v1727
        %v2025 = vunpack.c.l.b16 %v1728
        %v2026 = vunpack.c.l.b16 %v1729
        %v2027 = vunpack.c.h.b16 %v1729
        %v2028 = vunpack.c.l.b16 %v1730
        %v2029 = vunpack.c.l.b16 %v1731
        %v2030 = vunpack.c.h.b16 %v1731
        %v2031 = vunpack.c.l.b16 %v1732
        %v2032 = vunpack.c.l.b16 %v1733
        %v2033 = vunpack.c.h.b16 %v1733
        %v2034 = vunpack.c.l.b16 %v1734
        %v2035 = vunpack.c.l.b16 %v1735
        %v2036 = vunpack.c.h.b16 %v1735
        %v2037 = vunpack.c.l.b16 %v1736
        %v2038 = vunpack.c.l.b16 %v1737
        %v2039 = vunpack.c.h.b16 %v1737
        %v2040 = vunpack.c.l.b16 %v1738
        %v2041 = vunpack.c.l.b16 %v1739
        %v2042 = vunpack.c.h.b16 %v1739
        %v2043 = vunpack.c.l.b16 %v1740
        %v2044 = vunpack.c.l.b16 %v1741
        %v2045 = vunpack.c.h.b16 %v1741
        %v2046 = vunpack.c.l.b16 %v1742
        %v2047 = vunpack.c.l.b16 %v1743
        %v2048 = vunpack.c.h.b16 %v1743
        %v2049 = vunpack.c.l.b16 %v1744
        %v2050 = vunpack.c.l.b16 %v1745
        %v2051 = vunpack.c.h.b16 %v1745
        %v2052 = vunpack.c.l.b16 %v1746
        %v2053 = vunpack.c.l.b16 %v1747
        %v2054 = vunpack.c.h.b16 %v1747
        %v2055 = vunpack.c.l.b16 %v1748
        %v2056 = vunpack.c.l.b16 %v1749
        %v2057 = vunpack.c.h.b16 %v1749
        %v2058 = vunpack.c.l.b16 %v1750
        %v2059 = vunpack.c.l.b16 %v1751
        %v2060 = vunpack.c.h.b16 %v1751
        %v2061 = vunpack.c.l.b16 %v1752
        %v2062 = vunpack.c.l.b16 %v1753
        %v2063 = vunpack.c.h.b16 %v1753
        %v2064 = vunpack.c.l.b16 %v1754
        %v2065 = vunpack.c.l.b16 %v1755
        %v2066 = vunpack.c.h.b16 %v1755
        %v2067 = vunpack.c.l.b16 %v1756
        %v2068 = vunpack.c.l.b16 %v1757
        %v2069 = vunpack.c.h.b16 %v1757
        %v2070 = vunpack.c.l.b16 %v1758
        %v2071 = vunpack.c.l.b16 %v1759
        %v2072 = vunpack.c.h.b16 %v1759
        %v2073 = vunpack.c.l.b16 %v1760
        %v2074 = vunpack.c.l.b16 %v1761
        %v2075 = vunpack.c.h.b16 %v1761
        %v2076 = vunpack.c.l.b16 %v1762
        %v2077 = vunpack.c.l.b16 %v1763
        %v2078 = vunpack.c.h.b16 %v1763
        %v2079 = vunpack.c.l.b16 %v1764
        %v2080 = vunpack.c.l.b16 %v1765
        %v2081 = vunpack.c.h.b16 %v1765
        %v2082 = vunpack.c.l.b16 %v1766
        %v2083 = vunpack.c.l.b16 %v1767
        %v2084 = vunpack.c.h.b16 %v1767
        %v2085 = vunpack.c.l.b16 %v1768
        %v2086 = vunpack.c.l.b16 %v1769
        %v2087 = vunpack.c.h.b16 %v1769
        %v2088 = vunpack.c.l.b16 %v1770
        %v2089 = vunpack.c.l.b16 %v1771
        %v2090 = vunpack.c.h.b16 %v1771
        %v2091 = vunpack.c.l.b16 %v1772
        %v2092 = vunpack.c.l.b16 %v1773
        %v2093 = vunpack.c.h.b16 %v1773
        %v2094 = vunpack.c.l.b16 %v1774
        %v2095 = vunpack.c.l.b16 %v1775
        %v2096 = vunpack.c.h.b16 %v1775
        %v2097 = vunpack.c.l.b16 %v1776
        %v2098 = vunpack.c.l.b16 %v1777
        %v2099 = vunpack.c.h.b16 %v1777
        %v2100 = vunpack.c.l.b16 %v1778
        %v2101 = vunpack.c.l.b16 %v1779
        %v2102 = vunpack.c.h.b16 %v1779
        %v2103 = vunpack.c.l.b16 %v1780
        %v2104 = vunpack.c.l.b16 %v1781
        %v2105 = vunpack.c.h.b16 %v1781
        %v2106 = vunpack.c.l.b16 %v1782
        %v2107 = vpack.c.b16 %v1918, %v1915
        %v2108 = vpack.c.b16 %v1919, %v1916
        %v2109 = vpack.c.b16 %v1920, %v1917
        %v2110 = vpack.c.b16 %v1924, %v1921
        %v2111 = vpack.c.b16 %v1925, %v1922
        %v2112 = vpack.c.b16 %v1926, %v1923
        %v2113 = vpack.c.b16 %v1930, %v1927
        %v2114 = vpack.c.b16 %v1931, %v1928
        %v2115 = vpack.c.b16 %v1932, %v1929
        %v2116 = vpack.c.b16 %v1936, %v1933
        %v2117 = vpack.c.b16 %v1937, %v1934
        %v2118 = vpack.c.b16 %v1938, %v1935
        %v2119 = vpack.c.b16 %v1942, %v1939
        %v2120 = vpack.c.b16 %v1943, %v1940
        %v2121 = vpack.c.b16 %v1944, %v1941
        %v2122 = vpack.c.b16 %v1948, %v1945
        %v2123 = vpack.c.b16 %v1949, %v1946
        %v2124 = vpack.c.b16 %v1950, %v1947
        %v2125 = vpack.c.b16 %v1954, %v1951
        %v2126 = vpack.c.b16 %v1955, %v1952
        %v2127 = vpack.c.b16 %v1956, %v1953
        %v2128 = vpack.c.b16 %v1960, %v1957
        %v2129 = vpack.c.b16 %v1961, %v1958
        %v2130 = vpack.c.b16 %v1962, %v1959
        %v2131 = vpack.c.b16 %v1966, %v1963
        %v2132 = vpack.c.b16 %v1967, %v1964
        %v2133 = vpack.c.b16 %v1968, %v1965
        %v2134 = vpack.c.b16 %v1972, %v1969
        %v2135 = vpack.c.b16 %v1973, %v1970
        %v2136 = vpack.c.b16 %v1974, %v1971
        %v2137 = vpack.c.b16 %v1978, %v1975
        %v2138 = vpack.c.b16 %v1979, %v1976
        %v2139 = vpack.c.b16 %v1980, %v1977
        %v2140 = vpack.c.b16 %v1984, %v1981
        %v2141 = vpack.c.b16 %v1985, %v1982
        %v2142 = vpack.c.b16 %v1986, %v1983
        %v2143 = vpack.c.b16 %v1990, %v1987
        %v2144 = vpack.c.b16 %v1991, %v1988
        %v2145 = vpack.c.b16 %v1992, %v1989
        %v2146 = vpack.c.b16 %v1996, %v1993
        %v2147 = vpack.c.b16 %v1997, %v1994
        %v2148 = vpack.c.b16 %v1998, %v1995
        %v2149 = vpack.c.b16 %v2002, %v1999
        %v2150 = vpack.c.b16 %v2003, %v2000
        %v2151 = vpack.c.b16 %v2004, %v2001
        %v2152 = vpack.c.b16 %v2008, %v2005
        %v2153 = vpack.c.b16 %v2009, %v2006
        %v2154 = vpack.c.b16 %v2010, %v2007
        %v2155 = vpack.c.b16 %v2014, %v2011
        %v2156 = vpack.c.b16 %v2015, %v2012
        %v2157 = vpack.c.b16 %v2016, %v2013
        %v2158 = vpack.c.b16 %v2020, %v2017
        %v2159 = vpack.c.b16 %v2021, %v2018
        %v2160 = vpack.c.b16 %v2022, %v2019
        %v2161 = vpack.c.b16 %v2026, %v2023
        %v2162 = vpack.c.b16 %v2027, %v2024
        %v2163 = vpack.c.b16 %v2028, %v2025
        %v2164 = vpack.c.b16 %v2032, %v2029
        %v2165 = vpack.c.b16 %v2033, %v2030
        %v2166 = vpack.c.b16 %v2034, %v2031
        %v2167 = vpack.c.b16 %v2038, %v2035
        %v2168 = vpack.c.b16 %v2039, %v2036
        %v2169 = vpack.c.b16 %v2040, %v2037
        %v2170 = vpack.c.b16 %v2044, %v2041
        %v2171 = vpack.c.b16 %v2045, %v2042
        %v2172 = vpack.c.b16 %v2046, %v2043
        %v2173 = vpack.c.b16 %v2050, %v2047
        %v2174 = vpack.c.b16 %v2051, %v2048
        %v2175 = vpack.c.b16 %v2052, %v2049
        %v2176 = vpack.c.b16 %v2056, %v2053
        %v2177 = vpack.c.b16 %v2057, %v2054
        %v2178 = vpack.c.b16 %v2058, %v2055
        %v2179 = vpack.c.b16 %v2062, %v2059
        %v2180 = vpack.c.b16 %v2063, %v2060
        %v2181 = vpack.c.b16 %v2064, %v2061
        %v2182 = vpack.c.b16 %v2068, %v2065
        %v2183 = vpack.c.b16 %v2069, %v2066
        %v2184 = vpack.c.b16 %v2070, %v2067
        %v2185 = vpack.c.b16 %v2074, %v2071
        %v2186 = vpack.c.b16 %v2075, %v2072
        %v2187 = vpack.c.b16 %v2076, %v2073
        %v2188 = vpack.c.b16 %v2080, %v2077
        %v2189 = vpack.c.b16 %v2081, %v2078
        %v2190 = vpack.c.b16 %v2082, %v2079
        %v2191 = vpack.c.b16 %v2086, %v2083
        %v2192 = vpack.c.b16 %v2087, %v2084
        %v2193 = vpack.c.b16 %v2088, %v2085
        %v2194 = vpack.c.b16 %v2092, %v2089
        %v2195 = vpack.c.b16 %v2093, %v2090
        %v2196 = vpack.c.b16 %v2094, %v2091
        %v2197 = vpack.c.b16 %v2098, %v2095
        %v2198 = vpack.c.b16 %v2099, %v2096
        %v2199 = vpack.c.b16 %v2100, %v2097
        %v2200 = vpack.c.b16 %v2104, %v2101
        %v2201 = vpack.c.b16 %v2105, %v2102
        %v2202 = vpack.c.b16 %v2106, %v2103
        %2299 = vmatpush.bf16.msra.mxu0 %v2128
        %2300 = vmatpush.bf16.msra.mxu0 %v2125
        %2301 = vmatpush.bf16.msra.mxu0 %v2122
        %2302 = vmatpush.bf16.msra.mxu0 %v2119
        %2303 = vmatpush.bf16.msra.mxu0 %v2116
        %2304 = vmatpush.bf16.msra.mxu0 %v2113
        %2305 = vmatpush.bf16.msra.mxu0 %v2110
        %2306 = vmatpush.bf16.msra.mxu0 %v2107
        %2307 = vmatmul.bf16.gmra.mxu0 %v1783
        %v2308 = vpop.f32.mrf.mxu0
        %v2309 = vadd.f32 0.0, %v2308
        %v2310 = vpop.f32.mrf.mxu0
        %v2311 = vadd.f32 0.0, %v2310
        %2312 = vdwg.mxu0
        %2313 = vmatpush.bf16.msra.mxu0 %v2152
        %2314 = vmatpush.bf16.msra.mxu0 %v2149
        %2315 = vmatpush.bf16.msra.mxu0 %v2146
        %2316 = vmatpush.bf16.msra.mxu0 %v2143
        %2317 = vmatpush.bf16.msra.mxu0 %v2140
        %2318 = vmatpush.bf16.msra.mxu0 %v2137
        %2319 = vmatpush.bf16.msra.mxu0 %v2134
        %2320 = vmatpush.bf16.msra.mxu0 %v2131
        %2321 = vmatmul.bf16.gmra.mxu0 %v1784
        %v2322 = vpop.f32.mrf.mxu0
        %v2323 = vadd.f32 %v2309, %v2322
        %v2324 = vpop.f32.mrf.mxu0
        %v2325 = vadd.f32 %v2311, %v2324
        %2326 = vdwg.mxu0
        %2327 = vmatpush.bf16.msra.mxu0 %v2176
        %2328 = vmatpush.bf16.msra.mxu0 %v2173
        %2329 = vmatpush.bf16.msra.mxu0 %v2170
        %2330 = vmatpush.bf16.msra.mxu0 %v2167
        %2331 = vmatpush.bf16.msra.mxu0 %v2164
        %2332 = vmatpush.bf16.msra.mxu0 %v2161
        %2333 = vmatpush.bf16.msra.mxu0 %v2158
        %2334 = vmatpush.bf16.msra.mxu0 %v2155
        %2335 = vmatmul.bf16.gmra.mxu0 %v1785
        %v2336 = vpop.f32.mrf.mxu0
        %v2337 = vadd.f32 %v2323, %v2336
        %v2338 = vpop.f32.mrf.mxu0
        %v2339 = vadd.f32 %v2325, %v2338
        %2340 = vdwg.mxu0
        %2341 = vmatpush.bf16.msra.mxu0 %v2200
        %2342 = vmatpush.bf16.msra.mxu0 %v2197
        %2343 = vmatpush.bf16.msra.mxu0 %v2194
        %2344 = vmatpush.bf16.msra.mxu0 %v2191
        %2345 = vmatpush.bf16.msra.mxu0 %v2188
        %2346 = vmatpush.bf16.msra.mxu0 %v2185
        %2347 = vmatpush.bf16.msra.mxu0 %v2182
        %2348 = vmatpush.bf16.msra.mxu0 %v2179
        %2349 = vmatmul.bf16.gmra.mxu0 %v1786
        %v2350 = vpop.f32.mrf.mxu0
        %v2351 = vadd.f32 %v2337, %v2350
        %v2352 = vpop.f32.mrf.mxu0
        %v2353 = vadd.f32 %v2339, %v2352
        %2354 = vdwg.mxu0
        %2355 = vmatpush.bf16.msra.mxu0 %v2129
        %2356 = vmatpush.bf16.msra.mxu0 %v2126
        %2357 = vmatpush.bf16.msra.mxu0 %v2123
        %2358 = vmatpush.bf16.msra.mxu0 %v2120
        %2359 = vmatpush.bf16.msra.mxu0 %v2117
        %2360 = vmatpush.bf16.msra.mxu0 %v2114
        %2361 = vmatpush.bf16.msra.mxu0 %v2111
        %2362 = vmatpush.bf16.msra.mxu0 %v2108
        %2363 = vmatmul.bf16.gmra.mxu0 %v1783
        %v2364 = vpop.f32.mrf.mxu0
        %v2365 = vadd.f32 0.0, %v2364
        %v2366 = vpop.f32.mrf.mxu0
        %v2367 = vadd.f32 0.0, %v2366
        %2368 = vdwg.mxu0
        %2369 = vmatpush.bf16.msra.mxu0 %v2153
        %2370 = vmatpush.bf16.msra.mxu0 %v2150
        %2371 = vmatpush.bf16.msra.mxu0 %v2147
        %2372 = vmatpush.bf16.msra.mxu0 %v2144
        %2373 = vmatpush.bf16.msra.mxu0 %v2141
        %2374 = vmatpush.bf16.msra.mxu0 %v2138
        %2375 = vmatpush.bf16.msra.mxu0 %v2135
        %2376 = vmatpush.bf16.msra.mxu0 %v2132
        %2377 = vmatmul.bf16.gmra.mxu0 %v1784
        %v2378 = vpop.f32.mrf.mxu0
        %v2379 = vadd.f32 %v2365, %v2378
        %v2380 = vpop.f32.mrf.mxu0
        %v2381 = vadd.f32 %v2367, %v2380
        %2382 = vdwg.mxu0
        %2383 = vmatpush.bf16.msra.mxu0 %v2177
        %2384 = vmatpush.bf16.msra.mxu0 %v2174
        %2385 = vmatpush.bf16.msra.mxu0 %v2171
        %2386 = vmatpush.bf16.msra.mxu0 %v2168
        %2387 = vmatpush.bf16.msra.mxu0 %v2165
        %2388 = vmatpush.bf16.msra.mxu0 %v2162
        %2389 = vmatpush.bf16.msra.mxu0 %v2159
        %2390 = vmatpush.bf16.msra.mxu0 %v2156
        %2391 = vmatmul.bf16.gmra.mxu0 %v1785
        %v2392 = vpop.f32.mrf.mxu0
        %v2393 = vadd.f32 %v2379, %v2392
        %v2394 = vpop.f32.mrf.mxu0
        %v2395 = vadd.f32 %v2381, %v2394
        %2396 = vdwg.mxu0
        %2397 = vmatpush.bf16.msra.mxu0 %v2201
        %2398 = vmatpush.bf16.msra.mxu0 %v2198
        %2399 = vmatpush.bf16.msra.mxu0 %v2195
        %2400 = vmatpush.bf16.msra.mxu0 %v2192
        %2401 = vmatpush.bf16.msra.mxu0 %v2189
        %2402 = vmatpush.bf16.msra.mxu0 %v2186
        %2403 = vmatpush.bf16.msra.mxu0 %v2183
        %2404 = vmatpush.bf16.msra.mxu0 %v2180
        %2405 = vmatmul.bf16.gmra.mxu0 %v1786
        %v2406 = vpop.f32.mrf.mxu0
        %v2407 = vadd.f32 %v2393, %v2406
        %v2408 = vpop.f32.mrf.mxu0
        %v2409 = vadd.f32 %v2395, %v2408
        %2410 = vdwg.mxu0
        %2411 = vmatpush.bf16.msra.mxu0 %v2130
        %2412 = vmatpush.bf16.msra.mxu0 %v2127
        %2413 = vmatpush.bf16.msra.mxu0 %v2124
        %2414 = vmatpush.bf16.msra.mxu0 %v2121
        %2415 = vmatpush.bf16.msra.mxu0 %v2118
        %2416 = vmatpush.bf16.msra.mxu0 %v2115
        %2417 = vmatpush.bf16.msra.mxu0 %v2112
        %2418 = vmatpush.bf16.msra.mxu0 %v2109
        %2419 = vmatmul.bf16.gmra.mxu0 %v1783
        %v2420 = vpop.f32.mrf.mxu0
        %v2421 = vadd.f32 0.0, %v2420
        %v2422 = vpop.f32.mrf.mxu0
        %v2423 = vadd.f32 0.0, %v2422
        %2424 = vdwg.mxu0
        %2425 = vmatpush.bf16.msra.mxu0 %v2154
        %2426 = vmatpush.bf16.msra.mxu0 %v2151
        %2427 = vmatpush.bf16.msra.mxu0 %v2148
        %2428 = vmatpush.bf16.msra.mxu0 %v2145
        %2429 = vmatpush.bf16.msra.mxu0 %v2142
        %2430 = vmatpush.bf16.msra.mxu0 %v2139
        %2431 = vmatpush.bf16.msra.mxu0 %v2136
        %2432 = vmatpush.bf16.msra.mxu0 %v2133
        %2433 = vmatmul.bf16.gmra.mxu0 %v1784
        %v2434 = vpop.f32.mrf.mxu0
        %v2435 = vadd.f32 %v2421, %v2434
        %v2436 = vpop.f32.mrf.mxu0
        %v2437 = vadd.f32 %v2423, %v2436
        %2438 = vdwg.mxu0
        %2439 = vmatpush.bf16.msra.mxu0 %v2178
        %2440 = vmatpush.bf16.msra.mxu0 %v2175
        %2441 = vmatpush.bf16.msra.mxu0 %v2172
        %2442 = vmatpush.bf16.msra.mxu0 %v2169
        %2443 = vmatpush.bf16.msra.mxu0 %v2166
        %2444 = vmatpush.bf16.msra.mxu0 %v2163
        %2445 = vmatpush.bf16.msra.mxu0 %v2160
        %2446 = vmatpush.bf16.msra.mxu0 %v2157
        %2447 = vmatmul.bf16.gmra.mxu0 %v1785
        %v2448 = vpop.f32.mrf.mxu0
        %v2449 = vadd.f32 %v2435, %v2448
        %v2450 = vpop.f32.mrf.mxu0
        %v2451 = vadd.f32 %v2437, %v2450
        %2452 = vdwg.mxu0
        %2453 = vmatpush.bf16.msra.mxu0 %v2202
        %2454 = vmatpush.bf16.msra.mxu0 %v2199
        %2455 = vmatpush.bf16.msra.mxu0 %v2196
        %2456 = vmatpush.bf16.msra.mxu0 %v2193
        %2457 = vmatpush.bf16.msra.mxu0 %v2190
        %2458 = vmatpush.bf16.msra.mxu0 %v2187
        %2459 = vmatpush.bf16.msra.mxu0 %v2184
        %2460 = vmatpush.bf16.msra.mxu0 %v2181
        %2461 = vmatmul.bf16.gmra.mxu0 %v1786
        %v2462 = vpop.f32.mrf.mxu0
        %v2463 = vadd.f32 %v2449, %v2462
        %v2464 = vpop.f32.mrf.mxu0
        %v2465 = vadd.f32 %v2451, %v2464
        %2466 = vdwg.mxu0
        %v2467 = vperm.slane %v1641, 0
        %v2468 = vperm.slane %v1642, 0
        %v2469 = vperm.slane %v1643, 0
        %v2470 = vmul.f32 %v2351, %v2467
        %v2471 = vmul.f32 %v2407, %v2468
        %v2472 = vmul.f32 %v2463, %v2469
        %v2473 = vmul.f32 %v2353, %v2467
        %v2474 = vmul.f32 %v2409, %v2468
        %v2475 = vmul.f32 %v2465, %v2469
        %v2476 = vperm.slane %v1641, 1
        %v2477 = vperm.slane %v1642, 1
        %v2478 = vperm.slane %v1643, 1
        %v2479 = vadd.f32 %v2470, %v2476
        %v2480 = vadd.f32 %v2471, %v2477
        %v2481 = vadd.f32 %v2472, %v2478
        %v2482 = vadd.f32 %v2473, %v2476
        %v2483 = vadd.f32 %v2474, %v2477
        %v2484 = vadd.f32 %v2475, %v2478
        %v2485 = vld [vmem:[%s813] sm:$0xff]
        %v2486 = vld [vmem:[%s813 + $0x8] sm:$0xff]
        %v2487 = vld [vmem:[%s813 + $0x10] sm:$0xff]
        %v2488 = vld [vmem:[%s813 + $0x18] sm:$0xff]
        %v2489 = vld [vmem:[%s813 + $0x20] sm:$0xff]
        %v2490 = vld [vmem:[%s813 + $0x28] sm:$0xff]
        %v2491 = vld [vmem:[%s813 + $0x30] sm:$0xff]
        %v2492 = vld [vmem:[%s813 + $0x38] sm:$0xff]
        %v2493 = vld [vmem:[%s813 + $0x40] sm:$0xff]
        %v2494 = vld [vmem:[%s813 + $0x48] sm:$0xff]
        %v2495 = vld [vmem:[%s813 + $0x50] sm:$0xff]
        %v2496 = vld [vmem:[%s813 + $0x58] sm:$0xff]
        %v2497 = vld [vmem:[%s813 + $0x60] sm:$0xff]
        %v2498 = vld [vmem:[%s813 + $0x68] sm:$0xff]
        %v2499 = vld [vmem:[%s813 + $0x70] sm:$0xff]
        %v2500 = vld [vmem:[%s813 + $0x78] sm:$0xff]
        %v2501 = vpack.c.bf16 %v2483, %v2480
        %v2502 = vperm.slane %v1641, 2
        %v2503 = vperm.slane %v1642, 2
        %v2520 = vunpack.c.l.b16 %v2485
        %v2521 = vunpack.c.h.b16 %v2485
        %v2522 = vunpack.c.l.b16 %v2486
        %v2523 = vunpack.c.h.b16 %v2486
        %v2524 = vunpack.c.l.b16 %v2487
        %v2525 = vunpack.c.h.b16 %v2487
        %v2526 = vunpack.c.l.b16 %v2488
        %v2527 = vunpack.c.h.b16 %v2488
        %v2528 = vunpack.c.l.b16 %v2489
        %v2529 = vunpack.c.h.b16 %v2489
        %v2530 = vunpack.c.l.b16 %v2490
        %v2531 = vunpack.c.h.b16 %v2490
        %v2532 = vunpack.c.l.b16 %v2491
        %v2533 = vunpack.c.h.b16 %v2491
        %v2534 = vunpack.c.l.b16 %v2492
        %v2535 = vunpack.c.h.b16 %v2492
        %v2536 = vunpack.c.l.b16 %v2493
        %v2537 = vunpack.c.h.b16 %v2493
        %v2538 = vunpack.c.l.b16 %v2494
        %v2539 = vunpack.c.h.b16 %v2494
        %v2540 = vunpack.c.l.b16 %v2495
        %v2541 = vunpack.c.h.b16 %v2495
        %v2542 = vunpack.c.l.b16 %v2496
        %v2543 = vunpack.c.h.b16 %v2496
        %v2544 = vunpack.c.l.b16 %v2497
        %v2545 = vunpack.c.h.b16 %v2497
        %v2546 = vunpack.c.l.b16 %v2498
        %v2547 = vunpack.c.h.b16 %v2498
        %v2548 = vunpack.c.l.b16 %v2499
        %v2549 = vunpack.c.h.b16 %v2499
        %v2550 = vunpack.c.l.b16 %v2500
        %v2551 = vunpack.c.h.b16 %v2500
        %v2552 = vpack.c.b16 %v2522, %v2520
        %v2553 = vpack.c.b16 %v2523, %v2521
        %v2554 = vpack.c.b16 %v2526, %v2524
        %v2555 = vpack.c.b16 %v2527, %v2525
        %v2556 = vpack.c.b16 %v2530, %v2528
        %v2557 = vpack.c.b16 %v2531, %v2529
        %v2558 = vpack.c.b16 %v2534, %v2532
        %v2559 = vpack.c.b16 %v2535, %v2533
        %v2560 = vpack.c.b16 %v2538, %v2536
        %v2561 = vpack.c.b16 %v2539, %v2537
        %v2562 = vpack.c.b16 %v2542, %v2540
        %v2563 = vpack.c.b16 %v2543, %v2541
        %v2564 = vpack.c.b16 %v2546, %v2544
        %v2565 = vpack.c.b16 %v2547, %v2545
        %v2566 = vpack.c.b16 %v2550, %v2548
        %v2567 = vpack.c.b16 %v2551, %v2549
        %2584 = vmatpush.bf16.msra.mxu0 %v2566
        %2585 = vmatpush.bf16.msra.mxu0 %v2564
        %2586 = vmatpush.bf16.msra.mxu0 %v2562
        %2587 = vmatpush.bf16.msra.mxu0 %v2560
        %2588 = vmatpush.bf16.msra.mxu0 %v2558
        %2589 = vmatpush.bf16.msra.mxu0 %v2556
        %2590 = vmatpush.bf16.msra.mxu0 %v2554
        %2591 = vmatpush.bf16.msra.mxu0 %v2552
        %2592 = vmatmul.bf16.gmra.mxu0 %v2501
        %v2593 = vpop.f32.mrf.mxu0
        %v2594 = vadd.f32 %v2502, %v2593
        %v2595 = vpop.f32.mrf.mxu0
        %v2596 = vadd.f32 %v2502, %v2595
        %2597 = vdwg.mxu0
        %2598 = vmatpush.bf16.msra.mxu0 %v2567
        %2599 = vmatpush.bf16.msra.mxu0 %v2565
        %2600 = vmatpush.bf16.msra.mxu0 %v2563
        %2601 = vmatpush.bf16.msra.mxu0 %v2561
        %2602 = vmatpush.bf16.msra.mxu0 %v2559
        %2603 = vmatpush.bf16.msra.mxu0 %v2557
        %2604 = vmatpush.bf16.msra.mxu0 %v2555
        %2605 = vmatpush.bf16.msra.mxu0 %v2553
        %2606 = vmatmul.bf16.gmra.mxu0 %v2501
        %v2607 = vpop.f32.mrf.mxu0
        %v2608 = vadd.f32 %v2503, %v2607
        %v2609 = vpop.f32.mrf.mxu0
        %v2610 = vadd.f32 %v2503, %v2609
        %2611 = vdwg.mxu0
        %vm2612 = vcmask 261120
        %v2614 = vsel %vm2612, %v2594, 0
        %v2617 = vsel %vm2612, %v2596, 0
        %v2620 = vsel %vm2612, %v2608, 0
        %v2623 = vsel %vm2612, %v2610, 0
        %2625 = vmatpush.xpose.msra.mxu0 0.0
        %2626 = vmatpush.xpose.msra.mxu0 0.0
        %2627 = vmatpush.xpose.msra.mxu0 0.0
        %2628 = vmatpush.xpose.msra.mxu0 0.0
        %2629 = vmatpush.xpose.msra.mxu0 0.0
        %2630 = vmatpush.xpose.msra.mxu0 0.0
        %2631 = vmatpush.xpose.msra.mxu0 0.0
        %2632 = vmatpush.xpose.msra.mxu0 0.0
        %2633 = vmatpush.xpose.msra.mxu0 0.0
        %2634 = vmatpush.xpose.msra.mxu0 0.0
        %2635 = vmatpush.xpose.msra.mxu0 0.0
        %2636 = vmatpush.xpose.msra.mxu0 0.0
        %2637 = vmatpush.xpose.msra.mxu0 0.0
        %2638 = vmatpush.xpose.msra.mxu0 0.0
        %2639 = vmatpush.xpose.msra.mxu0 %v2623
        %2640 = vmatpush.xpose.msra.mxu0 %v2620
        %2641 = vmatmul.f32.gmra.mxu0 %v2614
        %v2642 = vpop.f32.mrf.mxu0
        %v2643 = vadd.f32 0.0, %v2642
        %2644 = vmatmul.f32.gmra.mxu0 %v2617
        %v2645 = vpop.f32.mrf.mxu0
        %v2646 = vadd.f32 0.0, %v2645
        %2647 = vdwg.mxu0
        %v2648 = vmul.f32 %v2643, 0.17677669
        %v2649 = vmul.f32 %v2646, 0.17677669
        %v2650 = vadd.f32 %v2648, %v1653
        %v2651 = vadd.f32 %v2649, %v1654
        %vm2652 = vcmask 130048
        %v2653 = vsel %vm2652, %v2650, -inf
        %2654 = vmax.xlane.f32.xlu0 %v2653
        %v2655 = vpop.xlane.xlu0 %2654
        %v2656 = vsel %vm2652, %v2651, -inf
        %2657 = vmax.xlane.f32.xlu0 %v2656
        %v2658 = vpop.xlane.xlu0 %2657
        %v2659 = vsub.f32 %v2650, %v2655
        %v2660 = vsub.f32 %v2651, %v2658
        %v2661 = vmul.f32 %v2659, 1.442695
        %v2662 = vpow.pop %v2661
        %v2663 = vmul.f32 %v2660, 1.442695
        %v2664 = vpow.pop %v2663
        %v2665 = vsel %vm2652, %v2662, 0.0
        %2666 = vadd.xlane.f32.xlu0 %v2665
        %v2667 = vpop.xlane.xlu0 %2666
        %v2668 = vsel %vm2652, %v2664, 0.0
        %2669 = vadd.xlane.f32.xlu0 %v2668
        %v2670 = vpop.xlane.xlu0 %2669
        %v2671 = vrcp.pop %v2667
        %v2672 = vrcp.pop %v2670
        %v2673 = vmul.f32 %v2662, %v2671
        %v2674 = vmul.f32 %v2664, %v2672
        %v2676 = vsel %vm2652, %v2673, 0
        %v2679 = vsel %vm2652, %v2674, 0
        %2681 = vmatpush.msra.mxu0 0.0
        %2682 = vmatpush.msra.mxu0 0.0
        %2683 = vmatpush.msra.mxu0 0.0
        %2684 = vmatpush.msra.mxu0 0.0
        %2685 = vmatpush.msra.mxu0 0.0
        %2686 = vmatpush.msra.mxu0 0.0
        %2687 = vmatpush.msra.mxu0 0.0
        %2688 = vmatpush.msra.mxu0 0.0
        %2689 = vmatpush.msra.mxu0 0.0
        %2690 = vmatpush.msra.mxu0 0.0
        %2691 = vmatpush.msra.mxu0 0.0
        %2692 = vmatpush.msra.mxu0 0.0
        %2693 = vmatpush.msra.mxu0 0.0
        %2694 = vmatpush.msra.mxu0 0.0
        %2695 = vmatpush.msra.mxu0 %v2484
        %2696 = vmatpush.msra.mxu0 %v2481
        %2697 = vmatmul.f32.gmra.mxu0 %v2676
        %v2698 = vpop.f32.mrf.mxu0
        %v2699 = vadd.f32 0.0, %v2698
        %2700 = vmatmul.f32.gmra.mxu0 %v2679
        %v2701 = vpop.f32.mrf.mxu0
        %v2702 = vadd.f32 0.0, %v2701
        %2703 = vdwg.mxu0
        %2704 = vst.msk [vmem:[#allocation3] sm:$0xff] %vm2612, %v2699
        %2705 = vst.msk [vmem:[#allocation3 + $0x8] sm:$0xff] %vm2612, %v2702
        %2706 = vrot.lane.b32.xlu0 %v2594, 96
        %v2707 = vpop.permute.xlu0 %2706
        %2708 = vrot.lane.b32.xlu0 %v2596, 96
        %v2709 = vpop.permute.xlu0 %2708
        %2710 = vrot.lane.b32.xlu0 %v2608, 96
        %v2711 = vpop.permute.xlu0 %2710
        %2712 = vrot.lane.b32.xlu0 %v2610, 96
        %v2713 = vpop.permute.xlu0 %2712
        %v2714 = vsel %vm2612, %v2707, 0
        %v2716 = vsel %vm2612, %v2709, 0
        %v2718 = vsel %vm2612, %v2711, 0
        %v2720 = vsel %vm2612, %v2713, 0
        %2722 = vmatpush.xpose.msra.mxu0 0.0
        %2723 = vmatpush.xpose.msra.mxu0 0.0
        %2724 = vmatpush.xpose.msra.mxu0 0.0
        %2725 = vmatpush.xpose.msra.mxu0 0.0
        %2726 = vmatpush.xpose.msra.mxu0 0.0
        %2727 = vmatpush.xpose.msra.mxu0 0.0
        %2728 = vmatpush.xpose.msra.mxu0 0.0
        %2729 = vmatpush.xpose.msra.mxu0 0.0
        %2730 = vmatpush.xpose.msra.mxu0 0.0
        %2731 = vmatpush.xpose.msra.mxu0 0.0
        %2732 = vmatpush.xpose.msra.mxu0 0.0
        %2733 = vmatpush.xpose.msra.mxu0 0.0
        %2734 = vmatpush.xpose.msra.mxu0 0.0
        %2735 = vmatpush.xpose.msra.mxu0 0.0
        %2736 = vmatpush.xpose.msra.mxu0 %v2720
        %2737 = vmatpush.xpose.msra.mxu0 %v2718
        %2738 = vmatmul.f32.gmra.mxu0 %v2714
        %v2739 = vpop.f32.mrf.mxu0
        %v2740 = vadd.f32 0.0, %v2739
        %2741 = vmatmul.f32.gmra.mxu0 %v2716
        %v2742 = vpop.f32.mrf.mxu0
        %v2743 = vadd.f32 0.0, %v2742
        %2744 = vdwg.mxu0
        %v2745 = vmul.f32 %v2740, 0.17677669
        %v2746 = vmul.f32 %v2743, 0.17677669
        %v2747 = vadd.f32 %v2745, %v1653
        %v2748 = vadd.f32 %v2746, %v1654
        %v2749 = vsel %vm2652, %v2747, -inf
        %2750 = vmax.xlane.f32.xlu0 %v2749
        %v2751 = vpop.xlane.xlu0 %2750
        %v2752 = vsel %vm2652, %v2748, -inf
        %2753 = vmax.xlane.f32.xlu0 %v2752
        %v2754 = vpop.xlane.xlu0 %2753
        %v2755 = vsub.f32 %v2747, %v2751
        %v2756 = vsub.f32 %v2748, %v2754
        %v2757 = vmul.f32 %v2755, 1.442695
        %v2758 = vpow.pop %v2757
        %v2759 = vmul.f32 %v2756, 1.442695
        %v2760 = vpow.pop %v2759
        %v2761 = vsel %vm2652, %v2758, 0.0
        %2762 = vadd.xlane.f32.xlu0 %v2761
        %v2763 = vpop.xlane.xlu0 %2762
        %v2764 = vsel %vm2652, %v2760, 0.0
        %2765 = vadd.xlane.f32.xlu0 %v2764
        %v2766 = vpop.xlane.xlu0 %2765
        %v2767 = vrcp.pop %v2763
        %v2768 = vrcp.pop %v2766
        %v2769 = vmul.f32 %v2758, %v2767
        %v2770 = vmul.f32 %v2760, %v2768
        %2773 = vrot.lane.b32.xlu0 %v2481, 96
        %v2774 = vpop.permute.xlu0 %2773
        %2775 = vrot.lane.b32.xlu0 %v2484, 96
        %v2776 = vpop.permute.xlu0 %2775
        %v2780 = vsel %vm2652, %v2769, 0
        %v2783 = vsel %vm2652, %v2770, 0
        %2785 = vmatpush.msra.mxu0 0.0
        %2786 = vmatpush.msra.mxu0 0.0
        %2787 = vmatpush.msra.mxu0 0.0
        %2788 = vmatpush.msra.mxu0 0.0
        %2789 = vmatpush.msra.mxu0 0.0
        %2790 = vmatpush.msra.mxu0 0.0
        %2791 = vmatpush.msra.mxu0 0.0
        %2792 = vmatpush.msra.mxu0 0.0
        %2793 = vmatpush.msra.mxu0 0.0
        %2794 = vmatpush.msra.mxu0 0.0
        %2795 = vmatpush.msra.mxu0 0.0
        %2796 = vmatpush.msra.mxu0 0.0
        %2797 = vmatpush.msra.mxu0 0.0
        %2798 = vmatpush.msra.mxu0 0.0
        %2799 = vmatpush.msra.mxu0 %v2776
        %2800 = vmatpush.msra.mxu0 %v2774
        %2801 = vmatmul.f32.gmra.mxu0 %v2780
        %v2802 = vpop.f32.mrf.mxu0
        %v2803 = vadd.f32 0.0, %v2802
        %2804 = vmatmul.f32.gmra.mxu0 %v2783
        %v2805 = vpop.f32.mrf.mxu0
        %v2806 = vadd.f32 0.0, %v2805
        %2807 = vdwg.mxu0
        %2810 = vrot.lane.b32.xlu0 %v2803, 32
        %v2811 = vpop.permute.xlu0 %2810
        %2812 = vrot.lane.b32.xlu0 %v2806, 32
        %v2813 = vpop.permute.xlu0 %2812
        %vm2816 = vcmask 523520
        %2817 = vst.msk [vmem:[#allocation3] sm:$0xff] %vm2816, %v2811
        %2818 = vst.msk [vmem:[#allocation3 + $0x8] sm:$0xff] %vm2816, %v2813
        %2819 = vrot.lane.b32.xlu0 %v2594, 64
        %v2820 = vpop.permute.xlu0 %2819
        %2821 = vrot.lane.b32.xlu0 %v2596, 64
        %v2822 = vpop.permute.xlu0 %2821
        %2823 = vrot.lane.b32.xlu0 %v2608, 64
        %v2824 = vpop.permute.xlu0 %2823
        %2825 = vrot.lane.b32.xlu0 %v2610, 64
        %v2826 = vpop.permute.xlu0 %2825
        %v2827 = vsel %vm2612, %v2820, 0
        %v2829 = vsel %vm2612, %v2822, 0
        %v2831 = vsel %vm2612, %v2824, 0
        %v2833 = vsel %vm2612, %v2826, 0
        %2835 = vmatpush.xpose.msra.mxu0 0.0
        %2836 = vmatpush.xpose.msra.mxu0 0.0
        %2837 = vmatpush.xpose.msra.mxu0 0.0
        %2838 = vmatpush.xpose.msra.mxu0 0.0
        %2839 = vmatpush.xpose.msra.mxu0 0.0
        %2840 = vmatpush.xpose.msra.mxu0 0.0
        %2841 = vmatpush.xpose.msra.mxu0 0.0
        %2842 = vmatpush.xpose.msra.mxu0 0.0
        %2843 = vmatpush.xpose.msra.mxu0 0.0
        %2844 = vmatpush.xpose.msra.mxu0 0.0
        %2845 = vmatpush.xpose.msra.mxu0 0.0
        %2846 = vmatpush.xpose.msra.mxu0 0.0
        %2847 = vmatpush.xpose.msra.mxu0 0.0
        %2848 = vmatpush.xpose.msra.mxu0 0.0
        %2849 = vmatpush.xpose.msra.mxu0 %v2833
        %2850 = vmatpush.xpose.msra.mxu0 %v2831
        %2851 = vmatmul.f32.gmra.mxu0 %v2827
        %v2852 = vpop.f32.mrf.mxu0
        %v2853 = vadd.f32 0.0, %v2852
        %2854 = vmatmul.f32.gmra.mxu0 %v2829
        %v2855 = vpop.f32.mrf.mxu0
        %v2856 = vadd.f32 0.0, %v2855
        %2857 = vdwg.mxu0
        %v2858 = vmul.f32 %v2853, 0.17677669
        %v2859 = vmul.f32 %v2856, 0.17677669
        %v2860 = vadd.f32 %v2858, %v1653
        %v2861 = vadd.f32 %v2859, %v1654
        %v2862 = vsel %vm2652, %v2860, -inf
        %2863 = vmax.xlane.f32.xlu0 %v2862
        %v2864 = vpop.xlane.xlu0 %2863
        %v2865 = vsel %vm2652, %v2861, -inf
        %2866 = vmax.xlane.f32.xlu0 %v2865
        %v2867 = vpop.xlane.xlu0 %2866
        %v2868 = vsub.f32 %v2860, %v2864
        %v2869 = vsub.f32 %v2861, %v2867
        %v2870 = vmul.f32 %v2868, 1.442695
        %v2871 = vpow.pop %v2870
        %v2872 = vmul.f32 %v2869, 1.442695
        %v2873 = vpow.pop %v2872
        %v2874 = vsel %vm2652, %v2871, 0.0
        %2875 = vadd.xlane.f32.xlu0 %v2874
        %v2876 = vpop.xlane.xlu0 %2875
        %v2877 = vsel %vm2652, %v2873, 0.0
        %2878 = vadd.xlane.f32.xlu0 %v2877
        %v2879 = vpop.xlane.xlu0 %2878
        %v2880 = vrcp.pop %v2876
        %v2881 = vrcp.pop %v2879
        %v2882 = vmul.f32 %v2871, %v2880
        %v2883 = vmul.f32 %v2873, %v2881
        %2884 = vrot.lane.b32.xlu0 %v2481, 64
        %v2885 = vpop.permute.xlu0 %2884
        %2886 = vrot.lane.b32.xlu0 %v2484, 64
        %v2887 = vpop.permute.xlu0 %2886
        %v2891 = vsel %vm2652, %v2882, 0
        %v2894 = vsel %vm2652, %v2883, 0
        %2896 = vmatpush.msra.mxu0 0.0
        %2897 = vmatpush.msra.mxu0 0.0
        %2898 = vmatpush.msra.mxu0 0.0
        %2899 = vmatpush.msra.mxu0 0.0
        %2900 = vmatpush.msra.mxu0 0.0
        %2901 = vmatpush.msra.mxu0 0.0
        %2902 = vmatpush.msra.mxu0 0.0
        %2903 = vmatpush.msra.mxu0 0.0
        %2904 = vmatpush.msra.mxu0 0.0
        %2905 = vmatpush.msra.mxu0 0.0
        %2906 = vmatpush.msra.mxu0 0.0
        %2907 = vmatpush.msra.mxu0 0.0
        %2908 = vmatpush.msra.mxu0 0.0
        %2909 = vmatpush.msra.mxu0 0.0
        %2910 = vmatpush.msra.mxu0 %v2887
        %2911 = vmatpush.msra.mxu0 %v2885
        %2912 = vmatmul.f32.gmra.mxu0 %v2891
        %v2913 = vpop.f32.mrf.mxu0
        %v2914 = vadd.f32 0.0, %v2913
        %2915 = vmatmul.f32.gmra.mxu0 %v2894
        %v2916 = vpop.f32.mrf.mxu0
        %v2917 = vadd.f32 0.0, %v2916
        %2918 = vdwg.mxu0
        %2921 = vrot.lane.b32.xlu0 %v2914, 64
        %v2922 = vpop.permute.xlu0 %2921
        %2923 = vrot.lane.b32.xlu0 %v2917, 64
        %v2924 = vpop.permute.xlu0 %2923
        %vm2927 = vcmask 785920
        %2928 = vst.msk [vmem:[#allocation3] sm:$0xff] %vm2927, %v2922
        %2929 = vst.msk [vmem:[#allocation3 + $0x8] sm:$0xff] %vm2927, %v2924
        %2930 = vrot.lane.b32.xlu0 %v2594, 32
        %v2931 = vpop.permute.xlu0 %2930
        %2932 = vrot.lane.b32.xlu0 %v2596, 32
        %v2933 = vpop.permute.xlu0 %2932
        %2934 = vrot.lane.b32.xlu0 %v2608, 32
        %v2935 = vpop.permute.xlu0 %2934
        %2936 = vrot.lane.b32.xlu0 %v2610, 32
        %v2937 = vpop.permute.xlu0 %2936
        %v2938 = vsel %vm2612, %v2931, 0
        %v2940 = vsel %vm2612, %v2933, 0
        %v2942 = vsel %vm2612, %v2935, 0
        %v2944 = vsel %vm2612, %v2937, 0
        %2946 = vmatpush.xpose.msra.mxu0 0.0
        %2947 = vmatpush.xpose.msra.mxu0 0.0
        %2948 = vmatpush.xpose.msra.mxu0 0.0
        %2949 = vmatpush.xpose.msra.mxu0 0.0
        %2950 = vmatpush.xpose.msra.mxu0 0.0
        %2951 = vmatpush.xpose.msra.mxu0 0.0
        %2952 = vmatpush.xpose.msra.mxu0 0.0
        %2953 = vmatpush.xpose.msra.mxu0 0.0
        %2954 = vmatpush.xpose.msra.mxu0 0.0
        %2955 = vmatpush.xpose.msra.mxu0 0.0
        %2956 = vmatpush.xpose.msra.mxu0 0.0
        %2957 = vmatpush.xpose.msra.mxu0 0.0
        %2958 = vmatpush.xpose.msra.mxu0 0.0
        %2959 = vmatpush.xpose.msra.mxu0 0.0
        %2960 = vmatpush.xpose.msra.mxu0 %v2944
        %2961 = vmatpush.xpose.msra.mxu0 %v2942
        %2962 = vmatmul.f32.gmra.mxu0 %v2938
        %v2963 = vpop.f32.mrf.mxu0
        %v2964 = vadd.f32 0.0, %v2963
        %2965 = vmatmul.f32.gmra.mxu0 %v2940
        %v2966 = vpop.f32.mrf.mxu0
        %v2967 = vadd.f32 0.0, %v2966
        %2968 = vdwg.mxu0
        %v2969 = vmul.f32 %v2964, 0.17677669
        %v2970 = vmul.f32 %v2967, 0.17677669
        %v2971 = vadd.f32 %v2969, %v1653
        %v2972 = vadd.f32 %v2970, %v1654
        %v2973 = vsel %vm2652, %v2971, -inf
        %2974 = vmax.xlane.f32.xlu0 %v2973
        %v2975 = vpop.xlane.xlu0 %2974
        %v2976 = vsel %vm2652, %v2972, -inf
        %2977 = vmax.xlane.f32.xlu0 %v2976
        %v2978 = vpop.xlane.xlu0 %2977
        %v2979 = vsub.f32 %v2971, %v2975
        %v2980 = vsub.f32 %v2972, %v2978
        %v2981 = vmul.f32 %v2979, 1.442695
        %v2982 = vpow.pop %v2981
        %v2983 = vmul.f32 %v2980, 1.442695
        %v2984 = vpow.pop %v2983
        %v2985 = vsel %vm2652, %v2982, 0.0
        %2986 = vadd.xlane.f32.xlu0 %v2985
        %v2987 = vpop.xlane.xlu0 %2986
        %v2988 = vsel %vm2652, %v2984, 0.0
        %2989 = vadd.xlane.f32.xlu0 %v2988
        %v2990 = vpop.xlane.xlu0 %2989
        %v2991 = vrcp.pop %v2987
        %v2992 = vrcp.pop %v2990
        %v2993 = vmul.f32 %v2982, %v2991
        %v2994 = vmul.f32 %v2984, %v2992
        %2995 = vrot.lane.b32.xlu0 %v2481, 32
        %v2996 = vpop.permute.xlu0 %2995
        %2997 = vrot.lane.b32.xlu0 %v2484, 32
        %v2998 = vpop.permute.xlu0 %2997
        %v3002 = vsel %vm2652, %v2993, 0
        %v3005 = vsel %vm2652, %v2994, 0
        %3007 = vmatpush.msra.mxu0 0.0
        %3008 = vmatpush.msra.mxu0 0.0
        %3009 = vmatpush.msra.mxu0 0.0
        %3010 = vmatpush.msra.mxu0 0.0
        %3011 = vmatpush.msra.mxu0 0.0
        %3012 = vmatpush.msra.mxu0 0.0
        %3013 = vmatpush.msra.mxu0 0.0
        %3014 = vmatpush.msra.mxu0 0.0
        %3015 = vmatpush.msra.mxu0 0.0
        %3016 = vmatpush.msra.mxu0 0.0
        %3017 = vmatpush.msra.mxu0 0.0
        %3018 = vmatpush.msra.mxu0 0.0
        %3019 = vmatpush.msra.mxu0 0.0
        %3020 = vmatpush.msra.mxu0 0.0
        %3021 = vmatpush.msra.mxu0 %v2998
        %3022 = vmatpush.msra.mxu0 %v2996
        %3023 = vmatmul.f32.gmra.mxu0 %v3002
        %v3024 = vpop.f32.mrf.mxu0
        %v3025 = vadd.f32 0.0, %v3024
        %3026 = vmatmul.f32.gmra.mxu0 %v3005
        %v3027 = vpop.f32.mrf.mxu0
        %v3028 = vadd.f32 0.0, %v3027
        %3029 = vdwg.mxu0
        %3032 = vrot.lane.b32.xlu0 %v3025, 96
        %v3033 = vpop.permute.xlu0 %3032
        %3034 = vrot.lane.b32.xlu0 %v3028, 96
        %v3035 = vpop.permute.xlu0 %3034
        %vm3038 = vcmask 1048320
        %3039 = vst.msk [vmem:[#allocation3] sm:$0xff] %vm3038, %v3033
        %3040 = vst.msk [vmem:[#allocation3 + $0x8] sm:$0xff] %vm3038, %v3035
        %v3041 = vld [vmem:[#allocation3] sm:$0xff]
        %v3042 = vld [vmem:[#allocation3 + $0x8] sm:$0xff]
        %v3043 = vld [vmem:[%s818] sm:$0xf]
        %v3044 = vld [vmem:[%s818 + $0x4] sm:$0xf]
        %v3045 = vld [vmem:[%s818 + $0x8] sm:$0xf]
        %v3046 = vld [vmem:[%s818 + $0xc] sm:$0xf]
        %v3047 = vld [vmem:[%s818 + $0x10] sm:$0xf]
        %v3048 = vld [vmem:[%s818 + $0x14] sm:$0xf]
        %v3049 = vld [vmem:[%s818 + $0x18] sm:$0xf]
        %v3050 = vld [vmem:[%s818 + $0x1c] sm:$0xf]
        %v3051 = vld [vmem:[%s818 + $0x20] sm:$0xf]
        %v3052 = vld [vmem:[%s818 + $0x24] sm:$0xf]
        %v3053 = vld [vmem:[%s818 + $0x28] sm:$0xf]
        %v3054 = vld [vmem:[%s818 + $0x2c] sm:$0xf]
        %v3055 = vld [vmem:[%s818 + $0x30] sm:$0xf]
        %v3056 = vld [vmem:[%s818 + $0x34] sm:$0xf]
        %v3057 = vld [vmem:[%s818 + $0x38] sm:$0xf]
        %v3058 = vld [vmem:[%s818 + $0x3c] sm:$0xf]
        %v3059 = vpack.c.bf16 %v3042, %v3041
        %v3076 = vunpack.c.l.b16 %v3043
        %v3077 = vunpack.c.l.b16 %v3044
        %v3078 = vunpack.c.l.b16 %v3045
        %v3079 = vunpack.c.l.b16 %v3046
        %v3080 = vunpack.c.l.b16 %v3047
        %v3081 = vunpack.c.l.b16 %v3048
        %v3082 = vunpack.c.l.b16 %v3049
        %v3083 = vunpack.c.l.b16 %v3050
        %v3084 = vunpack.c.l.b16 %v3051
        %v3085 = vunpack.c.l.b16 %v3052
        %v3086 = vunpack.c.l.b16 %v3053
        %v3087 = vunpack.c.l.b16 %v3054
        %v3088 = vunpack.c.l.b16 %v3055
        %v3089 = vunpack.c.l.b16 %v3056
        %v3090 = vunpack.c.l.b16 %v3057
        %v3091 = vunpack.c.l.b16 %v3058
        %v3092 = vpack.c.b16 %v3077, %v3076
        %v3093 = vpack.c.b16 %v3079, %v3078
        %v3094 = vpack.c.b16 %v3081, %v3080
        %v3095 = vpack.c.b16 %v3083, %v3082
        %v3096 = vpack.c.b16 %v3085, %v3084
        %v3097 = vpack.c.b16 %v3087, %v3086
        %v3098 = vpack.c.b16 %v3089, %v3088
        %v3099 = vpack.c.b16 %v3091, %v3090
        %3108 = vmatpush.bf16.msra.mxu0 %v3099
        %3109 = vmatpush.bf16.msra.mxu0 %v3098
        %3110 = vmatpush.bf16.msra.mxu0 %v3097
        %3111 = vmatpush.bf16.msra.mxu0 %v3096
        %3112 = vmatpush.bf16.msra.mxu0 %v3095
        %3113 = vmatpush.bf16.msra.mxu0 %v3094
        %3114 = vmatpush.bf16.msra.mxu0 %v3093
        %3115 = vmatpush.bf16.msra.mxu0 %v3092
        %3116 = vmatmul.bf16.gmra.mxu0 %v3059
        %v3117 = vpop.f32.mrf.mxu0
        %v3118 = vadd.f32 %v2479, %v3117
        %v3119 = vpop.f32.mrf.mxu0
        %v3120 = vadd.f32 %v2482, %v3119
        %3121 = vdwg.mxu0
        %v3122 = vperm.slane %v1641, 3
        %v3123 = vmul.f32 %v3118, %v3122
        %v3124 = vmul.f32 %v3120, %v3122
        %v3125 = vperm.slane %v1641, 4
        %v3126 = vadd.f32 %v3123, %v3125
        %v3127 = vadd.f32 %v3124, %v3125
        %v3128 = vld [vmem:[%s677] sm:$0xff]
        %v3129 = vld [vmem:[%s677 + $0x8] sm:$0xff]
        %v3130 = vld [vmem:[%s677 + $0x10] sm:$0xff]
        %v3131 = vld [vmem:[%s677 + $0x18] sm:$0xff]
        %v3132 = vld [vmem:[%s677 + $0x20] sm:$0xff]
        %v3133 = vld [vmem:[%s677 + $0x28] sm:$0xff]
        %v3134 = vld [vmem:[%s677 + $0x30] sm:$0xff]
        %v3135 = vld [vmem:[%s677 + $0x38] sm:$0xff]
        %v3136 = vld [vmem:[%s677 + $0x40] sm:$0xff]
        %v3137 = vld [vmem:[%s677 + $0x48] sm:$0xff]
        %v3138 = vld [vmem:[%s677 + $0x50] sm:$0xff]
        %v3139 = vld [vmem:[%s677 + $0x58] sm:$0xff]
        %v3140 = vld [vmem:[%s677 + $0x60] sm:$0xff]
        %v3141 = vld [vmem:[%s677 + $0x68] sm:$0xff]
        %v3142 = vld [vmem:[%s677 + $0x70] sm:$0xff]
        %v3143 = vld [vmem:[%s677 + $0x78] sm:$0xff]
        %v3144 = vld [vmem:[%s677 + $0x80] sm:$0xff]
        %v3145 = vld [vmem:[%s677 + $0x88] sm:$0xff]
        %v3146 = vld [vmem:[%s677 + $0x90] sm:$0xff]
        %v3147 = vld [vmem:[%s677 + $0x98] sm:$0xff]
        %v3148 = vld [vmem:[%s677 + $0xa0] sm:$0xff]
        %v3149 = vld [vmem:[%s677 + $0xa8] sm:$0xff]
        %v3150 = vld [vmem:[%s677 + $0xb0] sm:$0xff]
        %v3151 = vld [vmem:[%s677 + $0xb8] sm:$0xff]
        %v3152 = vld [vmem:[%s677 + $0xc0] sm:$0xff]
        %v3153 = vld [vmem:[%s677 + $0xc8] sm:$0xff]
        %v3154 = vld [vmem:[%s677 + $0xd0] sm:$0xff]
        %v3155 = vld [vmem:[%s677 + $0xd8] sm:$0xff]
        %v3156 = vld [vmem:[%s677 + $0xe0] sm:$0xff]
        %v3157 = vld [vmem:[%s677 + $0xe8] sm:$0xff]
        %v3158 = vld [vmem:[%s677 + $0xf0] sm:$0xff]
        %v3159 = vld [vmem:[%s677 + $0xf8] sm:$0xff]
        %v3160 = vpack.c.bf16 %v3127, %v3126
        %v3161 = vperm.slane %v1641, 5
        %v3162 = vperm.slane %v1642, 5
        %v3163 = vperm.slane %v1643, 5
        %v3164 = vperm.slane %v1644, 5
        %v3197 = vunpack.c.l.b16 %v3128
        %v3198 = vunpack.c.h.b16 %v3128
        %v3199 = vunpack.c.l.b16 %v3129
        %v3200 = vunpack.c.h.b16 %v3129
        %v3201 = vunpack.c.l.b16 %v3130
        %v3202 = vunpack.c.h.b16 %v3130
        %v3203 = vunpack.c.l.b16 %v3131
        %v3204 = vunpack.c.h.b16 %v3131
        %v3205 = vunpack.c.l.b16 %v3132
        %v3206 = vunpack.c.h.b16 %v3132
        %v3207 = vunpack.c.l.b16 %v3133
        %v3208 = vunpack.c.h.b16 %v3133
        %v3209 = vunpack.c.l.b16 %v3134
        %v3210 = vunpack.c.h.b16 %v3134
        %v3211 = vunpack.c.l.b16 %v3135
        %v3212 = vunpack.c.h.b16 %v3135
        %v3213 = vunpack.c.l.b16 %v3136
        %v3214 = vunpack.c.h.b16 %v3136
        %v3215 = vunpack.c.l.b16 %v3137
        %v3216 = vunpack.c.h.b16 %v3137
        %v3217 = vunpack.c.l.b16 %v3138
        %v3218 = vunpack.c.h.b16 %v3138
        %v3219 = vunpack.c.l.b16 %v3139
        %v3220 = vunpack.c.h.b16 %v3139
        %v3221 = vunpack.c.l.b16 %v3140
        %v3222 = vunpack.c.h.b16 %v3140
        %v3223 = vunpack.c.l.b16 %v3141
        %v3224 = vunpack.c.h.b16 %v3141
        %v3225 = vunpack.c.l.b16 %v3142
        %v3226 = vunpack.c.h.b16 %v3142
        %v3227 = vunpack.c.l.b16 %v3143
        %v3228 = vunpack.c.h.b16 %v3143
        %v3229 = vunpack.c.l.b16 %v3144
        %v3230 = vunpack.c.h.b16 %v3144
        %v3231 = vunpack.c.l.b16 %v3145
        %v3232 = vunpack.c.h.b16 %v3145
        %v3233 = vunpack.c.l.b16 %v3146
        %v3234 = vunpack.c.h.b16 %v3146
        %v3235 = vunpack.c.l.b16 %v3147
        %v3236 = vunpack.c.h.b16 %v3147
        %v3237 = vunpack.c.l.b16 %v3148
        %v3238 = vunpack.c.h.b16 %v3148
        %v3239 = vunpack.c.l.b16 %v3149
        %v3240 = vunpack.c.h.b16 %v3149
        %v3241 = vunpack.c.l.b16 %v3150
        %v3242 = vunpack.c.h.b16 %v3150
        %v3243 = vunpack.c.l.b16 %v3151
        %v3244 = vunpack.c.h.b16 %v3151
        %v3245 = vunpack.c.l.b16 %v3152
        %v3246 = vunpack.c.h.b16 %v3152
        %v3247 = vunpack.c.l.b16 %v3153
        %v3248 = vunpack.c.h.b16 %v3153
        %v3249 = vunpack.c.l.b16 %v3154
        %v3250 = vunpack.c.h.b16 %v3154
        %v3251 = vunpack.c.l.b16 %v3155
        %v3252 = vunpack.c.h.b16 %v3155
        %v3253 = vunpack.c.l.b16 %v3156
        %v3254 = vunpack.c.h.b16 %v3156
        %v3255 = vunpack.c.l.b16 %v3157
        %v3256 = vunpack.c.h.b16 %v3157
        %v3257 = vunpack.c.l.b16 %v3158
        %v3258 = vunpack.c.h.b16 %v3158
        %v3259 = vunpack.c.l.b16 %v3159
        %v3260 = vunpack.c.h.b16 %v3159
        %v3261 = vpack.c.b16 %v3201, %v3197
        %v3262 = vpack.c.b16 %v3202, %v3198
        %v3263 = vpack.c.b16 %v3203, %v3199
        %v3264 = vpack.c.b16 %v3204, %v3200
        %v3265 = vpack.c.b16 %v3209, %v3205
        %v3266 = vpack.c.b16 %v3210, %v3206
        %v3267 = vpack.c.b16 %v3211, %v3207
        %v3268 = vpack.c.b16 %v3212, %v3208
        %v3269 = vpack.c.b16 %v3217, %v3213
        %v3270 = vpack.c.b16 %v3218, %v3214
        %v3271 = vpack.c.b16 %v3219, %v3215
        %v3272 = vpack.c.b16 %v3220, %v3216
        %v3273 = vpack.c.b16 %v3225, %v3221
        %v3274 = vpack.c.b16 %v3226, %v3222
        %v3275 = vpack.c.b16 %v3227, %v3223
        %v3276 = vpack.c.b16 %v3228, %v3224
        %v3277 = vpack.c.b16 %v3233, %v3229
        %v3278 = vpack.c.b16 %v3234, %v3230
        %v3279 = vpack.c.b16 %v3235, %v3231
        %v3280 = vpack.c.b16 %v3236, %v3232
        %v3281 = vpack.c.b16 %v3241, %v3237
        %v3282 = vpack.c.b16 %v3242, %v3238
        %v3283 = vpack.c.b16 %v3243, %v3239
        %v3284 = vpack.c.b16 %v3244, %v3240
        %v3285 = vpack.c.b16 %v3249, %v3245
        %v3286 = vpack.c.b16 %v3250, %v3246
        %v3287 = vpack.c.b16 %v3251, %v3247
        %v3288 = vpack.c.b16 %v3252, %v3248
        %v3289 = vpack.c.b16 %v3257, %v3253
        %v3290 = vpack.c.b16 %v3258, %v3254
        %v3291 = vpack.c.b16 %v3259, %v3255
        %v3292 = vpack.c.b16 %v3260, %v3256
        %3325 = vmatpush.bf16.msra.mxu0 %v3289
        %3326 = vmatpush.bf16.msra.mxu0 %v3285
        %3327 = vmatpush.bf16.msra.mxu0 %v3281
        %3328 = vmatpush.bf16.msra.mxu0 %v3277
        %3329 = vmatpush.bf16.msra.mxu0 %v3273
        %3330 = vmatpush.bf16.msra.mxu0 %v3269
        %3331 = vmatpush.bf16.msra.mxu0 %v3265
        %3332 = vmatpush.bf16.msra.mxu0 %v3261
        %3333 = vmatmul.bf16.gmra.mxu0 %v3160
        %v3334 = vpop.f32.mrf.mxu0
        %v3335 = vadd.f32 %v3161, %v3334
        %v3336 = vpop.f32.mrf.mxu0
        %v3337 = vadd.f32 %v3161, %v3336
        %3338 = vdwg.mxu0
        %3339 = vmatpush.bf16.msra.mxu0 %v3290
        %3340 = vmatpush.bf16.msra.mxu0 %v3286
        %3341 = vmatpush.bf16.msra.mxu0 %v3282
        %3342 = vmatpush.bf16.msra.mxu0 %v3278
        %3343 = vmatpush.bf16.msra.mxu0 %v3274
        %3344 = vmatpush.bf16.msra.mxu0 %v3270
        %3345 = vmatpush.bf16.msra.mxu0 %v3266
        %3346 = vmatpush.bf16.msra.mxu0 %v3262
        %3347 = vmatmul.bf16.gmra.mxu0 %v3160
        %v3348 = vpop.f32.mrf.mxu0
        %v3349 = vadd.f32 %v3162, %v3348
        %v3350 = vpop.f32.mrf.mxu0
        %v3351 = vadd.f32 %v3162, %v3350
        %3352 = vdwg.mxu0
        %3353 = vmatpush.bf16.msra.mxu0 %v3291
        %3354 = vmatpush.bf16.msra.mxu0 %v3287
        %3355 = vmatpush.bf16.msra.mxu0 %v3283
        %3356 = vmatpush.bf16.msra.mxu0 %v3279
        %3357 = vmatpush.bf16.msra.mxu0 %v3275
        %3358 = vmatpush.bf16.msra.mxu0 %v3271
        %3359 = vmatpush.bf16.msra.mxu0 %v3267
        %3360 = vmatpush.bf16.msra.mxu0 %v3263
        %3361 = vmatmul.bf16.gmra.mxu0 %v3160
        %v3362 = vpop.f32.mrf.mxu0
        %v3363 = vadd.f32 %v3163, %v3362
        %v3364 = vpop.f32.mrf.mxu0
        %v3365 = vadd.f32 %v3163, %v3364
        %3366 = vdwg.mxu0
        %3367 = vmatpush.bf16.msra.mxu0 %v3292
        %3368 = vmatpush.bf16.msra.mxu0 %v3288
        %3369 = vmatpush.bf16.msra.mxu0 %v3284
        %3370 = vmatpush.bf16.msra.mxu0 %v3280
        %3371 = vmatpush.bf16.msra.mxu0 %v3276
        %3372 = vmatpush.bf16.msra.mxu0 %v3272
        %3373 = vmatpush.bf16.msra.mxu0 %v3268
        %3374 = vmatpush.bf16.msra.mxu0 %v3264
        %3375 = vmatmul.bf16.gmra.mxu0 %v3160
        %v3376 = vpop.f32.mrf.mxu0
        %v3377 = vadd.f32 %v3164, %v3376
        %v3378 = vpop.f32.mrf.mxu0
        %v3379 = vadd.f32 %v3164, %v3378
        %3380 = vdwg.mxu0
        %v3381 = vmul.f32 %v3335, 0.5
        %v3382 = vmul.f32 %v3349, 0.5
        %v3383 = vmul.f32 %v3363, 0.5
        %v3384 = vmul.f32 %v3377, 0.5
        %v3385 = vmul.f32 %v3337, 0.5
        %v3386 = vmul.f32 %v3351, 0.5
        %v3387 = vmul.f32 %v3365, 0.5
        %v3388 = vmul.f32 %v3379, 0.5
        %v3389 = vmul.f32 %v3335, 0.044715
        %v3390 = vmul.f32 %v3349, 0.044715
        %v3391 = vmul.f32 %v3363, 0.044715
        %v3392 = vmul.f32 %v3377, 0.044715
        %v3393 = vmul.f32 %v3337, 0.044715
        %v3394 = vmul.f32 %v3351, 0.044715
        %v3395 = vmul.f32 %v3365, 0.044715
        %v3396 = vmul.f32 %v3379, 0.044715
        %v3397 = vmul.f32 %v3389, %v3335
        %v3398 = vmul.f32 %v3390, %v3349
        %v3399 = vmul.f32 %v3391, %v3363
        %v3400 = vmul.f32 %v3392, %v3377
        %v3401 = vmul.f32 %v3393, %v3337
        %v3402 = vmul.f32 %v3394, %v3351
        %v3403 = vmul.f32 %v3395, %v3365
        %v3404 = vmul.f32 %v3396, %v3379
        %v3405 = vmul.f32 %v3397, %v3335
        %v3406 = vmul.f32 %v3398, %v3349
        %v3407 = vmul.f32 %v3399, %v3363
        %v3408 = vmul.f32 %v3400, %v3377
        %v3409 = vmul.f32 %v3401, %v3337
        %v3410 = vmul.f32 %v3402, %v3351
        %v3411 = vmul.f32 %v3403, %v3365
        %v3412 = vmul.f32 %v3404, %v3379
        %v3413 = vadd.f32 %v3335, %v3405
        %v3414 = vadd.f32 %v3349, %v3406
        %v3415 = vadd.f32 %v3363, %v3407
        %v3416 = vadd.f32 %v3377, %v3408
        %v3417 = vadd.f32 %v3337, %v3409
        %v3418 = vadd.f32 %v3351, %v3410
        %v3419 = vadd.f32 %v3365, %v3411
        %v3420 = vadd.f32 %v3379, %v3412
        %v3421 = vmul.f32 %v3413, 0.7978846
        %v3422 = vmul.f32 %v3414, 0.7978846
        %v3423 = vmul.f32 %v3415, 0.7978846
        %v3424 = vmul.f32 %v3416, 0.7978846
        %v3425 = vmul.f32 %v3417, 0.7978846
        %v3426 = vmul.f32 %v3418, 0.7978846
        %v3427 = vmul.f32 %v3419, 0.7978846
        %v3428 = vmul.f32 %v3420, 0.7978846
        %v3429 = vtanh.pop %v3421
        %v3430 = vtanh.pop %v3422
        %v3431 = vtanh.pop %v3423
        %v3432 = vtanh.pop %v3424
        %v3433 = vtanh.pop %v3425
        %v3434 = vtanh.pop %v3426
        %v3435 = vtanh.pop %v3427
        %v3436 = vtanh.pop %v3428
        %v3437 = vadd.f32 %v3429, 1.0
        %v3438 = vadd.f32 %v3430, 1.0
        %v3439 = vadd.f32 %v3431, 1.0
        %v3440 = vadd.f32 %v3432, 1.0
        %v3441 = vadd.f32 %v3433, 1.0
        %v3442 = vadd.f32 %v3434, 1.0
        %v3443 = vadd.f32 %v3435, 1.0
        %v3444 = vadd.f32 %v3436, 1.0
        %v3445 = vmul.f32 %v3381, %v3437
        %v3446 = vmul.f32 %v3382, %v3438
        %v3447 = vmul.f32 %v3383, %v3439
        %v3448 = vmul.f32 %v3384, %v3440
        %v3449 = vmul.f32 %v3385, %v3441
        %v3450 = vmul.f32 %v3386, %v3442
        %v3451 = vmul.f32 %v3387, %v3443
        %v3452 = vmul.f32 %v3388, %v3444
        %v3453 = vld [vmem:[%s687] sm:$0xf]
        %v3454 = vld [vmem:[%s687 + $0x4] sm:$0xf]
        %v3455 = vld [vmem:[%s687 + $0x8] sm:$0xf]
        %v3456 = vld [vmem:[%s687 + $0xc] sm:$0xf]
        %v3457 = vld [vmem:[%s687 + $0x10] sm:$0xf]
        %v3458 = vld [vmem:[%s687 + $0x14] sm:$0xf]
        %v3459 = vld [vmem:[%s687 + $0x18] sm:$0xf]
        %v3460 = vld [vmem:[%s687 + $0x1c] sm:$0xf]
        %v3461 = vld [vmem:[%s687 + $0x20] sm:$0xf]
        %v3462 = vld [vmem:[%s687 + $0x24] sm:$0xf]
        %v3463 = vld [vmem:[%s687 + $0x28] sm:$0xf]
        %v3464 = vld [vmem:[%s687 + $0x2c] sm:$0xf]
        %v3465 = vld [vmem:[%s687 + $0x30] sm:$0xf]
        %v3466 = vld [vmem:[%s687 + $0x34] sm:$0xf]
        %v3467 = vld [vmem:[%s687 + $0x38] sm:$0xf]
        %v3468 = vld [vmem:[%s687 + $0x3c] sm:$0xf]
        %v3469 = vld [vmem:[%s687 + $0x40] sm:$0xf]
        %v3470 = vld [vmem:[%s687 + $0x44] sm:$0xf]
        %v3471 = vld [vmem:[%s687 + $0x48] sm:$0xf]
        %v3472 = vld [vmem:[%s687 + $0x4c] sm:$0xf]
        %v3473 = vld [vmem:[%s687 + $0x50] sm:$0xf]
        %v3474 = vld [vmem:[%s687 + $0x54] sm:$0xf]
        %v3475 = vld [vmem:[%s687 + $0x58] sm:$0xf]
        %v3476 = vld [vmem:[%s687 + $0x5c] sm:$0xf]
        %v3477 = vld [vmem:[%s687 + $0x60] sm:$0xf]
        %v3478 = vld [vmem:[%s687 + $0x64] sm:$0xf]
        %v3479 = vld [vmem:[%s687 + $0x68] sm:$0xf]
        %v3480 = vld [vmem:[%s687 + $0x6c] sm:$0xf]
        %v3481 = vld [vmem:[%s687 + $0x70] sm:$0xf]
        %v3482 = vld [vmem:[%s687 + $0x74] sm:$0xf]
        %v3483 = vld [vmem:[%s687 + $0x78] sm:$0xf]
        %v3484 = vld [vmem:[%s687 + $0x7c] sm:$0xf]
        %v3485 = vld [vmem:[%s687 + $0x80] sm:$0xf]
        %v3486 = vld [vmem:[%s687 + $0x84] sm:$0xf]
        %v3487 = vld [vmem:[%s687 + $0x88] sm:$0xf]
        %v3488 = vld [vmem:[%s687 + $0x8c] sm:$0xf]
        %v3489 = vld [vmem:[%s687 + $0x90] sm:$0xf]
        %v3490 = vld [vmem:[%s687 + $0x94] sm:$0xf]
        %v3491 = vld [vmem:[%s687 + $0x98] sm:$0xf]
        %v3492 = vld [vmem:[%s687 + $0x9c] sm:$0xf]
        %v3493 = vld [vmem:[%s687 + $0xa0] sm:$0xf]
        %v3494 = vld [vmem:[%s687 + $0xa4] sm:$0xf]
        %v3495 = vld [vmem:[%s687 + $0xa8] sm:$0xf]
        %v3496 = vld [vmem:[%s687 + $0xac] sm:$0xf]
        %v3497 = vld [vmem:[%s687 + $0xb0] sm:$0xf]
        %v3498 = vld [vmem:[%s687 + $0xb4] sm:$0xf]
        %v3499 = vld [vmem:[%s687 + $0xb8] sm:$0xf]
        %v3500 = vld [vmem:[%s687 + $0xbc] sm:$0xf]
        %v3501 = vld [vmem:[%s687 + $0xc0] sm:$0xf]
        %v3502 = vld [vmem:[%s687 + $0xc4] sm:$0xf]
        %v3503 = vld [vmem:[%s687 + $0xc8] sm:$0xf]
        %v3504 = vld [vmem:[%s687 + $0xcc] sm:$0xf]
        %v3505 = vld [vmem:[%s687 + $0xd0] sm:$0xf]
        %v3506 = vld [vmem:[%s687 + $0xd4] sm:$0xf]
        %v3507 = vld [vmem:[%s687 + $0xd8] sm:$0xf]
        %v3508 = vld [vmem:[%s687 + $0xdc] sm:$0xf]
        %v3509 = vld [vmem:[%s687 + $0xe0] sm:$0xf]
        %v3510 = vld [vmem:[%s687 + $0xe4] sm:$0xf]
        %v3511 = vld [vmem:[%s687 + $0xe8] sm:$0xf]
        %v3512 = vld [vmem:[%s687 + $0xec] sm:$0xf]
        %v3513 = vld [vmem:[%s687 + $0xf0] sm:$0xf]
        %v3514 = vld [vmem:[%s687 + $0xf4] sm:$0xf]
        %v3515 = vld [vmem:[%s687 + $0xf8] sm:$0xf]
        %v3516 = vld [vmem:[%s687 + $0xfc] sm:$0xf]
        %v3517 = vpack.c.bf16 %v3449, %v3445
        %v3518 = vpack.c.bf16 %v3450, %v3446
        %v3519 = vpack.c.bf16 %v3451, %v3447
        %v3520 = vpack.c.bf16 %v3452, %v3448
        %v3585 = vunpack.c.l.b16 %v3453
        %v3586 = vunpack.c.l.b16 %v3454
        %v3587 = vunpack.c.l.b16 %v3455
        %v3588 = vunpack.c.l.b16 %v3456
        %v3589 = vunpack.c.l.b16 %v3457
        %v3590 = vunpack.c.l.b16 %v3458
        %v3591 = vunpack.c.l.b16 %v3459
        %v3592 = vunpack.c.l.b16 %v3460
        %v3593 = vunpack.c.l.b16 %v3461
        %v3594 = vunpack.c.l.b16 %v3462
        %v3595 = vunpack.c.l.b16 %v3463
        %v3596 = vunpack.c.l.b16 %v3464
        %v3597 = vunpack.c.l.b16 %v3465
        %v3598 = vunpack.c.l.b16 %v3466
        %v3599 = vunpack.c.l.b16 %v3467
        %v3600 = vunpack.c.l.b16 %v3468
        %v3601 = vunpack.c.l.b16 %v3469
        %v3602 = vunpack.c.l.b16 %v3470
        %v3603 = vunpack.c.l.b16 %v3471
        %v3604 = vunpack.c.l.b16 %v3472
        %v3605 = vunpack.c.l.b16 %v3473
        %v3606 = vunpack.c.l.b16 %v3474
        %v3607 = vunpack.c.l.b16 %v3475
        %v3608 = vunpack.c.l.b16 %v3476
        %v3609 = vunpack.c.l.b16 %v3477
        %v3610 = vunpack.c.l.b16 %v3478
        %v3611 = vunpack.c.l.b16 %v3479
        %v3612 = vunpack.c.l.b16 %v3480
        %v3613 = vunpack.c.l.b16 %v3481
        %v3614 = vunpack.c.l.b16 %v3482
        %v3615 = vunpack.c.l.b16 %v3483
        %v3616 = vunpack.c.l.b16 %v3484
        %v3617 = vunpack.c.l.b16 %v3485
        %v3618 = vunpack.c.l.b16 %v3486
        %v3619 = vunpack.c.l.b16 %v3487
        %v3620 = vunpack.c.l.b16 %v3488
        %v3621 = vunpack.c.l.b16 %v3489
        %v3622 = vunpack.c.l.b16 %v3490
        %v3623 = vunpack.c.l.b16 %v3491
        %v3624 = vunpack.c.l.b16 %v3492
        %v3625 = vunpack.c.l.b16 %v3493
        %v3626 = vunpack.c.l.b16 %v3494
        %v3627 = vunpack.c.l.b16 %v3495
        %v3628 = vunpack.c.l.b16 %v3496
        %v3629 = vunpack.c.l.b16 %v3497
        %v3630 = vunpack.c.l.b16 %v3498
        %v3631 = vunpack.c.l.b16 %v3499
        %v3632 = vunpack.c.l.b16 %v3500
        %v3633 = vunpack.c.l.b16 %v3501
        %v3634 = vunpack.c.l.b16 %v3502
        %v3635 = vunpack.c.l.b16 %v3503
        %v3636 = vunpack.c.l.b16 %v3504
        %v3637 = vunpack.c.l.b16 %v3505
        %v3638 = vunpack.c.l.b16 %v3506
        %v3639 = vunpack.c.l.b16 %v3507
        %v3640 = vunpack.c.l.b16 %v3508
        %v3641 = vunpack.c.l.b16 %v3509
        %v3642 = vunpack.c.l.b16 %v3510
        %v3643 = vunpack.c.l.b16 %v3511
        %v3644 = vunpack.c.l.b16 %v3512
        %v3645 = vunpack.c.l.b16 %v3513
        %v3646 = vunpack.c.l.b16 %v3514
        %v3647 = vunpack.c.l.b16 %v3515
        %v3648 = vunpack.c.l.b16 %v3516
        %v3649 = vpack.c.b16 %v3586, %v3585
        %v3650 = vpack.c.b16 %v3588, %v3587
        %v3651 = vpack.c.b16 %v3590, %v3589
        %v3652 = vpack.c.b16 %v3592, %v3591
        %v3653 = vpack.c.b16 %v3594, %v3593
        %v3654 = vpack.c.b16 %v3596, %v3595
        %v3655 = vpack.c.b16 %v3598, %v3597
        %v3656 = vpack.c.b16 %v3600, %v3599
        %v3657 = vpack.c.b16 %v3602, %v3601
        %v3658 = vpack.c.b16 %v3604, %v3603
        %v3659 = vpack.c.b16 %v3606, %v3605
        %v3660 = vpack.c.b16 %v3608, %v3607
        %v3661 = vpack.c.b16 %v3610, %v3609
        %v3662 = vpack.c.b16 %v3612, %v3611
        %v3663 = vpack.c.b16 %v3614, %v3613
        %v3664 = vpack.c.b16 %v3616, %v3615
        %v3665 = vpack.c.b16 %v3618, %v3617
        %v3666 = vpack.c.b16 %v3620, %v3619
        %v3667 = vpack.c.b16 %v3622, %v3621
        %v3668 = vpack.c.b16 %v3624, %v3623
        %v3669 = vpack.c.b16 %v3626, %v3625
        %v3670 = vpack.c.b16 %v3628, %v3627
        %v3671 = vpack.c.b16 %v3630, %v3629
        %v3672 = vpack.c.b16 %v3632, %v3631
        %v3673 = vpack.c.b16 %v3634, %v3633
        %v3674 = vpack.c.b16 %v3636, %v3635
        %v3675 = vpack.c.b16 %v3638, %v3637
        %v3676 = vpack.c.b16 %v3640, %v3639
        %v3677 = vpack.c.b16 %v3642, %v3641
        %v3678 = vpack.c.b16 %v3644, %v3643
        %v3679 = vpack.c.b16 %v3646, %v3645
        %v3680 = vpack.c.b16 %v3648, %v3647
        %3713 = vmatpush.bf16.msra.mxu0 %v3656
        %3714 = vmatpush.bf16.msra.mxu0 %v3655
        %3715 = vmatpush.bf16.msra.mxu0 %v3654
        %3716 = vmatpush.bf16.msra.mxu0 %v3653
        %3717 = vmatpush.bf16.msra.mxu0 %v3652
        %3718 = vmatpush.bf16.msra.mxu0 %v3651
        %3719 = vmatpush.bf16.msra.mxu0 %v3650
        %3720 = vmatpush.bf16.msra.mxu0 %v3649
        %3721 = vmatmul.bf16.gmra.mxu0 %v3517
        %v3722 = vpop.f32.mrf.mxu0
        %v3723 = vadd.f32 %v3126, %v3722
        %v3724 = vpop.f32.mrf.mxu0
        %v3725 = vadd.f32 %v3127, %v3724
        %3726 = vdwg.mxu0
        %3727 = vmatpush.bf16.msra.mxu0 %v3664
        %3728 = vmatpush.bf16.msra.mxu0 %v3663
        %3729 = vmatpush.bf16.msra.mxu0 %v3662
        %3730 = vmatpush.bf16.msra.mxu0 %v3661
        %3731 = vmatpush.bf16.msra.mxu0 %v3660
        %3732 = vmatpush.bf16.msra.mxu0 %v3659
        %3733 = vmatpush.bf16.msra.mxu0 %v3658
        %3734 = vmatpush.bf16.msra.mxu0 %v3657
        %3735 = vmatmul.bf16.gmra.mxu0 %v3518
        %v3736 = vpop.f32.mrf.mxu0
        %v3737 = vadd.f32 %v3723, %v3736
        %v3738 = vpop.f32.mrf.mxu0
        %v3739 = vadd.f32 %v3725, %v3738
        %3740 = vdwg.mxu0
        %3741 = vmatpush.bf16.msra.mxu0 %v3672
        %3742 = vmatpush.bf16.msra.mxu0 %v3671
        %3743 = vmatpush.bf16.msra.mxu0 %v3670
        %3744 = vmatpush.bf16.msra.mxu0 %v3669
        %3745 = vmatpush.bf16.msra.mxu0 %v3668
        %3746 = vmatpush.bf16.msra.mxu0 %v3667
        %3747 = vmatpush.bf16.msra.mxu0 %v3666
        %3748 = vmatpush.bf16.msra.mxu0 %v3665
        %3749 = vmatmul.bf16.gmra.mxu0 %v3519
        %v3750 = vpop.f32.mrf.mxu0
        %v3751 = vadd.f32 %v3737, %v3750
        %v3752 = vpop.f32.mrf.mxu0
        %v3753 = vadd.f32 %v3739, %v3752
        %3754 = vdwg.mxu0
        %3755 = vmatpush.bf16.msra.mxu0 %v3680
        %3756 = vmatpush.bf16.msra.mxu0 %v3679
        %3757 = vmatpush.bf16.msra.mxu0 %v3678
        %3758 = vmatpush.bf16.msra.mxu0 %v3677
        %3759 = vmatpush.bf16.msra.mxu0 %v3676
        %3760 = vmatpush.bf16.msra.mxu0 %v3675
        %3761 = vmatpush.bf16.msra.mxu0 %v3674
        %3762 = vmatpush.bf16.msra.mxu0 %v3673
        %3763 = vmatmul.bf16.gmra.mxu0 %v3520
        %v3764 = vpop.f32.mrf.mxu0
        %v3765 = vadd.f32 %v3751, %v3764
        %v3766 = vpop.f32.mrf.mxu0
        %v3767 = vadd.f32 %v3753, %v3766
        %3768 = vdwg.mxu0
        %v3769 = vperm.slane %v1645, 1
        %v3770 = vmul.f32 %v3765, %v3769
        %v3771 = vmul.f32 %v3767, %v3769
        %v3772 = vperm.slane %v1645, 5
        %v3773 = vadd.f32 %v3770, %v3772
        %v3774 = vadd.f32 %v3771, %v3772
        %s3775 = scalar_lea.vmem %s677, 256 [#allocation10]
        %v3776 = vld [vmem:[%s3775] sm:$0xff]
        %v3777 = vld [vmem:[%s3775 + $0x8] sm:$0xff]
        %v3778 = vld [vmem:[%s3775 + $0x10] sm:$0xff]
        %v3779 = vld [vmem:[%s3775 + $0x18] sm:$0xff]
        %v3780 = vld [vmem:[%s3775 + $0x20] sm:$0xff]
        %v3781 = vld [vmem:[%s3775 + $0x28] sm:$0xff]
        %v3782 = vld [vmem:[%s3775 + $0x30] sm:$0xff]
        %v3783 = vld [vmem:[%s3775 + $0x38] sm:$0xff]
        %v3784 = vld [vmem:[%s3775 + $0x40] sm:$0xff]
        %v3785 = vld [vmem:[%s3775 + $0x48] sm:$0xff]
        %v3786 = vld [vmem:[%s3775 + $0x50] sm:$0xff]
        %v3787 = vld [vmem:[%s3775 + $0x58] sm:$0xff]
        %v3788 = vld [vmem:[%s3775 + $0x60] sm:$0xff]
        %v3789 = vld [vmem:[%s3775 + $0x68] sm:$0xff]
        %v3790 = vld [vmem:[%s3775 + $0x70] sm:$0xff]
        %v3791 = vld [vmem:[%s3775 + $0x78] sm:$0xff]
        %v3792 = vld [vmem:[%s3775 + $0x80] sm:$0xff]
        %v3793 = vld [vmem:[%s3775 + $0x88] sm:$0xff]
        %v3794 = vld [vmem:[%s3775 + $0x90] sm:$0xff]
        %v3795 = vld [vmem:[%s3775 + $0x98] sm:$0xff]
        %v3796 = vld [vmem:[%s3775 + $0xa0] sm:$0xff]
        %v3797 = vld [vmem:[%s3775 + $0xa8] sm:$0xff]
        %v3798 = vld [vmem:[%s3775 + $0xb0] sm:$0xff]
        %v3799 = vld [vmem:[%s3775 + $0xb8] sm:$0xff]
        %v3800 = vld [vmem:[%s3775 + $0xc0] sm:$0xff]
        %v3801 = vld [vmem:[%s3775 + $0xc8] sm:$0xff]
        %v3802 = vld [vmem:[%s3775 + $0xd0] sm:$0xff]
        %v3803 = vld [vmem:[%s3775 + $0xd8] sm:$0xff]
        %v3804 = vld [vmem:[%s3775 + $0xe0] sm:$0xff]
        %v3805 = vld [vmem:[%s3775 + $0xe8] sm:$0xff]
        %v3806 = vld [vmem:[%s3775 + $0xf0] sm:$0xff]
        %v3807 = vld [vmem:[%s3775 + $0xf8] sm:$0xff]
        %v3808 = vpack.c.bf16 %v3774, %v3773
        %v3809 = vperm.slane %v1641, 6
        %v3810 = vperm.slane %v1642, 6
        %v3811 = vperm.slane %v1643, 6
        %v3812 = vperm.slane %v1644, 6
        %v3845 = vunpack.c.l.b16 %v3776
        %v3846 = vunpack.c.h.b16 %v3776
        %v3847 = vunpack.c.l.b16 %v3777
        %v3848 = vunpack.c.h.b16 %v3777
        %v3849 = vunpack.c.l.b16 %v3778
        %v3850 = vunpack.c.h.b16 %v3778
        %v3851 = vunpack.c.l.b16 %v3779
        %v3852 = vunpack.c.h.b16 %v3779
        %v3853 = vunpack.c.l.b16 %v3780
        %v3854 = vunpack.c.h.b16 %v3780
        %v3855 = vunpack.c.l.b16 %v3781
        %v3856 = vunpack.c.h.b16 %v3781
        %v3857 = vunpack.c.l.b16 %v3782
        %v3858 = vunpack.c.h.b16 %v3782
        %v3859 = vunpack.c.l.b16 %v3783
        %v3860 = vunpack.c.h.b16 %v3783
        %v3861 = vunpack.c.l.b16 %v3784
        %v3862 = vunpack.c.h.b16 %v3784
        %v3863 = vunpack.c.l.b16 %v3785
        %v3864 = vunpack.c.h.b16 %v3785
        %v3865 = vunpack.c.l.b16 %v3786
        %v3866 = vunpack.c.h.b16 %v3786
        %v3867 = vunpack.c.l.b16 %v3787
        %v3868 = vunpack.c.h.b16 %v3787
        %v3869 = vunpack.c.l.b16 %v3788
        %v3870 = vunpack.c.h.b16 %v3788
        %v3871 = vunpack.c.l.b16 %v3789
        %v3872 = vunpack.c.h.b16 %v3789
        %v3873 = vunpack.c.l.b16 %v3790
        %v3874 = vunpack.c.h.b16 %v3790
        %v3875 = vunpack.c.l.b16 %v3791
        %v3876 = vunpack.c.h.b16 %v3791
        %v3877 = vunpack.c.l.b16 %v3792
        %v3878 = vunpack.c.h.b16 %v3792
        %v3879 = vunpack.c.l.b16 %v3793
        %v3880 = vunpack.c.h.b16 %v3793
        %v3881 = vunpack.c.l.b16 %v3794
        %v3882 = vunpack.c.h.b16 %v3794
        %v3883 = vunpack.c.l.b16 %v3795
        %v3884 = vunpack.c.h.b16 %v3795
        %v3885 = vunpack.c.l.b16 %v3796
        %v3886 = vunpack.c.h.b16 %v3796
        %v3887 = vunpack.c.l.b16 %v3797
        %v3888 = vunpack.c.h.b16 %v3797
        %v3889 = vunpack.c.l.b16 %v3798
        %v3890 = vunpack.c.h.b16 %v3798
        %v3891 = vunpack.c.l.b16 %v3799
        %v3892 = vunpack.c.h.b16 %v3799
        %v3893 = vunpack.c.l.b16 %v3800
        %v3894 = vunpack.c.h.b16 %v3800
        %v3895 = vunpack.c.l.b16 %v3801
        %v3896 = vunpack.c.h.b16 %v3801
        %v3897 = vunpack.c.l.b16 %v3802
        %v3898 = vunpack.c.h.b16 %v3802
        %v3899 = vunpack.c.l.b16 %v3803
        %v3900 = vunpack.c.h.b16 %v3803
        %v3901 = vunpack.c.l.b16 %v3804
        %v3902 = vunpack.c.h.b16 %v3804
        %v3903 = vunpack.c.l.b16 %v3805
        %v3904 = vunpack.c.h.b16 %v3805
        %v3905 = vunpack.c.l.b16 %v3806
        %v3906 = vunpack.c.h.b16 %v3806
        %v3907 = vunpack.c.l.b16 %v3807
        %v3908 = vunpack.c.h.b16 %v3807
        %v3909 = vpack.c.b16 %v3849, %v3845
        %v3910 = vpack.c.b16 %v3850, %v3846
        %v3911 = vpack.c.b16 %v3851, %v3847
        %v3912 = vpack.c.b16 %v3852, %v3848
        %v3913 = vpack.c.b16 %v3857, %v3853
        %v3914 = vpack.c.b16 %v3858, %v3854
        %v3915 = vpack.c.b16 %v3859, %v3855
        %v3916 = vpack.c.b16 %v3860, %v3856
        %v3917 = vpack.c.b16 %v3865, %v3861
        %v3918 = vpack.c.b16 %v3866, %v3862
        %v3919 = vpack.c.b16 %v3867, %v3863
        %v3920 = vpack.c.b16 %v3868, %v3864
        %v3921 = vpack.c.b16 %v3873, %v3869
        %v3922 = vpack.c.b16 %v3874, %v3870
        %v3923 = vpack.c.b16 %v3875, %v3871
        %v3924 = vpack.c.b16 %v3876, %v3872
        %v3925 = vpack.c.b16 %v3881, %v3877
        %v3926 = vpack.c.b16 %v3882, %v3878
        %v3927 = vpack.c.b16 %v3883, %v3879
        %v3928 = vpack.c.b16 %v3884, %v3880
        %v3929 = vpack.c.b16 %v3889, %v3885
        %v3930 = vpack.c.b16 %v3890, %v3886
        %v3931 = vpack.c.b16 %v3891, %v3887
        %v3932 = vpack.c.b16 %v3892, %v3888
        %v3933 = vpack.c.b16 %v3897, %v3893
        %v3934 = vpack.c.b16 %v3898, %v3894
        %v3935 = vpack.c.b16 %v3899, %v3895
        %v3936 = vpack.c.b16 %v3900, %v3896
        %v3937 = vpack.c.b16 %v3905, %v3901
        %v3938 = vpack.c.b16 %v3906, %v3902
        %v3939 = vpack.c.b16 %v3907, %v3903
        %v3940 = vpack.c.b16 %v3908, %v3904
        %3973 = vmatpush.bf16.msra.mxu0 %v3937
        %3974 = vmatpush.bf16.msra.mxu0 %v3933
        %3975 = vmatpush.bf16.msra.mxu0 %v3929
        %3976 = vmatpush.bf16.msra.mxu0 %v3925
        %3977 = vmatpush.bf16.msra.mxu0 %v3921
        %3978 = vmatpush.bf16.msra.mxu0 %v3917
        %3979 = vmatpush.bf16.msra.mxu0 %v3913
        %3980 = vmatpush.bf16.msra.mxu0 %v3909
        %3981 = vmatmul.bf16.gmra.mxu0 %v3808
        %v3982 = vpop.f32.mrf.mxu0
        %v3983 = vadd.f32 %v3809, %v3982
        %v3984 = vpop.f32.mrf.mxu0
        %v3985 = vadd.f32 %v3809, %v3984
        %3986 = vdwg.mxu0
        %3987 = vmatpush.bf16.msra.mxu0 %v3938
        %3988 = vmatpush.bf16.msra.mxu0 %v3934
        %3989 = vmatpush.bf16.msra.mxu0 %v3930
        %3990 = vmatpush.bf16.msra.mxu0 %v3926
        %3991 = vmatpush.bf16.msra.mxu0 %v3922
        %3992 = vmatpush.bf16.msra.mxu0 %v3918
        %3993 = vmatpush.bf16.msra.mxu0 %v3914
        %3994 = vmatpush.bf16.msra.mxu0 %v3910
        %3995 = vmatmul.bf16.gmra.mxu0 %v3808
        %v3996 = vpop.f32.mrf.mxu0
        %v3997 = vadd.f32 %v3810, %v3996
        %v3998 = vpop.f32.mrf.mxu0
        %v3999 = vadd.f32 %v3810, %v3998
        %4000 = vdwg.mxu0
        %4001 = vmatpush.bf16.msra.mxu0 %v3939
        %4002 = vmatpush.bf16.msra.mxu0 %v3935
        %4003 = vmatpush.bf16.msra.mxu0 %v3931
        %4004 = vmatpush.bf16.msra.mxu0 %v3927
        %4005 = vmatpush.bf16.msra.mxu0 %v3923
        %4006 = vmatpush.bf16.msra.mxu0 %v3919
        %4007 = vmatpush.bf16.msra.mxu0 %v3915
        %4008 = vmatpush.bf16.msra.mxu0 %v3911
        %4009 = vmatmul.bf16.gmra.mxu0 %v3808
        %v4010 = vpop.f32.mrf.mxu0
        %v4011 = vadd.f32 %v3811, %v4010
        %v4012 = vpop.f32.mrf.mxu0
        %v4013 = vadd.f32 %v3811, %v4012
        %4014 = vdwg.mxu0
        %4015 = vmatpush.bf16.msra.mxu0 %v3940
        %4016 = vmatpush.bf16.msra.mxu0 %v3936
        %4017 = vmatpush.bf16.msra.mxu0 %v3932
        %4018 = vmatpush.bf16.msra.mxu0 %v3928
        %4019 = vmatpush.bf16.msra.mxu0 %v3924
        %4020 = vmatpush.bf16.msra.mxu0 %v3920
        %4021 = vmatpush.bf16.msra.mxu0 %v3916
        %4022 = vmatpush.bf16.msra.mxu0 %v3912
        %4023 = vmatmul.bf16.gmra.mxu0 %v3808
        %v4024 = vpop.f32.mrf.mxu0
        %v4025 = vadd.f32 %v3812, %v4024
        %v4026 = vpop.f32.mrf.mxu0
        %v4027 = vadd.f32 %v3812, %v4026
        %4028 = vdwg.mxu0
        %v4029 = vmul.f32 %v3983, 0.5
        %v4030 = vmul.f32 %v3997, 0.5
        %v4031 = vmul.f32 %v4011, 0.5
        %v4032 = vmul.f32 %v4025, 0.5
        %v4033 = vmul.f32 %v3985, 0.5
        %v4034 = vmul.f32 %v3999, 0.5
        %v4035 = vmul.f32 %v4013, 0.5
        %v4036 = vmul.f32 %v4027, 0.5
        %v4037 = vmul.f32 %v3983, 0.044715
        %v4038 = vmul.f32 %v3997, 0.044715
        %v4039 = vmul.f32 %v4011, 0.044715
        %v4040 = vmul.f32 %v4025, 0.044715
        %v4041 = vmul.f32 %v3985, 0.044715
        %v4042 = vmul.f32 %v3999, 0.044715
        %v4043 = vmul.f32 %v4013, 0.044715
        %v4044 = vmul.f32 %v4027, 0.044715
        %v4045 = vmul.f32 %v4037, %v3983
        %v4046 = vmul.f32 %v4038, %v3997
        %v4047 = vmul.f32 %v4039, %v4011
        %v4048 = vmul.f32 %v4040, %v4025
        %v4049 = vmul.f32 %v4041, %v3985
        %v4050 = vmul.f32 %v4042, %v3999
        %v4051 = vmul.f32 %v4043, %v4013
        %v4052 = vmul.f32 %v4044, %v4027
        %v4053 = vmul.f32 %v4045, %v3983
        %v4054 = vmul.f32 %v4046, %v3997
        %v4055 = vmul.f32 %v4047, %v4011
        %v4056 = vmul.f32 %v4048, %v4025
        %v4057 = vmul.f32 %v4049, %v3985
        %v4058 = vmul.f32 %v4050, %v3999
        %v4059 = vmul.f32 %v4051, %v4013
        %v4060 = vmul.f32 %v4052, %v4027
        %v4061 = vadd.f32 %v3983, %v4053
        %v4062 = vadd.f32 %v3997, %v4054
        %v4063 = vadd.f32 %v4011, %v4055
        %v4064 = vadd.f32 %v4025, %v4056
        %v4065 = vadd.f32 %v3985, %v4057
        %v4066 = vadd.f32 %v3999, %v4058
        %v4067 = vadd.f32 %v4013, %v4059
        %v4068 = vadd.f32 %v4027, %v4060
        %v4069 = vmul.f32 %v4061, 0.7978846
        %v4070 = vmul.f32 %v4062, 0.7978846
        %v4071 = vmul.f32 %v4063, 0.7978846
        %v4072 = vmul.f32 %v4064, 0.7978846
        %v4073 = vmul.f32 %v4065, 0.7978846
        %v4074 = vmul.f32 %v4066, 0.7978846
        %v4075 = vmul.f32 %v4067, 0.7978846
        %v4076 = vmul.f32 %v4068, 0.7978846
        %v4077 = vtanh.pop %v4069
        %v4078 = vtanh.pop %v4070
        %v4079 = vtanh.pop %v4071
        %v4080 = vtanh.pop %v4072
        %v4081 = vtanh.pop %v4073
        %v4082 = vtanh.pop %v4074
        %v4083 = vtanh.pop %v4075
        %v4084 = vtanh.pop %v4076
        %v4085 = vadd.f32 %v4077, 1.0
        %v4086 = vadd.f32 %v4078, 1.0
        %v4087 = vadd.f32 %v4079, 1.0
        %v4088 = vadd.f32 %v4080, 1.0
        %v4089 = vadd.f32 %v4081, 1.0
        %v4090 = vadd.f32 %v4082, 1.0
        %v4091 = vadd.f32 %v4083, 1.0
        %v4092 = vadd.f32 %v4084, 1.0
        %v4093 = vmul.f32 %v4029, %v4085
        %v4094 = vmul.f32 %v4030, %v4086
        %v4095 = vmul.f32 %v4031, %v4087
        %v4096 = vmul.f32 %v4032, %v4088
        %v4097 = vmul.f32 %v4033, %v4089
        %v4098 = vmul.f32 %v4034, %v4090
        %v4099 = vmul.f32 %v4035, %v4091
        %v4100 = vmul.f32 %v4036, %v4092
        %s4101 = scalar_lea.vmem %s687, 256 [#allocation11]
        %v4102 = vld [vmem:[%s4101] sm:$0xf]
        %v4103 = vld [vmem:[%s4101 + $0x4] sm:$0xf]
        %v4104 = vld [vmem:[%s4101 + $0x8] sm:$0xf]
        %v4105 = vld [vmem:[%s4101 + $0xc] sm:$0xf]
        %v4106 = vld [vmem:[%s4101 + $0x10] sm:$0xf]
        %v4107 = vld [vmem:[%s4101 + $0x14] sm:$0xf]
        %v4108 = vld [vmem:[%s4101 + $0x18] sm:$0xf]
        %v4109 = vld [vmem:[%s4101 + $0x1c] sm:$0xf]
        %v4110 = vld [vmem:[%s4101 + $0x20] sm:$0xf]
        %v4111 = vld [vmem:[%s4101 + $0x24] sm:$0xf]
        %v4112 = vld [vmem:[%s4101 + $0x28] sm:$0xf]
        %v4113 = vld [vmem:[%s4101 + $0x2c] sm:$0xf]
        %v4114 = vld [vmem:[%s4101 + $0x30] sm:$0xf]
        %v4115 = vld [vmem:[%s4101 + $0x34] sm:$0xf]
        %v4116 = vld [vmem:[%s4101 + $0x38] sm:$0xf]
        %v4117 = vld [vmem:[%s4101 + $0x3c] sm:$0xf]
        %v4118 = vld [vmem:[%s4101 + $0x40] sm:$0xf]
        %v4119 = vld [vmem:[%s4101 + $0x44] sm:$0xf]
        %v4120 = vld [vmem:[%s4101 + $0x48] sm:$0xf]
        %v4121 = vld [vmem:[%s4101 + $0x4c] sm:$0xf]
        %v4122 = vld [vmem:[%s4101 + $0x50] sm:$0xf]
        %v4123 = vld [vmem:[%s4101 + $0x54] sm:$0xf]
        %v4124 = vld [vmem:[%s4101 + $0x58] sm:$0xf]
        %v4125 = vld [vmem:[%s4101 + $0x5c] sm:$0xf]
        %v4126 = vld [vmem:[%s4101 + $0x60] sm:$0xf]
        %v4127 = vld [vmem:[%s4101 + $0x64] sm:$0xf]
        %v4128 = vld [vmem:[%s4101 + $0x68] sm:$0xf]
        %v4129 = vld [vmem:[%s4101 + $0x6c] sm:$0xf]
        %v4130 = vld [vmem:[%s4101 + $0x70] sm:$0xf]
        %v4131 = vld [vmem:[%s4101 + $0x74] sm:$0xf]
        %v4132 = vld [vmem:[%s4101 + $0x78] sm:$0xf]
        %v4133 = vld [vmem:[%s4101 + $0x7c] sm:$0xf]
        %v4134 = vld [vmem:[%s4101 + $0x80] sm:$0xf]
        %v4135 = vld [vmem:[%s4101 + $0x84] sm:$0xf]
        %v4136 = vld [vmem:[%s4101 + $0x88] sm:$0xf]
        %v4137 = vld [vmem:[%s4101 + $0x8c] sm:$0xf]
        %v4138 = vld [vmem:[%s4101 + $0x90] sm:$0xf]
        %v4139 = vld [vmem:[%s4101 + $0x94] sm:$0xf]
        %v4140 = vld [vmem:[%s4101 + $0x98] sm:$0xf]
        %v4141 = vld [vmem:[%s4101 + $0x9c] sm:$0xf]
        %v4142 = vld [vmem:[%s4101 + $0xa0] sm:$0xf]
        %v4143 = vld [vmem:[%s4101 + $0xa4] sm:$0xf]
        %v4144 = vld [vmem:[%s4101 + $0xa8] sm:$0xf]
        %v4145 = vld [vmem:[%s4101 + $0xac] sm:$0xf]
        %v4146 = vld [vmem:[%s4101 + $0xb0] sm:$0xf]
        %v4147 = vld [vmem:[%s4101 + $0xb4] sm:$0xf]
        %v4148 = vld [vmem:[%s4101 + $0xb8] sm:$0xf]
        %v4149 = vld [vmem:[%s4101 + $0xbc] sm:$0xf]
        %v4150 = vld [vmem:[%s4101 + $0xc0] sm:$0xf]
        %v4151 = vld [vmem:[%s4101 + $0xc4] sm:$0xf]
        %v4152 = vld [vmem:[%s4101 + $0xc8] sm:$0xf]
        %v4153 = vld [vmem:[%s4101 + $0xcc] sm:$0xf]
        %v4154 = vld [vmem:[%s4101 + $0xd0] sm:$0xf]
        %v4155 = vld [vmem:[%s4101 + $0xd4] sm:$0xf]
        %v4156 = vld [vmem:[%s4101 + $0xd8] sm:$0xf]
        %v4157 = vld [vmem:[%s4101 + $0xdc] sm:$0xf]
        %v4158 = vld [vmem:[%s4101 + $0xe0] sm:$0xf]
        %v4159 = vld [vmem:[%s4101 + $0xe4] sm:$0xf]
        %v4160 = vld [vmem:[%s4101 + $0xe8] sm:$0xf]
        %v4161 = vld [vmem:[%s4101 + $0xec] sm:$0xf]
        %v4162 = vld [vmem:[%s4101 + $0xf0] sm:$0xf]
        %v4163 = vld [vmem:[%s4101 + $0xf4] sm:$0xf]
        %v4164 = vld [vmem:[%s4101 + $0xf8] sm:$0xf]
        %v4165 = vld [vmem:[%s4101 + $0xfc] sm:$0xf]
        %v4166 = vpack.c.bf16 %v4097, %v4093
        %v4167 = vpack.c.bf16 %v4098, %v4094
        %v4168 = vpack.c.bf16 %v4099, %v4095
        %v4169 = vpack.c.bf16 %v4100, %v4096
        %v4234 = vunpack.c.l.b16 %v4102
        %v4235 = vunpack.c.l.b16 %v4103
        %v4236 = vunpack.c.l.b16 %v4104
        %v4237 = vunpack.c.l.b16 %v4105
        %v4238 = vunpack.c.l.b16 %v4106
        %v4239 = vunpack.c.l.b16 %v4107
        %v4240 = vunpack.c.l.b16 %v4108
        %v4241 = vunpack.c.l.b16 %v4109
        %v4242 = vunpack.c.l.b16 %v4110
        %v4243 = vunpack.c.l.b16 %v4111
        %v4244 = vunpack.c.l.b16 %v4112
        %v4245 = vunpack.c.l.b16 %v4113
        %v4246 = vunpack.c.l.b16 %v4114
        %v4247 = vunpack.c.l.b16 %v4115
        %v4248 = vunpack.c.l.b16 %v4116
        %v4249 = vunpack.c.l.b16 %v4117
        %v4250 = vunpack.c.l.b16 %v4118
        %v4251 = vunpack.c.l.b16 %v4119
        %v4252 = vunpack.c.l.b16 %v4120
        %v4253 = vunpack.c.l.b16 %v4121
        %v4254 = vunpack.c.l.b16 %v4122
        %v4255 = vunpack.c.l.b16 %v4123
        %v4256 = vunpack.c.l.b16 %v4124
        %v4257 = vunpack.c.l.b16 %v4125
        %v4258 = vunpack.c.l.b16 %v4126
        %v4259 = vunpack.c.l.b16 %v4127
        %v4260 = vunpack.c.l.b16 %v4128
        %v4261 = vunpack.c.l.b16 %v4129
        %v4262 = vunpack.c.l.b16 %v4130
        %v4263 = vunpack.c.l.b16 %v4131
        %v4264 = vunpack.c.l.b16 %v4132
        %v4265 = vunpack.c.l.b16 %v4133
        %v4266 = vunpack.c.l.b16 %v4134
        %v4267 = vunpack.c.l.b16 %v4135
        %v4268 = vunpack.c.l.b16 %v4136
        %v4269 = vunpack.c.l.b16 %v4137
        %v4270 = vunpack.c.l.b16 %v4138
        %v4271 = vunpack.c.l.b16 %v4139
        %v4272 = vunpack.c.l.b16 %v4140
        %v4273 = vunpack.c.l.b16 %v4141
        %v4274 = vunpack.c.l.b16 %v4142
        %v4275 = vunpack.c.l.b16 %v4143
        %v4276 = vunpack.c.l.b16 %v4144
        %v4277 = vunpack.c.l.b16 %v4145
        %v4278 = vunpack.c.l.b16 %v4146
        %v4279 = vunpack.c.l.b16 %v4147
        %v4280 = vunpack.c.l.b16 %v4148
        %v4281 = vunpack.c.l.b16 %v4149
        %v4282 = vunpack.c.l.b16 %v4150
        %v4283 = vunpack.c.l.b16 %v4151
        %v4284 = vunpack.c.l.b16 %v4152
        %v4285 = vunpack.c.l.b16 %v4153
        %v4286 = vunpack.c.l.b16 %v4154
        %v4287 = vunpack.c.l.b16 %v4155
        %v4288 = vunpack.c.l.b16 %v4156
        %v4289 = vunpack.c.l.b16 %v4157
        %v4290 = vunpack.c.l.b16 %v4158
        %v4291 = vunpack.c.l.b16 %v4159
        %v4292 = vunpack.c.l.b16 %v4160
        %v4293 = vunpack.c.l.b16 %v4161
        %v4294 = vunpack.c.l.b16 %v4162
        %v4295 = vunpack.c.l.b16 %v4163
        %v4296 = vunpack.c.l.b16 %v4164
        %v4297 = vunpack.c.l.b16 %v4165
        %v4298 = vpack.c.b16 %v4235, %v4234
        %v4299 = vpack.c.b16 %v4237, %v4236
        %v4300 = vpack.c.b16 %v4239, %v4238
        %v4301 = vpack.c.b16 %v4241, %v4240
        %v4302 = vpack.c.b16 %v4243, %v4242
        %v4303 = vpack.c.b16 %v4245, %v4244
        %v4304 = vpack.c.b16 %v4247, %v4246
        %v4305 = vpack.c.b16 %v4249, %v4248
        %v4306 = vpack.c.b16 %v4251, %v4250
        %v4307 = vpack.c.b16 %v4253, %v4252
        %v4308 = vpack.c.b16 %v4255, %v4254
        %v4309 = vpack.c.b16 %v4257, %v4256
        %v4310 = vpack.c.b16 %v4259, %v4258
        %v4311 = vpack.c.b16 %v4261, %v4260
        %v4312 = vpack.c.b16 %v4263, %v4262
        %v4313 = vpack.c.b16 %v4265, %v4264
        %v4314 = vpack.c.b16 %v4267, %v4266
        %v4315 = vpack.c.b16 %v4269, %v4268
        %v4316 = vpack.c.b16 %v4271, %v4270
        %v4317 = vpack.c.b16 %v4273, %v4272
        %v4318 = vpack.c.b16 %v4275, %v4274
        %v4319 = vpack.c.b16 %v4277, %v4276
        %v4320 = vpack.c.b16 %v4279, %v4278
        %v4321 = vpack.c.b16 %v4281, %v4280
        %v4322 = vpack.c.b16 %v4283, %v4282
        %v4323 = vpack.c.b16 %v4285, %v4284
        %v4324 = vpack.c.b16 %v4287, %v4286
        %v4325 = vpack.c.b16 %v4289, %v4288
        %v4326 = vpack.c.b16 %v4291, %v4290
        %v4327 = vpack.c.b16 %v4293, %v4292
        %v4328 = vpack.c.b16 %v4295, %v4294
        %v4329 = vpack.c.b16 %v4297, %v4296
        %4362 = vmatpush.bf16.msra.mxu0 %v4305
        %4363 = vmatpush.bf16.msra.mxu0 %v4304
        %4364 = vmatpush.bf16.msra.mxu0 %v4303
        %4365 = vmatpush.bf16.msra.mxu0 %v4302
        %4366 = vmatpush.bf16.msra.mxu0 %v4301
        %4367 = vmatpush.bf16.msra.mxu0 %v4300
        %4368 = vmatpush.bf16.msra.mxu0 %v4299
        %4369 = vmatpush.bf16.msra.mxu0 %v4298
        %4370 = vmatmul.bf16.gmra.mxu0 %v4166
        %v4371 = vpop.f32.mrf.mxu0
        %v4372 = vadd.f32 %v3773, %v4371
        %v4373 = vpop.f32.mrf.mxu0
        %v4374 = vadd.f32 %v3774, %v4373
        %4375 = vdwg.mxu0
        %4376 = vmatpush.bf16.msra.mxu0 %v4313
        %4377 = vmatpush.bf16.msra.mxu0 %v4312
        %4378 = vmatpush.bf16.msra.mxu0 %v4311
        %4379 = vmatpush.bf16.msra.mxu0 %v4310
        %4380 = vmatpush.bf16.msra.mxu0 %v4309
        %4381 = vmatpush.bf16.msra.mxu0 %v4308
        %4382 = vmatpush.bf16.msra.mxu0 %v4307
        %4383 = vmatpush.bf16.msra.mxu0 %v4306
        %4384 = vmatmul.bf16.gmra.mxu0 %v4167
        %v4385 = vpop.f32.mrf.mxu0
        %v4386 = vadd.f32 %v4372, %v4385
        %v4387 = vpop.f32.mrf.mxu0
        %v4388 = vadd.f32 %v4374, %v4387
        %4389 = vdwg.mxu0
        %4390 = vmatpush.bf16.msra.mxu0 %v4321
        %4391 = vmatpush.bf16.msra.mxu0 %v4320
        %4392 = vmatpush.bf16.msra.mxu0 %v4319
        %4393 = vmatpush.bf16.msra.mxu0 %v4318
        %4394 = vmatpush.bf16.msra.mxu0 %v4317
        %4395 = vmatpush.bf16.msra.mxu0 %v4316
        %4396 = vmatpush.bf16.msra.mxu0 %v4315
        %4397 = vmatpush.bf16.msra.mxu0 %v4314
        %4398 = vmatmul.bf16.gmra.mxu0 %v4168
        %v4399 = vpop.f32.mrf.mxu0
        %v4400 = vadd.f32 %v4386, %v4399
        %v4401 = vpop.f32.mrf.mxu0
        %v4402 = vadd.f32 %v4388, %v4401
        %4403 = vdwg.mxu0
        %4404 = vmatpush.bf16.msra.mxu0 %v4329
        %4405 = vmatpush.bf16.msra.mxu0 %v4328
        %4406 = vmatpush.bf16.msra.mxu0 %v4327
        %4407 = vmatpush.bf16.msra.mxu0 %v4326
        %4408 = vmatpush.bf16.msra.mxu0 %v4325
        %4409 = vmatpush.bf16.msra.mxu0 %v4324
        %4410 = vmatpush.bf16.msra.mxu0 %v4323
        %4411 = vmatpush.bf16.msra.mxu0 %v4322
        %4412 = vmatmul.bf16.gmra.mxu0 %v4169
        %v4413 = vpop.f32.mrf.mxu0
        %v4414 = vadd.f32 %v4400, %v4413
        %v4415 = vpop.f32.mrf.mxu0
        %v4416 = vadd.f32 %v4402, %v4415
        %4417 = vdwg.mxu0
        %v4418 = vperm.slane %v1645, 2
        %v4419 = vmul.f32 %v4414, %v4418
        %v4420 = vmul.f32 %v4416, %v4418
        %v4421 = vperm.slane %v1645, 6
        %v4422 = vadd.f32 %v4419, %v4421
        %v4423 = vadd.f32 %v4420, %v4421
        %s4424 = scalar_lea.vmem %s677, 512 [#allocation10]
        %v4425 = vld [vmem:[%s4424] sm:$0xff]
        %v4426 = vld [vmem:[%s4424 + $0x8] sm:$0xff]
        %v4427 = vld [vmem:[%s4424 + $0x10] sm:$0xff]
        %v4428 = vld [vmem:[%s4424 + $0x18] sm:$0xff]
        %v4429 = vld [vmem:[%s4424 + $0x20] sm:$0xff]
        %v4430 = vld [vmem:[%s4424 + $0x28] sm:$0xff]
        %v4431 = vld [vmem:[%s4424 + $0x30] sm:$0xff]
        %v4432 = vld [vmem:[%s4424 + $0x38] sm:$0xff]
        %v4433 = vld [vmem:[%s4424 + $0x40] sm:$0xff]
        %v4434 = vld [vmem:[%s4424 + $0x48] sm:$0xff]
        %v4435 = vld [vmem:[%s4424 + $0x50] sm:$0xff]
        %v4436 = vld [vmem:[%s4424 + $0x58] sm:$0xff]
        %v4437 = vld [vmem:[%s4424 + $0x60] sm:$0xff]
        %v4438 = vld [vmem:[%s4424 + $0x68] sm:$0xff]
        %v4439 = vld [vmem:[%s4424 + $0x70] sm:$0xff]
        %v4440 = vld [vmem:[%s4424 + $0x78] sm:$0xff]
        %v4441 = vld [vmem:[%s4424 + $0x80] sm:$0xff]
        %v4442 = vld [vmem:[%s4424 + $0x88] sm:$0xff]
        %v4443 = vld [vmem:[%s4424 + $0x90] sm:$0xff]
        %v4444 = vld [vmem:[%s4424 + $0x98] sm:$0xff]
        %v4445 = vld [vmem:[%s4424 + $0xa0] sm:$0xff]
        %v4446 = vld [vmem:[%s4424 + $0xa8] sm:$0xff]
        %v4447 = vld [vmem:[%s4424 + $0xb0] sm:$0xff]
        %v4448 = vld [vmem:[%s4424 + $0xb8] sm:$0xff]
        %v4449 = vld [vmem:[%s4424 + $0xc0] sm:$0xff]
        %v4450 = vld [vmem:[%s4424 + $0xc8] sm:$0xff]
        %v4451 = vld [vmem:[%s4424 + $0xd0] sm:$0xff]
        %v4452 = vld [vmem:[%s4424 + $0xd8] sm:$0xff]
        %v4453 = vld [vmem:[%s4424 + $0xe0] sm:$0xff]
        %v4454 = vld [vmem:[%s4424 + $0xe8] sm:$0xff]
        %v4455 = vld [vmem:[%s4424 + $0xf0] sm:$0xff]
        %v4456 = vld [vmem:[%s4424 + $0xf8] sm:$0xff]
        %v4457 = vpack.c.bf16 %v4423, %v4422
        %v4458 = vperm.slane %v1641, 7
        %v4459 = vperm.slane %v1642, 7
        %v4460 = vperm.slane %v1643, 7
        %v4461 = vperm.slane %v1644, 7
        %v4494 = vunpack.c.l.b16 %v4425
        %v4495 = vunpack.c.h.b16 %v4425
        %v4496 = vunpack.c.l.b16 %v4426
        %v4497 = vunpack.c.h.b16 %v4426
        %v4498 = vunpack.c.l.b16 %v4427
        %v4499 = vunpack.c.h.b16 %v4427
        %v4500 = vunpack.c.l.b16 %v4428
        %v4501 = vunpack.c.h.b16 %v4428
        %v4502 = vunpack.c.l.b16 %v4429
        %v4503 = vunpack.c.h.b16 %v4429
        %v4504 = vunpack.c.l.b16 %v4430
        %v4505 = vunpack.c.h.b16 %v4430
        %v4506 = vunpack.c.l.b16 %v4431
        %v4507 = vunpack.c.h.b16 %v4431
        %v4508 = vunpack.c.l.b16 %v4432
        %v4509 = vunpack.c.h.b16 %v4432
        %v4510 = vunpack.c.l.b16 %v4433
        %v4511 = vunpack.c.h.b16 %v4433
        %v4512 = vunpack.c.l.b16 %v4434
        %v4513 = vunpack.c.h.b16 %v4434
        %v4514 = vunpack.c.l.b16 %v4435
        %v4515 = vunpack.c.h.b16 %v4435
        %v4516 = vunpack.c.l.b16 %v4436
        %v4517 = vunpack.c.h.b16 %v4436
        %v4518 = vunpack.c.l.b16 %v4437
        %v4519 = vunpack.c.h.b16 %v4437
        %v4520 = vunpack.c.l.b16 %v4438
        %v4521 = vunpack.c.h.b16 %v4438
        %v4522 = vunpack.c.l.b16 %v4439
        %v4523 = vunpack.c.h.b16 %v4439
        %v4524 = vunpack.c.l.b16 %v4440
        %v4525 = vunpack.c.h.b16 %v4440
        %v4526 = vunpack.c.l.b16 %v4441
        %v4527 = vunpack.c.h.b16 %v4441
        %v4528 = vunpack.c.l.b16 %v4442
        %v4529 = vunpack.c.h.b16 %v4442
        %v4530 = vunpack.c.l.b16 %v4443
        %v4531 = vunpack.c.h.b16 %v4443
        %v4532 = vunpack.c.l.b16 %v4444
        %v4533 = vunpack.c.h.b16 %v4444
        %v4534 = vunpack.c.l.b16 %v4445
        %v4535 = vunpack.c.h.b16 %v4445
        %v4536 = vunpack.c.l.b16 %v4446
        %v4537 = vunpack.c.h.b16 %v4446
        %v4538 = vunpack.c.l.b16 %v4447
        %v4539 = vunpack.c.h.b16 %v4447
        %v4540 = vunpack.c.l.b16 %v4448
        %v4541 = vunpack.c.h.b16 %v4448
        %v4542 = vunpack.c.l.b16 %v4449
        %v4543 = vunpack.c.h.b16 %v4449
        %v4544 = vunpack.c.l.b16 %v4450
        %v4545 = vunpack.c.h.b16 %v4450
        %v4546 = vunpack.c.l.b16 %v4451
        %v4547 = vunpack.c.h.b16 %v4451
        %v4548 = vunpack.c.l.b16 %v4452
        %v4549 = vunpack.c.h.b16 %v4452
        %v4550 = vunpack.c.l.b16 %v4453
        %v4551 = vunpack.c.h.b16 %v4453
        %v4552 = vunpack.c.l.b16 %v4454
        %v4553 = vunpack.c.h.b16 %v4454
        %v4554 = vunpack.c.l.b16 %v4455
        %v4555 = vunpack.c.h.b16 %v4455
        %v4556 = vunpack.c.l.b16 %v4456
        %v4557 = vunpack.c.h.b16 %v4456
        %v4558 = vpack.c.b16 %v4498, %v4494
        %v4559 = vpack.c.b16 %v4499, %v4495
        %v4560 = vpack.c.b16 %v4500, %v4496
        %v4561 = vpack.c.b16 %v4501, %v4497
        %v4562 = vpack.c.b16 %v4506, %v4502
        %v4563 = vpack.c.b16 %v4507, %v4503
        %v4564 = vpack.c.b16 %v4508, %v4504
        %v4565 = vpack.c.b16 %v4509, %v4505
        %v4566 = vpack.c.b16 %v4514, %v4510
        %v4567 = vpack.c.b16 %v4515, %v4511
        %v4568 = vpack.c.b16 %v4516, %v4512
        %v4569 = vpack.c.b16 %v4517, %v4513
        %v4570 = vpack.c.b16 %v4522, %v4518
        %v4571 = vpack.c.b16 %v4523, %v4519
        %v4572 = vpack.c.b16 %v4524, %v4520
        %v4573 = vpack.c.b16 %v4525, %v4521
        %v4574 = vpack.c.b16 %v4530, %v4526
        %v4575 = vpack.c.b16 %v4531, %v4527
        %v4576 = vpack.c.b16 %v4532, %v4528
        %v4577 = vpack.c.b16 %v4533, %v4529
        %v4578 = vpack.c.b16 %v4538, %v4534
        %v4579 = vpack.c.b16 %v4539, %v4535
        %v4580 = vpack.c.b16 %v4540, %v4536
        %v4581 = vpack.c.b16 %v4541, %v4537
        %v4582 = vpack.c.b16 %v4546, %v4542
        %v4583 = vpack.c.b16 %v4547, %v4543
        %v4584 = vpack.c.b16 %v4548, %v4544
        %v4585 = vpack.c.b16 %v4549, %v4545
        %v4586 = vpack.c.b16 %v4554, %v4550
        %v4587 = vpack.c.b16 %v4555, %v4551
        %v4588 = vpack.c.b16 %v4556, %v4552
        %v4589 = vpack.c.b16 %v4557, %v4553
        %4622 = vmatpush.bf16.msra.mxu0 %v4586
        %4623 = vmatpush.bf16.msra.mxu0 %v4582
        %4624 = vmatpush.bf16.msra.mxu0 %v4578
        %4625 = vmatpush.bf16.msra.mxu0 %v4574
        %4626 = vmatpush.bf16.msra.mxu0 %v4570
        %4627 = vmatpush.bf16.msra.mxu0 %v4566
        %4628 = vmatpush.bf16.msra.mxu0 %v4562
        %4629 = vmatpush.bf16.msra.mxu0 %v4558
        %4630 = vmatmul.bf16.gmra.mxu0 %v4457
        %v4631 = vpop.f32.mrf.mxu0
        %v4632 = vadd.f32 %v4458, %v4631
        %v4633 = vpop.f32.mrf.mxu0
        %v4634 = vadd.f32 %v4458, %v4633
        %4635 = vdwg.mxu0
        %4636 = vmatpush.bf16.msra.mxu0 %v4587
        %4637 = vmatpush.bf16.msra.mxu0 %v4583
        %4638 = vmatpush.bf16.msra.mxu0 %v4579
        %4639 = vmatpush.bf16.msra.mxu0 %v4575
        %4640 = vmatpush.bf16.msra.mxu0 %v4571
        %4641 = vmatpush.bf16.msra.mxu0 %v4567
        %4642 = vmatpush.bf16.msra.mxu0 %v4563
        %4643 = vmatpush.bf16.msra.mxu0 %v4559
        %4644 = vmatmul.bf16.gmra.mxu0 %v4457
        %v4645 = vpop.f32.mrf.mxu0
        %v4646 = vadd.f32 %v4459, %v4645
        %v4647 = vpop.f32.mrf.mxu0
        %v4648 = vadd.f32 %v4459, %v4647
        %4649 = vdwg.mxu0
        %4650 = vmatpush.bf16.msra.mxu0 %v4588
        %4651 = vmatpush.bf16.msra.mxu0 %v4584
        %4652 = vmatpush.bf16.msra.mxu0 %v4580
        %4653 = vmatpush.bf16.msra.mxu0 %v4576
        %4654 = vmatpush.bf16.msra.mxu0 %v4572
        %4655 = vmatpush.bf16.msra.mxu0 %v4568
        %4656 = vmatpush.bf16.msra.mxu0 %v4564
        %4657 = vmatpush.bf16.msra.mxu0 %v4560
        %4658 = vmatmul.bf16.gmra.mxu0 %v4457
        %v4659 = vpop.f32.mrf.mxu0
        %v4660 = vadd.f32 %v4460, %v4659
        %v4661 = vpop.f32.mrf.mxu0
        %v4662 = vadd.f32 %v4460, %v4661
        %4663 = vdwg.mxu0
        %4664 = vmatpush.bf16.msra.mxu0 %v4589
        %4665 = vmatpush.bf16.msra.mxu0 %v4585
        %4666 = vmatpush.bf16.msra.mxu0 %v4581
        %4667 = vmatpush.bf16.msra.mxu0 %v4577
        %4668 = vmatpush.bf16.msra.mxu0 %v4573
        %4669 = vmatpush.bf16.msra.mxu0 %v4569
        %4670 = vmatpush.bf16.msra.mxu0 %v4565
        %4671 = vmatpush.bf16.msra.mxu0 %v4561
        %4672 = vmatmul.bf16.gmra.mxu0 %v4457
        %v4673 = vpop.f32.mrf.mxu0
        %v4674 = vadd.f32 %v4461, %v4673
        %v4675 = vpop.f32.mrf.mxu0
        %v4676 = vadd.f32 %v4461, %v4675
        %4677 = vdwg.mxu0
        %v4678 = vmul.f32 %v4632, 0.5
        %v4679 = vmul.f32 %v4646, 0.5
        %v4680 = vmul.f32 %v4660, 0.5
        %v4681 = vmul.f32 %v4674, 0.5
        %v4682 = vmul.f32 %v4634, 0.5
        %v4683 = vmul.f32 %v4648, 0.5
        %v4684 = vmul.f32 %v4662, 0.5
        %v4685 = vmul.f32 %v4676, 0.5
        %v4686 = vmul.f32 %v4632, 0.044715
        %v4687 = vmul.f32 %v4646, 0.044715
        %v4688 = vmul.f32 %v4660, 0.044715
        %v4689 = vmul.f32 %v4674, 0.044715
        %v4690 = vmul.f32 %v4634, 0.044715
        %v4691 = vmul.f32 %v4648, 0.044715
        %v4692 = vmul.f32 %v4662, 0.044715
        %v4693 = vmul.f32 %v4676, 0.044715
        %v4694 = vmul.f32 %v4686, %v4632
        %v4695 = vmul.f32 %v4687, %v4646
        %v4696 = vmul.f32 %v4688, %v4660
        %v4697 = vmul.f32 %v4689, %v4674
        %v4698 = vmul.f32 %v4690, %v4634
        %v4699 = vmul.f32 %v4691, %v4648
        %v4700 = vmul.f32 %v4692, %v4662
        %v4701 = vmul.f32 %v4693, %v4676
        %v4702 = vmul.f32 %v4694, %v4632
        %v4703 = vmul.f32 %v4695, %v4646
        %v4704 = vmul.f32 %v4696, %v4660
        %v4705 = vmul.f32 %v4697, %v4674
        %v4706 = vmul.f32 %v4698, %v4634
        %v4707 = vmul.f32 %v4699, %v4648
        %v4708 = vmul.f32 %v4700, %v4662
        %v4709 = vmul.f32 %v4701, %v4676
        %v4710 = vadd.f32 %v4632, %v4702
        %v4711 = vadd.f32 %v4646, %v4703
        %v4712 = vadd.f32 %v4660, %v4704
        %v4713 = vadd.f32 %v4674, %v4705
        %v4714 = vadd.f32 %v4634, %v4706
        %v4715 = vadd.f32 %v4648, %v4707
        %v4716 = vadd.f32 %v4662, %v4708
        %v4717 = vadd.f32 %v4676, %v4709
        %v4718 = vmul.f32 %v4710, 0.7978846
        %v4719 = vmul.f32 %v4711, 0.7978846
        %v4720 = vmul.f32 %v4712, 0.7978846
        %v4721 = vmul.f32 %v4713, 0.7978846
        %v4722 = vmul.f32 %v4714, 0.7978846
        %v4723 = vmul.f32 %v4715, 0.7978846
        %v4724 = vmul.f32 %v4716, 0.7978846
        %v4725 = vmul.f32 %v4717, 0.7978846
        %v4726 = vtanh.pop %v4718
        %v4727 = vtanh.pop %v4719
        %v4728 = vtanh.pop %v4720
        %v4729 = vtanh.pop %v4721
        %v4730 = vtanh.pop %v4722
        %v4731 = vtanh.pop %v4723
        %v4732 = vtanh.pop %v4724
        %v4733 = vtanh.pop %v4725
        %v4734 = vadd.f32 %v4726, 1.0
        %v4735 = vadd.f32 %v4727, 1.0
        %v4736 = vadd.f32 %v4728, 1.0
        %v4737 = vadd.f32 %v4729, 1.0
        %v4738 = vadd.f32 %v4730, 1.0
        %v4739 = vadd.f32 %v4731, 1.0
        %v4740 = vadd.f32 %v4732, 1.0
        %v4741 = vadd.f32 %v4733, 1.0
        %v4742 = vmul.f32 %v4678, %v4734
        %v4743 = vmul.f32 %v4679, %v4735
        %v4744 = vmul.f32 %v4680, %v4736
        %v4745 = vmul.f32 %v4681, %v4737
        %v4746 = vmul.f32 %v4682, %v4738
        %v4747 = vmul.f32 %v4683, %v4739
        %v4748 = vmul.f32 %v4684, %v4740
        %v4749 = vmul.f32 %v4685, %v4741
        %s4750 = scalar_lea.vmem %s687, 512 [#allocation11]
        %v4751 = vld [vmem:[%s4750] sm:$0xf]
        %v4752 = vld [vmem:[%s4750 + $0x4] sm:$0xf]
        %v4753 = vld [vmem:[%s4750 + $0x8] sm:$0xf]
        %v4754 = vld [vmem:[%s4750 + $0xc] sm:$0xf]
        %v4755 = vld [vmem:[%s4750 + $0x10] sm:$0xf]
        %v4756 = vld [vmem:[%s4750 + $0x14] sm:$0xf]
        %v4757 = vld [vmem:[%s4750 + $0x18] sm:$0xf]
        %v4758 = vld [vmem:[%s4750 + $0x1c] sm:$0xf]
        %v4759 = vld [vmem:[%s4750 + $0x20] sm:$0xf]
        %v4760 = vld [vmem:[%s4750 + $0x24] sm:$0xf]
        %v4761 = vld [vmem:[%s4750 + $0x28] sm:$0xf]
        %v4762 = vld [vmem:[%s4750 + $0x2c] sm:$0xf]
        %v4763 = vld [vmem:[%s4750 + $0x30] sm:$0xf]
        %v4764 = vld [vmem:[%s4750 + $0x34] sm:$0xf]
        %v4765 = vld [vmem:[%s4750 + $0x38] sm:$0xf]
        %v4766 = vld [vmem:[%s4750 + $0x3c] sm:$0xf]
        %v4767 = vld [vmem:[%s4750 + $0x40] sm:$0xf]
        %v4768 = vld [vmem:[%s4750 + $0x44] sm:$0xf]
        %v4769 = vld [vmem:[%s4750 + $0x48] sm:$0xf]
        %v4770 = vld [vmem:[%s4750 + $0x4c] sm:$0xf]
        %v4771 = vld [vmem:[%s4750 + $0x50] sm:$0xf]
        %v4772 = vld [vmem:[%s4750 + $0x54] sm:$0xf]
        %v4773 = vld [vmem:[%s4750 + $0x58] sm:$0xf]
        %v4774 = vld [vmem:[%s4750 + $0x5c] sm:$0xf]
        %v4775 = vld [vmem:[%s4750 + $0x60] sm:$0xf]
        %v4776 = vld [vmem:[%s4750 + $0x64] sm:$0xf]
        %v4777 = vld [vmem:[%s4750 + $0x68] sm:$0xf]
        %v4778 = vld [vmem:[%s4750 + $0x6c] sm:$0xf]
        %v4779 = vld [vmem:[%s4750 + $0x70] sm:$0xf]
        %v4780 = vld [vmem:[%s4750 + $0x74] sm:$0xf]
        %v4781 = vld [vmem:[%s4750 + $0x78] sm:$0xf]
        %v4782 = vld [vmem:[%s4750 + $0x7c] sm:$0xf]
        %v4783 = vld [vmem:[%s4750 + $0x80] sm:$0xf]
        %v4784 = vld [vmem:[%s4750 + $0x84] sm:$0xf]
        %v4785 = vld [vmem:[%s4750 + $0x88] sm:$0xf]
        %v4786 = vld [vmem:[%s4750 + $0x8c] sm:$0xf]
        %v4787 = vld [vmem:[%s4750 + $0x90] sm:$0xf]
        %v4788 = vld [vmem:[%s4750 + $0x94] sm:$0xf]
        %v4789 = vld [vmem:[%s4750 + $0x98] sm:$0xf]
        %v4790 = vld [vmem:[%s4750 + $0x9c] sm:$0xf]
        %v4791 = vld [vmem:[%s4750 + $0xa0] sm:$0xf]
        %v4792 = vld [vmem:[%s4750 + $0xa4] sm:$0xf]
        %v4793 = vld [vmem:[%s4750 + $0xa8] sm:$0xf]
        %v4794 = vld [vmem:[%s4750 + $0xac] sm:$0xf]
        %v4795 = vld [vmem:[%s4750 + $0xb0] sm:$0xf]
        %v4796 = vld [vmem:[%s4750 + $0xb4] sm:$0xf]
        %v4797 = vld [vmem:[%s4750 + $0xb8] sm:$0xf]
        %v4798 = vld [vmem:[%s4750 + $0xbc] sm:$0xf]
        %v4799 = vld [vmem:[%s4750 + $0xc0] sm:$0xf]
        %v4800 = vld [vmem:[%s4750 + $0xc4] sm:$0xf]
        %v4801 = vld [vmem:[%s4750 + $0xc8] sm:$0xf]
        %v4802 = vld [vmem:[%s4750 + $0xcc] sm:$0xf]
        %v4803 = vld [vmem:[%s4750 + $0xd0] sm:$0xf]
        %v4804 = vld [vmem:[%s4750 + $0xd4] sm:$0xf]
        %v4805 = vld [vmem:[%s4750 + $0xd8] sm:$0xf]
        %v4806 = vld [vmem:[%s4750 + $0xdc] sm:$0xf]
        %v4807 = vld [vmem:[%s4750 + $0xe0] sm:$0xf]
        %v4808 = vld [vmem:[%s4750 + $0xe4] sm:$0xf]
        %v4809 = vld [vmem:[%s4750 + $0xe8] sm:$0xf]
        %v4810 = vld [vmem:[%s4750 + $0xec] sm:$0xf]
        %v4811 = vld [vmem:[%s4750 + $0xf0] sm:$0xf]
        %v4812 = vld [vmem:[%s4750 + $0xf4] sm:$0xf]
        %v4813 = vld [vmem:[%s4750 + $0xf8] sm:$0xf]
        %v4814 = vld [vmem:[%s4750 + $0xfc] sm:$0xf]
        %v4815 = vpack.c.bf16 %v4746, %v4742
        %v4816 = vpack.c.bf16 %v4747, %v4743
        %v4817 = vpack.c.bf16 %v4748, %v4744
        %v4818 = vpack.c.bf16 %v4749, %v4745
        %v4883 = vunpack.c.l.b16 %v4751
        %v4884 = vunpack.c.l.b16 %v4752
        %v4885 = vunpack.c.l.b16 %v4753
        %v4886 = vunpack.c.l.b16 %v4754
        %v4887 = vunpack.c.l.b16 %v4755
        %v4888 = vunpack.c.l.b16 %v4756
        %v4889 = vunpack.c.l.b16 %v4757
        %v4890 = vunpack.c.l.b16 %v4758
        %v4891 = vunpack.c.l.b16 %v4759
        %v4892 = vunpack.c.l.b16 %v4760
        %v4893 = vunpack.c.l.b16 %v4761
        %v4894 = vunpack.c.l.b16 %v4762
        %v4895 = vunpack.c.l.b16 %v4763
        %v4896 = vunpack.c.l.b16 %v4764
        %v4897 = vunpack.c.l.b16 %v4765
        %v4898 = vunpack.c.l.b16 %v4766
        %v4899 = vunpack.c.l.b16 %v4767
        %v4900 = vunpack.c.l.b16 %v4768
        %v4901 = vunpack.c.l.b16 %v4769
        %v4902 = vunpack.c.l.b16 %v4770
        %v4903 = vunpack.c.l.b16 %v4771
        %v4904 = vunpack.c.l.b16 %v4772
        %v4905 = vunpack.c.l.b16 %v4773
        %v4906 = vunpack.c.l.b16 %v4774
        %v4907 = vunpack.c.l.b16 %v4775
        %v4908 = vunpack.c.l.b16 %v4776
        %v4909 = vunpack.c.l.b16 %v4777
        %v4910 = vunpack.c.l.b16 %v4778
        %v4911 = vunpack.c.l.b16 %v4779
        %v4912 = vunpack.c.l.b16 %v4780
        %v4913 = vunpack.c.l.b16 %v4781
        %v4914 = vunpack.c.l.b16 %v4782
        %v4915 = vunpack.c.l.b16 %v4783
        %v4916 = vunpack.c.l.b16 %v4784
        %v4917 = vunpack.c.l.b16 %v4785
        %v4918 = vunpack.c.l.b16 %v4786
        %v4919 = vunpack.c.l.b16 %v4787
        %v4920 = vunpack.c.l.b16 %v4788
        %v4921 = vunpack.c.l.b16 %v4789
        %v4922 = vunpack.c.l.b16 %v4790
        %v4923 = vunpack.c.l.b16 %v4791
        %v4924 = vunpack.c.l.b16 %v4792
        %v4925 = vunpack.c.l.b16 %v4793
        %v4926 = vunpack.c.l.b16 %v4794
        %v4927 = vunpack.c.l.b16 %v4795
        %v4928 = vunpack.c.l.b16 %v4796
        %v4929 = vunpack.c.l.b16 %v4797
        %v4930 = vunpack.c.l.b16 %v4798
        %v4931 = vunpack.c.l.b16 %v4799
        %v4932 = vunpack.c.l.b16 %v4800
        %v4933 = vunpack.c.l.b16 %v4801
        %v4934 = vunpack.c.l.b16 %v4802
        %v4935 = vunpack.c.l.b16 %v4803
        %v4936 = vunpack.c.l.b16 %v4804
        %v4937 = vunpack.c.l.b16 %v4805
        %v4938 = vunpack.c.l.b16 %v4806
        %v4939 = vunpack.c.l.b16 %v4807
        %v4940 = vunpack.c.l.b16 %v4808
        %v4941 = vunpack.c.l.b16 %v4809
        %v4942 = vunpack.c.l.b16 %v4810
        %v4943 = vunpack.c.l.b16 %v4811
        %v4944 = vunpack.c.l.b16 %v4812
        %v4945 = vunpack.c.l.b16 %v4813
        %v4946 = vunpack.c.l.b16 %v4814
        %v4947 = vpack.c.b16 %v4884, %v4883
        %v4948 = vpack.c.b16 %v4886, %v4885
        %v4949 = vpack.c.b16 %v4888, %v4887
        %v4950 = vpack.c.b16 %v4890, %v4889
        %v4951 = vpack.c.b16 %v4892, %v4891
        %v4952 = vpack.c.b16 %v4894, %v4893
        %v4953 = vpack.c.b16 %v4896, %v4895
        %v4954 = vpack.c.b16 %v4898, %v4897
        %v4955 = vpack.c.b16 %v4900, %v4899
        %v4956 = vpack.c.b16 %v4902, %v4901
        %v4957 = vpack.c.b16 %v4904, %v4903
        %v4958 = vpack.c.b16 %v4906, %v4905
        %v4959 = vpack.c.b16 %v4908, %v4907
        %v4960 = vpack.c.b16 %v4910, %v4909
        %v4961 = vpack.c.b16 %v4912, %v4911
        %v4962 = vpack.c.b16 %v4914, %v4913
        %v4963 = vpack.c.b16 %v4916, %v4915
        %v4964 = vpack.c.b16 %v4918, %v4917
        %v4965 = vpack.c.b16 %v4920, %v4919
        %v4966 = vpack.c.b16 %v4922, %v4921
        %v4967 = vpack.c.b16 %v4924, %v4923
        %v4968 = vpack.c.b16 %v4926, %v4925
        %v4969 = vpack.c.b16 %v4928, %v4927
        %v4970 = vpack.c.b16 %v4930, %v4929
        %v4971 = vpack.c.b16 %v4932, %v4931
        %v4972 = vpack.c.b16 %v4934, %v4933
        %v4973 = vpack.c.b16 %v4936, %v4935
        %v4974 = vpack.c.b16 %v4938, %v4937
        %v4975 = vpack.c.b16 %v4940, %v4939
        %v4976 = vpack.c.b16 %v4942, %v4941
        %v4977 = vpack.c.b16 %v4944, %v4943
        %v4978 = vpack.c.b16 %v4946, %v4945
        %5011 = vmatpush.bf16.msra.mxu0 %v4954
        %5012 = vmatpush.bf16.msra.mxu0 %v4953
        %5013 = vmatpush.bf16.msra.mxu0 %v4952
        %5014 = vmatpush.bf16.msra.mxu0 %v4951
        %5015 = vmatpush.bf16.msra.mxu0 %v4950
        %5016 = vmatpush.bf16.msra.mxu0 %v4949
        %5017 = vmatpush.bf16.msra.mxu0 %v4948
        %5018 = vmatpush.bf16.msra.mxu0 %v4947
        %5019 = vmatmul.bf16.gmra.mxu0 %v4815
        %v5020 = vpop.f32.mrf.mxu0
        %v5021 = vadd.f32 %v4422, %v5020
        %v5022 = vpop.f32.mrf.mxu0
        %v5023 = vadd.f32 %v4423, %v5022
        %5024 = vdwg.mxu0
        %5025 = vmatpush.bf16.msra.mxu0 %v4962
        %5026 = vmatpush.bf16.msra.mxu0 %v4961
        %5027 = vmatpush.bf16.msra.mxu0 %v4960
        %5028 = vmatpush.bf16.msra.mxu0 %v4959
        %5029 = vmatpush.bf16.msra.mxu0 %v4958
        %5030 = vmatpush.bf16.msra.mxu0 %v4957
        %5031 = vmatpush.bf16.msra.mxu0 %v4956
        %5032 = vmatpush.bf16.msra.mxu0 %v4955
        %5033 = vmatmul.bf16.gmra.mxu0 %v4816
        %v5034 = vpop.f32.mrf.mxu0
        %v5035 = vadd.f32 %v5021, %v5034
        %v5036 = vpop.f32.mrf.mxu0
        %v5037 = vadd.f32 %v5023, %v5036
        %5038 = vdwg.mxu0
        %5039 = vmatpush.bf16.msra.mxu0 %v4970
        %5040 = vmatpush.bf16.msra.mxu0 %v4969
        %5041 = vmatpush.bf16.msra.mxu0 %v4968
        %5042 = vmatpush.bf16.msra.mxu0 %v4967
        %5043 = vmatpush.bf16.msra.mxu0 %v4966
        %5044 = vmatpush.bf16.msra.mxu0 %v4965
        %5045 = vmatpush.bf16.msra.mxu0 %v4964
        %5046 = vmatpush.bf16.msra.mxu0 %v4963
        %5047 = vmatmul.bf16.gmra.mxu0 %v4817
        %v5048 = vpop.f32.mrf.mxu0
        %v5049 = vadd.f32 %v5035, %v5048
        %v5050 = vpop.f32.mrf.mxu0
        %v5051 = vadd.f32 %v5037, %v5050
        %5052 = vdwg.mxu0
        %5053 = vmatpush.bf16.msra.mxu0 %v4978
        %5054 = vmatpush.bf16.msra.mxu0 %v4977
        %5055 = vmatpush.bf16.msra.mxu0 %v4976
        %5056 = vmatpush.bf16.msra.mxu0 %v4975
        %5057 = vmatpush.bf16.msra.mxu0 %v4974
        %5058 = vmatpush.bf16.msra.mxu0 %v4973
        %5059 = vmatpush.bf16.msra.mxu0 %v4972
        %5060 = vmatpush.bf16.msra.mxu0 %v4971
        %5061 = vmatmul.bf16.gmra.mxu0 %v4818
        %v5062 = vpop.f32.mrf.mxu0
        %v5063 = vadd.f32 %v5049, %v5062
        %v5064 = vpop.f32.mrf.mxu0
        %v5065 = vadd.f32 %v5051, %v5064
        %5066 = vdwg.mxu0
        %v5067 = vperm.slane %v1645, 3
        %v5068 = vmul.f32 %v5063, %v5067
        %v5069 = vmul.f32 %v5065, %v5067
        %v5070 = vperm.slane %v1645, 7
        %v5071 = vadd.f32 %v5068, %v5070
        %v5072 = vadd.f32 %v5069, %v5070
        %s5073 = scalar_lea.vmem %s677, 768 [#allocation10]
        %v5074 = vld [vmem:[%s5073] sm:$0xff]
        %v5075 = vld [vmem:[%s5073 + $0x8] sm:$0xff]
        %v5076 = vld [vmem:[%s5073 + $0x10] sm:$0xff]
        %v5077 = vld [vmem:[%s5073 + $0x18] sm:$0xff]
        %v5078 = vld [vmem:[%s5073 + $0x20] sm:$0xff]
        %v5079 = vld [vmem:[%s5073 + $0x28] sm:$0xff]
        %v5080 = vld [vmem:[%s5073 + $0x30] sm:$0xff]
        %v5081 = vld [vmem:[%s5073 + $0x38] sm:$0xff]
        %v5082 = vld [vmem:[%s5073 + $0x40] sm:$0xff]
        %v5083 = vld [vmem:[%s5073 + $0x48] sm:$0xff]
        %v5084 = vld [vmem:[%s5073 + $0x50] sm:$0xff]
        %v5085 = vld [vmem:[%s5073 + $0x58] sm:$0xff]
        %v5086 = vld [vmem:[%s5073 + $0x60] sm:$0xff]
        %v5087 = vld [vmem:[%s5073 + $0x68] sm:$0xff]
        %v5088 = vld [vmem:[%s5073 + $0x70] sm:$0xff]
        %v5089 = vld [vmem:[%s5073 + $0x78] sm:$0xff]
        %v5090 = vld [vmem:[%s5073 + $0x80] sm:$0xff]
        %v5091 = vld [vmem:[%s5073 + $0x88] sm:$0xff]
        %v5092 = vld [vmem:[%s5073 + $0x90] sm:$0xff]
        %v5093 = vld [vmem:[%s5073 + $0x98] sm:$0xff]
        %v5094 = vld [vmem:[%s5073 + $0xa0] sm:$0xff]
        %v5095 = vld [vmem:[%s5073 + $0xa8] sm:$0xff]
        %v5096 = vld [vmem:[%s5073 + $0xb0] sm:$0xff]
        %v5097 = vld [vmem:[%s5073 + $0xb8] sm:$0xff]
        %v5098 = vld [vmem:[%s5073 + $0xc0] sm:$0xff]
        %v5099 = vld [vmem:[%s5073 + $0xc8] sm:$0xff]
        %v5100 = vld [vmem:[%s5073 + $0xd0] sm:$0xff]
        %v5101 = vld [vmem:[%s5073 + $0xd8] sm:$0xff]
        %v5102 = vld [vmem:[%s5073 + $0xe0] sm:$0xff]
        %v5103 = vld [vmem:[%s5073 + $0xe8] sm:$0xff]
        %v5104 = vld [vmem:[%s5073 + $0xf0] sm:$0xff]
        %v5105 = vld [vmem:[%s5073 + $0xf8] sm:$0xff]
        %v5106 = vpack.c.bf16 %v5072, %v5071
        %v5107 = vperm.slane %v1645, 0
        %v5108 = vperm.slane %v1646, 0
        %v5109 = vperm.slane %v1647, 0
        %v5110 = vperm.slane %v1648, 0
        %v5143 = vunpack.c.l.b16 %v5074
        %v5144 = vunpack.c.h.b16 %v5074
        %v5145 = vunpack.c.l.b16 %v5075
        %v5146 = vunpack.c.h.b16 %v5075
        %v5147 = vunpack.c.l.b16 %v5076
        %v5148 = vunpack.c.h.b16 %v5076
        %v5149 = vunpack.c.l.b16 %v5077
        %v5150 = vunpack.c.h.b16 %v5077
        %v5151 = vunpack.c.l.b16 %v5078
        %v5152 = vunpack.c.h.b16 %v5078
        %v5153 = vunpack.c.l.b16 %v5079
        %v5154 = vunpack.c.h.b16 %v5079
        %v5155 = vunpack.c.l.b16 %v5080
        %v5156 = vunpack.c.h.b16 %v5080
        %v5157 = vunpack.c.l.b16 %v5081
        %v5158 = vunpack.c.h.b16 %v5081
        %v5159 = vunpack.c.l.b16 %v5082
        %v5160 = vunpack.c.h.b16 %v5082
        %v5161 = vunpack.c.l.b16 %v5083
        %v5162 = vunpack.c.h.b16 %v5083
        %v5163 = vunpack.c.l.b16 %v5084
        %v5164 = vunpack.c.h.b16 %v5084
        %v5165 = vunpack.c.l.b16 %v5085
        %v5166 = vunpack.c.h.b16 %v5085
        %v5167 = vunpack.c.l.b16 %v5086
        %v5168 = vunpack.c.h.b16 %v5086
        %v5169 = vunpack.c.l.b16 %v5087
        %v5170 = vunpack.c.h.b16 %v5087
        %v5171 = vunpack.c.l.b16 %v5088
        %v5172 = vunpack.c.h.b16 %v5088
        %v5173 = vunpack.c.l.b16 %v5089
        %v5174 = vunpack.c.h.b16 %v5089
        %v5175 = vunpack.c.l.b16 %v5090
        %v5176 = vunpack.c.h.b16 %v5090
        %v5177 = vunpack.c.l.b16 %v5091
        %v5178 = vunpack.c.h.b16 %v5091
        %v5179 = vunpack.c.l.b16 %v5092
        %v5180 = vunpack.c.h.b16 %v5092
        %v5181 = vunpack.c.l.b16 %v5093
        %v5182 = vunpack.c.h.b16 %v5093
        %v5183 = vunpack.c.l.b16 %v5094
        %v5184 = vunpack.c.h.b16 %v5094
        %v5185 = vunpack.c.l.b16 %v5095
        %v5186 = vunpack.c.h.b16 %v5095
        %v5187 = vunpack.c.l.b16 %v5096
        %v5188 = vunpack.c.h.b16 %v5096
        %v5189 = vunpack.c.l.b16 %v5097
        %v5190 = vunpack.c.h.b16 %v5097
        %v5191 = vunpack.c.l.b16 %v5098
        %v5192 = vunpack.c.h.b16 %v5098
        %v5193 = vunpack.c.l.b16 %v5099
        %v5194 = vunpack.c.h.b16 %v5099
        %v5195 = vunpack.c.l.b16 %v5100
        %v5196 = vunpack.c.h.b16 %v5100
        %v5197 = vunpack.c.l.b16 %v5101
        %v5198 = vunpack.c.h.b16 %v5101
        %v5199 = vunpack.c.l.b16 %v5102
        %v5200 = vunpack.c.h.b16 %v5102
        %v5201 = vunpack.c.l.b16 %v5103
        %v5202 = vunpack.c.h.b16 %v5103
        %v5203 = vunpack.c.l.b16 %v5104
        %v5204 = vunpack.c.h.b16 %v5104
        %v5205 = vunpack.c.l.b16 %v5105
        %v5206 = vunpack.c.h.b16 %v5105
        %v5207 = vpack.c.b16 %v5147, %v5143
        %v5208 = vpack.c.b16 %v5148, %v5144
        %v5209 = vpack.c.b16 %v5149, %v5145
        %v5210 = vpack.c.b16 %v5150, %v5146
        %v5211 = vpack.c.b16 %v5155, %v5151
        %v5212 = vpack.c.b16 %v5156, %v5152
        %v5213 = vpack.c.b16 %v5157, %v5153
        %v5214 = vpack.c.b16 %v5158, %v5154
        %v5215 = vpack.c.b16 %v5163, %v5159
        %v5216 = vpack.c.b16 %v5164, %v5160
        %v5217 = vpack.c.b16 %v5165, %v5161
        %v5218 = vpack.c.b16 %v5166, %v5162
        %v5219 = vpack.c.b16 %v5171, %v5167
        %v5220 = vpack.c.b16 %v5172, %v5168
        %v5221 = vpack.c.b16 %v5173, %v5169
        %v5222 = vpack.c.b16 %v5174, %v5170
        %v5223 = vpack.c.b16 %v5179, %v5175
        %v5224 = vpack.c.b16 %v5180, %v5176
        %v5225 = vpack.c.b16 %v5181, %v5177
        %v5226 = vpack.c.b16 %v5182, %v5178
        %v5227 = vpack.c.b16 %v5187, %v5183
        %v5228 = vpack.c.b16 %v5188, %v5184
        %v5229 = vpack.c.b16 %v5189, %v5185
        %v5230 = vpack.c.b16 %v5190, %v5186
        %v5231 = vpack.c.b16 %v5195, %v5191
        %v5232 = vpack.c.b16 %v5196, %v5192
        %v5233 = vpack.c.b16 %v5197, %v5193
        %v5234 = vpack.c.b16 %v5198, %v5194
        %v5235 = vpack.c.b16 %v5203, %v5199
        %v5236 = vpack.c.b16 %v5204, %v5200
        %v5237 = vpack.c.b16 %v5205, %v5201
        %v5238 = vpack.c.b16 %v5206, %v5202
        %5271 = vmatpush.bf16.msra.mxu0 %v5235
        %5272 = vmatpush.bf16.msra.mxu0 %v5231
        %5273 = vmatpush.bf16.msra.mxu0 %v5227
        %5274 = vmatpush.bf16.msra.mxu0 %v5223
        %5275 = vmatpush.bf16.msra.mxu0 %v5219
        %5276 = vmatpush.bf16.msra.mxu0 %v5215
        %5277 = vmatpush.bf16.msra.mxu0 %v5211
        %5278 = vmatpush.bf16.msra.mxu0 %v5207
        %5279 = vmatmul.bf16.gmra.mxu0 %v5106
        %v5280 = vpop.f32.mrf.mxu0
        %v5281 = vadd.f32 %v5107, %v5280
        %v5282 = vpop.f32.mrf.mxu0
        %v5283 = vadd.f32 %v5107, %v5282
        %5284 = vdwg.mxu0
        %5285 = vmatpush.bf16.msra.mxu0 %v5236
        %5286 = vmatpush.bf16.msra.mxu0 %v5232
        %5287 = vmatpush.bf16.msra.mxu0 %v5228
        %5288 = vmatpush.bf16.msra.mxu0 %v5224
        %5289 = vmatpush.bf16.msra.mxu0 %v5220
        %5290 = vmatpush.bf16.msra.mxu0 %v5216
        %5291 = vmatpush.bf16.msra.mxu0 %v5212
        %5292 = vmatpush.bf16.msra.mxu0 %v5208
        %5293 = vmatmul.bf16.gmra.mxu0 %v5106
        %v5294 = vpop.f32.mrf.mxu0
        %v5295 = vadd.f32 %v5108, %v5294
        %v5296 = vpop.f32.mrf.mxu0
        %v5297 = vadd.f32 %v5108, %v5296
        %5298 = vdwg.mxu0
        %5299 = vmatpush.bf16.msra.mxu0 %v5237
        %5300 = vmatpush.bf16.msra.mxu0 %v5233
        %5301 = vmatpush.bf16.msra.mxu0 %v5229
        %5302 = vmatpush.bf16.msra.mxu0 %v5225
        %5303 = vmatpush.bf16.msra.mxu0 %v5221
        %5304 = vmatpush.bf16.msra.mxu0 %v5217
        %5305 = vmatpush.bf16.msra.mxu0 %v5213
        %5306 = vmatpush.bf16.msra.mxu0 %v5209
        %5307 = vmatmul.bf16.gmra.mxu0 %v5106
        %v5308 = vpop.f32.mrf.mxu0
        %v5309 = vadd.f32 %v5109, %v5308
        %v5310 = vpop.f32.mrf.mxu0
        %v5311 = vadd.f32 %v5109, %v5310
        %5312 = vdwg.mxu0
        %5313 = vmatpush.bf16.msra.mxu0 %v5238
        %5314 = vmatpush.bf16.msra.mxu0 %v5234
        %5315 = vmatpush.bf16.msra.mxu0 %v5230
        %5316 = vmatpush.bf16.msra.mxu0 %v5226
        %5317 = vmatpush.bf16.msra.mxu0 %v5222
        %5318 = vmatpush.bf16.msra.mxu0 %v5218
        %5319 = vmatpush.bf16.msra.mxu0 %v5214
        %5320 = vmatpush.bf16.msra.mxu0 %v5210
        %5321 = vmatmul.bf16.gmra.mxu0 %v5106
        %v5322 = vpop.f32.mrf.mxu0
        %v5323 = vadd.f32 %v5110, %v5322
        %v5324 = vpop.f32.mrf.mxu0
        %v5325 = vadd.f32 %v5110, %v5324
        %5326 = vdwg.mxu0
        %v5327 = vmul.f32 %v5281, 0.5
        %v5328 = vmul.f32 %v5295, 0.5
        %v5329 = vmul.f32 %v5309, 0.5
        %v5330 = vmul.f32 %v5323, 0.5
        %v5331 = vmul.f32 %v5283, 0.5
        %v5332 = vmul.f32 %v5297, 0.5
        %v5333 = vmul.f32 %v5311, 0.5
        %v5334 = vmul.f32 %v5325, 0.5
        %v5335 = vmul.f32 %v5281, 0.044715
        %v5336 = vmul.f32 %v5295, 0.044715
        %v5337 = vmul.f32 %v5309, 0.044715
        %v5338 = vmul.f32 %v5323, 0.044715
        %v5339 = vmul.f32 %v5283, 0.044715
        %v5340 = vmul.f32 %v5297, 0.044715
        %v5341 = vmul.f32 %v5311, 0.044715
        %v5342 = vmul.f32 %v5325, 0.044715
        %v5343 = vmul.f32 %v5335, %v5281
        %v5344 = vmul.f32 %v5336, %v5295
        %v5345 = vmul.f32 %v5337, %v5309
        %v5346 = vmul.f32 %v5338, %v5323
        %v5347 = vmul.f32 %v5339, %v5283
        %v5348 = vmul.f32 %v5340, %v5297
        %v5349 = vmul.f32 %v5341, %v5311
        %v5350 = vmul.f32 %v5342, %v5325
        %v5351 = vmul.f32 %v5343, %v5281
        %v5352 = vmul.f32 %v5344, %v5295
        %v5353 = vmul.f32 %v5345, %v5309
        %v5354 = vmul.f32 %v5346, %v5323
        %v5355 = vmul.f32 %v5347, %v5283
        %v5356 = vmul.f32 %v5348, %v5297
        %v5357 = vmul.f32 %v5349, %v5311
        %v5358 = vmul.f32 %v5350, %v5325
        %v5359 = vadd.f32 %v5281, %v5351
        %v5360 = vadd.f32 %v5295, %v5352
        %v5361 = vadd.f32 %v5309, %v5353
        %v5362 = vadd.f32 %v5323, %v5354
        %v5363 = vadd.f32 %v5283, %v5355
        %v5364 = vadd.f32 %v5297, %v5356
        %v5365 = vadd.f32 %v5311, %v5357
        %v5366 = vadd.f32 %v5325, %v5358
        %v5367 = vmul.f32 %v5359, 0.7978846
        %v5368 = vmul.f32 %v5360, 0.7978846
        %v5369 = vmul.f32 %v5361, 0.7978846
        %v5370 = vmul.f32 %v5362, 0.7978846
        %v5371 = vmul.f32 %v5363, 0.7978846
        %v5372 = vmul.f32 %v5364, 0.7978846
        %v5373 = vmul.f32 %v5365, 0.7978846
        %v5374 = vmul.f32 %v5366, 0.7978846
        %v5375 = vtanh.pop %v5367
        %v5376 = vtanh.pop %v5368
        %v5377 = vtanh.pop %v5369
        %v5378 = vtanh.pop %v5370
        %v5379 = vtanh.pop %v5371
        %v5380 = vtanh.pop %v5372
        %v5381 = vtanh.pop %v5373
        %v5382 = vtanh.pop %v5374
        %v5383 = vadd.f32 %v5375, 1.0
        %v5384 = vadd.f32 %v5376, 1.0
        %v5385 = vadd.f32 %v5377, 1.0
        %v5386 = vadd.f32 %v5378, 1.0
        %v5387 = vadd.f32 %v5379, 1.0
        %v5388 = vadd.f32 %v5380, 1.0
        %v5389 = vadd.f32 %v5381, 1.0
        %v5390 = vadd.f32 %v5382, 1.0
        %v5391 = vmul.f32 %v5327, %v5383
        %v5392 = vmul.f32 %v5328, %v5384
        %v5393 = vmul.f32 %v5329, %v5385
        %v5394 = vmul.f32 %v5330, %v5386
        %v5395 = vmul.f32 %v5331, %v5387
        %v5396 = vmul.f32 %v5332, %v5388
        %v5397 = vmul.f32 %v5333, %v5389
        %v5398 = vmul.f32 %v5334, %v5390
        %s5399 = scalar_lea.vmem %s687, 768 [#allocation11]
        %v5400 = vld [vmem:[%s5399] sm:$0xf]
        %v5401 = vld [vmem:[%s5399 + $0x4] sm:$0xf]
        %v5402 = vld [vmem:[%s5399 + $0x8] sm:$0xf]
        %v5403 = vld [vmem:[%s5399 + $0xc] sm:$0xf]
        %v5404 = vld [vmem:[%s5399 + $0x10] sm:$0xf]
        %v5405 = vld [vmem:[%s5399 + $0x14] sm:$0xf]
        %v5406 = vld [vmem:[%s5399 + $0x18] sm:$0xf]
        %v5407 = vld [vmem:[%s5399 + $0x1c] sm:$0xf]
        %v5408 = vld [vmem:[%s5399 + $0x20] sm:$0xf]
        %v5409 = vld [vmem:[%s5399 + $0x24] sm:$0xf]
        %v5410 = vld [vmem:[%s5399 + $0x28] sm:$0xf]
        %v5411 = vld [vmem:[%s5399 + $0x2c] sm:$0xf]
        %v5412 = vld [vmem:[%s5399 + $0x30] sm:$0xf]
        %v5413 = vld [vmem:[%s5399 + $0x34] sm:$0xf]
        %v5414 = vld [vmem:[%s5399 + $0x38] sm:$0xf]
        %v5415 = vld [vmem:[%s5399 + $0x3c] sm:$0xf]
        %v5416 = vld [vmem:[%s5399 + $0x40] sm:$0xf]
        %v5417 = vld [vmem:[%s5399 + $0x44] sm:$0xf]
        %v5418 = vld [vmem:[%s5399 + $0x48] sm:$0xf]
        %v5419 = vld [vmem:[%s5399 + $0x4c] sm:$0xf]
        %v5420 = vld [vmem:[%s5399 + $0x50] sm:$0xf]
        %v5421 = vld [vmem:[%s5399 + $0x54] sm:$0xf]
        %v5422 = vld [vmem:[%s5399 + $0x58] sm:$0xf]
        %v5423 = vld [vmem:[%s5399 + $0x5c] sm:$0xf]
        %v5424 = vld [vmem:[%s5399 + $0x60] sm:$0xf]
        %v5425 = vld [vmem:[%s5399 + $0x64] sm:$0xf]
        %v5426 = vld [vmem:[%s5399 + $0x68] sm:$0xf]
        %v5427 = vld [vmem:[%s5399 + $0x6c] sm:$0xf]
        %v5428 = vld [vmem:[%s5399 + $0x70] sm:$0xf]
        %v5429 = vld [vmem:[%s5399 + $0x74] sm:$0xf]
        %v5430 = vld [vmem:[%s5399 + $0x78] sm:$0xf]
        %v5431 = vld [vmem:[%s5399 + $0x7c] sm:$0xf]
        %v5432 = vld [vmem:[%s5399 + $0x80] sm:$0xf]
        %v5433 = vld [vmem:[%s5399 + $0x84] sm:$0xf]
        %v5434 = vld [vmem:[%s5399 + $0x88] sm:$0xf]
        %v5435 = vld [vmem:[%s5399 + $0x8c] sm:$0xf]
        %v5436 = vld [vmem:[%s5399 + $0x90] sm:$0xf]
        %v5437 = vld [vmem:[%s5399 + $0x94] sm:$0xf]
        %v5438 = vld [vmem:[%s5399 + $0x98] sm:$0xf]
        %v5439 = vld [vmem:[%s5399 + $0x9c] sm:$0xf]
        %v5440 = vld [vmem:[%s5399 + $0xa0] sm:$0xf]
        %v5441 = vld [vmem:[%s5399 + $0xa4] sm:$0xf]
        %v5442 = vld [vmem:[%s5399 + $0xa8] sm:$0xf]
        %v5443 = vld [vmem:[%s5399 + $0xac] sm:$0xf]
        %v5444 = vld [vmem:[%s5399 + $0xb0] sm:$0xf]
        %v5445 = vld [vmem:[%s5399 + $0xb4] sm:$0xf]
        %v5446 = vld [vmem:[%s5399 + $0xb8] sm:$0xf]
        %v5447 = vld [vmem:[%s5399 + $0xbc] sm:$0xf]
        %v5448 = vld [vmem:[%s5399 + $0xc0] sm:$0xf]
        %v5449 = vld [vmem:[%s5399 + $0xc4] sm:$0xf]
        %v5450 = vld [vmem:[%s5399 + $0xc8] sm:$0xf]
        %v5451 = vld [vmem:[%s5399 + $0xcc] sm:$0xf]
        %v5452 = vld [vmem:[%s5399 + $0xd0] sm:$0xf]
        %v5453 = vld [vmem:[%s5399 + $0xd4] sm:$0xf]
        %v5454 = vld [vmem:[%s5399 + $0xd8] sm:$0xf]
        %v5455 = vld [vmem:[%s5399 + $0xdc] sm:$0xf]
        %v5456 = vld [vmem:[%s5399 + $0xe0] sm:$0xf]
        %v5457 = vld [vmem:[%s5399 + $0xe4] sm:$0xf]
        %v5458 = vld [vmem:[%s5399 + $0xe8] sm:$0xf]
        %v5459 = vld [vmem:[%s5399 + $0xec] sm:$0xf]
        %v5460 = vld [vmem:[%s5399 + $0xf0] sm:$0xf]
        %v5461 = vld [vmem:[%s5399 + $0xf4] sm:$0xf]
        %v5462 = vld [vmem:[%s5399 + $0xf8] sm:$0xf]
        %v5463 = vld [vmem:[%s5399 + $0xfc] sm:$0xf]
        %v5464 = vpack.c.bf16 %v5395, %v5391
        %v5465 = vpack.c.bf16 %v5396, %v5392
        %v5466 = vpack.c.bf16 %v5397, %v5393
        %v5467 = vpack.c.bf16 %v5398, %v5394
        %v5532 = vunpack.c.l.b16 %v5400
        %v5533 = vunpack.c.l.b16 %v5401
        %v5534 = vunpack.c.l.b16 %v5402
        %v5535 = vunpack.c.l.b16 %v5403
        %v5536 = vunpack.c.l.b16 %v5404
        %v5537 = vunpack.c.l.b16 %v5405
        %v5538 = vunpack.c.l.b16 %v5406
        %v5539 = vunpack.c.l.b16 %v5407
        %v5540 = vunpack.c.l.b16 %v5408
        %v5541 = vunpack.c.l.b16 %v5409
        %v5542 = vunpack.c.l.b16 %v5410
        %v5543 = vunpack.c.l.b16 %v5411
        %v5544 = vunpack.c.l.b16 %v5412
        %v5545 = vunpack.c.l.b16 %v5413
        %v5546 = vunpack.c.l.b16 %v5414
        %v5547 = vunpack.c.l.b16 %v5415
        %v5548 = vunpack.c.l.b16 %v5416
        %v5549 = vunpack.c.l.b16 %v5417
        %v5550 = vunpack.c.l.b16 %v5418
        %v5551 = vunpack.c.l.b16 %v5419
        %v5552 = vunpack.c.l.b16 %v5420
        %v5553 = vunpack.c.l.b16 %v5421
        %v5554 = vunpack.c.l.b16 %v5422
        %v5555 = vunpack.c.l.b16 %v5423
        %v5556 = vunpack.c.l.b16 %v5424
        %v5557 = vunpack.c.l.b16 %v5425
        %v5558 = vunpack.c.l.b16 %v5426
        %v5559 = vunpack.c.l.b16 %v5427
        %v5560 = vunpack.c.l.b16 %v5428
        %v5561 = vunpack.c.l.b16 %v5429
        %v5562 = vunpack.c.l.b16 %v5430
        %v5563 = vunpack.c.l.b16 %v5431
        %v5564 = vunpack.c.l.b16 %v5432
        %v5565 = vunpack.c.l.b16 %v5433
        %v5566 = vunpack.c.l.b16 %v5434
        %v5567 = vunpack.c.l.b16 %v5435
        %v5568 = vunpack.c.l.b16 %v5436
        %v5569 = vunpack.c.l.b16 %v5437
        %v5570 = vunpack.c.l.b16 %v5438
        %v5571 = vunpack.c.l.b16 %v5439
        %v5572 = vunpack.c.l.b16 %v5440
        %v5573 = vunpack.c.l.b16 %v5441
        %v5574 = vunpack.c.l.b16 %v5442
        %v5575 = vunpack.c.l.b16 %v5443
        %v5576 = vunpack.c.l.b16 %v5444
        %v5577 = vunpack.c.l.b16 %v5445
        %v5578 = vunpack.c.l.b16 %v5446
        %v5579 = vunpack.c.l.b16 %v5447
        %v5580 = vunpack.c.l.b16 %v5448
        %v5581 = vunpack.c.l.b16 %v5449
        %v5582 = vunpack.c.l.b16 %v5450
        %v5583 = vunpack.c.l.b16 %v5451
        %v5584 = vunpack.c.l.b16 %v5452
        %v5585 = vunpack.c.l.b16 %v5453
        %v5586 = vunpack.c.l.b16 %v5454
        %v5587 = vunpack.c.l.b16 %v5455
        %v5588 = vunpack.c.l.b16 %v5456
        %v5589 = vunpack.c.l.b16 %v5457
        %v5590 = vunpack.c.l.b16 %v5458
        %v5591 = vunpack.c.l.b16 %v5459
        %v5592 = vunpack.c.l.b16 %v5460
        %v5593 = vunpack.c.l.b16 %v5461
        %v5594 = vunpack.c.l.b16 %v5462
        %v5595 = vunpack.c.l.b16 %v5463
        %v5596 = vpack.c.b16 %v5533, %v5532
        %v5597 = vpack.c.b16 %v5535, %v5534
        %v5598 = vpack.c.b16 %v5537, %v5536
        %v5599 = vpack.c.b16 %v5539, %v5538
        %v5600 = vpack.c.b16 %v5541, %v5540
        %v5601 = vpack.c.b16 %v5543, %v5542
        %v5602 = vpack.c.b16 %v5545, %v5544
        %v5603 = vpack.c.b16 %v5547, %v5546
        %v5604 = vpack.c.b16 %v5549, %v5548
        %v5605 = vpack.c.b16 %v5551, %v5550
        %v5606 = vpack.c.b16 %v5553, %v5552
        %v5607 = vpack.c.b16 %v5555, %v5554
        %v5608 = vpack.c.b16 %v5557, %v5556
        %v5609 = vpack.c.b16 %v5559, %v5558
        %v5610 = vpack.c.b16 %v5561, %v5560
        %v5611 = vpack.c.b16 %v5563, %v5562
        %v5612 = vpack.c.b16 %v5565, %v5564
        %v5613 = vpack.c.b16 %v5567, %v5566
        %v5614 = vpack.c.b16 %v5569, %v5568
        %v5615 = vpack.c.b16 %v5571, %v5570
        %v5616 = vpack.c.b16 %v5573, %v5572
        %v5617 = vpack.c.b16 %v5575, %v5574
        %v5618 = vpack.c.b16 %v5577, %v5576
        %v5619 = vpack.c.b16 %v5579, %v5578
        %v5620 = vpack.c.b16 %v5581, %v5580
        %v5621 = vpack.c.b16 %v5583, %v5582
        %v5622 = vpack.c.b16 %v5585, %v5584
        %v5623 = vpack.c.b16 %v5587, %v5586
        %v5624 = vpack.c.b16 %v5589, %v5588
        %v5625 = vpack.c.b16 %v5591, %v5590
        %v5626 = vpack.c.b16 %v5593, %v5592
        %v5627 = vpack.c.b16 %v5595, %v5594
        %5660 = vmatpush.bf16.msra.mxu0 %v5603
        %5661 = vmatpush.bf16.msra.mxu0 %v5602
        %5662 = vmatpush.bf16.msra.mxu0 %v5601
        %5663 = vmatpush.bf16.msra.mxu0 %v5600
        %5664 = vmatpush.bf16.msra.mxu0 %v5599
        %5665 = vmatpush.bf16.msra.mxu0 %v5598
        %5666 = vmatpush.bf16.msra.mxu0 %v5597
        %5667 = vmatpush.bf16.msra.mxu0 %v5596
        %5668 = vmatmul.bf16.gmra.mxu0 %v5464
        %v5669 = vpop.f32.mrf.mxu0
        %v5670 = vadd.f32 %v5071, %v5669
        %v5671 = vpop.f32.mrf.mxu0
        %v5672 = vadd.f32 %v5072, %v5671
        %5673 = vdwg.mxu0
        %5674 = vmatpush.bf16.msra.mxu0 %v5611
        %5675 = vmatpush.bf16.msra.mxu0 %v5610
        %5676 = vmatpush.bf16.msra.mxu0 %v5609
        %5677 = vmatpush.bf16.msra.mxu0 %v5608
        %5678 = vmatpush.bf16.msra.mxu0 %v5607
        %5679 = vmatpush.bf16.msra.mxu0 %v5606
        %5680 = vmatpush.bf16.msra.mxu0 %v5605
        %5681 = vmatpush.bf16.msra.mxu0 %v5604
        %5682 = vmatmul.bf16.gmra.mxu0 %v5465
        %v5683 = vpop.f32.mrf.mxu0
        %v5684 = vadd.f32 %v5670, %v5683
        %v5685 = vpop.f32.mrf.mxu0
        %v5686 = vadd.f32 %v5672, %v5685
        %5687 = vdwg.mxu0
        %5688 = vmatpush.bf16.msra.mxu0 %v5619
        %5689 = vmatpush.bf16.msra.mxu0 %v5618
        %5690 = vmatpush.bf16.msra.mxu0 %v5617
        %5691 = vmatpush.bf16.msra.mxu0 %v5616
        %5692 = vmatpush.bf16.msra.mxu0 %v5615
        %5693 = vmatpush.bf16.msra.mxu0 %v5614
        %5694 = vmatpush.bf16.msra.mxu0 %v5613
        %5695 = vmatpush.bf16.msra.mxu0 %v5612
        %5696 = vmatmul.bf16.gmra.mxu0 %v5466
        %v5697 = vpop.f32.mrf.mxu0
        %v5698 = vadd.f32 %v5684, %v5697
        %v5699 = vpop.f32.mrf.mxu0
        %v5700 = vadd.f32 %v5686, %v5699
        %5701 = vdwg.mxu0
        %5702 = vmatpush.bf16.msra.mxu0 %v5627
        %5703 = vmatpush.bf16.msra.mxu0 %v5626
        %5704 = vmatpush.bf16.msra.mxu0 %v5625
        %5705 = vmatpush.bf16.msra.mxu0 %v5624
        %5706 = vmatpush.bf16.msra.mxu0 %v5623
        %5707 = vmatpush.bf16.msra.mxu0 %v5622
        %5708 = vmatpush.bf16.msra.mxu0 %v5621
        %5709 = vmatpush.bf16.msra.mxu0 %v5620
        %5710 = vmatmul.bf16.gmra.mxu0 %v5467
        %v5711 = vpop.f32.mrf.mxu0
        %v5712 = vadd.f32 %v5698, %v5711
        %v5713 = vpop.f32.mrf.mxu0
        %v5714 = vadd.f32 %v5700, %v5713
        %5715 = vdwg.mxu0
        %v5716 = vperm.slane %v1645, 4
        %v5717 = vmul.f32 %v5712, %v5716
        %v5718 = vmul.f32 %v5714, %v5716
        %v5719 = vperm.slane %v1649, 0
        %v5720 = vadd.f32 %v5717, %v5719
        %v5721 = vadd.f32 %v5718, %v5719
        %v5722 = vld [vmem:[%s823] sm:$0xff]
        %v5723 = vld [vmem:[%s823 + $0x8] sm:$0xff]
        %v5724 = vld [vmem:[%s823 + $0x10] sm:$0xff]
        %v5725 = vld [vmem:[%s823 + $0x18] sm:$0xff]
        %v5726 = vld [vmem:[%s823 + $0x20] sm:$0xff]
        %v5727 = vld [vmem:[%s823 + $0x28] sm:$0xff]
        %v5728 = vld [vmem:[%s823 + $0x30] sm:$0xff]
        %v5729 = vld [vmem:[%s823 + $0x38] sm:$0xff]
        %v5730 = vld [vmem:[%s823 + $0x40] sm:$0xff]
        %v5731 = vld [vmem:[%s823 + $0x48] sm:$0xff]
        %v5732 = vld [vmem:[%s823 + $0x50] sm:$0xff]
        %v5733 = vld [vmem:[%s823 + $0x58] sm:$0xff]
        %v5734 = vld [vmem:[%s823 + $0x60] sm:$0xff]
        %v5735 = vld [vmem:[%s823 + $0x68] sm:$0xff]
        %v5736 = vld [vmem:[%s823 + $0x70] sm:$0xff]
        %v5737 = vld [vmem:[%s823 + $0x78] sm:$0xff]
        %v5738 = vld [vmem:[%s823 + $0x80] sm:$0xff]
        %v5739 = vld [vmem:[%s823 + $0x88] sm:$0xff]
        %v5740 = vld [vmem:[%s823 + $0x90] sm:$0xff]
        %v5741 = vld [vmem:[%s823 + $0x98] sm:$0xff]
        %v5742 = vld [vmem:[%s823 + $0xa0] sm:$0xff]
        %v5743 = vld [vmem:[%s823 + $0xa8] sm:$0xff]
        %v5744 = vld [vmem:[%s823 + $0xb0] sm:$0xff]
        %v5745 = vld [vmem:[%s823 + $0xb8] sm:$0xff]
        %v5746 = vld [vmem:[%s823 + $0xc0] sm:$0xff]
        %v5747 = vld [vmem:[%s823 + $0xc8] sm:$0xff]
        %v5748 = vld [vmem:[%s823 + $0xd0] sm:$0xff]
        %v5749 = vld [vmem:[%s823 + $0xd8] sm:$0xff]
        %v5750 = vld [vmem:[%s823 + $0xe0] sm:$0xff]
        %v5751 = vld [vmem:[%s823 + $0xe8] sm:$0xff]
        %v5752 = vld [vmem:[%s823 + $0xf0] sm:$0xff]
        %v5753 = vld [vmem:[%s823 + $0xf8] sm:$0xff]
        %v5754 = vpack.c.bf16 %v5721, %v5720
        %v5787 = vunpack.c.l.b16 %v5722
        %v5788 = vunpack.c.h.b16 %v5722
        %v5789 = vunpack.c.l.b16 %v5723
        %v5790 = vunpack.c.h.b16 %v5723
        %v5791 = vunpack.c.l.b16 %v5724
        %v5792 = vunpack.c.h.b16 %v5724
        %v5793 = vunpack.c.l.b16 %v5725
        %v5794 = vunpack.c.h.b16 %v5725
        %v5795 = vunpack.c.l.b16 %v5726
        %v5796 = vunpack.c.h.b16 %v5726
        %v5797 = vunpack.c.l.b16 %v5727
        %v5798 = vunpack.c.h.b16 %v5727
        %v5799 = vunpack.c.l.b16 %v5728
        %v5800 = vunpack.c.h.b16 %v5728
        %v5801 = vunpack.c.l.b16 %v5729
        %v5802 = vunpack.c.h.b16 %v5729
        %v5803 = vunpack.c.l.b16 %v5730
        %v5804 = vunpack.c.h.b16 %v5730
        %v5805 = vunpack.c.l.b16 %v5731
        %v5806 = vunpack.c.h.b16 %v5731
        %v5807 = vunpack.c.l.b16 %v5732
        %v5808 = vunpack.c.h.b16 %v5732
        %v5809 = vunpack.c.l.b16 %v5733
        %v5810 = vunpack.c.h.b16 %v5733
        %v5811 = vunpack.c.l.b16 %v5734
        %v5812 = vunpack.c.h.b16 %v5734
        %v5813 = vunpack.c.l.b16 %v5735
        %v5814 = vunpack.c.h.b16 %v5735
        %v5815 = vunpack.c.l.b16 %v5736
        %v5816 = vunpack.c.h.b16 %v5736
        %v5817 = vunpack.c.l.b16 %v5737
        %v5818 = vunpack.c.h.b16 %v5737
        %v5819 = vunpack.c.l.b16 %v5738
        %v5820 = vunpack.c.h.b16 %v5738
        %v5821 = vunpack.c.l.b16 %v5739
        %v5822 = vunpack.c.h.b16 %v5739
        %v5823 = vunpack.c.l.b16 %v5740
        %v5824 = vunpack.c.h.b16 %v5740
        %v5825 = vunpack.c.l.b16 %v5741
        %v5826 = vunpack.c.h.b16 %v5741
        %v5827 = vunpack.c.l.b16 %v5742
        %v5828 = vunpack.c.h.b16 %v5742
        %v5829 = vunpack.c.l.b16 %v5743
        %v5830 = vunpack.c.h.b16 %v5743
        %v5831 = vunpack.c.l.b16 %v5744
        %v5832 = vunpack.c.h.b16 %v5744
        %v5833 = vunpack.c.l.b16 %v5745
        %v5834 = vunpack.c.h.b16 %v5745
        %v5835 = vunpack.c.l.b16 %v5746
        %v5836 = vunpack.c.h.b16 %v5746
        %v5837 = vunpack.c.l.b16 %v5747
        %v5838 = vunpack.c.h.b16 %v5747
        %v5839 = vunpack.c.l.b16 %v5748
        %v5840 = vunpack.c.h.b16 %v5748
        %v5841 = vunpack.c.l.b16 %v5749
        %v5842 = vunpack.c.h.b16 %v5749
        %v5843 = vunpack.c.l.b16 %v5750
        %v5844 = vunpack.c.h.b16 %v5750
        %v5845 = vunpack.c.l.b16 %v5751
        %v5846 = vunpack.c.h.b16 %v5751
        %v5847 = vunpack.c.l.b16 %v5752
        %v5848 = vunpack.c.h.b16 %v5752
        %v5849 = vunpack.c.l.b16 %v5753
        %v5850 = vunpack.c.h.b16 %v5753
        %v5851 = vpack.c.b16 %v5791, %v5787
        %v5852 = vpack.c.b16 %v5792, %v5788
        %v5853 = vpack.c.b16 %v5793, %v5789
        %v5854 = vpack.c.b16 %v5794, %v5790
        %v5855 = vpack.c.b16 %v5799, %v5795
        %v5856 = vpack.c.b16 %v5800, %v5796
        %v5857 = vpack.c.b16 %v5801, %v5797
        %v5858 = vpack.c.b16 %v5802, %v5798
        %v5859 = vpack.c.b16 %v5807, %v5803
        %v5860 = vpack.c.b16 %v5808, %v5804
        %v5861 = vpack.c.b16 %v5809, %v5805
        %v5862 = vpack.c.b16 %v5810, %v5806
        %v5863 = vpack.c.b16 %v5815, %v5811
        %v5864 = vpack.c.b16 %v5816, %v5812
        %v5865 = vpack.c.b16 %v5817, %v5813
        %v5866 = vpack.c.b16 %v5818, %v5814
        %v5867 = vpack.c.b16 %v5823, %v5819
        %v5868 = vpack.c.b16 %v5824, %v5820
        %v5869 = vpack.c.b16 %v5825, %v5821
        %v5870 = vpack.c.b16 %v5826, %v5822
        %v5871 = vpack.c.b16 %v5831, %v5827
        %v5872 = vpack.c.b16 %v5832, %v5828
        %v5873 = vpack.c.b16 %v5833, %v5829
        %v5874 = vpack.c.b16 %v5834, %v5830
        %v5875 = vpack.c.b16 %v5839, %v5835
        %v5876 = vpack.c.b16 %v5840, %v5836
        %v5877 = vpack.c.b16 %v5841, %v5837
        %v5878 = vpack.c.b16 %v5842, %v5838
        %v5879 = vpack.c.b16 %v5847, %v5843
        %v5880 = vpack.c.b16 %v5848, %v5844
        %v5881 = vpack.c.b16 %v5849, %v5845
        %v5882 = vpack.c.b16 %v5850, %v5846
        %5915 = vmatpush.bf16.msra.mxu0 %v5879
        %5916 = vmatpush.bf16.msra.mxu0 %v5875
        %5917 = vmatpush.bf16.msra.mxu0 %v5871
        %5918 = vmatpush.bf16.msra.mxu0 %v5867
        %5919 = vmatpush.bf16.msra.mxu0 %v5863
        %5920 = vmatpush.bf16.msra.mxu0 %v5859
        %5921 = vmatpush.bf16.msra.mxu0 %v5855
        %5922 = vmatpush.bf16.msra.mxu0 %v5851
        %5923 = vmatmul.bf16.gmra.mxu0 %v5754
        %v5924 = vpop.f32.mrf.mxu0
        %v5925 = vadd.f32 %v1633, %v5924
        %v5926 = vpop.f32.mrf.mxu0
        %v5927 = vadd.f32 %v1637, %v5926
        %5928 = vdwg.mxu0
        %5929 = vmatpush.bf16.msra.mxu0 %v5880
        %5930 = vmatpush.bf16.msra.mxu0 %v5876
        %5931 = vmatpush.bf16.msra.mxu0 %v5872
        %5932 = vmatpush.bf16.msra.mxu0 %v5868
        %5933 = vmatpush.bf16.msra.mxu0 %v5864
        %5934 = vmatpush.bf16.msra.mxu0 %v5860
        %5935 = vmatpush.bf16.msra.mxu0 %v5856
        %5936 = vmatpush.bf16.msra.mxu0 %v5852
        %5937 = vmatmul.bf16.gmra.mxu0 %v5754
        %v5938 = vpop.f32.mrf.mxu0
        %v5939 = vadd.f32 %v1634, %v5938
        %v5940 = vpop.f32.mrf.mxu0
        %v5941 = vadd.f32 %v1638, %v5940
        %5942 = vdwg.mxu0
        %5943 = vmatpush.bf16.msra.mxu0 %v5881
        %5944 = vmatpush.bf16.msra.mxu0 %v5877
        %5945 = vmatpush.bf16.msra.mxu0 %v5873
        %5946 = vmatpush.bf16.msra.mxu0 %v5869
        %5947 = vmatpush.bf16.msra.mxu0 %v5865
        %5948 = vmatpush.bf16.msra.mxu0 %v5861
        %5949 = vmatpush.bf16.msra.mxu0 %v5857
        %5950 = vmatpush.bf16.msra.mxu0 %v5853
        %5951 = vmatmul.bf16.gmra.mxu0 %v5754
        %v5952 = vpop.f32.mrf.mxu0
        %v5953 = vadd.f32 %v1635, %v5952
        %v5954 = vpop.f32.mrf.mxu0
        %v5955 = vadd.f32 %v1639, %v5954
        %5956 = vdwg.mxu0
        %5957 = vmatpush.bf16.msra.mxu0 %v5882
        %5958 = vmatpush.bf16.msra.mxu0 %v5878
        %5959 = vmatpush.bf16.msra.mxu0 %v5874
        %5960 = vmatpush.bf16.msra.mxu0 %v5870
        %5961 = vmatpush.bf16.msra.mxu0 %v5866
        %5962 = vmatpush.bf16.msra.mxu0 %v5862
        %5963 = vmatpush.bf16.msra.mxu0 %v5858
        %5964 = vmatpush.bf16.msra.mxu0 %v5854
        %5965 = vmatmul.bf16.gmra.mxu0 %v5754
        %v5966 = vpop.f32.mrf.mxu0
        %v5967 = vadd.f32 %v1636, %v5966
        %v5968 = vpop.f32.mrf.mxu0
        %v5969 = vadd.f32 %v1640, %v5968
        %5970 = vdwg.mxu0
        %v5971 = vperm.slane %v1649, 1
        %v5972 = vperm.slane %v1650, 1
        %v5973 = vperm.slane %v1651, 1
        %v5974 = vperm.slane %v1652, 1
        %v5975 = vmul.f32 %v5925, %v5971
        %v5976 = vmul.f32 %v5939, %v5972
        %v5977 = vmul.f32 %v5953, %v5973
        %v5978 = vmul.f32 %v5967, %v5974
        %v5979 = vmul.f32 %v5927, %v5971
        %v5980 = vmul.f32 %v5941, %v5972
        %v5981 = vmul.f32 %v5955, %v5973
        %v5982 = vmul.f32 %v5969, %v5974
        %v5983 = vperm.slane %v1649, 2
        %v5984 = vperm.slane %v1650, 2
        %v5985 = vperm.slane %v1651, 2
        %v5986 = vperm.slane %v1652, 2
        %v5987 = vadd.f32 %v5975, %v5983
        %v5988 = vadd.f32 %v5976, %v5984
        %v5989 = vadd.f32 %v5977, %v5985
        %v5990 = vadd.f32 %v5978, %v5986
        %v5991 = vadd.f32 %v5979, %v5983
        %v5992 = vadd.f32 %v5980, %v5984
        %v5993 = vadd.f32 %v5981, %v5985
        %v5994 = vadd.f32 %v5982, %v5986
        %5995 = vst [vmem:[#allocation2] sm:$0xff] %v5987
        %5996 = vst [vmem:[#allocation2 + $0x8] sm:$0xff] %v5988
        %5997 = vst [vmem:[#allocation2 + $0x10] sm:$0xff] %v5989
        %5998 = vst [vmem:[#allocation2 + $0x18] sm:$0xff] %v5990
        %5999 = vst [vmem:[#allocation2 + $0x20] sm:$0xff] %v5991
        %6000 = vst [vmem:[#allocation2 + $0x28] sm:$0xff] %v5992
        %6001 = vst [vmem:[#allocation2 + $0x30] sm:$0xff] %v5993
        %6002 = vst [vmem:[#allocation2 + $0x38] sm:$0xff] %v5994
        %p6003 = scmp.eq.s32.totalorder %s36, 1
        // Predicated region
        $region105: #{forward.1} parent=79 // pred_check
          %p6004 = pneg %p6003
        $region106: #{forward.1} parent=79 // pred_check_branch
          %6006 = sbr.rel (%p6004) target = $region108
        $region107: #{forward.1} parent=79 // pred_region
          %v6007 = vld [vmem:[%s7] sm:$0x1f]
          %v6008 = vld [vmem:[%s7 + $0x8] sm:$0x1f]
          %v6009 = vld [vmem:[%s7 + $0x10] sm:$0x1f]
          %v6010 = vld [vmem:[%s7 + $0x18] sm:$0x1f]
          %v6011 = vlaneseq
          %v6012 = vshrl.u32 %v6011, 7
          %v6013 = vlaneseq
          %v6014 = vand.u32 %v6013, 127
          %v6015 = vmul.u32 %v6012, 8
          %vm6016 = vcmp.eq.s32.totalorder %v6014, %v6015
          %v6017 = vsel %vm6016, 1, 0
          %v6018 = vcvt.s32.f32 %v6017
          %v6020 = vsel %vm2652, %v6018, 0
          %6022 = vmatpush.msra.mxu0 0.0
          %6023 = vmatpush.msra.mxu0 0.0
          %6024 = vmatpush.msra.mxu0 0.0
          %6025 = vmatpush.msra.mxu0 0.0
          %6026 = vmatpush.msra.mxu0 0.0
          %6027 = vmatpush.msra.mxu0 0.0
          %6028 = vmatpush.msra.mxu0 0.0
          %6029 = vmatpush.msra.mxu0 0.0
          %6030 = vmatpush.msra.mxu0 0.0
          %6031 = vmatpush.msra.mxu0 0.0
          %6032 = vmatpush.msra.mxu0 0.0
          %6033 = vmatpush.msra.mxu0 0.0
          %6034 = vmatpush.msra.mxu0 0.0
          %6035 = vmatpush.msra.mxu0 0.0
          %6036 = vmatpush.msra.mxu0 %v5991
          %6037 = vmatpush.msra.mxu0 %v5987
          %6038 = vmatmul.f32.gmra.mxu0 %v6020
          %v6039 = vpop.f32.mrf.mxu0
          %v6040 = vadd.f32 0.0, %v6039
          %6041 = vdwg.mxu0
          %6042 = vmatpush.msra.mxu0 0.0
          %6043 = vmatpush.msra.mxu0 0.0
          %6044 = vmatpush.msra.mxu0 0.0
          %6045 = vmatpush.msra.mxu0 0.0
          %6046 = vmatpush.msra.mxu0 0.0
          %6047 = vmatpush.msra.mxu0 0.0
          %6048 = vmatpush.msra.mxu0 0.0
          %6049 = vmatpush.msra.mxu0 0.0
          %6050 = vmatpush.msra.mxu0 0.0
          %6051 = vmatpush.msra.mxu0 0.0
          %6052 = vmatpush.msra.mxu0 0.0
          %6053 = vmatpush.msra.mxu0 0.0
          %6054 = vmatpush.msra.mxu0 0.0
          %6055 = vmatpush.msra.mxu0 0.0
          %6056 = vmatpush.msra.mxu0 %v5992
          %6057 = vmatpush.msra.mxu0 %v5988
          %6058 = vmatmul.f32.gmra.mxu0 %v6020
          %v6059 = vpop.f32.mrf.mxu0
          %v6060 = vadd.f32 0.0, %v6059
          %6061 = vdwg.mxu0
          %6062 = vmatpush.msra.mxu0 0.0
          %6063 = vmatpush.msra.mxu0 0.0
          %6064 = vmatpush.msra.mxu0 0.0
          %6065 = vmatpush.msra.mxu0 0.0
          %6066 = vmatpush.msra.mxu0 0.0
          %6067 = vmatpush.msra.mxu0 0.0
          %6068 = vmatpush.msra.mxu0 0.0
          %6069 = vmatpush.msra.mxu0 0.0
          %6070 = vmatpush.msra.mxu0 0.0
          %6071 = vmatpush.msra.mxu0 0.0
          %6072 = vmatpush.msra.mxu0 0.0
          %6073 = vmatpush.msra.mxu0 0.0
          %6074 = vmatpush.msra.mxu0 0.0
          %6075 = vmatpush.msra.mxu0 0.0
          %6076 = vmatpush.msra.mxu0 %v5993
          %6077 = vmatpush.msra.mxu0 %v5989
          %6078 = vmatmul.f32.gmra.mxu0 %v6020
          %v6079 = vpop.f32.mrf.mxu0
          %v6080 = vadd.f32 0.0, %v6079
          %6081 = vdwg.mxu0
          %6082 = vmatpush.msra.mxu0 0.0
          %6083 = vmatpush.msra.mxu0 0.0
          %6084 = vmatpush.msra.mxu0 0.0
          %6085 = vmatpush.msra.mxu0 0.0
          %6086 = vmatpush.msra.mxu0 0.0
          %6087 = vmatpush.msra.mxu0 0.0
          %6088 = vmatpush.msra.mxu0 0.0
          %6089 = vmatpush.msra.mxu0 0.0
          %6090 = vmatpush.msra.mxu0 0.0
          %6091 = vmatpush.msra.mxu0 0.0
          %6092 = vmatpush.msra.mxu0 0.0
          %6093 = vmatpush.msra.mxu0 0.0
          %6094 = vmatpush.msra.mxu0 0.0
          %6095 = vmatpush.msra.mxu0 0.0
          %6096 = vmatpush.msra.mxu0 %v5994
          %6097 = vmatpush.msra.mxu0 %v5990
          %6098 = vmatmul.f32.gmra.mxu0 %v6020
          %v6099 = vpop.f32.mrf.mxu0
          %v6100 = vadd.f32 0.0, %v6099
          %6101 = vdwg.mxu0
          %v6102 = vld [vmem:[#allocation7] sm:$0xff]
          %v6103 = vld [vmem:[#allocation7 + $0x8] sm:$0xff]
          %v6104 = vld [vmem:[#allocation7 + $0x10] sm:$0xff]
          %v6105 = vld [vmem:[#allocation7 + $0x18] sm:$0xff]
          %v6106 = vld [vmem:[#allocation7 + $0x20] sm:$0xff]
          %v6107 = vld [vmem:[#allocation7 + $0x28] sm:$0xff]
          %v6108 = vld [vmem:[#allocation7 + $0x30] sm:$0xff]
          %v6109 = vld [vmem:[#allocation7 + $0x38] sm:$0xff]
          %v6110 = vld [vmem:[#allocation7 + $0x40] sm:$0xff]
          %v6111 = vld [vmem:[#allocation7 + $0x48] sm:$0xff]
          %v6112 = vld [vmem:[#allocation7 + $0x50] sm:$0xff]
          %v6113 = vld [vmem:[#allocation7 + $0x58] sm:$0xff]
          %v6114 = vld [vmem:[#allocation7 + $0x60] sm:$0xff]
          %v6115 = vld [vmem:[#allocation7 + $0x68] sm:$0xff]
          %v6116 = vld [vmem:[#allocation7 + $0x70] sm:$0xff]
          %v6117 = vld [vmem:[#allocation7 + $0x78] sm:$0xff]
          %v6118 = vld [vmem:[#allocation7 + $0x80] sm:$0xff]
          %v6119 = vld [vmem:[#allocation7 + $0x88] sm:$0xff]
          %v6120 = vld [vmem:[#allocation7 + $0x90] sm:$0xff]
          %v6121 = vld [vmem:[#allocation7 + $0x98] sm:$0xff]
          %v6122 = vld [vmem:[#allocation7 + $0xa0] sm:$0xff]
          %v6123 = vld [vmem:[#allocation7 + $0xa8] sm:$0xff]
          %v6124 = vld [vmem:[#allocation7 + $0xb0] sm:$0xff]
          %v6125 = vld [vmem:[#allocation7 + $0xb8] sm:$0xff]
          %v6126 = vld [vmem:[#allocation7 + $0xc0] sm:$0xff]
          %v6127 = vld [vmem:[#allocation7 + $0xc8] sm:$0xff]
          %v6128 = vld [vmem:[#allocation7 + $0xd0] sm:$0xff]
          %v6129 = vld [vmem:[#allocation7 + $0xd8] sm:$0xff]
          %v6130 = vld [vmem:[#allocation7 + $0xe0] sm:$0xff]
          %v6131 = vld [vmem:[#allocation7 + $0xe8] sm:$0xff]
          %v6132 = vld [vmem:[#allocation7 + $0xf0] sm:$0xff]
          %v6133 = vld [vmem:[#allocation7 + $0xf8] sm:$0xff]
          %v6134 = vld [vmem:[#allocation7 + $0x100] sm:$0xff]
          %v6135 = vld [vmem:[#allocation7 + $0x108] sm:$0xff]
          %v6136 = vld [vmem:[#allocation7 + $0x110] sm:$0xff]
          %v6137 = vld [vmem:[#allocation7 + $0x118] sm:$0xff]
          %v6138 = vld [vmem:[#allocation7 + $0x120] sm:$0xff]
          %v6139 = vld [vmem:[#allocation7 + $0x128] sm:$0xff]
          %v6140 = vld [vmem:[#allocation7 + $0x130] sm:$0xff]
          %v6141 = vld [vmem:[#allocation7 + $0x138] sm:$0xff]
          %v6142 = vld [vmem:[#allocation7 + $0x140] sm:$0xff]
          %v6143 = vld [vmem:[#allocation7 + $0x148] sm:$0xff]
          %v6144 = vld [vmem:[#allocation7 + $0x150] sm:$0xff]
          %v6145 = vld [vmem:[#allocation7 + $0x158] sm:$0xff]
          %v6146 = vld [vmem:[#allocation7 + $0x160] sm:$0xff]
          %v6147 = vld [vmem:[#allocation7 + $0x168] sm:$0xff]
          %v6148 = vld [vmem:[#allocation7 + $0x170] sm:$0xff]
          %v6149 = vld [vmem:[#allocation7 + $0x178] sm:$0xff]
          %v6150 = vld [vmem:[#allocation7 + $0x180] sm:$0xff]
          %v6151 = vld [vmem:[#allocation7 + $0x188] sm:$0xff]
          %v6152 = vld [vmem:[#allocation7 + $0x190] sm:$0xff]
          %v6153 = vld [vmem:[#allocation7 + $0x198] sm:$0xff]
          %v6154 = vld [vmem:[#allocation7 + $0x1a0] sm:$0xff]
          %v6155 = vld [vmem:[#allocation7 + $0x1a8] sm:$0xff]
          %v6156 = vld [vmem:[#allocation7 + $0x1b0] sm:$0xff]
          %v6157 = vld [vmem:[#allocation7 + $0x1b8] sm:$0xff]
          %v6158 = vld [vmem:[#allocation7 + $0x1c0] sm:$0xff]
          %v6159 = vld [vmem:[#allocation7 + $0x1c8] sm:$0xff]
          %v6160 = vld [vmem:[#allocation7 + $0x1d0] sm:$0xff]
          %v6161 = vld [vmem:[#allocation7 + $0x1d8] sm:$0xff]
          %v6162 = vld [vmem:[#allocation7 + $0x1e0] sm:$0xff]
          %v6163 = vld [vmem:[#allocation7 + $0x1e8] sm:$0xff]
          %v6164 = vld [vmem:[#allocation7 + $0x1f0] sm:$0xff]
          %v6165 = vld [vmem:[#allocation7 + $0x1f8] sm:$0xff]
          %v6166 = vld [vmem:[#allocation7 + $0x200] sm:$0xff]
          %v6167 = vld [vmem:[#allocation7 + $0x208] sm:$0xff]
          %v6168 = vld [vmem:[#allocation7 + $0x210] sm:$0xff]
          %v6169 = vld [vmem:[#allocation7 + $0x218] sm:$0xff]
          %v6170 = vld [vmem:[#allocation7 + $0x220] sm:$0xff]
          %v6171 = vld [vmem:[#allocation7 + $0x228] sm:$0xff]
          %v6172 = vld [vmem:[#allocation7 + $0x230] sm:$0xff]
          %v6173 = vld [vmem:[#allocation7 + $0x238] sm:$0xff]
          %v6174 = vld [vmem:[#allocation7 + $0x240] sm:$0xff]
          %v6175 = vld [vmem:[#allocation7 + $0x248] sm:$0xff]
          %v6176 = vld [vmem:[#allocation7 + $0x250] sm:$0xff]
          %v6177 = vld [vmem:[#allocation7 + $0x258] sm:$0xff]
          %v6178 = vld [vmem:[#allocation7 + $0x260] sm:$0xff]
          %v6179 = vld [vmem:[#allocation7 + $0x268] sm:$0xff]
          %v6180 = vld [vmem:[#allocation7 + $0x270] sm:$0xff]
          %v6181 = vld [vmem:[#allocation7 + $0x278] sm:$0xff]
          %v6182 = vld [vmem:[#allocation7 + $0x280] sm:$0xff]
          %v6183 = vld [vmem:[#allocation7 + $0x288] sm:$0xff]
          %v6184 = vld [vmem:[#allocation7 + $0x290] sm:$0xff]
          %v6185 = vld [vmem:[#allocation7 + $0x298] sm:$0xff]
          %v6186 = vld [vmem:[#allocation7 + $0x2a0] sm:$0xff]
          %v6187 = vld [vmem:[#allocation7 + $0x2a8] sm:$0xff]
          %v6188 = vld [vmem:[#allocation7 + $0x2b0] sm:$0xff]
          %v6189 = vld [vmem:[#allocation7 + $0x2b8] sm:$0xff]
          %v6190 = vld [vmem:[#allocation7 + $0x2c0] sm:$0xff]
          %v6191 = vld [vmem:[#allocation7 + $0x2c8] sm:$0xff]
          %v6192 = vld [vmem:[#allocation7 + $0x2d0] sm:$0xff]
          %v6193 = vld [vmem:[#allocation7 + $0x2d8] sm:$0xff]
          %v6194 = vld [vmem:[#allocation7 + $0x2e0] sm:$0xff]
          %v6195 = vld [vmem:[#allocation7 + $0x2e8] sm:$0xff]
          %v6196 = vld [vmem:[#allocation7 + $0x2f0] sm:$0xff]
          %v6197 = vld [vmem:[#allocation7 + $0x2f8] sm:$0xff]
          %v6198 = vld [vmem:[#allocation7 + $0x300] sm:$0xff]
          %v6199 = vld [vmem:[#allocation7 + $0x308] sm:$0xff]
          %v6200 = vld [vmem:[#allocation7 + $0x310] sm:$0xff]
          %v6201 = vld [vmem:[#allocation7 + $0x318] sm:$0xff]
          %v6202 = vld [vmem:[#allocation7 + $0x320] sm:$0xff]
          %v6203 = vld [vmem:[#allocation7 + $0x328] sm:$0xff]
          %v6204 = vld [vmem:[#allocation7 + $0x330] sm:$0xff]
          %v6205 = vld [vmem:[#allocation7 + $0x338] sm:$0xff]
          %v6206 = vld [vmem:[#allocation7 + $0x340] sm:$0xff]
          %v6207 = vld [vmem:[#allocation7 + $0x348] sm:$0xff]
          %v6208 = vld [vmem:[#allocation7 + $0x350] sm:$0xff]
          %v6209 = vld [vmem:[#allocation7 + $0x358] sm:$0xff]
          %v6210 = vld [vmem:[#allocation7 + $0x360] sm:$0xff]
          %v6211 = vld [vmem:[#allocation7 + $0x368] sm:$0xff]
          %v6212 = vld [vmem:[#allocation7 + $0x370] sm:$0xff]
          %v6213 = vld [vmem:[#allocation7 + $0x378] sm:$0xff]
          %v6214 = vld [vmem:[#allocation7 + $0x380] sm:$0xff]
          %v6215 = vld [vmem:[#allocation7 + $0x388] sm:$0xff]
          %v6216 = vld [vmem:[#allocation7 + $0x390] sm:$0xff]
          %v6217 = vld [vmem:[#allocation7 + $0x398] sm:$0xff]
          %v6218 = vld [vmem:[#allocation7 + $0x3a0] sm:$0xff]
          %v6219 = vld [vmem:[#allocation7 + $0x3a8] sm:$0xff]
          %v6220 = vld [vmem:[#allocation7 + $0x3b0] sm:$0xff]
          %v6221 = vld [vmem:[#allocation7 + $0x3b8] sm:$0xff]
          %v6222 = vld [vmem:[#allocation7 + $0x3c0] sm:$0xff]
          %v6223 = vld [vmem:[#allocation7 + $0x3c8] sm:$0xff]
          %v6224 = vld [vmem:[#allocation7 + $0x3d0] sm:$0xff]
          %v6225 = vld [vmem:[#allocation7 + $0x3d8] sm:$0xff]
          %v6226 = vld [vmem:[#allocation7 + $0x3e0] sm:$0xff]
          %v6227 = vld [vmem:[#allocation7 + $0x3e8] sm:$0xff]
          %v6228 = vld [vmem:[#allocation7 + $0x3f0] sm:$0xff]
          %v6229 = vld [vmem:[#allocation7 + $0x3f8] sm:$0xff]
          %v6230 = vpack.c.bf16 %v6040, %v6040
          %v6231 = vpack.c.bf16 %v6060, %v6060
          %v6232 = vpack.c.bf16 %v6080, %v6080
          %v6233 = vpack.c.bf16 %v6100, %v6100
          %v6234 = vperm.slane %v6007, 2
          %v6235 = vperm.slane %v6008, 2
          %v6236 = vperm.slane %v6009, 2
          %v6237 = vperm.slane %v6010, 2
          %v6366 = vunpack.c.l.b16 %v6102
          %v6367 = vunpack.c.h.b16 %v6102
          %v6368 = vunpack.c.l.b16 %v6103
          %v6369 = vunpack.c.h.b16 %v6103
          %v6370 = vunpack.c.l.b16 %v6104
          %v6371 = vunpack.c.h.b16 %v6104
          %v6372 = vunpack.c.l.b16 %v6105
          %v6373 = vunpack.c.h.b16 %v6105
          %v6374 = vunpack.c.l.b16 %v6106
          %v6375 = vunpack.c.h.b16 %v6106
          %v6376 = vunpack.c.l.b16 %v6107
          %v6377 = vunpack.c.h.b16 %v6107
          %v6378 = vunpack.c.l.b16 %v6108
          %v6379 = vunpack.c.h.b16 %v6108
          %v6380 = vunpack.c.l.b16 %v6109
          %v6381 = vunpack.c.h.b16 %v6109
          %v6382 = vunpack.c.l.b16 %v6110
          %v6383 = vunpack.c.h.b16 %v6110
          %v6384 = vunpack.c.l.b16 %v6111
          %v6385 = vunpack.c.h.b16 %v6111
          %v6386 = vunpack.c.l.b16 %v6112
          %v6387 = vunpack.c.h.b16 %v6112
          %v6388 = vunpack.c.l.b16 %v6113
          %v6389 = vunpack.c.h.b16 %v6113
          %v6390 = vunpack.c.l.b16 %v6114
          %v6391 = vunpack.c.h.b16 %v6114
          %v6392 = vunpack.c.l.b16 %v6115
          %v6393 = vunpack.c.h.b16 %v6115
          %v6394 = vunpack.c.l.b16 %v6116
          %v6395 = vunpack.c.h.b16 %v6116
          %v6396 = vunpack.c.l.b16 %v6117
          %v6397 = vunpack.c.h.b16 %v6117
          %v6398 = vunpack.c.l.b16 %v6118
          %v6399 = vunpack.c.h.b16 %v6118
          %v6400 = vunpack.c.l.b16 %v6119
          %v6401 = vunpack.c.h.b16 %v6119
          %v6402 = vunpack.c.l.b16 %v6120
          %v6403 = vunpack.c.h.b16 %v6120
          %v6404 = vunpack.c.l.b16 %v6121
          %v6405 = vunpack.c.h.b16 %v6121
          %v6406 = vunpack.c.l.b16 %v6122
          %v6407 = vunpack.c.h.b16 %v6122
          %v6408 = vunpack.c.l.b16 %v6123
          %v6409 = vunpack.c.h.b16 %v6123
          %v6410 = vunpack.c.l.b16 %v6124
          %v6411 = vunpack.c.h.b16 %v6124
          %v6412 = vunpack.c.l.b16 %v6125
          %v6413 = vunpack.c.h.b16 %v6125
          %v6414 = vunpack.c.l.b16 %v6126
          %v6415 = vunpack.c.h.b16 %v6126
          %v6416 = vunpack.c.l.b16 %v6127
          %v6417 = vunpack.c.h.b16 %v6127
          %v6418 = vunpack.c.l.b16 %v6128
          %v6419 = vunpack.c.h.b16 %v6128
          %v6420 = vunpack.c.l.b16 %v6129
          %v6421 = vunpack.c.h.b16 %v6129
          %v6422 = vunpack.c.l.b16 %v6130
          %v6423 = vunpack.c.h.b16 %v6130
          %v6424 = vunpack.c.l.b16 %v6131
          %v6425 = vunpack.c.h.b16 %v6131
          %v6426 = vunpack.c.l.b16 %v6132
          %v6427 = vunpack.c.h.b16 %v6132
          %v6428 = vunpack.c.l.b16 %v6133
          %v6429 = vunpack.c.h.b16 %v6133
          %v6430 = vunpack.c.l.b16 %v6134
          %v6431 = vunpack.c.h.b16 %v6134
          %v6432 = vunpack.c.l.b16 %v6135
          %v6433 = vunpack.c.h.b16 %v6135
          %v6434 = vunpack.c.l.b16 %v6136
          %v6435 = vunpack.c.h.b16 %v6136
          %v6436 = vunpack.c.l.b16 %v6137
          %v6437 = vunpack.c.h.b16 %v6137
          %v6438 = vunpack.c.l.b16 %v6138
          %v6439 = vunpack.c.h.b16 %v6138
          %v6440 = vunpack.c.l.b16 %v6139
          %v6441 = vunpack.c.h.b16 %v6139
          %v6442 = vunpack.c.l.b16 %v6140
          %v6443 = vunpack.c.h.b16 %v6140
          %v6444 = vunpack.c.l.b16 %v6141
          %v6445 = vunpack.c.h.b16 %v6141
          %v6446 = vunpack.c.l.b16 %v6142
          %v6447 = vunpack.c.h.b16 %v6142
          %v6448 = vunpack.c.l.b16 %v6143
          %v6449 = vunpack.c.h.b16 %v6143
          %v6450 = vunpack.c.l.b16 %v6144
          %v6451 = vunpack.c.h.b16 %v6144
          %v6452 = vunpack.c.l.b16 %v6145
          %v6453 = vunpack.c.h.b16 %v6145
          %v6454 = vunpack.c.l.b16 %v6146
          %v6455 = vunpack.c.h.b16 %v6146
          %v6456 = vunpack.c.l.b16 %v6147
          %v6457 = vunpack.c.h.b16 %v6147
          %v6458 = vunpack.c.l.b16 %v6148
          %v6459 = vunpack.c.h.b16 %v6148
          %v6460 = vunpack.c.l.b16 %v6149
          %v6461 = vunpack.c.h.b16 %v6149
          %v6462 = vunpack.c.l.b16 %v6150
          %v6463 = vunpack.c.h.b16 %v6150
          %v6464 = vunpack.c.l.b16 %v6151
          %v6465 = vunpack.c.h.b16 %v6151
          %v6466 = vunpack.c.l.b16 %v6152
          %v6467 = vunpack.c.h.b16 %v6152
          %v6468 = vunpack.c.l.b16 %v6153
          %v6469 = vunpack.c.h.b16 %v6153
          %v6470 = vunpack.c.l.b16 %v6154
          %v6471 = vunpack.c.h.b16 %v6154
          %v6472 = vunpack.c.l.b16 %v6155
          %v6473 = vunpack.c.h.b16 %v6155
          %v6474 = vunpack.c.l.b16 %v6156
          %v6475 = vunpack.c.h.b16 %v6156
          %v6476 = vunpack.c.l.b16 %v6157
          %v6477 = vunpack.c.h.b16 %v6157
          %v6478 = vunpack.c.l.b16 %v6158
          %v6479 = vunpack.c.h.b16 %v6158
          %v6480 = vunpack.c.l.b16 %v6159
          %v6481 = vunpack.c.h.b16 %v6159
          %v6482 = vunpack.c.l.b16 %v6160
          %v6483 = vunpack.c.h.b16 %v6160
          %v6484 = vunpack.c.l.b16 %v6161
          %v6485 = vunpack.c.h.b16 %v6161
          %v6486 = vunpack.c.l.b16 %v6162
          %v6487 = vunpack.c.h.b16 %v6162
          %v6488 = vunpack.c.l.b16 %v6163
          %v6489 = vunpack.c.h.b16 %v6163
          %v6490 = vunpack.c.l.b16 %v6164
          %v6491 = vunpack.c.h.b16 %v6164
          %v6492 = vunpack.c.l.b16 %v6165
          %v6493 = vunpack.c.h.b16 %v6165
          %v6494 = vunpack.c.l.b16 %v6166
          %v6495 = vunpack.c.h.b16 %v6166
          %v6496 = vunpack.c.l.b16 %v6167
          %v6497 = vunpack.c.h.b16 %v6167
          %v6498 = vunpack.c.l.b16 %v6168
          %v6499 = vunpack.c.h.b16 %v6168
          %v6500 = vunpack.c.l.b16 %v6169
          %v6501 = vunpack.c.h.b16 %v6169
          %v6502 = vunpack.c.l.b16 %v6170
          %v6503 = vunpack.c.h.b16 %v6170
          %v6504 = vunpack.c.l.b16 %v6171
          %v6505 = vunpack.c.h.b16 %v6171
          %v6506 = vunpack.c.l.b16 %v6172
          %v6507 = vunpack.c.h.b16 %v6172
          %v6508 = vunpack.c.l.b16 %v6173
          %v6509 = vunpack.c.h.b16 %v6173
          %v6510 = vunpack.c.l.b16 %v6174
          %v6511 = vunpack.c.h.b16 %v6174
          %v6512 = vunpack.c.l.b16 %v6175
          %v6513 = vunpack.c.h.b16 %v6175
          %v6514 = vunpack.c.l.b16 %v6176
          %v6515 = vunpack.c.h.b16 %v6176
          %v6516 = vunpack.c.l.b16 %v6177
          %v6517 = vunpack.c.h.b16 %v6177
          %v6518 = vunpack.c.l.b16 %v6178
          %v6519 = vunpack.c.h.b16 %v6178
          %v6520 = vunpack.c.l.b16 %v6179
          %v6521 = vunpack.c.h.b16 %v6179
          %v6522 = vunpack.c.l.b16 %v6180
          %v6523 = vunpack.c.h.b16 %v6180
          %v6524 = vunpack.c.l.b16 %v6181
          %v6525 = vunpack.c.h.b16 %v6181
          %v6526 = vunpack.c.l.b16 %v6182
          %v6527 = vunpack.c.h.b16 %v6182
          %v6528 = vunpack.c.l.b16 %v6183
          %v6529 = vunpack.c.h.b16 %v6183
          %v6530 = vunpack.c.l.b16 %v6184
          %v6531 = vunpack.c.h.b16 %v6184
          %v6532 = vunpack.c.l.b16 %v6185
          %v6533 = vunpack.c.h.b16 %v6185
          %v6534 = vunpack.c.l.b16 %v6186
          %v6535 = vunpack.c.h.b16 %v6186
          %v6536 = vunpack.c.l.b16 %v6187
          %v6537 = vunpack.c.h.b16 %v6187
          %v6538 = vunpack.c.l.b16 %v6188
          %v6539 = vunpack.c.h.b16 %v6188
          %v6540 = vunpack.c.l.b16 %v6189
          %v6541 = vunpack.c.h.b16 %v6189
          %v6542 = vunpack.c.l.b16 %v6190
          %v6543 = vunpack.c.h.b16 %v6190
          %v6544 = vunpack.c.l.b16 %v6191
          %v6545 = vunpack.c.h.b16 %v6191
          %v6546 = vunpack.c.l.b16 %v6192
          %v6547 = vunpack.c.h.b16 %v6192
          %v6548 = vunpack.c.l.b16 %v6193
          %v6549 = vunpack.c.h.b16 %v6193
          %v6550 = vunpack.c.l.b16 %v6194
          %v6551 = vunpack.c.h.b16 %v6194
          %v6552 = vunpack.c.l.b16 %v6195
          %v6553 = vunpack.c.h.b16 %v6195
          %v6554 = vunpack.c.l.b16 %v6196
          %v6555 = vunpack.c.h.b16 %v6196
          %v6556 = vunpack.c.l.b16 %v6197
          %v6557 = vunpack.c.h.b16 %v6197
          %v6558 = vunpack.c.l.b16 %v6198
          %v6559 = vunpack.c.h.b16 %v6198
          %v6560 = vunpack.c.l.b16 %v6199
          %v6561 = vunpack.c.h.b16 %v6199
          %v6562 = vunpack.c.l.b16 %v6200
          %v6563 = vunpack.c.h.b16 %v6200
          %v6564 = vunpack.c.l.b16 %v6201
          %v6565 = vunpack.c.h.b16 %v6201
          %v6566 = vunpack.c.l.b16 %v6202
          %v6567 = vunpack.c.h.b16 %v6202
          %v6568 = vunpack.c.l.b16 %v6203
          %v6569 = vunpack.c.h.b16 %v6203
          %v6570 = vunpack.c.l.b16 %v6204
          %v6571 = vunpack.c.h.b16 %v6204
          %v6572 = vunpack.c.l.b16 %v6205
          %v6573 = vunpack.c.h.b16 %v6205
          %v6574 = vunpack.c.l.b16 %v6206
          %v6575 = vunpack.c.h.b16 %v6206
          %v6576 = vunpack.c.l.b16 %v6207
          %v6577 = vunpack.c.h.b16 %v6207
          %v6578 = vunpack.c.l.b16 %v6208
          %v6579 = vunpack.c.h.b16 %v6208
          %v6580 = vunpack.c.l.b16 %v6209
          %v6581 = vunpack.c.h.b16 %v6209
          %v6582 = vunpack.c.l.b16 %v6210
          %v6583 = vunpack.c.h.b16 %v6210
          %v6584 = vunpack.c.l.b16 %v6211
          %v6585 = vunpack.c.h.b16 %v6211
          %v6586 = vunpack.c.l.b16 %v6212
          %v6587 = vunpack.c.h.b16 %v6212
          %v6588 = vunpack.c.l.b16 %v6213
          %v6589 = vunpack.c.h.b16 %v6213
          %v6590 = vunpack.c.l.b16 %v6214
          %v6591 = vunpack.c.h.b16 %v6214
          %v6592 = vunpack.c.l.b16 %v6215
          %v6593 = vunpack.c.h.b16 %v6215
          %v6594 = vunpack.c.l.b16 %v6216
          %v6595 = vunpack.c.h.b16 %v6216
          %v6596 = vunpack.c.l.b16 %v6217
          %v6597 = vunpack.c.h.b16 %v6217
          %v6598 = vunpack.c.l.b16 %v6218
          %v6599 = vunpack.c.h.b16 %v6218
          %v6600 = vunpack.c.l.b16 %v6219
          %v6601 = vunpack.c.h.b16 %v6219
          %v6602 = vunpack.c.l.b16 %v6220
          %v6603 = vunpack.c.h.b16 %v6220
          %v6604 = vunpack.c.l.b16 %v6221
          %v6605 = vunpack.c.h.b16 %v6221
          %v6606 = vunpack.c.l.b16 %v6222
          %v6607 = vunpack.c.h.b16 %v6222
          %v6608 = vunpack.c.l.b16 %v6223
          %v6609 = vunpack.c.h.b16 %v6223
          %v6610 = vunpack.c.l.b16 %v6224
          %v6611 = vunpack.c.h.b16 %v6224
          %v6612 = vunpack.c.l.b16 %v6225
          %v6613 = vunpack.c.h.b16 %v6225
          %v6614 = vunpack.c.l.b16 %v6226
          %v6615 = vunpack.c.h.b16 %v6226
          %v6616 = vunpack.c.l.b16 %v6227
          %v6617 = vunpack.c.h.b16 %v6227
          %v6618 = vunpack.c.l.b16 %v6228
          %v6619 = vunpack.c.h.b16 %v6228
          %v6620 = vunpack.c.l.b16 %v6229
          %v6621 = vunpack.c.h.b16 %v6229
          %v6622 = vpack.c.b16 %v6370, %v6366
          %v6623 = vpack.c.b16 %v6371, %v6367
          %v6624 = vpack.c.b16 %v6372, %v6368
          %v6625 = vpack.c.b16 %v6373, %v6369
          %v6626 = vpack.c.b16 %v6378, %v6374
          %v6627 = vpack.c.b16 %v6379, %v6375
          %v6628 = vpack.c.b16 %v6380, %v6376
          %v6629 = vpack.c.b16 %v6381, %v6377
          %v6630 = vpack.c.b16 %v6386, %v6382
          %v6631 = vpack.c.b16 %v6387, %v6383
          %v6632 = vpack.c.b16 %v6388, %v6384
          %v6633 = vpack.c.b16 %v6389, %v6385
          %v6634 = vpack.c.b16 %v6394, %v6390
          %v6635 = vpack.c.b16 %v6395, %v6391
          %v6636 = vpack.c.b16 %v6396, %v6392
          %v6637 = vpack.c.b16 %v6397, %v6393
          %v6638 = vpack.c.b16 %v6402, %v6398
          %v6639 = vpack.c.b16 %v6403, %v6399
          %v6640 = vpack.c.b16 %v6404, %v6400
          %v6641 = vpack.c.b16 %v6405, %v6401
          %v6642 = vpack.c.b16 %v6410, %v6406
          %v6643 = vpack.c.b16 %v6411, %v6407
          %v6644 = vpack.c.b16 %v6412, %v6408
          %v6645 = vpack.c.b16 %v6413, %v6409
          %v6646 = vpack.c.b16 %v6418, %v6414
          %v6647 = vpack.c.b16 %v6419, %v6415
          %v6648 = vpack.c.b16 %v6420, %v6416
          %v6649 = vpack.c.b16 %v6421, %v6417
          %v6650 = vpack.c.b16 %v6426, %v6422
          %v6651 = vpack.c.b16 %v6427, %v6423
          %v6652 = vpack.c.b16 %v6428, %v6424
          %v6653 = vpack.c.b16 %v6429, %v6425
          %v6654 = vpack.c.b16 %v6434, %v6430
          %v6655 = vpack.c.b16 %v6435, %v6431
          %v6656 = vpack.c.b16 %v6436, %v6432
          %v6657 = vpack.c.b16 %v6437, %v6433
          %v6658 = vpack.c.b16 %v6442, %v6438
          %v6659 = vpack.c.b16 %v6443, %v6439
          %v6660 = vpack.c.b16 %v6444, %v6440
          %v6661 = vpack.c.b16 %v6445, %v6441
          %v6662 = vpack.c.b16 %v6450, %v6446
          %v6663 = vpack.c.b16 %v6451, %v6447
          %v6664 = vpack.c.b16 %v6452, %v6448
          %v6665 = vpack.c.b16 %v6453, %v6449
          %v6666 = vpack.c.b16 %v6458, %v6454
          %v6667 = vpack.c.b16 %v6459, %v6455
          %v6668 = vpack.c.b16 %v6460, %v6456
          %v6669 = vpack.c.b16 %v6461, %v6457
          %v6670 = vpack.c.b16 %v6466, %v6462
          %v6671 = vpack.c.b16 %v6467, %v6463
          %v6672 = vpack.c.b16 %v6468, %v6464
          %v6673 = vpack.c.b16 %v6469, %v6465
          %v6674 = vpack.c.b16 %v6474, %v6470
          %v6675 = vpack.c.b16 %v6475, %v6471
          %v6676 = vpack.c.b16 %v6476, %v6472
          %v6677 = vpack.c.b16 %v6477, %v6473
          %v6678 = vpack.c.b16 %v6482, %v6478
          %v6679 = vpack.c.b16 %v6483, %v6479
          %v6680 = vpack.c.b16 %v6484, %v6480
          %v6681 = vpack.c.b16 %v6485, %v6481
          %v6682 = vpack.c.b16 %v6490, %v6486
          %v6683 = vpack.c.b16 %v6491, %v6487
          %v6684 = vpack.c.b16 %v6492, %v6488
          %v6685 = vpack.c.b16 %v6493, %v6489
          %v6686 = vpack.c.b16 %v6498, %v6494
          %v6687 = vpack.c.b16 %v6499, %v6495
          %v6688 = vpack.c.b16 %v6500, %v6496
          %v6689 = vpack.c.b16 %v6501, %v6497
          %v6690 = vpack.c.b16 %v6506, %v6502
          %v6691 = vpack.c.b16 %v6507, %v6503
          %v6692 = vpack.c.b16 %v6508, %v6504
          %v6693 = vpack.c.b16 %v6509, %v6505
          %v6694 = vpack.c.b16 %v6514, %v6510
          %v6695 = vpack.c.b16 %v6515, %v6511
          %v6696 = vpack.c.b16 %v6516, %v6512
          %v6697 = vpack.c.b16 %v6517, %v6513
          %v6698 = vpack.c.b16 %v6522, %v6518
          %v6699 = vpack.c.b16 %v6523, %v6519
          %v6700 = vpack.c.b16 %v6524, %v6520
          %v6701 = vpack.c.b16 %v6525, %v6521
          %v6702 = vpack.c.b16 %v6530, %v6526
          %v6703 = vpack.c.b16 %v6531, %v6527
          %v6704 = vpack.c.b16 %v6532, %v6528
          %v6705 = vpack.c.b16 %v6533, %v6529
          %v6706 = vpack.c.b16 %v6538, %v6534
          %v6707 = vpack.c.b16 %v6539, %v6535
          %v6708 = vpack.c.b16 %v6540, %v6536
          %v6709 = vpack.c.b16 %v6541, %v6537
          %v6710 = vpack.c.b16 %v6546, %v6542
          %v6711 = vpack.c.b16 %v6547, %v6543
          %v6712 = vpack.c.b16 %v6548, %v6544
          %v6713 = vpack.c.b16 %v6549, %v6545
          %v6714 = vpack.c.b16 %v6554, %v6550
          %v6715 = vpack.c.b16 %v6555, %v6551
          %v6716 = vpack.c.b16 %v6556, %v6552
          %v6717 = vpack.c.b16 %v6557, %v6553
          %v6718 = vpack.c.b16 %v6562, %v6558
          %v6719 = vpack.c.b16 %v6563, %v6559
          %v6720 = vpack.c.b16 %v6564, %v6560
          %v6721 = vpack.c.b16 %v6565, %v6561
          %v6722 = vpack.c.b16 %v6570, %v6566
          %v6723 = vpack.c.b16 %v6571, %v6567
          %v6724 = vpack.c.b16 %v6572, %v6568
          %v6725 = vpack.c.b16 %v6573, %v6569
          %v6726 = vpack.c.b16 %v6578, %v6574
          %v6727 = vpack.c.b16 %v6579, %v6575
          %v6728 = vpack.c.b16 %v6580, %v6576
          %v6729 = vpack.c.b16 %v6581, %v6577
          %v6730 = vpack.c.b16 %v6586, %v6582
          %v6731 = vpack.c.b16 %v6587, %v6583
          %v6732 = vpack.c.b16 %v6588, %v6584
          %v6733 = vpack.c.b16 %v6589, %v6585
          %v6734 = vpack.c.b16 %v6594, %v6590
          %v6735 = vpack.c.b16 %v6595, %v6591
          %v6736 = vpack.c.b16 %v6596, %v6592
          %v6737 = vpack.c.b16 %v6597, %v6593
          %v6738 = vpack.c.b16 %v6602, %v6598
          %v6739 = vpack.c.b16 %v6603, %v6599
          %v6740 = vpack.c.b16 %v6604, %v6600
          %v6741 = vpack.c.b16 %v6605, %v6601
          %v6742 = vpack.c.b16 %v6610, %v6606
          %v6743 = vpack.c.b16 %v6611, %v6607
          %v6744 = vpack.c.b16 %v6612, %v6608
          %v6745 = vpack.c.b16 %v6613, %v6609
          %v6746 = vpack.c.b16 %v6618, %v6614
          %v6747 = vpack.c.b16 %v6619, %v6615
          %v6748 = vpack.c.b16 %v6620, %v6616
          %v6749 = vpack.c.b16 %v6621, %v6617
          %6878 = vmatpush.bf16.msra.mxu0 %v6650
          %6879 = vmatpush.bf16.msra.mxu0 %v6646
          %6880 = vmatpush.bf16.msra.mxu0 %v6642
          %6881 = vmatpush.bf16.msra.mxu0 %v6638
          %6882 = vmatpush.bf16.msra.mxu0 %v6634
          %6883 = vmatpush.bf16.msra.mxu0 %v6630
          %6884 = vmatpush.bf16.msra.mxu0 %v6626
          %6885 = vmatpush.bf16.msra.mxu0 %v6622
          %6886 = vmatmul.bf16.gmra.mxu0 %v6230
          %v6887 = vpop.f32.mrf.mxu0
          %v6888 = vadd.f32 %v6234, %v6887
          %v6889 = vpop.f32.mrf.mxu0
          %6890 = vdwg.mxu0
          %6891 = vmatpush.bf16.msra.mxu0 %v6682
          %6892 = vmatpush.bf16.msra.mxu0 %v6678
          %6893 = vmatpush.bf16.msra.mxu0 %v6674
          %6894 = vmatpush.bf16.msra.mxu0 %v6670
          %6895 = vmatpush.bf16.msra.mxu0 %v6666
          %6896 = vmatpush.bf16.msra.mxu0 %v6662
          %6897 = vmatpush.bf16.msra.mxu0 %v6658
          %6898 = vmatpush.bf16.msra.mxu0 %v6654
          %6899 = vmatmul.bf16.gmra.mxu0 %v6231
          %v6900 = vpop.f32.mrf.mxu0
          %v6901 = vadd.f32 %v6888, %v6900
          %v6902 = vpop.f32.mrf.mxu0
          %6903 = vdwg.mxu0
          %6904 = vmatpush.bf16.msra.mxu0 %v6714
          %6905 = vmatpush.bf16.msra.mxu0 %v6710
          %6906 = vmatpush.bf16.msra.mxu0 %v6706
          %6907 = vmatpush.bf16.msra.mxu0 %v6702
          %6908 = vmatpush.bf16.msra.mxu0 %v6698
          %6909 = vmatpush.bf16.msra.mxu0 %v6694
          %6910 = vmatpush.bf16.msra.mxu0 %v6690
          %6911 = vmatpush.bf16.msra.mxu0 %v6686
          %6912 = vmatmul.bf16.gmra.mxu0 %v6232
          %v6913 = vpop.f32.mrf.mxu0
          %v6914 = vadd.f32 %v6901, %v6913
          %v6915 = vpop.f32.mrf.mxu0
          %6916 = vdwg.mxu0
          %6917 = vmatpush.bf16.msra.mxu0 %v6746
          %6918 = vmatpush.bf16.msra.mxu0 %v6742
          %6919 = vmatpush.bf16.msra.mxu0 %v6738
          %6920 = vmatpush.bf16.msra.mxu0 %v6734
          %6921 = vmatpush.bf16.msra.mxu0 %v6730
          %6922 = vmatpush.bf16.msra.mxu0 %v6726
          %6923 = vmatpush.bf16.msra.mxu0 %v6722
          %6924 = vmatpush.bf16.msra.mxu0 %v6718
          %6925 = vmatmul.bf16.gmra.mxu0 %v6233
          %v6926 = vpop.f32.mrf.mxu0
          %v6927 = vadd.f32 %v6914, %v6926
          %v6928 = vpop.f32.mrf.mxu0
          %6929 = vdwg.mxu0
          %6930 = vmatpush.bf16.msra.mxu0 %v6651
          %6931 = vmatpush.bf16.msra.mxu0 %v6647
          %6932 = vmatpush.bf16.msra.mxu0 %v6643
          %6933 = vmatpush.bf16.msra.mxu0 %v6639
          %6934 = vmatpush.bf16.msra.mxu0 %v6635
          %6935 = vmatpush.bf16.msra.mxu0 %v6631
          %6936 = vmatpush.bf16.msra.mxu0 %v6627
          %6937 = vmatpush.bf16.msra.mxu0 %v6623
          %6938 = vmatmul.bf16.gmra.mxu0 %v6230
          %v6939 = vpop.f32.mrf.mxu0
          %v6940 = vadd.f32 %v6235, %v6939
          %v6941 = vpop.f32.mrf.mxu0
          %6942 = vdwg.mxu0
          %6943 = vmatpush.bf16.msra.mxu0 %v6683
          %6944 = vmatpush.bf16.msra.mxu0 %v6679
          %6945 = vmatpush.bf16.msra.mxu0 %v6675
          %6946 = vmatpush.bf16.msra.mxu0 %v6671
          %6947 = vmatpush.bf16.msra.mxu0 %v6667
          %6948 = vmatpush.bf16.msra.mxu0 %v6663
          %6949 = vmatpush.bf16.msra.mxu0 %v6659
          %6950 = vmatpush.bf16.msra.mxu0 %v6655
          %6951 = vmatmul.bf16.gmra.mxu0 %v6231
          %v6952 = vpop.f32.mrf.mxu0
          %v6953 = vadd.f32 %v6940, %v6952
          %v6954 = vpop.f32.mrf.mxu0
          %6955 = vdwg.mxu0
          %6956 = vmatpush.bf16.msra.mxu0 %v6715
          %6957 = vmatpush.bf16.msra.mxu0 %v6711
          %6958 = vmatpush.bf16.msra.mxu0 %v6707
          %6959 = vmatpush.bf16.msra.mxu0 %v6703
          %6960 = vmatpush.bf16.msra.mxu0 %v6699
          %6961 = vmatpush.bf16.msra.mxu0 %v6695
          %6962 = vmatpush.bf16.msra.mxu0 %v6691
          %6963 = vmatpush.bf16.msra.mxu0 %v6687
          %6964 = vmatmul.bf16.gmra.mxu0 %v6232
          %v6965 = vpop.f32.mrf.mxu0
          %v6966 = vadd.f32 %v6953, %v6965
          %v6967 = vpop.f32.mrf.mxu0
          %6968 = vdwg.mxu0
          %6969 = vmatpush.bf16.msra.mxu0 %v6747
          %6970 = vmatpush.bf16.msra.mxu0 %v6743
          %6971 = vmatpush.bf16.msra.mxu0 %v6739
          %6972 = vmatpush.bf16.msra.mxu0 %v6735
          %6973 = vmatpush.bf16.msra.mxu0 %v6731
          %6974 = vmatpush.bf16.msra.mxu0 %v6727
          %6975 = vmatpush.bf16.msra.mxu0 %v6723
          %6976 = vmatpush.bf16.msra.mxu0 %v6719
          %6977 = vmatmul.bf16.gmra.mxu0 %v6233
          %v6978 = vpop.f32.mrf.mxu0
          %v6979 = vadd.f32 %v6966, %v6978
          %v6980 = vpop.f32.mrf.mxu0
          %6981 = vdwg.mxu0
          %6982 = vmatpush.bf16.msra.mxu0 %v6652
          %6983 = vmatpush.bf16.msra.mxu0 %v6648
          %6984 = vmatpush.bf16.msra.mxu0 %v6644
          %6985 = vmatpush.bf16.msra.mxu0 %v6640
          %6986 = vmatpush.bf16.msra.mxu0 %v6636
          %6987 = vmatpush.bf16.msra.mxu0 %v6632
          %6988 = vmatpush.bf16.msra.mxu0 %v6628
          %6989 = vmatpush.bf16.msra.mxu0 %v6624
          %6990 = vmatmul.bf16.gmra.mxu0 %v6230
          %v6991 = vpop.f32.mrf.mxu0
          %v6992 = vadd.f32 %v6236, %v6991
          %v6993 = vpop.f32.mrf.mxu0
          %6994 = vdwg.mxu0
          %6995 = vmatpush.bf16.msra.mxu0 %v6684
          %6996 = vmatpush.bf16.msra.mxu0 %v6680
          %6997 = vmatpush.bf16.msra.mxu0 %v6676
          %6998 = vmatpush.bf16.msra.mxu0 %v6672
          %6999 = vmatpush.bf16.msra.mxu0 %v6668
          %7000 = vmatpush.bf16.msra.mxu0 %v6664
          %7001 = vmatpush.bf16.msra.mxu0 %v6660
          %7002 = vmatpush.bf16.msra.mxu0 %v6656
          %7003 = vmatmul.bf16.gmra.mxu0 %v6231
          %v7004 = vpop.f32.mrf.mxu0
          %v7005 = vadd.f32 %v6992, %v7004
          %v7006 = vpop.f32.mrf.mxu0
          %7007 = vdwg.mxu0
          %7008 = vmatpush.bf16.msra.mxu0 %v6716
          %7009 = vmatpush.bf16.msra.mxu0 %v6712
          %7010 = vmatpush.bf16.msra.mxu0 %v6708
          %7011 = vmatpush.bf16.msra.mxu0 %v6704
          %7012 = vmatpush.bf16.msra.mxu0 %v6700
          %7013 = vmatpush.bf16.msra.mxu0 %v6696
          %7014 = vmatpush.bf16.msra.mxu0 %v6692
          %7015 = vmatpush.bf16.msra.mxu0 %v6688
          %7016 = vmatmul.bf16.gmra.mxu0 %v6232
          %v7017 = vpop.f32.mrf.mxu0
          %v7018 = vadd.f32 %v7005, %v7017
          %v7019 = vpop.f32.mrf.mxu0
          %7020 = vdwg.mxu0
          %7021 = vmatpush.bf16.msra.mxu0 %v6748
          %7022 = vmatpush.bf16.msra.mxu0 %v6744
          %7023 = vmatpush.bf16.msra.mxu0 %v6740
          %7024 = vmatpush.bf16.msra.mxu0 %v6736
          %7025 = vmatpush.bf16.msra.mxu0 %v6732
          %7026 = vmatpush.bf16.msra.mxu0 %v6728
          %7027 = vmatpush.bf16.msra.mxu0 %v6724
          %7028 = vmatpush.bf16.msra.mxu0 %v6720
          %7029 = vmatmul.bf16.gmra.mxu0 %v6233
          %v7030 = vpop.f32.mrf.mxu0
          %v7031 = vadd.f32 %v7018, %v7030
          %v7032 = vpop.f32.mrf.mxu0
          %7033 = vdwg.mxu0
          %7034 = vmatpush.bf16.msra.mxu0 %v6653
          %7035 = vmatpush.bf16.msra.mxu0 %v6649
          %7036 = vmatpush.bf16.msra.mxu0 %v6645
          %7037 = vmatpush.bf16.msra.mxu0 %v6641
          %7038 = vmatpush.bf16.msra.mxu0 %v6637
          %7039 = vmatpush.bf16.msra.mxu0 %v6633
          %7040 = vmatpush.bf16.msra.mxu0 %v6629
          %7041 = vmatpush.bf16.msra.mxu0 %v6625
          %7042 = vmatmul.bf16.gmra.mxu0 %v6230
          %v7043 = vpop.f32.mrf.mxu0
          %v7044 = vadd.f32 %v6237, %v7043
          %v7045 = vpop.f32.mrf.mxu0
          %7046 = vdwg.mxu0
          %7047 = vmatpush.bf16.msra.mxu0 %v6685
          %7048 = vmatpush.bf16.msra.mxu0 %v6681
          %7049 = vmatpush.bf16.msra.mxu0 %v6677
          %7050 = vmatpush.bf16.msra.mxu0 %v6673
          %7051 = vmatpush.bf16.msra.mxu0 %v6669
          %7052 = vmatpush.bf16.msra.mxu0 %v6665
          %7053 = vmatpush.bf16.msra.mxu0 %v6661
          %7054 = vmatpush.bf16.msra.mxu0 %v6657
          %7055 = vmatmul.bf16.gmra.mxu0 %v6231
          %v7056 = vpop.f32.mrf.mxu0
          %v7057 = vadd.f32 %v7044, %v7056
          %v7058 = vpop.f32.mrf.mxu0
          %7059 = vdwg.mxu0
          %7060 = vmatpush.bf16.msra.mxu0 %v6717
          %7061 = vmatpush.bf16.msra.mxu0 %v6713
          %7062 = vmatpush.bf16.msra.mxu0 %v6709
          %7063 = vmatpush.bf16.msra.mxu0 %v6705
          %7064 = vmatpush.bf16.msra.mxu0 %v6701
          %7065 = vmatpush.bf16.msra.mxu0 %v6697
          %7066 = vmatpush.bf16.msra.mxu0 %v6693
          %7067 = vmatpush.bf16.msra.mxu0 %v6689
          %7068 = vmatmul.bf16.gmra.mxu0 %v6232
          %v7069 = vpop.f32.mrf.mxu0
          %v7070 = vadd.f32 %v7057, %v7069
          %v7071 = vpop.f32.mrf.mxu0
          %7072 = vdwg.mxu0
          %7073 = vmatpush.bf16.msra.mxu0 %v6749
          %7074 = vmatpush.bf16.msra.mxu0 %v6745
          %7075 = vmatpush.bf16.msra.mxu0 %v6741
          %7076 = vmatpush.bf16.msra.mxu0 %v6737
          %7077 = vmatpush.bf16.msra.mxu0 %v6733
          %7078 = vmatpush.bf16.msra.mxu0 %v6729
          %7079 = vmatpush.bf16.msra.mxu0 %v6725
          %7080 = vmatpush.bf16.msra.mxu0 %v6721
          %7081 = vmatmul.bf16.gmra.mxu0 %v6233
          %v7082 = vpop.f32.mrf.mxu0
          %v7083 = vadd.f32 %v7070, %v7082
          %v7084 = vpop.f32.mrf.mxu0
          %7085 = vdwg.mxu0
          %v7086 = vtanh.pop %v6927
          %v7087 = vtanh.pop %v6979
          %v7088 = vtanh.pop %v7031
          %v7089 = vtanh.pop %v7083
          %v7090 = vld [vmem:[%s6] sm:$0xf]
          %v7091 = vld [vmem:[%s6 + $0x4] sm:$0xf]
          %v7092 = vld [vmem:[%s6 + $0x8] sm:$0xf]
          %v7093 = vld [vmem:[%s6 + $0xc] sm:$0xf]
          %v7094 = vld [vmem:[%s6 + $0x10] sm:$0xf]
          %v7095 = vld [vmem:[%s6 + $0x14] sm:$0xf]
          %v7096 = vld [vmem:[%s6 + $0x18] sm:$0xf]
          %v7097 = vld [vmem:[%s6 + $0x1c] sm:$0xf]
          %v7098 = vld [vmem:[%s6 + $0x20] sm:$0xf]
          %v7099 = vld [vmem:[%s6 + $0x24] sm:$0xf]
          %v7100 = vld [vmem:[%s6 + $0x28] sm:$0xf]
          %v7101 = vld [vmem:[%s6 + $0x2c] sm:$0xf]
          %v7102 = vld [vmem:[%s6 + $0x30] sm:$0xf]
          %v7103 = vld [vmem:[%s6 + $0x34] sm:$0xf]
          %v7104 = vld [vmem:[%s6 + $0x38] sm:$0xf]
          %v7105 = vld [vmem:[%s6 + $0x3c] sm:$0xf]
          %v7106 = vld [vmem:[%s6 + $0x40] sm:$0xf]
          %v7107 = vld [vmem:[%s6 + $0x44] sm:$0xf]
          %v7108 = vld [vmem:[%s6 + $0x48] sm:$0xf]
          %v7109 = vld [vmem:[%s6 + $0x4c] sm:$0xf]
          %v7110 = vld [vmem:[%s6 + $0x50] sm:$0xf]
          %v7111 = vld [vmem:[%s6 + $0x54] sm:$0xf]
          %v7112 = vld [vmem:[%s6 + $0x58] sm:$0xf]
          %v7113 = vld [vmem:[%s6 + $0x5c] sm:$0xf]
          %v7114 = vld [vmem:[%s6 + $0x60] sm:$0xf]
          %v7115 = vld [vmem:[%s6 + $0x64] sm:$0xf]
          %v7116 = vld [vmem:[%s6 + $0x68] sm:$0xf]
          %v7117 = vld [vmem:[%s6 + $0x6c] sm:$0xf]
          %v7118 = vld [vmem:[%s6 + $0x70] sm:$0xf]
          %v7119 = vld [vmem:[%s6 + $0x74] sm:$0xf]
          %v7120 = vld [vmem:[%s6 + $0x78] sm:$0xf]
          %v7121 = vld [vmem:[%s6 + $0x7c] sm:$0xf]
          %v7122 = vld [vmem:[%s6 + $0x80] sm:$0xf]
          %v7123 = vld [vmem:[%s6 + $0x84] sm:$0xf]
          %v7124 = vld [vmem:[%s6 + $0x88] sm:$0xf]
          %v7125 = vld [vmem:[%s6 + $0x8c] sm:$0xf]
          %v7126 = vld [vmem:[%s6 + $0x90] sm:$0xf]
          %v7127 = vld [vmem:[%s6 + $0x94] sm:$0xf]
          %v7128 = vld [vmem:[%s6 + $0x98] sm:$0xf]
          %v7129 = vld [vmem:[%s6 + $0x9c] sm:$0xf]
          %v7130 = vld [vmem:[%s6 + $0xa0] sm:$0xf]
          %v7131 = vld [vmem:[%s6 + $0xa4] sm:$0xf]
          %v7132 = vld [vmem:[%s6 + $0xa8] sm:$0xf]
          %v7133 = vld [vmem:[%s6 + $0xac] sm:$0xf]
          %v7134 = vld [vmem:[%s6 + $0xb0] sm:$0xf]
          %v7135 = vld [vmem:[%s6 + $0xb4] sm:$0xf]
          %v7136 = vld [vmem:[%s6 + $0xb8] sm:$0xf]
          %v7137 = vld [vmem:[%s6 + $0xbc] sm:$0xf]
          %v7138 = vld [vmem:[%s6 + $0xc0] sm:$0xf]
          %v7139 = vld [vmem:[%s6 + $0xc4] sm:$0xf]
          %v7140 = vld [vmem:[%s6 + $0xc8] sm:$0xf]
          %v7141 = vld [vmem:[%s6 + $0xcc] sm:$0xf]
          %v7142 = vld [vmem:[%s6 + $0xd0] sm:$0xf]
          %v7143 = vld [vmem:[%s6 + $0xd4] sm:$0xf]
          %v7144 = vld [vmem:[%s6 + $0xd8] sm:$0xf]
          %v7145 = vld [vmem:[%s6 + $0xdc] sm:$0xf]
          %v7146 = vld [vmem:[%s6 + $0xe0] sm:$0xf]
          %v7147 = vld [vmem:[%s6 + $0xe4] sm:$0xf]
          %v7148 = vld [vmem:[%s6 + $0xe8] sm:$0xf]
          %v7149 = vld [vmem:[%s6 + $0xec] sm:$0xf]
          %v7150 = vld [vmem:[%s6 + $0xf0] sm:$0xf]
          %v7151 = vld [vmem:[%s6 + $0xf4] sm:$0xf]
          %v7152 = vld [vmem:[%s6 + $0xf8] sm:$0xf]
          %v7153 = vld [vmem:[%s6 + $0xfc] sm:$0xf]
          %v7154 = vpack.c.bf16 %v7086, %v7086
          %v7155 = vpack.c.bf16 %v7087, %v7087
          %v7156 = vpack.c.bf16 %v7088, %v7088
          %v7157 = vpack.c.bf16 %v7089, %v7089
          %v7158 = vperm.slane %v6007, 3
          %v7223 = vunpack.c.l.b16 %v7090
          %v7224 = vunpack.c.l.b16 %v7091
          %v7225 = vunpack.c.l.b16 %v7092
          %v7226 = vunpack.c.l.b16 %v7093
          %v7227 = vunpack.c.l.b16 %v7094
          %v7228 = vunpack.c.l.b16 %v7095
          %v7229 = vunpack.c.l.b16 %v7096
          %v7230 = vunpack.c.l.b16 %v7097
          %v7231 = vunpack.c.l.b16 %v7098
          %v7232 = vunpack.c.l.b16 %v7099
          %v7233 = vunpack.c.l.b16 %v7100
          %v7234 = vunpack.c.l.b16 %v7101
          %v7235 = vunpack.c.l.b16 %v7102
          %v7236 = vunpack.c.l.b16 %v7103
          %v7237 = vunpack.c.l.b16 %v7104
          %v7238 = vunpack.c.l.b16 %v7105
          %v7239 = vunpack.c.l.b16 %v7106
          %v7240 = vunpack.c.l.b16 %v7107
          %v7241 = vunpack.c.l.b16 %v7108
          %v7242 = vunpack.c.l.b16 %v7109
          %v7243 = vunpack.c.l.b16 %v7110
          %v7244 = vunpack.c.l.b16 %v7111
          %v7245 = vunpack.c.l.b16 %v7112
          %v7246 = vunpack.c.l.b16 %v7113
          %v7247 = vunpack.c.l.b16 %v7114
          %v7248 = vunpack.c.l.b16 %v7115
          %v7249 = vunpack.c.l.b16 %v7116
          %v7250 = vunpack.c.l.b16 %v7117
          %v7251 = vunpack.c.l.b16 %v7118
          %v7252 = vunpack.c.l.b16 %v7119
          %v7253 = vunpack.c.l.b16 %v7120
          %v7254 = vunpack.c.l.b16 %v7121
          %v7255 = vunpack.c.l.b16 %v7122
          %v7256 = vunpack.c.l.b16 %v7123
          %v7257 = vunpack.c.l.b16 %v7124
          %v7258 = vunpack.c.l.b16 %v7125
          %v7259 = vunpack.c.l.b16 %v7126
          %v7260 = vunpack.c.l.b16 %v7127
          %v7261 = vunpack.c.l.b16 %v7128
          %v7262 = vunpack.c.l.b16 %v7129
          %v7263 = vunpack.c.l.b16 %v7130
          %v7264 = vunpack.c.l.b16 %v7131
          %v7265 = vunpack.c.l.b16 %v7132
          %v7266 = vunpack.c.l.b16 %v7133
          %v7267 = vunpack.c.l.b16 %v7134
          %v7268 = vunpack.c.l.b16 %v7135
          %v7269 = vunpack.c.l.b16 %v7136
          %v7270 = vunpack.c.l.b16 %v7137
          %v7271 = vunpack.c.l.b16 %v7138
          %v7272 = vunpack.c.l.b16 %v7139
          %v7273 = vunpack.c.l.b16 %v7140
          %v7274 = vunpack.c.l.b16 %v7141
          %v7275 = vunpack.c.l.b16 %v7142
          %v7276 = vunpack.c.l.b16 %v7143
          %v7277 = vunpack.c.l.b16 %v7144
          %v7278 = vunpack.c.l.b16 %v7145
          %v7279 = vunpack.c.l.b16 %v7146
          %v7280 = vunpack.c.l.b16 %v7147
          %v7281 = vunpack.c.l.b16 %v7148
          %v7282 = vunpack.c.l.b16 %v7149
          %v7283 = vunpack.c.l.b16 %v7150
          %v7284 = vunpack.c.l.b16 %v7151
          %v7285 = vunpack.c.l.b16 %v7152
          %v7286 = vunpack.c.l.b16 %v7153
          %v7287 = vpack.c.b16 %v7224, %v7223
          %v7288 = vpack.c.b16 %v7226, %v7225
          %v7289 = vpack.c.b16 %v7228, %v7227
          %v7290 = vpack.c.b16 %v7230, %v7229
          %v7291 = vpack.c.b16 %v7232, %v7231
          %v7292 = vpack.c.b16 %v7234, %v7233
          %v7293 = vpack.c.b16 %v7236, %v7235
          %v7294 = vpack.c.b16 %v7238, %v7237
          %v7295 = vpack.c.b16 %v7240, %v7239
          %v7296 = vpack.c.b16 %v7242, %v7241
          %v7297 = vpack.c.b16 %v7244, %v7243
          %v7298 = vpack.c.b16 %v7246, %v7245
          %v7299 = vpack.c.b16 %v7248, %v7247
          %v7300 = vpack.c.b16 %v7250, %v7249
          %v7301 = vpack.c.b16 %v7252, %v7251
          %v7302 = vpack.c.b16 %v7254, %v7253
          %v7303 = vpack.c.b16 %v7256, %v7255
          %v7304 = vpack.c.b16 %v7258, %v7257
          %v7305 = vpack.c.b16 %v7260, %v7259
          %v7306 = vpack.c.b16 %v7262, %v7261
          %v7307 = vpack.c.b16 %v7264, %v7263
          %v7308 = vpack.c.b16 %v7266, %v7265
          %v7309 = vpack.c.b16 %v7268, %v7267
          %v7310 = vpack.c.b16 %v7270, %v7269
          %v7311 = vpack.c.b16 %v7272, %v7271
          %v7312 = vpack.c.b16 %v7274, %v7273
          %v7313 = vpack.c.b16 %v7276, %v7275
          %v7314 = vpack.c.b16 %v7278, %v7277
          %v7315 = vpack.c.b16 %v7280, %v7279
          %v7316 = vpack.c.b16 %v7282, %v7281
          %v7317 = vpack.c.b16 %v7284, %v7283
          %v7318 = vpack.c.b16 %v7286, %v7285
          %7351 = vmatpush.bf16.msra.mxu0 %v7294
          %7352 = vmatpush.bf16.msra.mxu0 %v7293
          %7353 = vmatpush.bf16.msra.mxu0 %v7292
          %7354 = vmatpush.bf16.msra.mxu0 %v7291
          %7355 = vmatpush.bf16.msra.mxu0 %v7290
          %7356 = vmatpush.bf16.msra.mxu0 %v7289
          %7357 = vmatpush.bf16.msra.mxu0 %v7288
          %7358 = vmatpush.bf16.msra.mxu0 %v7287
          %7359 = vmatmul.bf16.gmra.mxu0 %v7154
          %v7360 = vpop.f32.mrf.mxu0
          %v7361 = vadd.f32 %v7158, %v7360
          %v7362 = vpop.f32.mrf.mxu0
          %7363 = vdwg.mxu0
          %7364 = vmatpush.bf16.msra.mxu0 %v7302
          %7365 = vmatpush.bf16.msra.mxu0 %v7301
          %7366 = vmatpush.bf16.msra.mxu0 %v7300
          %7367 = vmatpush.bf16.msra.mxu0 %v7299
          %7368 = vmatpush.bf16.msra.mxu0 %v7298
          %7369 = vmatpush.bf16.msra.mxu0 %v7297
          %7370 = vmatpush.bf16.msra.mxu0 %v7296
          %7371 = vmatpush.bf16.msra.mxu0 %v7295
          %7372 = vmatmul.bf16.gmra.mxu0 %v7155
          %v7373 = vpop.f32.mrf.mxu0
          %v7374 = vadd.f32 %v7361, %v7373
          %v7375 = vpop.f32.mrf.mxu0
          %7376 = vdwg.mxu0
          %7377 = vmatpush.bf16.msra.mxu0 %v7310
          %7378 = vmatpush.bf16.msra.mxu0 %v7309
          %7379 = vmatpush.bf16.msra.mxu0 %v7308
          %7380 = vmatpush.bf16.msra.mxu0 %v7307
          %7381 = vmatpush.bf16.msra.mxu0 %v7306
          %7382 = vmatpush.bf16.msra.mxu0 %v7305
          %7383 = vmatpush.bf16.msra.mxu0 %v7304
          %7384 = vmatpush.bf16.msra.mxu0 %v7303
          %7385 = vmatmul.bf16.gmra.mxu0 %v7156
          %v7386 = vpop.f32.mrf.mxu0
          %v7387 = vadd.f32 %v7374, %v7386
          %v7388 = vpop.f32.mrf.mxu0
          %7389 = vdwg.mxu0
          %7390 = vmatpush.bf16.msra.mxu0 %v7318
          %7391 = vmatpush.bf16.msra.mxu0 %v7317
          %7392 = vmatpush.bf16.msra.mxu0 %v7316
          %7393 = vmatpush.bf16.msra.mxu0 %v7315
          %7394 = vmatpush.bf16.msra.mxu0 %v7314
          %7395 = vmatpush.bf16.msra.mxu0 %v7313
          %7396 = vmatpush.bf16.msra.mxu0 %v7312
          %7397 = vmatpush.bf16.msra.mxu0 %v7311
          %7398 = vmatmul.bf16.gmra.mxu0 %v7157
          %v7399 = vpop.f32.mrf.mxu0
          %v7400 = vadd.f32 %v7387, %v7399
          %v7401 = vpop.f32.mrf.mxu0
          %7402 = vdwg.mxu0
          %7403 = vst [vmem:[#allocation12] sm:$0x3] %v7400
          %v7404 = vld [vmem:[%s808] sm:$0x3]
          %v7405 = vmax.f32 %v7400, 0.0
          %v7406 = vmul.f32 %v7400, %v7404
          %v7407 = vsub.f32 %v7405, %v7406
          %v7408 = vand.u32 2147483647, %v7400
          %v7409 = vsub.f32 0.0, %v7408
          %v7410 = vmul.f32 %v7409, 1.442695
          %v7411 = vpow.pop %v7410
          %v7412 = vadd.f32 %v7411, 1.0
          %v7413 = vlog2.pop %v7412
          %v7414 = vmul.f32 %v7413, 0.6931472
          %v7415 = vmul.f32 -0.5, %v7411
          %v7416 = vadd.f32 %v7415, 1.0
          %v7417 = vmul.f32 %v7416, %v7411
          %v7418 = vand.u32 2147483647, %v7411
          %vm7419 = vcmp.lt.f32.partialorder %v7418, 0.0004427343
          %v7420 = vsel %vm7419, %v7417, %v7414
          %v7421 = vadd.f32 %v7407, %v7420
          %v7422 = vperm.slane %v6007, 4
          %v7423 = vmul.f32 %v7421, %v7422
          %vm7424 = vcmask 1041408
          %v7425 = vsel %vm7424, %v7423, 0.0
          %v7426 = vrot.slane %v7425, 4
          %v7427 = vadd.f32 %v7425, %v7426
          %v7428 = vrot.slane %v7427, 2
          %v7429 = vadd.f32 %v7427, %v7428
          %v7430 = vrot.slane %v7429, 1
          %v7431 = vadd.f32 %v7429, %v7430
          %7432 = vst [vmem:[%s831] sm:$0x1] %v7431
        $region108: #{forward.1} parent=79 // pred_fallthru
          _
        %p7433 = scmp.lt.s32.totalorder %s35, 0
        %s7434 = scalar_select %p7433, %s35, 0
        %s7435 = scalar_lea.vmem %s16, %s7434
        // Predicated region
        $region109: #{forward.1} parent=79 // pred_check
          %p7436 = pneg %p431
        $region110: #{forward.1} parent=79 // pred_check_branch
          %7438 = sbr.rel (%p7436) target = $region112
        $region111: #{forward.1} parent=79 // pred_region
          %7440 = vsyncadd [#allocation6], 0
          %s7441 = smul.addr %s35, 2
          %s7442 = scalar_lea.hbm %s15, %s7441
          %s7444 = sshll.u32 [#allocation12], 4
          %s7445 = int_to_ptr.vmem [resolvable:$true] %s7444
          %s7446 = sshll.u32 %s7442, 4
          %s7447 = int_to_ptr.hbm [resolvable:$true] %s7446
          %7449 = dma.vmem_to_hbm [thread:$0]  %s7445, 32, %s7447, [#allocation6]
        $region112: #{forward.1} parent=79 // pred_fallthru
          _
        // Predicated region
        $region113: #{forward.1} parent=79 // pred_check
          %p7450 = pneg %p457
        $region114: #{forward.1} parent=79 // pred_check_branch
          %7452 = sbr.rel (%p7450) target = $region116
        $region115: #{forward.1} parent=79 // pred_region
          _
        $region116: #{forward.1} parent=79 // pred_fallthru
          _
        // Predicated region
        $region117: #{forward.1} parent=79 // pred_check
          %p7453 = pneg %p431
        $region118: #{forward.1} parent=79 // pred_check_branch
          %7455 = sbr.rel (%p7453) target = $region120
        $region119: #{forward.1} parent=79 // pred_region
          %7457 = dma.done [#allocation6], 32
        $region120: #{forward.1} parent=79 // pred_fallthru
          _
        // Predicated region
        $region121: #{forward.1} parent=79 // pred_check
          %p7458 = pneg %p457
        $region122: #{forward.1} parent=79 // pred_check_branch
          %7460 = sbr.rel (%p7458) target = $region124
        $region123: #{forward.1} parent=79 // pred_region
          %p7461 = scmp.lt.s32.totalorder %s35, 0
          %s7462 = scalar_select %p7461, %s35, 0
          %s7463 = scalar_lea.vmem %s16, %s7462
        $region124: #{forward.1} parent=79 // pred_fallthru
          _
      $region80: #{forward.1} parent=5 // pred_fallthru
        _
      %p7464 = scmp.le.s32.totalorder 2, %s26
      // Predicated region
      $region125: #{forward.1} parent=5 // pred_check
        %p7465 = pneg %p7464
      $region126: #{forward.1} parent=5 // pred_check_branch
        %7467 = sbr.rel (%p7465) target = $region128
      $region127: #{forward.1} parent=5 // pred_region
        %s7468 = ssub.s32 %s26, 2
      $region128: #{forward.1} parent=5 // pred_fallthru
        _
    $region6: #{forward.1} parent=1 // loop_footer
      %s30 = sadd.s32 1, %s26
    $region7: #{forward.1} parent=1 // loop_footer_branch
      %25 = sbr.rel target = $region3
    $region8: #{forward.1} parent=1 // loop_exit
      _
    %7469 = vsyncpa [#allocation5], 1
    %s7470 = scalar_lea.sflag [#allocation5], 1
    %7471 = vsyncpa %s7470, 1
    %7472 = vsyncpa [#allocation8], 1
    %7473 = vsyncpa [#allocation6], 1
    %s7474 = scalar_lea.sflag [#allocation6], 1
    %7475 = vsyncpa %s7474, 1

</llo_original>
